<compile_context>
chip_gen: v7x
topology: tpu7x:2x2x1
jax: 0.10.0
libtpu: 0.0.40
codegen_flags: <defaults>
</compile_context>

<pallas_src>
import functools
import math

import jax
import jax.numpy as jnp
from jax.experimental import pallas as pl
from jax.experimental.pallas import tpu as pltpu

LN_EPS = 1e-5


# ------------------------------- utilities ---------------------------------

@functools.lru_cache(maxsize=1)
def _tpu_cfg():
    """Generation-aware VMEM limit and tile caps."""
    vmem_phys = 64 * 1024 * 1024          # conservative fallback (v7x-class)
    try:
        info_fn = getattr(pltpu, "get_tpu_info", None)
        if info_fn is not None:
            vmem_phys = int(info_fn().vmem_capacity_bytes)
    except Exception:
        pass
    if vmem_phys <= 64 * 1024 * 1024:      # v7x: 64 MiB VMEM, 2 TCs
        return dict(vmem_limit=44 * 1024 * 1024,
                    m_cap=256, ff_cap=512, q_cap=256, k_cap=512)
    # v5e / v6e: 128 MiB physical VMEM -> bigger tiles, higher scoped limit
    return dict(vmem_limit=96 * 1024 * 1024,
                m_cap=512, ff_cap=1024, q_cap=512, k_cap=1024)


def _cparams(*sem):
    return pltpu.CompilerParams(
        dimension_semantics=sem,
        vmem_limit_bytes=_tpu_cfg()["vmem_limit"],
    )


def _pick_tile(n, cap, align, prefer_split=False):
    """Largest tile <= cap that divides n and is a multiple of `align`,
    or n itself (full block) if n <= cap or no aligned divisor exists.
    With prefer_split, halve an easily-splittable full block so 'parallel'
    grid axes get >= 2 steps (megacore utilisation on 2-TC chips)."""
    if n <= cap:
        if prefer_split and n % 2 == 0 and (n // 2) % align == 0:
            return n // 2
        return n
    t = (cap // align) * align
    while t >= align:
        if n % t == 0:
            return t
        t -= align
    return n


def _cast(x, dt):
    return x if dt is None else x.astype(dt)


def _layernorm(z, g, b, eps):
    # biased variance, matching PyTorch LayerNorm; stats always fp32
    mu = jnp.mean(z, axis=-1, keepdims=True)
    var = jnp.mean((z - mu) ** 2, axis=-1, keepdims=True)
    return (z - mu) * jax.lax.rsqrt(var + eps) * g + b


# ------------------------------ Pallas kernels ------------------------------

def _qkv_proj_kernel(*refs, has_pos, mxu_dtype):
    """Self-attn projections: q = (x+pos)@Wq'+bq', kv = [ (x+pos)@Wk+bk | x@Wv+bv ].
    Wq'/bq' have 1/sqrt(dh) pre-folded."""
    if has_pos:
        (x_ref, pos_ref, wq_ref, bq_ref, wk_ref, bk_ref, wv_ref, bv_ref,
         q_out, kv_out) = refs
    else:
        (x_ref, wq_ref, bq_ref, wk_ref, bk_ref, wv_ref, bv_ref,
         q_out, kv_out) = refs
    x = x_ref[...]
    xp = (x + pos_ref[...]) if has_pos else x
    xpc = _cast(xp, mxu_dtype)
    q = jnp.dot(xpc, wq_ref[...], preferred_element_type=jnp.float32) + bq_ref[...]
    k = jnp.dot(xpc, wk_ref[...], preferred_element_type=jnp.float32) + bk_ref[...]
    v = jnp.dot(_cast(x, mxu_dtype), wv_ref[...],
                preferred_element_type=jnp.float32) + bv_ref[...]
    q_out[...] = q.astype(q_out.dtype)
    kv_out[...] = jnp.concatenate([k, v], axis=-1).astype(kv_out.dtype)


def _q_proj_kernel(*refs, has_pos, mxu_dtype):
    """Cross-attn query projection: q = (x+pos)@Wq'+bq' (scale pre-folded)."""
    if has_pos:
        x_ref, pos_ref, wq_ref, bq_ref, o_ref = refs
        xp = x_ref[...] + pos_ref[...]
    else:
        x_ref, wq_ref, bq_ref, o_ref = refs
        xp = x_ref[...]
    q = jnp.dot(_cast(xp, mxu_dtype), wq_ref[...],
                preferred_element_type=jnp.float32) + bq_ref[...]
    o_ref[...] = q.astype(o_ref.dtype)


def _kv_proj_kernel(*refs, has_pos, mxu_dtype):
    """Cross-attn key/value projections: kv = [ (x+pos)@Wk+bk | x@Wv+bv ]."""
    if has_pos:
        x_ref, pos_ref, wk_ref, bk_ref, wv_ref, bv_ref, o_ref = refs
    else:
        x_ref, wk_ref, bk_ref, wv_ref, bv_ref, o_ref = refs
    x = x_ref[...]
    xp = (x + pos_ref[...]) if has_pos else x
    k = jnp.dot(_cast(xp, mxu_dtype), wk_ref[...],
                preferred_element_type=jnp.float32) + bk_ref[...]
    v = jnp.dot(_cast(x, mxu_dtype), wv_ref[...],
                preferred_element_type=jnp.float32) + bv_ref[...]
    o_ref[...] = jnp.concatenate([k, v], axis=-1).astype(o_ref.dtype)


def _attn_core_kernel(q_ref, kv_ref, res_ref, wo_ref, bo_ref, g_ref, b_ref,
                      o_ref, m_scr, l_scr, acc_scr,
                      *, nhead, dh, eps, mxu_dtype, exact_softmax):
    """Flash-style multi-head attention fused with out-proj + residual + LN.
    Grid: (B, Lq tiles, Lk tiles); Lk axis 'arbitrary' (last).
      q_ref:  (1, tq, D)  (already scaled by 1/sqrt(dh) via Wq prep)
      kv_ref: (1, tk, 2D) lanes [K|V]
      res_ref:(1, tq, D)  residual rows (fp32)
      scratch: m/l (nhead, tq, 1), acc (nhead, tq, dh) — online softmax state."""
    kj = pl.program_id(2)
    d = nhead * dh

    @pl.when(kj == 0)
    def _():
        m_scr[...] = jnp.full(m_scr.shape, -1e30, dtype=jnp.float32)
        l_scr[...] = jnp.zeros_like(l_scr)
        acc_scr[...] = jnp.zeros_like(acc_scr)

    for h in range(nhead):
        lo, hi = h * dh, (h + 1) * dh
        qh = _cast(q_ref[0, :, lo:hi], mxu_dtype)             # (tq, dh)
        kh = _cast(kv_ref[0, :, lo:hi], mxu_dtype)            # (tk, dh)
        vh = _cast(kv_ref[0, :, d + lo:d + hi], mxu_dtype)    # (tk, dh)
        s = jnp.dot(qh, kh.T, preferred_element_type=jnp.float32)   # (tq, tk)
        m_prev = m_scr[h]                                      # (tq, 1)
        m_new = jnp.maximum(m_prev, jnp.max(s, axis=-1, keepdims=True))
        alpha = jnp.exp(m_prev - m_new)
        p = jnp.exp(s - m_new)
        l_scr[h] = alpha * l_scr[h] + jnp.sum(p, axis=-1, keepdims=True)
        acc_scr[h] = alpha * acc_scr[h] + jnp.dot(
            _cast(p, mxu_dtype), vh, preferred_element_type=jnp.float32)
        m_scr[h] = m_new

    @pl.when(kj == pl.num_programs(2) - 1)
    def _():
        tq = q_ref.shape[1]
        y = jnp.zeros((tq, d), jnp.float32)
        for h in range(nhead):
            lo, hi = h * dh, (h + 1) * dh
            if exact_softmax:
                inv_l = 1.0 / l_scr[h]
            else:
                inv_l = pl.reciprocal(l_scr[h], approx=True)   # EUP slot
            oh = acc_scr[h] * inv_l                            # (tq, dh) fp32
            # per-head contribution to the output projection (lane-dense acc)
            y = y + jnp.dot(_cast(oh, mxu_dtype), wo_ref[lo:hi, :],
                            preferred_element_type=jnp.float32)
        z = res_ref[0].astype(jnp.float32) + y + bo_ref[...]
        o_ref[0] = _layernorm(z, g_ref[...], b_ref[...], eps).astype(o_ref.dtype)


def _ffn_kernel(x_ref, w1_ref, b1_ref, w2_ref, b2_ref, g_ref, beta_ref, o_ref,
                acc_ref, *, eps, mxu_dtype):
    """Fused FFN: relu(x@w1+b1)@w2, tiled over FF (grid axis 1, 'arbitrary'),
    accumulated in VMEM; residual + LayerNorm applied on the last FF tile."""
    j = pl.program_id(1)

    @pl.when(j == 0)
    def _():
        acc_ref[...] = jnp.zeros_like(acc_ref)

    x = x_ref[...]
    h = jnp.dot(_cast(x, mxu_dtype), w1_ref[...],
                preferred_element_type=jnp.float32) + b1_ref[...]
    h = jnp.maximum(h, 0.0)                            # relu, fp32 on VPU
    acc_ref[...] += jnp.dot(_cast(h, mxu_dtype), w2_ref[...],
                            preferred_element_type=jnp.float32)

    @pl.when(j == pl.num_programs(1) - 1)
    def _():
        z = x.astype(jnp.float32) + acc_ref[...] + b2_ref[...]
        o_ref[...] = _layernorm(z, g_ref[...], beta_ref[...], eps).astype(o_ref.dtype)


# ------------------------------ call wrappers -------------------------------

def qkv_projection(x2d, pos2d, p, mxu_dtype=None):
    M, D = x2d.shape
    cfg = _tpu_cfg()
    align = 16 if mxu_dtype is not None else 8
    tm = _pick_tile(M, cfg["m_cap"], align, prefer_split=True)
    assert M % tm == 0
    has_pos = pos2d is not None
    out_dt = mxu_dtype if mxu_dtype is not None else x2d.dtype
    row = pl.BlockSpec((tm, D), lambda i: (i, 0))
    wsp = pl.BlockSpec((D, D), lambda i: (0, 0))
    vsp = pl.BlockSpec((1, D), lambda i: (0, 0))
    in_specs = [row] + ([row] if has_pos else []) + [wsp, vsp, wsp, vsp, wsp, vsp]
    args = [x2d] + ([pos2d] if has_pos else []) + [
        p["wq"], p["bq"], p["wk"], p["bk"], p["wv"], p["bv"]]
    return pl.pallas_call(
        functools.partial(_qkv_proj_kernel, has_pos=has_pos, mxu_dtype=mxu_dtype),
        out_shape=(jax.ShapeDtypeStruct((M, D), out_dt),
                   jax.ShapeDtypeStruct((M, 2 * D), out_dt)),
        grid=(M // tm,),
        in_specs=in_specs,
        out_specs=(pl.BlockSpec((tm, D), lambda i: (i, 0)),
                   pl.BlockSpec((tm, 2 * D), lambda i: (i, 0))),
        compiler_params=_cparams("parallel"),
    )(*args)


def q_projection(x2d, pos2d, p, mxu_dtype=None):
    M, D = x2d.shape
    cfg = _tpu_cfg()
    align = 16 if mxu_dtype is not None else 8
    tm = _pick_tile(M, cfg["m_cap"], align, prefer_split=True)
    assert M % tm == 0
    has_pos = pos2d is not None
    out_dt = mxu_dtype if mxu_dtype is not None else x2d.dtype
    row = pl.BlockSpec((tm, D), lambda i: (i, 0))
    in_specs = [row] + ([row] if has_pos else []) + [
        pl.BlockSpec((D, D), lambda i: (0, 0)),
        pl.BlockSpec((1, D), lambda i: (0, 0)),
    ]
    args = [x2d] + ([pos2d] if has_pos else []) + [p["wq"], p["bq"]]
    return pl.pallas_call(
        functools.partial(_q_proj_kernel, has_pos=has_pos, mxu_dtype=mxu_dtype),
        out_shape=jax.ShapeDtypeStruct((M, D), out_dt),
        grid=(M // tm,),
        in_specs=in_specs,
        out_specs=pl.BlockSpec((tm, D), lambda i: (i, 0)),
        compiler_params=_cparams("parallel"),
    )(*args)


def kv_projection(x2d, pos2d, p, mxu_dtype=None):
    M, D = x2d.shape
    cfg = _tpu_cfg()
    align = 16 if mxu_dtype is not None else 8
    tm = _pick_tile(M, cfg["m_cap"], align, prefer_split=True)
    assert M % tm == 0
    has_pos = pos2d is not None
    out_dt = mxu_dtype if mxu_dtype is not None else x2d.dtype
    row = pl.BlockSpec((tm, D), lambda i: (i, 0))
    wsp = pl.BlockSpec((D, D), lambda i: (0, 0))
    vsp = pl.BlockSpec((1, D), lambda i: (0, 0))
    in_specs = [row] + ([row] if has_pos else []) + [wsp, vsp, wsp, vsp]
    args = [x2d] + ([pos2d] if has_pos else []) + [
        p["wk"], p["bk"], p["wv"], p["bv"]]
    return pl.pallas_call(
        functools.partial(_kv_proj_kernel, has_pos=has_pos, mxu_dtype=mxu_dtype),
        out_shape=jax.ShapeDtypeStruct((M, 2 * D), out_dt),
        grid=(M // tm,),
        in_specs=in_specs,
        out_specs=pl.BlockSpec((tm, 2 * D), lambda i: (i, 0)),
        compiler_params=_cparams("parallel"),
    )(*args)


def attention_block(q_bld, kv_bld, res_bld, p, gamma, beta, nhead,
                    mxu_dtype=None, eps=LN_EPS, exact_softmax=False):
    """Fused flash attention + out-proj + residual + LayerNorm.
    q_bld: (B, Lq, D); kv_bld: (B, Lk, 2D) lanes [K|V]; res_bld: (B, Lq, D)."""
    B, Lq, D = q_bld.shape
    _, Lk, twoD = kv_bld.shape
    dh = D // nhead
    cfg = _tpu_cfg()
    align = 16 if mxu_dtype is not None else 8
    tq = _pick_tile(Lq, cfg["q_cap"], align)
    tk = _pick_tile(Lk, cfg["k_cap"], align)
    assert Lq % tq == 0 and Lk % tk == 0
    grid = (B, Lq // tq, Lk // tk)
    return pl.pallas_call(
        functools.partial(_attn_core_kernel, nhead=nhead, dh=dh, eps=eps,
                          mxu_dtype=mxu_dtype, exact_softmax=exact_softmax),
        out_shape=jax.ShapeDtypeStruct((B, Lq, D), res_bld.dtype),
        grid=grid,
        in_specs=[
            pl.BlockSpec((1, tq, D), lambda b, qi, kj: (b, qi, 0)),     # q
            pl.BlockSpec((1, tk, twoD), lambda b, qi, kj: (b, kj, 0)),  # kv
            pl.BlockSpec((1, tq, D), lambda b, qi, kj: (b, qi, 0)),     # residual
            pl.BlockSpec((D, D), lambda b, qi, kj: (0, 0)),             # Wo
            pl.BlockSpec((1, D), lambda b, qi, kj: (0, 0)),             # bo
            pl.BlockSpec((1, D), lambda b, qi, kj: (0, 0)),             # gamma
            pl.BlockSpec((1, D), lambda b, qi, kj: (0, 0)),             # beta
        ],
        out_specs=pl.BlockSpec((1, tq, D), lambda b, qi, kj: (b, qi, 0)),
        scratch_shapes=[
            pltpu.VMEM((nhead, tq, 1), jnp.float32),    # running max m
            pltpu.VMEM((nhead, tq, 1), jnp.float32),    # running sum l
            pltpu.VMEM((nhead, tq, dh), jnp.float32),   # running acc (p@v)
        ],
        compiler_params=_cparams("parallel", "parallel", "arbitrary"),
    )(q_bld, kv_bld, res_bld, p["wo"], p["bo"], gamma, beta)


def ffn_residual_layernorm(x2d, w1, b1, w2, b2, gamma, beta,
                           mxu_dtype=None, eps=LN_EPS):
    M, D = x2d.shape
    FF = w1.shape[1]
    cfg = _tpu_cfg()
    tm = _pick_tile(M, cfg["m_cap"], 8, prefer_split=True)
    tf = _pick_tile(FF, cfg["ff_cap"], 128)
    assert M % tm == 0 and FF % tf == 0
    return pl.pallas_call(
        functools.partial(_ffn_kernel, eps=eps, mxu_dtype=mxu_dtype),
        out_shape=jax.ShapeDtypeStruct((M, D), x2d.dtype),
        grid=(M // tm, FF // tf),
        in_specs=[
            pl.BlockSpec((tm, D), lambda i, j: (i, 0)),
            pl.BlockSpec((D, tf), lambda i, j: (0, j)),
            pl.BlockSpec((1, tf), lambda i, j: (0, j)),
            pl.BlockSpec((tf, D), lambda i, j: (j, 0)),
            pl.BlockSpec((1, D), lambda i, j: (0, 0)),
            pl.BlockSpec((1, D), lambda i, j: (0, 0)),
            pl.BlockSpec((1, D), lambda i, j: (0, 0)),
        ],
        out_specs=pl.BlockSpec((tm, D), lambda i, j: (i, 0)),
        scratch_shapes=[pltpu.VMEM((tm, D), jnp.float32)],
        compiler_params=_cparams("parallel", "arbitrary"),
    )(x2d, w1, b1, w2, b2, gamma, beta)


# ---------------------------- parameter prep --------------------------------

def prepare_params(params, nhead, mxu_dtype=None):
    """One-time prep: fold 1/sqrt(dh) into Wq/bq, cast MXU weights (bf16 by
    default in production), reshape biases / LN params to (1, N).  Biases and
    LayerNorm params stay fp32 (added/applied after fp32 accumulation)."""
    wd = (lambda w: w) if mxu_dtype is None else (lambda w: w.astype(mxu_dtype))
    D = params["w1"].shape[0]
    dh = D // nhead
    scale = 1.0 / math.sqrt(dh)

    def attn(p):
        return dict(
            wq=wd(p["wq"] * scale), bq=(p["bq"] * scale).reshape(1, -1),
            wk=wd(p["wk"]), bk=p["bk"].reshape(1, -1),
            wv=wd(p["wv"]), bv=p["bv"].reshape(1, -1),
            wo=wd(p["wo"]), bo=p["bo"].reshape(1, -1),
        )

    row = lambda v: v.reshape(1, -1)
    return dict(
        self_attn=attn(params["self_attn"]),
        cross_attn=attn(params["cross_attn"]),
        w1=wd(params["w1"]), b1=row(params["b1"]),
        w2=wd(params["w2"]), b2=row(params["b2"]),
        norm1_g=row(params["norm1_g"]), norm1_b=row(params["norm1_b"]),
        norm2_g=row(params["norm2_g"]), norm2_b=row(params["norm2_b"]),
        norm3_g=row(params["norm3_g"]), norm3_b=row(params["norm3_b"]),
    )


# ----------------------------- decoder forward ------------------------------

def decoder_layer_forward(tgt, memory, prep, nhead, pos=None, query_pos=None,
                          mxu_dtype=None):
    """forward_post of TransformerDecoderLayer (normalize_before=False).
    tgt: (Lt, B, D), memory: (Lm, B, D) -> (Lt, B, D)."""
    Lt, B, D = tgt.shape
    Lm = memory.shape[0]

    # Batch-first internally: one transpose per input/output, zero transposes
    # between kernels; attention output stays lane-dense over the full D.
    tgt_b = jnp.transpose(tgt, (1, 0, 2))           # (B, Lt, D)
    mem2d = jnp.transpose(memory, (1, 0, 2)).reshape(B * Lm, D)
    qp2d = (None if query_pos is None
            else jnp.transpose(query_pos, (1, 0, 2)).reshape(B * Lt, D))
    pos2d = (None if pos is None
             else jnp.transpose(pos, (1, 0, 2)).reshape(B * Lm, D))
    tgt2d = tgt_b.reshape(B * Lt, D)

    # --- self-attention block: QKV proj + fused attn/out-proj/residual/LN ---
    ps = prep["self_attn"]
    q, kv = qkv_projection(tgt2d, qp2d, ps, mxu_dtype=mxu_dtype)
    tgt_b = attention_block(q.reshape(B, Lt, D), kv.reshape(B, Lt, 2 * D),
                            tgt_b, ps, prep["norm1_g"], prep["norm1_b"],
                            nhead, mxu_dtype=mxu_dtype)
    tgt2d = tgt_b.reshape(B * Lt, D)

    # --- cross-attention block ---
    pc = prep["cross_attn"]
    q = q_projection(tgt2d, qp2d, pc, mxu_dtype=mxu_dtype)
    kv = kv_projection(mem2d, pos2d, pc, mxu_dtype=mxu_dtype)
    tgt_b = attention_block(q.reshape(B, Lt, D), kv.reshape(B, Lm, 2 * D),
                            tgt_b, pc, prep["norm2_g"], prep["norm2_b"],
                            nhead, mxu_dtype=mxu_dtype)
    tgt2d = tgt_b.reshape(B * Lt, D)

    # --- feed-forward block (FF-tiled, VMEM-accumulated) ---
    tgt2d = ffn_residual_layernorm(tgt2d, prep["w1"], prep["b1"],
                                   prep["w2"], prep["b2"],
                                   prep["norm3_g"], prep["norm3_b"],
                                   mxu_dtype=mxu_dtype)

    return jnp.transpose(tgt2d.reshape(B, Lt, D), (1, 0, 2))


# ------------------------------ reference (jnp) -----------------------------

def _ref_mha(query, key, value, p, nhead):
    Lq, B, D = query.shape
    Lk = key.shape[0]
    Dh = D // nhead
    scale = 1.0 / math.sqrt(Dh)
    q = query.reshape(Lq * B, D) @ p["wq"] + p["bq"]
    k = key.reshape(Lk * B, D) @ p["wk"] + p["bk"]
    v = value.reshape(Lk * B, D) @ p["wv"] + p["bv"]
    q = q.reshape(Lq, B * nhead, Dh).transpose(1, 0, 2)
    k = k.reshape(Lk, B * nhead, Dh).transpose(1, 0, 2)
    v = v.reshape(Lk, B * nhead, Dh).transpose(1, 0, 2)
    s = jnp.einsum("bqd,bkd->bqk", q, k) * scale
    p_attn = jax.nn.softmax(s, axis=-1)
    o = jnp.einsum("bqk,bkd->bqd", p_attn, v)
    o = o.transpose(1, 0, 2).reshape(Lq * B, D) @ p["wo"] + p["bo"]
    return o.reshape(Lq, B, D)


def _ref_ln(x, g, b, eps=LN_EPS):
    mu = jnp.mean(x, axis=-1, keepdims=True)
    var = jnp.mean((x - mu) ** 2, axis=-1, keepdims=True)
    return (x - mu) * jax.lax.rsqrt(var + eps) * g + b


def ref_forward(tgt, memory, params, nhead, pos, query_pos):
    qk = tgt + query_pos
    tgt2 = _ref_mha(qk, qk, tgt, params["self_attn"], nhead)
    tgt = _ref_ln(tgt + tgt2, params["norm1_g"], params["norm1_b"])
    q = tgt + query_pos
    k = memory + pos
    tgt2 = _ref_mha(q, k, memory, params["cross_attn"], nhead)
    tgt = _ref_ln(tgt + tgt2, params["norm2_g"], params["norm2_b"])
    h = jnp.maximum(tgt @ params["w1"] + params["b1"], 0.0)
    ff = h @ params["w2"] + params["b2"]
    return _ref_ln(tgt + ff, params["norm3_g"], params["norm3_b"])


# --------------------------------- params ----------------------------------

def init_params(key, d_model, dff):
    ks = iter(jax.random.split(key, 32))

    def w(shape, scale=0.02):
        return jax.random.normal(next(ks), shape, jnp.float32) * scale

    def attn():
        return dict(
            wq=w((d_model, d_model)), bq=w((d_model,)),
            wk=w((d_model, d_model)), bk=w((d_model,)),
            wv=w((d_model, d_model)), bv=w((d_model,)),
            wo=w((d_model, d_model)), bo=w((d_model,)),
        )

    return dict(
        self_attn=attn(),
        cross_attn=attn(),
        w1=w((d_model, dff)), b1=w((dff,)),
        w2=w((dff, d_model)), b2=w((d_model,)),
        norm1_g=1.0 + w((d_model,)), norm1_b=w((d_model,)),
        norm2_g=1.0 + w((d_model,)), norm2_b=w((d_model,)),
        norm3_g=1.0 + w((d_model,)), norm3_b=w((d_model,)),
    )


# ---------------------------------- main ------------------------------------

if __name__ == "__main__":
    B, Lt, Lm, D, H, FF = 2, 8, 12, 32, 4, 64

    key = jax.random.PRNGKey(0)
    k_tgt, k_mem, k_qp, k_pos, k_par = jax.random.split(key, 5)

    tgt = jax.random.normal(k_tgt, (Lt, B, D), jnp.float32)        # (L, B, D)
    memory = jax.random.normal(k_mem, (Lm, B, D), jnp.float32)
    query_pos = jax.random.normal(k_qp, (Lt, B, D), jnp.float32)
    pos = jax.random.normal(k_pos, (Lm, B, D), jnp.float32)

    params = init_params(k_par, D, FF)

    # One-time parameter prep (scale folding, bias reshape, optional bf16 cast).
    prep_f32 = prepare_params(params, H, mxu_dtype=None)
    prep_bf16 = prepare_params(params, H, mxu_dtype=jnp.bfloat16)

    fwd_f32 = jax.jit(lambda t, m, pp, ps, qp: decoder_layer_forward(
        t, m, pp, H, pos=ps, query_pos=qp, mxu_dtype=None))
    fwd_bf16 = jax.jit(lambda t, m, pp, ps, qp: decoder_layer_forward(
        t, m, pp, H, pos=ps, query_pos=qp, mxu_dtype=jnp.bfloat16))

    out = jax.block_until_ready(fwd_f32(tgt, memory, prep_f32, pos, query_pos))
    ref = ref_forward(tgt, memory, params, H, pos, query_pos)
    assert out.shape == (Lt, B, D)
    assert jnp.allclose(out, ref, atol=5e-3, rtol=5e-3), (
        float(jnp.max(jnp.abs(out - ref))))

    # Production path: bf16 MXU operands / fp32 accumulation (looser tolerance).
    out_bf = jax.block_until_ready(fwd_bf16(tgt, memory, prep_bf16, pos, query_pos))
    assert jnp.allclose(out_bf, ref, atol=1e-1, rtol=1e-1), (
        float(jnp.max(jnp.abs(out_bf - ref))))

    print("KERNEL_OK")
</pallas_src>

<mosaic_0001>
module attributes {stable_mosaic.version = 11 : i64} {
  func.func @_qkv_proj_kernel(%arg0: i32, %arg1: memref<8x32xf32, #tpu.memory_space<vmem>>, %arg2: memref<8x32xf32, #tpu.memory_space<vmem>>, %arg3: memref<32x32xf32, #tpu.memory_space<vmem>>, %arg4: memref<1x32xf32, #tpu.memory_space<vmem>>, %arg5: memref<32x32xf32, #tpu.memory_space<vmem>>, %arg6: memref<1x32xf32, #tpu.memory_space<vmem>>, %arg7: memref<32x32xf32, #tpu.memory_space<vmem>>, %arg8: memref<1x32xf32, #tpu.memory_space<vmem>>, %arg9: memref<8x32xf32, #tpu.memory_space<vmem>>, %arg10: memref<8x64xf32, #tpu.memory_space<vmem>>) attributes {dimension_semantics = [#tpu.dimension_semantics<parallel>], iteration_bounds = array<i64: 2>, scalar_prefetch = 0 : i64, scratch_operands = 0 : i64, tpu.core_type = #tpu.core_type<tc>, window_params = [{transform_indices = @transform_0, window_bounds = array<i64: 8, 32>}, {transform_indices = @transform_1, window_bounds = array<i64: 8, 32>}, {pipeline_mode = #tpu.pipeline_mode<synchronous>, transform_indices = @transform_2, window_bounds = array<i64: 32, 32>}, {pipeline_mode = #tpu.pipeline_mode<synchronous>, transform_indices = @transform_3, window_bounds = array<i64: 1, 32>}, {pipeline_mode = #tpu.pipeline_mode<synchronous>, transform_indices = @transform_4, window_bounds = array<i64: 32, 32>}, {pipeline_mode = #tpu.pipeline_mode<synchronous>, transform_indices = @transform_5, window_bounds = array<i64: 1, 32>}, {pipeline_mode = #tpu.pipeline_mode<synchronous>, transform_indices = @transform_6, window_bounds = array<i64: 32, 32>}, {pipeline_mode = #tpu.pipeline_mode<synchronous>, transform_indices = @transform_7, window_bounds = array<i64: 1, 32>}, {transform_indices = @transform_8, window_bounds = array<i64: 8, 32>}, {transform_indices = @transform_9, window_bounds = array<i64: 8, 64>}]} {
    %c0 = arith.constant 0 : index
    %c0_0 = arith.constant 0 : index
    %0 = vector.load %arg1[%c0, %c0_0] : memref<8x32xf32, #tpu.memory_space<vmem>>, vector<8x32xf32>
    %c0_1 = arith.constant 0 : index
    %c0_2 = arith.constant 0 : index
    %1 = vector.load %arg2[%c0_1, %c0_2] : memref<8x32xf32, #tpu.memory_space<vmem>>, vector<8x32xf32>
    %2 = arith.addf %0, %1 : vector<8x32xf32>
    %c0_3 = arith.constant 0 : index
    %c0_4 = arith.constant 0 : index
    %3 = vector.load %arg3[%c0_3, %c0_4] : memref<32x32xf32, #tpu.memory_space<vmem>>, vector<32x32xf32>
    %cst = arith.constant dense<0.000000e+00> : vector<8x32xf32>
    %4 = tpu.matmul %2, %3, %cst {dimension_numbers = #tpu.dot_dimension_numbers<[1], [0], [0], [1], [0, 0, 1, 1], [], []>} : vector<8x32xf32>, vector<32x32xf32>, vector<8x32xf32> -> vector<8x32xf32>
    %c0_5 = arith.constant 0 : index
    %c0_6 = arith.constant 0 : index
    %5 = vector.load %arg4[%c0_5, %c0_6] : memref<1x32xf32, #tpu.memory_space<vmem>>, vector<1x32xf32>
    %6 = vector.broadcast %5 : vector<1x32xf32> to vector<8x32xf32>
    %7 = arith.addf %4, %6 : vector<8x32xf32>
    %c0_7 = arith.constant 0 : index
    %c0_8 = arith.constant 0 : index
    %8 = vector.load %arg5[%c0_7, %c0_8] : memref<32x32xf32, #tpu.memory_space<vmem>>, vector<32x32xf32>
    %cst_9 = arith.constant dense<0.000000e+00> : vector<8x32xf32>
    %9 = tpu.matmul %2, %8, %cst_9 {dimension_numbers = #tpu.dot_dimension_numbers<[1], [0], [0], [1], [0, 0, 1, 1], [], []>} : vector<8x32xf32>, vector<32x32xf32>, vector<8x32xf32> -> vector<8x32xf32>
    %c0_10 = arith.constant 0 : index
    %c0_11 = arith.constant 0 : index
    %10 = vector.load %arg6[%c0_10, %c0_11] : memref<1x32xf32, #tpu.memory_space<vmem>>, vector<1x32xf32>
    %11 = vector.broadcast %10 : vector<1x32xf32> to vector<8x32xf32>
    %12 = arith.addf %9, %11 : vector<8x32xf32>
    %c0_12 = arith.constant 0 : index
    %c0_13 = arith.constant 0 : index
    %13 = vector.load %arg7[%c0_12, %c0_13] : memref<32x32xf32, #tpu.memory_space<vmem>>, vector<32x32xf32>
    %cst_14 = arith.constant dense<0.000000e+00> : vector<8x32xf32>
    %14 = tpu.matmul %0, %13, %cst_14 {dimension_numbers = #tpu.dot_dimension_numbers<[1], [0], [0], [1], [0, 0, 1, 1], [], []>} : vector<8x32xf32>, vector<32x32xf32>, vector<8x32xf32> -> vector<8x32xf32>
    %c0_15 = arith.constant 0 : index
    %c0_16 = arith.constant 0 : index
    %15 = vector.load %arg8[%c0_15, %c0_16] : memref<1x32xf32, #tpu.memory_space<vmem>>, vector<1x32xf32>
    %16 = vector.broadcast %15 : vector<1x32xf32> to vector<8x32xf32>
    %17 = arith.addf %14, %16 : vector<8x32xf32>
    %c0_17 = arith.constant 0 : index
    %c0_18 = arith.constant 0 : index
    %18 = vector.load %arg9[%c0_17, %c0_18] : memref<8x32xf32, #tpu.memory_space<vmem>>, vector<8x32xf32>
    tpu.vector_store %arg9[%c0_17, %c0_18], %7 {strides = array<i32>} : memref<8x32xf32, #tpu.memory_space<vmem>>, vector<8x32xf32>,
    %19 = tpu.concatenate %12, %17 in 1 : vector<8x32xf32>, vector<8x32xf32> -> vector<8x64xf32>
    %c0_19 = arith.constant 0 : index
    %c0_20 = arith.constant 0 : index
    %20 = vector.load %arg10[%c0_19, %c0_20] : memref<8x64xf32, #tpu.memory_space<vmem>>, vector<8x64xf32>
    tpu.vector_store %arg10[%c0_19, %c0_20], %19 {strides = array<i32>} : memref<8x64xf32, #tpu.memory_space<vmem>>, vector<8x64xf32>,
    return
  }
  func.func @transform_0(%arg0: i32) -> (i32, i32) {
    %c0_i32 = arith.constant 0 : i32
    %c0_i32_0 = arith.constant 0 : i32
    return %arg0, %c0_i32 : i32, i32
  }
  func.func @transform_1(%arg0: i32) -> (i32, i32) {
    %c0_i32 = arith.constant 0 : i32
    %c0_i32_0 = arith.constant 0 : i32
    return %arg0, %c0_i32 : i32, i32
  }
  func.func @transform_2(%arg0: i32) -> (i32, i32) {
    %c0_i32 = arith.constant 0 : i32
    %c0_i32_0 = arith.constant 0 : i32
    %c0_i32_1 = arith.constant 0 : i32
    return %c0_i32, %c0_i32_0 : i32, i32
  }
  func.func @transform_3(%arg0: i32) -> (i32, i32) {
    %c0_i32 = arith.constant 0 : i32
    %c0_i32_0 = arith.constant 0 : i32
    %c0_i32_1 = arith.constant 0 : i32
    return %c0_i32, %c0_i32_0 : i32, i32
  }
  func.func @transform_4(%arg0: i32) -> (i32, i32) {
    %c0_i32 = arith.constant 0 : i32
    %c0_i32_0 = arith.constant 0 : i32
    %c0_i32_1 = arith.constant 0 : i32
    return %c0_i32, %c0_i32_0 : i32, i32
  }
  func.func @transform_5(%arg0: i32) -> (i32, i32) {
    %c0_i32 = arith.constant 0 : i32
    %c0_i32_0 = arith.constant 0 : i32
    %c0_i32_1 = arith.constant 0 : i32
    return %c0_i32, %c0_i32_0 : i32, i32
  }
  func.func @transform_6(%arg0: i32) -> (i32, i32) {
    %c0_i32 = arith.constant 0 : i32
    %c0_i32_0 = arith.constant 0 : i32
    %c0_i32_1 = arith.constant 0 : i32
    return %c0_i32, %c0_i32_0 : i32, i32
  }
  func.func @transform_7(%arg0: i32) -> (i32, i32) {
    %c0_i32 = arith.constant 0 : i32
    %c0_i32_0 = arith.constant 0 : i32
    %c0_i32_1 = arith.constant 0 : i32
    return %c0_i32, %c0_i32_0 : i32, i32
  }
  func.func @transform_8(%arg0: i32) -> (i32, i32) {
    %c0_i32 = arith.constant 0 : i32
    %c0_i32_0 = arith.constant 0 : i32
    return %arg0, %c0_i32 : i32, i32
  }
  func.func @transform_9(%arg0: i32) -> (i32, i32) {
    %c0_i32 = arith.constant 0 : i32
    %c0_i32_0 = arith.constant 0 : i32
    return %arg0, %c0_i32 : i32, i32
  }
}

module attributes {stable_mosaic.version = 11 : i64} {
  func.func @_attn_core_kernel(%arg0: i32, %arg1: i32, %arg2: i32, %arg3: memref<1x8x32xf32, #tpu.memory_space<vmem>>, %arg4: memref<1x8x64xf32, #tpu.memory_space<vmem>>, %arg5: memref<1x8x32xf32, #tpu.memory_space<vmem>>, %arg6: memref<32x32xf32, #tpu.memory_space<vmem>>, %arg7: memref<1x32xf32, #tpu.memory_space<vmem>>, %arg8: memref<1x32xf32, #tpu.memory_space<vmem>>, %arg9: memref<1x32xf32, #tpu.memory_space<vmem>>, %arg10: memref<1x8x32xf32, #tpu.memory_space<vmem>>, %arg11: memref<4x8x1xf32, #tpu.memory_space<vmem>>, %arg12: memref<4x8x1xf32, #tpu.memory_space<vmem>>, %arg13: memref<4x8x8xf32, #tpu.memory_space<vmem>>) attributes {dimension_semantics = [#tpu.dimension_semantics<parallel>, #tpu.dimension_semantics<parallel>, #tpu.dimension_semantics<arbitrary>], iteration_bounds = array<i64: 2, 1, 1>, scalar_prefetch = 0 : i64, scratch_operands = 3 : i64, tpu.core_type = #tpu.core_type<tc>, window_params = [{transform_indices = @transform_0, window_bounds = array<i64: 1, 8, 32>}, {transform_indices = @transform_1, window_bounds = array<i64: 1, 8, 64>}, {transform_indices = @transform_2, window_bounds = array<i64: 1, 8, 32>}, {pipeline_mode = #tpu.pipeline_mode<synchronous>, transform_indices = @transform_3, window_bounds = array<i64: 32, 32>}, {pipeline_mode = #tpu.pipeline_mode<synchronous>, transform_indices = @transform_4, window_bounds = array<i64: 1, 32>}, {pipeline_mode = #tpu.pipeline_mode<synchronous>, transform_indices = @transform_5, window_bounds = array<i64: 1, 32>}, {pipeline_mode = #tpu.pipeline_mode<synchronous>, transform_indices = @transform_6, window_bounds = array<i64: 1, 32>}, {transform_indices = @transform_7, window_bounds = array<i64: 1, 8, 32>}]} {
    %c0_i32 = arith.constant 0 : i32
    %0 = arith.cmpi eq, %arg2, %c0_i32 : i32
    %1 = arith.extui %0 : i1 to i32
    %c0_i32_0 = arith.constant 0 : i32
    %2 = arith.cmpi ne, %1, %c0_i32_0 : i32
    scf.if %2 {
      %cst_115 = arith.constant -1.000000e+30 : f32
      %162 = vector.broadcast %cst_115 : f32 to vector<4x8x1xf32>
      %c0_116 = arith.constant 0 : index
      %c0_117 = arith.constant 0 : index
      %c0_118 = arith.constant 0 : index
      %163 = vector.load %arg11[%c0_116, %c0_117, %c0_118] : memref<4x8x1xf32, #tpu.memory_space<vmem>>, vector<4x8x1xf32>
      tpu.vector_store %arg11[%c0_116, %c0_117, %c0_118], %162 {strides = array<i32>} : memref<4x8x1xf32, #tpu.memory_space<vmem>>, vector<4x8x1xf32>,
      %cst_119 = arith.constant 0.000000e+00 : f32
      %164 = vector.broadcast %cst_119 : f32 to vector<4x8x1xf32>
      %c0_120 = arith.constant 0 : index
      %c0_121 = arith.constant 0 : index
      %c0_122 = arith.constant 0 : index
      %165 = vector.load %arg12[%c0_120, %c0_121, %c0_122] : memref<4x8x1xf32, #tpu.memory_space<vmem>>, vector<4x8x1xf32>
      tpu.vector_store %arg12[%c0_120, %c0_121, %c0_122], %164 {strides = array<i32>} : memref<4x8x1xf32, #tpu.memory_space<vmem>>, vector<4x8x1xf32>,
      %cst_123 = arith.constant 0.000000e+00 : f32
      %166 = vector.broadcast %cst_123 : f32 to vector<4x8x8xf32>
      %c0_124 = arith.constant 0 : index
      %c0_125 = arith.constant 0 : index
      %c0_126 = arith.constant 0 : index
      %167 = vector.load %arg13[%c0_124, %c0_125, %c0_126] : memref<4x8x8xf32, #tpu.memory_space<vmem>>, vector<4x8x8xf32>
      tpu.vector_store %arg13[%c0_124, %c0_125, %c0_126], %166 {strides = array<i32>} : memref<4x8x8xf32, #tpu.memory_space<vmem>>, vector<4x8x8xf32>,
    } else {
    }
    %c0 = arith.constant 0 : index
    %c0_1 = arith.constant 0 : index
    %c0_2 = arith.constant 0 : index
    %3 = vector.load %arg3[%c0, %c0_1, %c0_2] : memref<1x8x32xf32, #tpu.memory_space<vmem>>, vector<1x8x8xf32>
    %4 = vector.shape_cast %3 : vector<1x8x8xf32> to vector<8x8xf32>
    %c0_3 = arith.constant 0 : index
    %c0_4 = arith.constant 0 : index
    %c0_5 = arith.constant 0 : index
    %5 = vector.load %arg4[%c0_3, %c0_4, %c0_5] : memref<1x8x64xf32, #tpu.memory_space<vmem>>, vector<1x8x8xf32>
    %6 = vector.shape_cast %5 : vector<1x8x8xf32> to vector<8x8xf32>
    %c0_6 = arith.constant 0 : index
    %c0_7 = arith.constant 0 : index
    %c32 = arith.constant 32 : index
    %7 = vector.load %arg4[%c0_6, %c0_7, %c32] : memref<1x8x64xf32, #tpu.memory_space<vmem>>, vector<1x8x8xf32>
    %8 = vector.shape_cast %7 : vector<1x8x8xf32> to vector<8x8xf32>
    %9 = tpu.transpose %6, [1, 0] : vector<8x8xf32> -> vector<8x8xf32>
    %cst = arith.constant dense<0.000000e+00> : vector<8x8xf32>
    %10 = tpu.matmul %4, %9, %cst {dimension_numbers = #tpu.dot_dimension_numbers<[1], [0], [0], [1], [0, 0, 1, 1], [], []>} : vector<8x8xf32>, vector<8x8xf32>, vector<8x8xf32> -> vector<8x8xf32>
    %c0_8 = arith.constant 0 : index
    %c0_9 = arith.constant 0 : index
    %c0_10 = arith.constant 0 : index
    %11 = vector.load %arg11[%c0_8, %c0_9, %c0_10] : memref<4x8x1xf32, #tpu.memory_space<vmem>>, vector<1x8x1xf32>
    %12 = vector.shape_cast %11 : vector<1x8x1xf32> to vector<8x1xf32>
    %cst_11 = arith.constant dense<0xFF800000> : vector<8xf32>
    %13 = vector.multi_reduction <maximumf>, %10, %cst_11 [1] : vector<8x8xf32> to vector<8xf32>
    %14 = vector.shape_cast %13 : vector<8xf32> to vector<8x1xf32>
    %15 = arith.maximumf %12, %14 : vector<8x1xf32>
    %16 = arith.subf %12, %15 : vector<8x1xf32>
    %17 = math.exp %16 : vector<8x1xf32>
    %18 = vector.broadcast %15 : vector<8x1xf32> to vector<8x8xf32>
    %19 = arith.subf %10, %18 : vector<8x8xf32>
    %20 = math.exp %19 : vector<8x8xf32>
    %c0_12 = arith.constant 0 : index
    %c0_13 = arith.constant 0 : index
    %c0_14 = arith.constant 0 : index
    %21 = vector.load %arg12[%c0_12, %c0_13, %c0_14] : memref<4x8x1xf32, #tpu.memory_space<vmem>>, vector<1x8x1xf32>
    %22 = vector.shape_cast %21 : vector<1x8x1xf32> to vector<8x1xf32>
    %23 = arith.mulf %17, %22 : vector<8x1xf32>
    %cst_15 = arith.constant dense<0.000000e+00> : vector<8xf32>
    %24 = vector.multi_reduction <add>, %20, %cst_15 [1] : vector<8x8xf32> to vector<8xf32>
    %25 = vector.shape_cast %24 : vector<8xf32> to vector<8x1xf32>
    %26 = arith.addf %23, %25 : vector<8x1xf32>
    %c0_16 = arith.constant 0 : index
    %c0_17 = arith.constant 0 : index
    %c0_18 = arith.constant 0 : index
    %27 = vector.load %arg12[%c0_16, %c0_17, %c0_18] : memref<4x8x1xf32, #tpu.memory_space<vmem>>, vector<1x8x1xf32>
    %28 = vector.shape_cast %27 : vector<1x8x1xf32> to vector<8x1xf32>
    %29 = vector.shape_cast %26 : vector<8x1xf32> to vector<1x8x1xf32>
    tpu.vector_store %arg12[%c0_16, %c0_17, %c0_18], %29 {strides = array<i32>} : memref<4x8x1xf32, #tpu.memory_space<vmem>>, vector<1x8x1xf32>,
    %c0_19 = arith.constant 0 : index
    %c0_20 = arith.constant 0 : index
    %c0_21 = arith.constant 0 : index
    %30 = vector.load %arg13[%c0_19, %c0_20, %c0_21] : memref<4x8x8xf32, #tpu.memory_space<vmem>>, vector<1x8x8xf32>
    %31 = vector.shape_cast %30 : vector<1x8x8xf32> to vector<8x8xf32>
    %32 = vector.broadcast %17 : vector<8x1xf32> to vector<8x8xf32>
    %33 = arith.mulf %32, %31 : vector<8x8xf32>
    %cst_22 = arith.constant dense<0.000000e+00> : vector<8x8xf32>
    %34 = tpu.matmul %20, %8, %cst_22 {dimension_numbers = #tpu.dot_dimension_numbers<[1], [0], [0], [1], [0, 0, 1, 1], [], []>} : vector<8x8xf32>, vector<8x8xf32>, vector<8x8xf32> -> vector<8x8xf32>
    %35 = arith.addf %33, %34 : vector<8x8xf32>
    %c0_23 = arith.constant 0 : index
    %c0_24 = arith.constant 0 : index
    %c0_25 = arith.constant 0 : index
    %36 = vector.load %arg13[%c0_23, %c0_24, %c0_25] : memref<4x8x8xf32, #tpu.memory_space<vmem>>, vector<1x8x8xf32>
    %37 = vector.shape_cast %36 : vector<1x8x8xf32> to vector<8x8xf32>
    %38 = vector.shape_cast %35 : vector<8x8xf32> to vector<1x8x8xf32>
    tpu.vector_store %arg13[%c0_23, %c0_24, %c0_25], %38 {strides = array<i32>} : memref<4x8x8xf32, #tpu.memory_space<vmem>>, vector<1x8x8xf32>,
    %c0_26 = arith.constant 0 : index
    %c0_27 = arith.constant 0 : index
    %c0_28 = arith.constant 0 : index
    %39 = vector.load %arg11[%c0_26, %c0_27, %c0_28] : memref<4x8x1xf32, #tpu.memory_space<vmem>>, vector<1x8x1xf32>
    %40 = vector.shape_cast %39 : vector<1x8x1xf32> to vector<8x1xf32>
    %41 = vector.shape_cast %15 : vector<8x1xf32> to vector<1x8x1xf32>
    tpu.vector_store %arg11[%c0_26, %c0_27, %c0_28], %41 {strides = array<i32>} : memref<4x8x1xf32, #tpu.memory_space<vmem>>, vector<1x8x1xf32>,
    %c0_29 = arith.constant 0 : index
    %c0_30 = arith.constant 0 : index
    %c8 = arith.constant 8 : index
    %42 = vector.load %arg3[%c0_29, %c0_30, %c8] : memref<1x8x32xf32, #tpu.memory_space<vmem>>, vector<1x8x8xf32>
    %43 = vector.shape_cast %42 : vector<1x8x8xf32> to vector<8x8xf32>
    %c0_31 = arith.constant 0 : index
    %c0_32 = arith.constant 0 : index
    %c8_33 = arith.constant 8 : index
    %44 = vector.load %arg4[%c0_31, %c0_32, %c8_33] : memref<1x8x64xf32, #tpu.memory_space<vmem>>, vector<1x8x8xf32>
    %45 = vector.shape_cast %44 : vector<1x8x8xf32> to vector<8x8xf32>
    %c0_34 = arith.constant 0 : index
    %c0_35 = arith.constant 0 : index
    %c40 = arith.constant 40 : index
    %46 = vector.load %arg4[%c0_34, %c0_35, %c40] : memref<1x8x64xf32, #tpu.memory_space<vmem>>, vector<1x8x8xf32>
    %47 = vector.shape_cast %46 : vector<1x8x8xf32> to vector<8x8xf32>
    %48 = tpu.transpose %45, [1, 0] : vector<8x8xf32> -> vector<8x8xf32>
    %cst_36 = arith.constant dense<0.000000e+00> : vector<8x8xf32>
    %49 = tpu.matmul %43, %48, %cst_36 {dimension_numbers = #tpu.dot_dimension_numbers<[1], [0], [0], [1], [0, 0, 1, 1], [], []>} : vector<8x8xf32>, vector<8x8xf32>, vector<8x8xf32> -> vector<8x8xf32>
    %c1 = arith.constant 1 : index
    %c0_37 = arith.constant 0 : index
    %c0_38 = arith.constant 0 : index
    %50 = vector.load %arg11[%c1, %c0_37, %c0_38] : memref<4x8x1xf32, #tpu.memory_space<vmem>>, vector<1x8x1xf32>
    %51 = vector.shape_cast %50 : vector<1x8x1xf32> to vector<8x1xf32>
    %cst_39 = arith.constant dense<0xFF800000> : vector<8xf32>
    %52 = vector.multi_reduction <maximumf>, %49, %cst_39 [1] : vector<8x8xf32> to vector<8xf32>
    %53 = vector.shape_cast %52 : vector<8xf32> to vector<8x1xf32>
    %54 = arith.maximumf %51, %53 : vector<8x1xf32>
    %55 = arith.subf %51, %54 : vector<8x1xf32>
    %56 = math.exp %55 : vector<8x1xf32>
    %57 = vector.broadcast %54 : vector<8x1xf32> to vector<8x8xf32>
    %58 = arith.subf %49, %57 : vector<8x8xf32>
    %59 = math.exp %58 : vector<8x8xf32>
    %c1_40 = arith.constant 1 : index
    %c0_41 = arith.constant 0 : index
    %c0_42 = arith.constant 0 : index
    %60 = vector.load %arg12[%c1_40, %c0_41, %c0_42] : memref<4x8x1xf32, #tpu.memory_space<vmem>>, vector<1x8x1xf32>
    %61 = vector.shape_cast %60 : vector<1x8x1xf32> to vector<8x1xf32>
    %62 = arith.mulf %56, %61 : vector<8x1xf32>
    %cst_43 = arith.constant dense<0.000000e+00> : vector<8xf32>
    %63 = vector.multi_reduction <add>, %59, %cst_43 [1] : vector<8x8xf32> to vector<8xf32>
    %64 = vector.shape_cast %63 : vector<8xf32> to vector<8x1xf32>
    %65 = arith.addf %62, %64 : vector<8x1xf32>
    %c1_44 = arith.constant 1 : index
    %c0_45 = arith.constant 0 : index
    %c0_46 = arith.constant 0 : index
    %66 = vector.load %arg12[%c1_44, %c0_45, %c0_46] : memref<4x8x1xf32, #tpu.memory_space<vmem>>, vector<1x8x1xf32>
    %67 = vector.shape_cast %66 : vector<1x8x1xf32> to vector<8x1xf32>
    %68 = vector.shape_cast %65 : vector<8x1xf32> to vector<1x8x1xf32>
    tpu.vector_store %arg12[%c1_44, %c0_45, %c0_46], %68 {strides = array<i32>} : memref<4x8x1xf32, #tpu.memory_space<vmem>>, vector<1x8x1xf32>,
    %c1_47 = arith.constant 1 : index
    %c0_48 = arith.constant 0 : index
    %c0_49 = arith.constant 0 : index
    %69 = vector.load %arg13[%c1_47, %c0_48, %c0_49] : memref<4x8x8xf32, #tpu.memory_space<vmem>>, vector<1x8x8xf32>
    %70 = vector.shape_cast %69 : vector<1x8x8xf32> to vector<8x8xf32>
    %71 = vector.broadcast %56 : vector<8x1xf32> to vector<8x8xf32>
    %72 = arith.mulf %71, %70 : vector<8x8xf32>
    %cst_50 = arith.constant dense<0.000000e+00> : vector<8x8xf32>
    %73 = tpu.matmul %59, %47, %cst_50 {dimension_numbers = #tpu.dot_dimension_numbers<[1], [0], [0], [1], [0, 0, 1, 1], [], []>} : vector<8x8xf32>, vector<8x8xf32>, vector<8x8xf32> -> vector<8x8xf32>
    %74 = arith.addf %72, %73 : vector<8x8xf32>
    %c1_51 = arith.constant 1 : index
    %c0_52 = arith.constant 0 : index
    %c0_53 = arith.constant 0 : index
    %75 = vector.load %arg13[%c1_51, %c0_52, %c0_53] : memref<4x8x8xf32, #tpu.memory_space<vmem>>, vector<1x8x8xf32>
    %76 = vector.shape_cast %75 : vector<1x8x8xf32> to vector<8x8xf32>
    %77 = vector.shape_cast %74 : vector<8x8xf32> to vector<1x8x8xf32>
    tpu.vector_store %arg13[%c1_51, %c0_52, %c0_53], %77 {strides = array<i32>} : memref<4x8x8xf32, #tpu.memory_space<vmem>>, vector<1x8x8xf32>,
    %c1_54 = arith.constant 1 : index
    %c0_55 = arith.constant 0 : index
    %c0_56 = arith.constant 0 : index
    %78 = vector.load %arg11[%c1_54, %c0_55, %c0_56] : memref<4x8x1xf32, #tpu.memory_space<vmem>>, vector<1x8x1xf32>
    %79 = vector.shape_cast %78 : vector<1x8x1xf32> to vector<8x1xf32>
    %80 = vector.shape_cast %54 : vector<8x1xf32> to vector<1x8x1xf32>
    tpu.vector_store %arg11[%c1_54, %c0_55, %c0_56], %80 {strides = array<i32>} : memref<4x8x1xf32, #tpu.memory_space<vmem>>, vector<1x8x1xf32>,
    %c0_57 = arith.constant 0 : index
    %c0_58 = arith.constant 0 : index
    %c16 = arith.constant 16 : index
    %81 = vector.load %arg3[%c0_57, %c0_58, %c16] : memref<1x8x32xf32, #tpu.memory_space<vmem>>, vector<1x8x8xf32>
    %82 = vector.shape_cast %81 : vector<1x8x8xf32> to vector<8x8xf32>
    %c0_59 = arith.constant 0 : index
    %c0_60 = arith.constant 0 : index
    %c16_61 = arith.constant 16 : index
    %83 = vector.load %arg4[%c0_59, %c0_60, %c16_61] : memref<1x8x64xf32, #tpu.memory_space<vmem>>, vector<1x8x8xf32>
    %84 = vector.shape_cast %83 : vector<1x8x8xf32> to vector<8x8xf32>
    %c0_62 = arith.constant 0 : index
    %c0_63 = arith.constant 0 : index
    %c48 = arith.constant 48 : index
    %85 = vector.load %arg4[%c0_62, %c0_63, %c48] : memref<1x8x64xf32, #tpu.memory_space<vmem>>, vector<1x8x8xf32>
    %86 = vector.shape_cast %85 : vector<1x8x8xf32> to vector<8x8xf32>
    %87 = tpu.transpose %84, [1, 0] : vector<8x8xf32> -> vector<8x8xf32>
    %cst_64 = arith.constant dense<0.000000e+00> : vector<8x8xf32>
    %88 = tpu.matmul %82, %87, %cst_64 {dimension_numbers = #tpu.dot_dimension_numbers<[1], [0], [0], [1], [0, 0, 1, 1], [], []>} : vector<8x8xf32>, vector<8x8xf32>, vector<8x8xf32> -> vector<8x8xf32>
    %c2 = arith.constant 2 : index
    %c0_65 = arith.constant 0 : index
    %c0_66 = arith.constant 0 : index
    %89 = vector.load %arg11[%c2, %c0_65, %c0_66] : memref<4x8x1xf32, #tpu.memory_space<vmem>>, vector<1x8x1xf32>
    %90 = vector.shape_cast %89 : vector<1x8x1xf32> to vector<8x1xf32>
    %cst_67 = arith.constant dense<0xFF800000> : vector<8xf32>
    %91 = vector.multi_reduction <maximumf>, %88, %cst_67 [1] : vector<8x8xf32> to vector<8xf32>
    %92 = vector.shape_cast %91 : vector<8xf32> to vector<8x1xf32>
    %93 = arith.maximumf %90, %92 : vector<8x1xf32>
    %94 = arith.subf %90, %93 : vector<8x1xf32>
    %95 = math.exp %94 : vector<8x1xf32>
    %96 = vector.broadcast %93 : vector<8x1xf32> to vector<8x8xf32>
    %97 = arith.subf %88, %96 : vector<8x8xf32>
    %98 = math.exp %97 : vector<8x8xf32>
    %c2_68 = arith.constant 2 : index
    %c0_69 = arith.constant 0 : index
    %c0_70 = arith.constant 0 : index
    %99 = vector.load %arg12[%c2_68, %c0_69, %c0_70] : memref<4x8x1xf32, #tpu.memory_space<vmem>>, vector<1x8x1xf32>
    %100 = vector.shape_cast %99 : vector<1x8x1xf32> to vector<8x1xf32>
    %101 = arith.mulf %95, %100 : vector<8x1xf32>
    %cst_71 = arith.constant dense<0.000000e+00> : vector<8xf32>
    %102 = vector.multi_reduction <add>, %98, %cst_71 [1] : vector<8x8xf32> to vector<8xf32>
    %103 = vector.shape_cast %102 : vector<8xf32> to vector<8x1xf32>
    %104 = arith.addf %101, %103 : vector<8x1xf32>
    %c2_72 = arith.constant 2 : index
    %c0_73 = arith.constant 0 : index
    %c0_74 = arith.constant 0 : index
    %105 = vector.load %arg12[%c2_72, %c0_73, %c0_74] : memref<4x8x1xf32, #tpu.memory_space<vmem>>, vector<1x8x1xf32>
    %106 = vector.shape_cast %105 : vector<1x8x1xf32> to vector<8x1xf32>
    %107 = vector.shape_cast %104 : vector<8x1xf32> to vector<1x8x1xf32>
    tpu.vector_store %arg12[%c2_72, %c0_73, %c0_74], %107 {strides = array<i32>} : memref<4x8x1xf32, #tpu.memory_space<vmem>>, vector<1x8x1xf32>,
    %c2_75 = arith.constant 2 : index
    %c0_76 = arith.constant 0 : index
    %c0_77 = arith.constant 0 : index
    %108 = vector.load %arg13[%c2_75, %c0_76, %c0_77] : memref<4x8x8xf32, #tpu.memory_space<vmem>>, vector<1x8x8xf32>
    %109 = vector.shape_cast %108 : vector<1x8x8xf32> to vector<8x8xf32>
    %110 = vector.broadcast %95 : vector<8x1xf32> to vector<8x8xf32>
    %111 = arith.mulf %110, %109 : vector<8x8xf32>
    %cst_78 = arith.constant dense<0.000000e+00> : vector<8x8xf32>
    %112 = tpu.matmul %98, %86, %cst_78 {dimension_numbers = #tpu.dot_dimension_numbers<[1], [0], [0], [1], [0, 0, 1, 1], [], []>} : vector<8x8xf32>, vector<8x8xf32>, vector<8x8xf32> -> vector<8x8xf32>
    %113 = arith.addf %111, %112 : vector<8x8xf32>
    %c2_79 = arith.constant 2 : index
    %c0_80 = arith.constant 0 : index
    %c0_81 = arith.constant 0 : index
    %114 = vector.load %arg13[%c2_79, %c0_80, %c0_81] : memref<4x8x8xf32, #tpu.memory_space<vmem>>, vector<1x8x8xf32>
    %115 = vector.shape_cast %114 : vector<1x8x8xf32> to vector<8x8xf32>
    %116 = vector.shape_cast %113 : vector<8x8xf32> to vector<1x8x8xf32>
    tpu.vector_store %arg13[%c2_79, %c0_80, %c0_81], %116 {strides = array<i32>} : memref<4x8x8xf32, #tpu.memory_space<vmem>>, vector<1x8x8xf32>,
    %c2_82 = arith.constant 2 : index
    %c0_83 = arith.constant 0 : index
    %c0_84 = arith.constant 0 : index
    %117 = vector.load %arg11[%c2_82, %c0_83, %c0_84] : memref<4x8x1xf32, #tpu.memory_space<vmem>>, vector<1x8x1xf32>
    %118 = vector.shape_cast %117 : vector<1x8x1xf32> to vector<8x1xf32>
    %119 = vector.shape_cast %93 : vector<8x1xf32> to vector<1x8x1xf32>
    tpu.vector_store %arg11[%c2_82, %c0_83, %c0_84], %119 {strides = array<i32>} : memref<4x8x1xf32, #tpu.memory_space<vmem>>, vector<1x8x1xf32>,
    %c0_85 = arith.constant 0 : index
    %c0_86 = arith.constant 0 : index
    %c24 = arith.constant 24 : index
    %120 = vector.load %arg3[%c0_85, %c0_86, %c24] : memref<1x8x32xf32, #tpu.memory_space<vmem>>, vector<1x8x8xf32>
    %121 = vector.shape_cast %120 : vector<1x8x8xf32> to vector<8x8xf32>
    %c0_87 = arith.constant 0 : index
    %c0_88 = arith.constant 0 : index
    %c24_89 = arith.constant 24 : index
    %122 = vector.load %arg4[%c0_87, %c0_88, %c24_89] : memref<1x8x64xf32, #tpu.memory_space<vmem>>, vector<1x8x8xf32>
    %123 = vector.shape_cast %122 : vector<1x8x8xf32> to vector<8x8xf32>
    %c0_90 = arith.constant 0 : index
    %c0_91 = arith.constant 0 : index
    %c56 = arith.constant 56 : index
    %124 = vector.load %arg4[%c0_90, %c0_91, %c56] : memref<1x8x64xf32, #tpu.memory_space<vmem>>, vector<1x8x8xf32>
    %125 = vector.shape_cast %124 : vector<1x8x8xf32> to vector<8x8xf32>
    %126 = tpu.transpose %123, [1, 0] : vector<8x8xf32> -> vector<8x8xf32>
    %cst_92 = arith.constant dense<0.000000e+00> : vector<8x8xf32>
    %127 = tpu.matmul %121, %126, %cst_92 {dimension_numbers = #tpu.dot_dimension_numbers<[1], [0], [0], [1], [0, 0, 1, 1], [], []>} : vector<8x8xf32>, vector<8x8xf32>, vector<8x8xf32> -> vector<8x8xf32>
    %c3 = arith.constant 3 : index
    %c0_93 = arith.constant 0 : index
    %c0_94 = arith.constant 0 : index
    %128 = vector.load %arg11[%c3, %c0_93, %c0_94] : memref<4x8x1xf32, #tpu.memory_space<vmem>>, vector<1x8x1xf32>
    %129 = vector.shape_cast %128 : vector<1x8x1xf32> to vector<8x1xf32>
    %cst_95 = arith.constant dense<0xFF800000> : vector<8xf32>
    %130 = vector.multi_reduction <maximumf>, %127, %cst_95 [1] : vector<8x8xf32> to vector<8xf32>
    %131 = vector.shape_cast %130 : vector<8xf32> to vector<8x1xf32>
    %132 = arith.maximumf %129, %131 : vector<8x1xf32>
    %133 = arith.subf %129, %132 : vector<8x1xf32>
    %134 = math.exp %133 : vector<8x1xf32>
    %135 = vector.broadcast %132 : vector<8x1xf32> to vector<8x8xf32>
    %136 = arith.subf %127, %135 : vector<8x8xf32>
    %137 = math.exp %136 : vector<8x8xf32>
    %c3_96 = arith.constant 3 : index
    %c0_97 = arith.constant 0 : index
    %c0_98 = arith.constant 0 : index
    %138 = vector.load %arg12[%c3_96, %c0_97, %c0_98] : memref<4x8x1xf32, #tpu.memory_space<vmem>>, vector<1x8x1xf32>
    %139 = vector.shape_cast %138 : vector<1x8x1xf32> to vector<8x1xf32>
    %140 = arith.mulf %134, %139 : vector<8x1xf32>
    %cst_99 = arith.constant dense<0.000000e+00> : vector<8xf32>
    %141 = vector.multi_reduction <add>, %137, %cst_99 [1] : vector<8x8xf32> to vector<8xf32>
    %142 = vector.shape_cast %141 : vector<8xf32> to vector<8x1xf32>
    %143 = arith.addf %140, %142 : vector<8x1xf32>
    %c3_100 = arith.constant 3 : index
    %c0_101 = arith.constant 0 : index
    %c0_102 = arith.constant 0 : index
    %144 = vector.load %arg12[%c3_100, %c0_101, %c0_102] : memref<4x8x1xf32, #tpu.memory_space<vmem>>, vector<1x8x1xf32>
    %145 = vector.shape_cast %144 : vector<1x8x1xf32> to vector<8x1xf32>
    %146 = vector.shape_cast %143 : vector<8x1xf32> to vector<1x8x1xf32>
    tpu.vector_store %arg12[%c3_100, %c0_101, %c0_102], %146 {strides = array<i32>} : memref<4x8x1xf32, #tpu.memory_space<vmem>>, vector<1x8x1xf32>,
    %c3_103 = arith.constant 3 : index
    %c0_104 = arith.constant 0 : index
    %c0_105 = arith.constant 0 : index
    %147 = vector.load %arg13[%c3_103, %c0_104, %c0_105] : memref<4x8x8xf32, #tpu.memory_space<vmem>>, vector<1x8x8xf32>
    %148 = vector.shape_cast %147 : vector<1x8x8xf32> to vector<8x8xf32>
    %149 = vector.broadcast %134 : vector<8x1xf32> to vector<8x8xf32>
    %150 = arith.mulf %149, %148 : vector<8x8xf32>
    %cst_106 = arith.constant dense<0.000000e+00> : vector<8x8xf32>
    %151 = tpu.matmul %137, %125, %cst_106 {dimension_numbers = #tpu.dot_dimension_numbers<[1], [0], [0], [1], [0, 0, 1, 1], [], []>} : vector<8x8xf32>, vector<8x8xf32>, vector<8x8xf32> -> vector<8x8xf32>
    %152 = arith.addf %150, %151 : vector<8x8xf32>
    %c3_107 = arith.constant 3 : index
    %c0_108 = arith.constant 0 : index
    %c0_109 = arith.constant 0 : index
    %153 = vector.load %arg13[%c3_107, %c0_108, %c0_109] : memref<4x8x8xf32, #tpu.memory_space<vmem>>, vector<1x8x8xf32>
    %154 = vector.shape_cast %153 : vector<1x8x8xf32> to vector<8x8xf32>
    %155 = vector.shape_cast %152 : vector<8x8xf32> to vector<1x8x8xf32>
    tpu.vector_store %arg13[%c3_107, %c0_108, %c0_109], %155 {strides = array<i32>} : memref<4x8x8xf32, #tpu.memory_space<vmem>>, vector<1x8x8xf32>,
    %c3_110 = arith.constant 3 : index
    %c0_111 = arith.constant 0 : index
    %c0_112 = arith.constant 0 : index
    %156 = vector.load %arg11[%c3_110, %c0_111, %c0_112] : memref<4x8x1xf32, #tpu.memory_space<vmem>>, vector<1x8x1xf32>
    %157 = vector.shape_cast %156 : vector<1x8x1xf32> to vector<8x1xf32>
    %158 = vector.shape_cast %132 : vector<8x1xf32> to vector<1x8x1xf32>
    tpu.vector_store %arg11[%c3_110, %c0_111, %c0_112], %158 {strides = array<i32>} : memref<4x8x1xf32, #tpu.memory_space<vmem>>, vector<1x8x1xf32>,
    %c0_i32_113 = arith.constant 0 : i32
    %159 = arith.cmpi eq, %arg2, %c0_i32_113 : i32
    %160 = arith.extui %159 : i1 to i32
    %c0_i32_114 = arith.constant 0 : i32
    %161 = arith.cmpi ne, %160, %c0_i32_114 : i32
    scf.if %161 {
      %cst_115 = arith.constant 0.000000e+00 : f32
      %162 = vector.broadcast %cst_115 : f32 to vector<8x32xf32>
      %c0_116 = arith.constant 0 : index
      %c0_117 = arith.constant 0 : index
      %c0_118 = arith.constant 0 : index
      %163 = vector.load %arg12[%c0_116, %c0_117, %c0_118] : memref<4x8x1xf32, #tpu.memory_space<vmem>>, vector<1x8x1xf32>
      %164 = vector.shape_cast %163 : vector<1x8x1xf32> to vector<8x1xf32>
      %165 = tpu.reciprocal %164 {approx = true} : vector<8x1xf32> -> vector<8x1xf32>
      %c0_119 = arith.constant 0 : index
      %c0_120 = arith.constant 0 : index
      %c0_121 = arith.constant 0 : index
      %166 = vector.load %arg13[%c0_119, %c0_120, %c0_121] : memref<4x8x8xf32, #tpu.memory_space<vmem>>, vector<1x8x8xf32>
      %167 = vector.shape_cast %166 : vector<1x8x8xf32> to vector<8x8xf32>
      %168 = vector.broadcast %165 : vector<8x1xf32> to vector<8x8xf32>
      %169 = arith.mulf %167, %168 : vector<8x8xf32>
      %c0_122 = arith.constant 0 : index
      %c0_123 = arith.constant 0 : index
      %170 = vector.load %arg6[%c0_122, %c0_123] : memref<32x32xf32, #tpu.memory_space<vmem>>, vector<8x32xf32>
      %cst_124 = arith.constant dense<0.000000e+00> : vector<8x32xf32>
      %171 = tpu.matmul %169, %170, %cst_124 {dimension_numbers = #tpu.dot_dimension_numbers<[1], [0], [0], [1], [0, 0, 1, 1], [], []>} : vector<8x8xf32>, vector<8x32xf32>, vector<8x32xf32> -> vector<8x32xf32>
      %172 = arith.addf %162, %171 : vector<8x32xf32>
      %c1_125 = arith.constant 1 : index
      %c0_126 = arith.constant 0 : index
      %c0_127 = arith.constant 0 : index
      %173 = vector.load %arg12[%c1_125, %c0_126, %c0_127] : memref<4x8x1xf32, #tpu.memory_space<vmem>>, vector<1x8x1xf32>
      %174 = vector.shape_cast %173 : vector<1x8x1xf32> to vector<8x1xf32>
      %175 = tpu.reciprocal %174 {approx = true} : vector<8x1xf32> -> vector<8x1xf32>
      %c1_128 = arith.constant 1 : index
      %c0_129 = arith.constant 0 : index
      %c0_130 = arith.constant 0 : index
      %176 = vector.load %arg13[%c1_128, %c0_129, %c0_130] : memref<4x8x8xf32, #tpu.memory_space<vmem>>, vector<1x8x8xf32>
      %177 = vector.shape_cast %176 : vector<1x8x8xf32> to vector<8x8xf32>
      %178 = vector.broadcast %175 : vector<8x1xf32> to vector<8x8xf32>
      %179 = arith.mulf %177, %178 : vector<8x8xf32>
      %c8_131 = arith.constant 8 : index
      %c0_132 = arith.constant 0 : index
      %180 = vector.load %arg6[%c8_131, %c0_132] : memref<32x32xf32, #tpu.memory_space<vmem>>, vector<8x32xf32>
      %cst_133 = arith.constant dense<0.000000e+00> : vector<8x32xf32>
      %181 = tpu.matmul %179, %180, %cst_133 {dimension_numbers = #tpu.dot_dimension_numbers<[1], [0], [0], [1], [0, 0, 1, 1], [], []>} : vector<8x8xf32>, vector<8x32xf32>, vector<8x32xf32> -> vector<8x32xf32>
      %182 = arith.addf %172, %181 : vector<8x32xf32>
      %c2_134 = arith.constant 2 : index
      %c0_135 = arith.constant 0 : index
      %c0_136 = arith.constant 0 : index
      %183 = vector.load %arg12[%c2_134, %c0_135, %c0_136] : memref<4x8x1xf32, #tpu.memory_space<vmem>>, vector<1x8x1xf32>
      %184 = vector.shape_cast %183 : vector<1x8x1xf32> to vector<8x1xf32>
      %185 = tpu.reciprocal %184 {approx = true} : vector<8x1xf32> -> vector<8x1xf32>
      %c2_137 = arith.constant 2 : index
      %c0_138 = arith.constant 0 : index
      %c0_139 = arith.constant 0 : index
      %186 = vector.load %arg13[%c2_137, %c0_138, %c0_139] : memref<4x8x8xf32, #tpu.memory_space<vmem>>, vector<1x8x8xf32>
      %187 = vector.shape_cast %186 : vector<1x8x8xf32> to vector<8x8xf32>
      %188 = vector.broadcast %185 : vector<8x1xf32> to vector<8x8xf32>
      %189 = arith.mulf %187, %188 : vector<8x8xf32>
      %c16_140 = arith.constant 16 : index
      %c0_141 = arith.constant 0 : index
      %190 = vector.load %arg6[%c16_140, %c0_141] : memref<32x32xf32, #tpu.memory_space<vmem>>, vector<8x32xf32>
      %cst_142 = arith.constant dense<0.000000e+00> : vector<8x32xf32>
      %191 = tpu.matmul %189, %190, %cst_142 {dimension_numbers = #tpu.dot_dimension_numbers<[1], [0], [0], [1], [0, 0, 1, 1], [], []>} : vector<8x8xf32>, vector<8x32xf32>, vector<8x32xf32> -> vector<8x32xf32>
      %192 = arith.addf %182, %191 : vector<8x32xf32>
      %c3_143 = arith.constant 3 : index
      %c0_144 = arith.constant 0 : index
      %c0_145 = arith.constant 0 : index
      %193 = vector.load %arg12[%c3_143, %c0_144, %c0_145] : memref<4x8x1xf32, #tpu.memory_space<vmem>>, vector<1x8x1xf32>
      %194 = vector.shape_cast %193 : vector<1x8x1xf32> to vector<8x1xf32>
      %195 = tpu.reciprocal %194 {approx = true} : vector<8x1xf32> -> vector<8x1xf32>
      %c3_146 = arith.constant 3 : index
      %c0_147 = arith.constant 0 : index
      %c0_148 = arith.constant 0 : index
      %196 = vector.load %arg13[%c3_146, %c0_147, %c0_148] : memref<4x8x8xf32, #tpu.memory_space<vmem>>, vector<1x8x8xf32>
      %197 = vector.shape_cast %196 : vector<1x8x8xf32> to vector<8x8xf32>
      %198 = vector.broadcast %195 : vector<8x1xf32> to vector<8x8xf32>
      %199 = arith.mulf %197, %198 : vector<8x8xf32>
      %c24_149 = arith.constant 24 : index
      %c0_150 = arith.constant 0 : index
      %200 = vector.load %arg6[%c24_149, %c0_150] : memref<32x32xf32, #tpu.memory_space<vmem>>, vector<8x32xf32>
      %cst_151 = arith.constant dense<0.000000e+00> : vector<8x32xf32>
      %201 = tpu.matmul %199, %200, %cst_151 {dimension_numbers = #tpu.dot_dimension_numbers<[1], [0], [0], [1], [0, 0, 1, 1], [], []>} : vector<8x8xf32>, vector<8x32xf32>, vector<8x32xf32> -> vector<8x32xf32>
      %202 = arith.addf %192, %201 : vector<8x32xf32>
      %c0_152 = arith.constant 0 : index
      %c0_153 = arith.constant 0 : index
      %c0_154 = arith.constant 0 : index
      %203 = vector.load %arg5[%c0_152, %c0_153, %c0_154] : memref<1x8x32xf32, #tpu.memory_space<vmem>>, vector<1x8x32xf32>
      %204 = vector.shape_cast %203 : vector<1x8x32xf32> to vector<8x32xf32>
      %205 = arith.addf %204, %202 : vector<8x32xf32>
      %c0_155 = arith.constant 0 : index
      %c0_156 = arith.constant 0 : index
      %206 = vector.load %arg7[%c0_155, %c0_156] : memref<1x32xf32, #tpu.memory_space<vmem>>, vector<1x32xf32>
      %207 = vector.broadcast %206 : vector<1x32xf32> to vector<8x32xf32>
      %208 = arith.addf %205, %207 : vector<8x32xf32>
      %c0_157 = arith.constant 0 : index
      %c0_158 = arith.constant 0 : index
      %209 = vector.load %arg8[%c0_157, %c0_158] : memref<1x32xf32, #tpu.memory_space<vmem>>, vector<1x32xf32>
      %c0_159 = arith.constant 0 : index
      %c0_160 = arith.constant 0 : index
      %210 = vector.load %arg9[%c0_159, %c0_160] : memref<1x32xf32, #tpu.memory_space<vmem>>, vector<1x32xf32>
      %cst_161 = arith.constant dense<0.000000e+00> : vector<8xf32>
      %211 = vector.multi_reduction <add>, %208, %cst_161 [1] : vector<8x32xf32> to vector<8xf32>
      %212 = vector.shape_cast %211 : vector<8xf32> to vector<8x1xf32>
      %cst_162 = arith.constant 3.200000e+01 : f32
      %213 = vector.broadcast %cst_162 : f32 to vector<8x1xf32>
      %214 = arith.divf %212, %213 : vector<8x1xf32>
      %215 = vector.broadcast %214 : vector<8x1xf32> to vector<8x32xf32>
      %216 = arith.subf %208, %215 : vector<8x32xf32>
      %217 = arith.mulf %216, %216 : vector<8x32xf32>
      %cst_163 = arith.constant dense<0.000000e+00> : vector<8xf32>
      %218 = vector.multi_reduction <add>, %217, %cst_163 [1] : vector<8x32xf32> to vector<8xf32>
      %219 = vector.shape_cast %218 : vector<8xf32> to vector<8x1xf32>
      %cst_164 = arith.constant 3.200000e+01 : f32
      %220 = vector.broadcast %cst_164 : f32 to vector<8x1xf32>
      %221 = arith.divf %219, %220 : vector<8x1xf32>
      %222 = vector.broadcast %214 : vector<8x1xf32> to vector<8x32xf32>
      %223 = arith.subf %208, %222 : vector<8x32xf32>
      %cst_165 = arith.constant 9.99999974E-6 : f32
      %224 = vector.broadcast %cst_165 : f32 to vector<8x1xf32>
      %225 = arith.addf %221, %224 : vector<8x1xf32>
      %226 = math.rsqrt %225 : vector<8x1xf32>
      %227 = vector.broadcast %226 : vector<8x1xf32> to vector<8x32xf32>
      %228 = arith.mulf %223, %227 : vector<8x32xf32>
      %229 = vector.broadcast %209 : vector<1x32xf32> to vector<8x32xf32>
      %230 = arith.mulf %228, %229 : vector<8x32xf32>
      %231 = vector.broadcast %210 : vector<1x32xf32> to vector<8x32xf32>
      %232 = arith.addf %230, %231 : vector<8x32xf32>
      %c0_166 = arith.constant 0 : index
      %c0_167 = arith.constant 0 : index
      %c0_168 = arith.constant 0 : index
      %233 = vector.load %arg10[%c0_166, %c0_167, %c0_168] : memref<1x8x32xf32, #tpu.memory_space<vmem>>, vector<1x8x32xf32>
      %234 = vector.shape_cast %233 : vector<1x8x32xf32> to vector<8x32xf32>
      %235 = vector.shape_cast %232 : vector<8x32xf32> to vector<1x8x32xf32>
      tpu.vector_store %arg10[%c0_166, %c0_167, %c0_168], %235 {strides = array<i32>} : memref<1x8x32xf32, #tpu.memory_space<vmem>>, vector<1x8x32xf32>,
    } else {
    }
    return
  }
  func.func @transform_0(%arg0: i32, %arg1: i32, %arg2: i32) -> (i32, i32, i32) {
    %c0_i32 = arith.constant 0 : i32
    %c0_i32_0 = arith.constant 0 : i32
    return %arg0, %arg1, %c0_i32 : i32, i32, i32
  }
  func.func @transform_1(%arg0: i32, %arg1: i32, %arg2: i32) -> (i32, i32, i32) {
    %c0_i32 = arith.constant 0 : i32
    %c0_i32_0 = arith.constant 0 : i32
    return %arg0, %arg2, %c0_i32 : i32, i32, i32
  }
  func.func @transform_2(%arg0: i32, %arg1: i32, %arg2: i32) -> (i32, i32, i32) {
    %c0_i32 = arith.constant 0 : i32
    %c0_i32_0 = arith.constant 0 : i32
    return %arg0, %arg1, %c0_i32 : i32, i32, i32
  }
  func.func @transform_3(%arg0: i32, %arg1: i32, %arg2: i32) -> (i32, i32) {
    %c0_i32 = arith.constant 0 : i32
    %c0_i32_0 = arith.constant 0 : i32
    %c0_i32_1 = arith.constant 0 : i32
    return %c0_i32, %c0_i32_0 : i32, i32
  }
  func.func @transform_4(%arg0: i32, %arg1: i32, %arg2: i32) -> (i32, i32) {
    %c0_i32 = arith.constant 0 : i32
    %c0_i32_0 = arith.constant 0 : i32
    %c0_i32_1 = arith.constant 0 : i32
    return %c0_i32, %c0_i32_0 : i32, i32
  }
  func.func @transform_5(%arg0: i32, %arg1: i32, %arg2: i32) -> (i32, i32) {
    %c0_i32 = arith.constant 0 : i32
    %c0_i32_0 = arith.constant 0 : i32
    %c0_i32_1 = arith.constant 0 : i32
    return %c0_i32, %c0_i32_0 : i32, i32
  }
  func.func @transform_6(%arg0: i32, %arg1: i32, %arg2: i32) -> (i32, i32) {
    %c0_i32 = arith.constant 0 : i32
    %c0_i32_0 = arith.constant 0 : i32
    %c0_i32_1 = arith.constant 0 : i32
    return %c0_i32, %c0_i32_0 : i32, i32
  }
  func.func @transform_7(%arg0: i32, %arg1: i32, %arg2: i32) -> (i32, i32, i32) {
    %c0_i32 = arith.constant 0 : i32
    %c0_i32_0 = arith.constant 0 : i32
    return %arg0, %arg1, %c0_i32 : i32, i32, i32
  }
}

module attributes {stable_mosaic.version = 11 : i64} {
  func.func @_q_proj_kernel(%arg0: i32, %arg1: memref<8x32xf32, #tpu.memory_space<vmem>>, %arg2: memref<8x32xf32, #tpu.memory_space<vmem>>, %arg3: memref<32x32xf32, #tpu.memory_space<vmem>>, %arg4: memref<1x32xf32, #tpu.memory_space<vmem>>, %arg5: memref<8x32xf32, #tpu.memory_space<vmem>>) attributes {dimension_semantics = [#tpu.dimension_semantics<parallel>], iteration_bounds = array<i64: 2>, scalar_prefetch = 0 : i64, scratch_operands = 0 : i64, tpu.core_type = #tpu.core_type<tc>, window_params = [{transform_indices = @transform_0, window_bounds = array<i64: 8, 32>}, {transform_indices = @transform_1, window_bounds = array<i64: 8, 32>}, {pipeline_mode = #tpu.pipeline_mode<synchronous>, transform_indices = @transform_2, window_bounds = array<i64: 32, 32>}, {pipeline_mode = #tpu.pipeline_mode<synchronous>, transform_indices = @transform_3, window_bounds = array<i64: 1, 32>}, {transform_indices = @transform_4, window_bounds = array<i64: 8, 32>}]} {
    %c0 = arith.constant 0 : index
    %c0_0 = arith.constant 0 : index
    %0 = vector.load %arg1[%c0, %c0_0] : memref<8x32xf32, #tpu.memory_space<vmem>>, vector<8x32xf32>
    %c0_1 = arith.constant 0 : index
    %c0_2 = arith.constant 0 : index
    %1 = vector.load %arg2[%c0_1, %c0_2] : memref<8x32xf32, #tpu.memory_space<vmem>>, vector<8x32xf32>
    %2 = arith.addf %0, %1 : vector<8x32xf32>
    %c0_3 = arith.constant 0 : index
    %c0_4 = arith.constant 0 : index
    %3 = vector.load %arg3[%c0_3, %c0_4] : memref<32x32xf32, #tpu.memory_space<vmem>>, vector<32x32xf32>
    %cst = arith.constant dense<0.000000e+00> : vector<8x32xf32>
    %4 = tpu.matmul %2, %3, %cst {dimension_numbers = #tpu.dot_dimension_numbers<[1], [0], [0], [1], [0, 0, 1, 1], [], []>} : vector<8x32xf32>, vector<32x32xf32>, vector<8x32xf32> -> vector<8x32xf32>
    %c0_5 = arith.constant 0 : index
    %c0_6 = arith.constant 0 : index
    %5 = vector.load %arg4[%c0_5, %c0_6] : memref<1x32xf32, #tpu.memory_space<vmem>>, vector<1x32xf32>
    %6 = vector.broadcast %5 : vector<1x32xf32> to vector<8x32xf32>
    %7 = arith.addf %4, %6 : vector<8x32xf32>
    %c0_7 = arith.constant 0 : index
    %c0_8 = arith.constant 0 : index
    %8 = vector.load %arg5[%c0_7, %c0_8] : memref<8x32xf32, #tpu.memory_space<vmem>>, vector<8x32xf32>
    tpu.vector_store %arg5[%c0_7, %c0_8], %7 {strides = array<i32>} : memref<8x32xf32, #tpu.memory_space<vmem>>, vector<8x32xf32>,
    return
  }
  func.func @transform_0(%arg0: i32) -> (i32, i32) {
    %c0_i32 = arith.constant 0 : i32
    %c0_i32_0 = arith.constant 0 : i32
    return %arg0, %c0_i32 : i32, i32
  }
  func.func @transform_1(%arg0: i32) -> (i32, i32) {
    %c0_i32 = arith.constant 0 : i32
    %c0_i32_0 = arith.constant 0 : i32
    return %arg0, %c0_i32 : i32, i32
  }
  func.func @transform_2(%arg0: i32) -> (i32, i32) {
    %c0_i32 = arith.constant 0 : i32
    %c0_i32_0 = arith.constant 0 : i32
    %c0_i32_1 = arith.constant 0 : i32
    return %c0_i32, %c0_i32_0 : i32, i32
  }
  func.func @transform_3(%arg0: i32) -> (i32, i32) {
    %c0_i32 = arith.constant 0 : i32
    %c0_i32_0 = arith.constant 0 : i32
    %c0_i32_1 = arith.constant 0 : i32
    return %c0_i32, %c0_i32_0 : i32, i32
  }
  func.func @transform_4(%arg0: i32) -> (i32, i32) {
    %c0_i32 = arith.constant 0 : i32
    %c0_i32_0 = arith.constant 0 : i32
    return %arg0, %c0_i32 : i32, i32
  }
}

module attributes {stable_mosaic.version = 11 : i64} {
  func.func @_kv_proj_kernel(%arg0: i32, %arg1: memref<24x32xf32, #tpu.memory_space<vmem>>, %arg2: memref<24x32xf32, #tpu.memory_space<vmem>>, %arg3: memref<32x32xf32, #tpu.memory_space<vmem>>, %arg4: memref<1x32xf32, #tpu.memory_space<vmem>>, %arg5: memref<32x32xf32, #tpu.memory_space<vmem>>, %arg6: memref<1x32xf32, #tpu.memory_space<vmem>>, %arg7: memref<24x64xf32, #tpu.memory_space<vmem>>) attributes {dimension_semantics = [#tpu.dimension_semantics<parallel>], iteration_bounds = array<i64: 1>, scalar_prefetch = 0 : i64, scratch_operands = 0 : i64, tpu.core_type = #tpu.core_type<tc>, window_params = [{transform_indices = @transform_0, window_bounds = array<i64: 24, 32>}, {transform_indices = @transform_1, window_bounds = array<i64: 24, 32>}, {pipeline_mode = #tpu.pipeline_mode<synchronous>, transform_indices = @transform_2, window_bounds = array<i64: 32, 32>}, {pipeline_mode = #tpu.pipeline_mode<synchronous>, transform_indices = @transform_3, window_bounds = array<i64: 1, 32>}, {pipeline_mode = #tpu.pipeline_mode<synchronous>, transform_indices = @transform_4, window_bounds = array<i64: 32, 32>}, {pipeline_mode = #tpu.pipeline_mode<synchronous>, transform_indices = @transform_5, window_bounds = array<i64: 1, 32>}, {transform_indices = @transform_6, window_bounds = array<i64: 24, 64>}]} {
    %c0 = arith.constant 0 : index
    %c0_0 = arith.constant 0 : index
    %0 = vector.load %arg1[%c0, %c0_0] : memref<24x32xf32, #tpu.memory_space<vmem>>, vector<24x32xf32>
    %c0_1 = arith.constant 0 : index
    %c0_2 = arith.constant 0 : index
    %1 = vector.load %arg2[%c0_1, %c0_2] : memref<24x32xf32, #tpu.memory_space<vmem>>, vector<24x32xf32>
    %2 = arith.addf %0, %1 : vector<24x32xf32>
    %c0_3 = arith.constant 0 : index
    %c0_4 = arith.constant 0 : index
    %3 = vector.load %arg3[%c0_3, %c0_4] : memref<32x32xf32, #tpu.memory_space<vmem>>, vector<32x32xf32>
    %cst = arith.constant dense<0.000000e+00> : vector<24x32xf32>
    %4 = tpu.matmul %2, %3, %cst {dimension_numbers = #tpu.dot_dimension_numbers<[1], [0], [0], [1], [0, 0, 1, 1], [], []>} : vector<24x32xf32>, vector<32x32xf32>, vector<24x32xf32> -> vector<24x32xf32>
    %c0_5 = arith.constant 0 : index
    %c0_6 = arith.constant 0 : index
    %5 = vector.load %arg4[%c0_5, %c0_6] : memref<1x32xf32, #tpu.memory_space<vmem>>, vector<1x32xf32>
    %6 = vector.broadcast %5 : vector<1x32xf32> to vector<24x32xf32>
    %7 = arith.addf %4, %6 : vector<24x32xf32>
    %c0_7 = arith.constant 0 : index
    %c0_8 = arith.constant 0 : index
    %8 = vector.load %arg5[%c0_7, %c0_8] : memref<32x32xf32, #tpu.memory_space<vmem>>, vector<32x32xf32>
    %cst_9 = arith.constant dense<0.000000e+00> : vector<24x32xf32>
    %9 = tpu.matmul %0, %8, %cst_9 {dimension_numbers = #tpu.dot_dimension_numbers<[1], [0], [0], [1], [0, 0, 1, 1], [], []>} : vector<24x32xf32>, vector<32x32xf32>, vector<24x32xf32> -> vector<24x32xf32>
    %c0_10 = arith.constant 0 : index
    %c0_11 = arith.constant 0 : index
    %10 = vector.load %arg6[%c0_10, %c0_11] : memref<1x32xf32, #tpu.memory_space<vmem>>, vector<1x32xf32>
    %11 = vector.broadcast %10 : vector<1x32xf32> to vector<24x32xf32>
    %12 = arith.addf %9, %11 : vector<24x32xf32>
    %13 = tpu.concatenate %7, %12 in 1 : vector<24x32xf32>, vector<24x32xf32> -> vector<24x64xf32>
    %c0_12 = arith.constant 0 : index
    %c0_13 = arith.constant 0 : index
    %14 = vector.load %arg7[%c0_12, %c0_13] : memref<24x64xf32, #tpu.memory_space<vmem>>, vector<24x64xf32>
    tpu.vector_store %arg7[%c0_12, %c0_13], %13 {strides = array<i32>} : memref<24x64xf32, #tpu.memory_space<vmem>>, vector<24x64xf32>,
    return
  }
  func.func @transform_0(%arg0: i32) -> (i32, i32) {
    %c0_i32 = arith.constant 0 : i32
    %c0_i32_0 = arith.constant 0 : i32
    return %arg0, %c0_i32 : i32, i32
  }
  func.func @transform_1(%arg0: i32) -> (i32, i32) {
    %c0_i32 = arith.constant 0 : i32
    %c0_i32_0 = arith.constant 0 : i32
    return %arg0, %c0_i32 : i32, i32
  }
  func.func @transform_2(%arg0: i32) -> (i32, i32) {
    %c0_i32 = arith.constant 0 : i32
    %c0_i32_0 = arith.constant 0 : i32
    %c0_i32_1 = arith.constant 0 : i32
    return %c0_i32, %c0_i32_0 : i32, i32
  }
  func.func @transform_3(%arg0: i32) -> (i32, i32) {
    %c0_i32 = arith.constant 0 : i32
    %c0_i32_0 = arith.constant 0 : i32
    %c0_i32_1 = arith.constant 0 : i32
    return %c0_i32, %c0_i32_0 : i32, i32
  }
  func.func @transform_4(%arg0: i32) -> (i32, i32) {
    %c0_i32 = arith.constant 0 : i32
    %c0_i32_0 = arith.constant 0 : i32
    %c0_i32_1 = arith.constant 0 : i32
    return %c0_i32, %c0_i32_0 : i32, i32
  }
  func.func @transform_5(%arg0: i32) -> (i32, i32) {
    %c0_i32 = arith.constant 0 : i32
    %c0_i32_0 = arith.constant 0 : i32
    %c0_i32_1 = arith.constant 0 : i32
    return %c0_i32, %c0_i32_0 : i32, i32
  }
  func.func @transform_6(%arg0: i32) -> (i32, i32) {
    %c0_i32 = arith.constant 0 : i32
    %c0_i32_0 = arith.constant 0 : i32
    return %arg0, %c0_i32 : i32, i32
  }
}

module attributes {stable_mosaic.version = 11 : i64} {
  func.func @_ffn_kernel(%arg0: i32, %arg1: i32, %arg2: memref<8x32xf32, #tpu.memory_space<vmem>>, %arg3: memref<32x64xf32, #tpu.memory_space<vmem>>, %arg4: memref<1x64xf32, #tpu.memory_space<vmem>>, %arg5: memref<64x32xf32, #tpu.memory_space<vmem>>, %arg6: memref<1x32xf32, #tpu.memory_space<vmem>>, %arg7: memref<1x32xf32, #tpu.memory_space<vmem>>, %arg8: memref<1x32xf32, #tpu.memory_space<vmem>>, %arg9: memref<8x32xf32, #tpu.memory_space<vmem>>, %arg10: memref<8x32xf32, #tpu.memory_space<vmem>>) attributes {dimension_semantics = [#tpu.dimension_semantics<parallel>, #tpu.dimension_semantics<arbitrary>], iteration_bounds = array<i64: 2, 1>, scalar_prefetch = 0 : i64, scratch_operands = 1 : i64, tpu.core_type = #tpu.core_type<tc>, window_params = [{transform_indices = @transform_0, window_bounds = array<i64: 8, 32>}, {transform_indices = @transform_1, window_bounds = array<i64: 32, 64>}, {transform_indices = @transform_2, window_bounds = array<i64: 1, 64>}, {transform_indices = @transform_3, window_bounds = array<i64: 64, 32>}, {pipeline_mode = #tpu.pipeline_mode<synchronous>, transform_indices = @transform_4, window_bounds = array<i64: 1, 32>}, {pipeline_mode = #tpu.pipeline_mode<synchronous>, transform_indices = @transform_5, window_bounds = array<i64: 1, 32>}, {pipeline_mode = #tpu.pipeline_mode<synchronous>, transform_indices = @transform_6, window_bounds = array<i64: 1, 32>}, {transform_indices = @transform_7, window_bounds = array<i64: 8, 32>}]} {
    %c0_i32 = arith.constant 0 : i32
    %0 = arith.cmpi eq, %arg1, %c0_i32 : i32
    %1 = arith.extui %0 : i1 to i32
    %c0_i32_0 = arith.constant 0 : i32
    %2 = arith.cmpi ne, %1, %c0_i32_0 : i32
    scf.if %2 {
      %cst_16 = arith.constant 0.000000e+00 : f32
      %19 = vector.broadcast %cst_16 : f32 to vector<8x32xf32>
      %c0_17 = arith.constant 0 : index
      %c0_18 = arith.constant 0 : index
      %20 = vector.load %arg10[%c0_17, %c0_18] : memref<8x32xf32, #tpu.memory_space<vmem>>, vector<8x32xf32>
      tpu.vector_store %arg10[%c0_17, %c0_18], %19 {strides = array<i32>} : memref<8x32xf32, #tpu.memory_space<vmem>>, vector<8x32xf32>,
    } else {
    }
    %c0 = arith.constant 0 : index
    %c0_1 = arith.constant 0 : index
    %3 = vector.load %arg2[%c0, %c0_1] : memref<8x32xf32, #tpu.memory_space<vmem>>, vector<8x32xf32>
    %c0_2 = arith.constant 0 : index
    %c0_3 = arith.constant 0 : index
    %4 = vector.load %arg3[%c0_2, %c0_3] : memref<32x64xf32, #tpu.memory_space<vmem>>, vector<32x64xf32>
    %cst = arith.constant dense<0.000000e+00> : vector<8x64xf32>
    %5 = tpu.matmul %3, %4, %cst {dimension_numbers = #tpu.dot_dimension_numbers<[1], [0], [0], [1], [0, 0, 1, 1], [], []>} : vector<8x32xf32>, vector<32x64xf32>, vector<8x64xf32> -> vector<8x64xf32>
    %c0_4 = arith.constant 0 : index
    %c0_5 = arith.constant 0 : index
    %6 = vector.load %arg4[%c0_4, %c0_5] : memref<1x64xf32, #tpu.memory_space<vmem>>, vector<1x64xf32>
    %7 = vector.broadcast %6 : vector<1x64xf32> to vector<8x64xf32>
    %8 = arith.addf %5, %7 : vector<8x64xf32>
    %cst_6 = arith.constant 0.000000e+00 : f32
    %9 = vector.broadcast %cst_6 : f32 to vector<8x64xf32>
    %10 = arith.maximumf %8, %9 : vector<8x64xf32>
    %c0_7 = arith.constant 0 : index
    %c0_8 = arith.constant 0 : index
    %11 = vector.load %arg10[%c0_7, %c0_8] : memref<8x32xf32, #tpu.memory_space<vmem>>, vector<8x32xf32>
    %c0_9 = arith.constant 0 : index
    %c0_10 = arith.constant 0 : index
    %12 = vector.load %arg5[%c0_9, %c0_10] : memref<64x32xf32, #tpu.memory_space<vmem>>, vector<64x32xf32>
    %cst_11 = arith.constant dense<0.000000e+00> : vector<8x32xf32>
    %13 = tpu.matmul %10, %12, %cst_11 {dimension_numbers = #tpu.dot_dimension_numbers<[1], [0], [0], [1], [0, 0, 1, 1], [], []>} : vector<8x64xf32>, vector<64x32xf32>, vector<8x32xf32> -> vector<8x32xf32>
    %14 = arith.addf %11, %13 : vector<8x32xf32>
    %c0_12 = arith.constant 0 : index
    %c0_13 = arith.constant 0 : index
    %15 = vector.load %arg10[%c0_12, %c0_13] : memref<8x32xf32, #tpu.memory_space<vmem>>, vector<8x32xf32>
    tpu.vector_store %arg10[%c0_12, %c0_13], %14 {strides = array<i32>} : memref<8x32xf32, #tpu.memory_space<vmem>>, vector<8x32xf32>,
    %c0_i32_14 = arith.constant 0 : i32
    %16 = arith.cmpi eq, %arg1, %c0_i32_14 : i32
    %17 = arith.extui %16 : i1 to i32
    %c0_i32_15 = arith.constant 0 : i32
    %18 = arith.cmpi ne, %17, %c0_i32_15 : i32
    scf.if %18 {
      %c0_16 = arith.constant 0 : index
      %c0_17 = arith.constant 0 : index
      %19 = vector.load %arg10[%c0_16, %c0_17] : memref<8x32xf32, #tpu.memory_space<vmem>>, vector<8x32xf32>
      %20 = arith.addf %3, %19 : vector<8x32xf32>
      %c0_18 = arith.constant 0 : index
      %c0_19 = arith.constant 0 : index
      %21 = vector.load %arg6[%c0_18, %c0_19] : memref<1x32xf32, #tpu.memory_space<vmem>>, vector<1x32xf32>
      %22 = vector.broadcast %21 : vector<1x32xf32> to vector<8x32xf32>
      %23 = arith.addf %20, %22 : vector<8x32xf32>
      %c0_20 = arith.constant 0 : index
      %c0_21 = arith.constant 0 : index
      %24 = vector.load %arg7[%c0_20, %c0_21] : memref<1x32xf32, #tpu.memory_space<vmem>>, vector<1x32xf32>
      %c0_22 = arith.constant 0 : index
      %c0_23 = arith.constant 0 : index
      %25 = vector.load %arg8[%c0_22, %c0_23] : memref<1x32xf32, #tpu.memory_space<vmem>>, vector<1x32xf32>
      %cst_24 = arith.constant dense<0.000000e+00> : vector<8xf32>
      %26 = vector.multi_reduction <add>, %23, %cst_24 [1] : vector<8x32xf32> to vector<8xf32>
      %27 = vector.shape_cast %26 : vector<8xf32> to vector<8x1xf32>
      %cst_25 = arith.constant 3.200000e+01 : f32
      %28 = vector.broadcast %cst_25 : f32 to vector<8x1xf32>
      %29 = arith.divf %27, %28 : vector<8x1xf32>
      %30 = vector.broadcast %29 : vector<8x1xf32> to vector<8x32xf32>
      %31 = arith.subf %23, %30 : vector<8x32xf32>
      %32 = arith.mulf %31, %31 : vector<8x32xf32>
      %cst_26 = arith.constant dense<0.000000e+00> : vector<8xf32>
      %33 = vector.multi_reduction <add>, %32, %cst_26 [1] : vector<8x32xf32> to vector<8xf32>
      %34 = vector.shape_cast %33 : vector<8xf32> to vector<8x1xf32>
      %cst_27 = arith.constant 3.200000e+01 : f32
      %35 = vector.broadcast %cst_27 : f32 to vector<8x1xf32>
      %36 = arith.divf %34, %35 : vector<8x1xf32>
      %37 = vector.broadcast %29 : vector<8x1xf32> to vector<8x32xf32>
      %38 = arith.subf %23, %37 : vector<8x32xf32>
      %cst_28 = arith.constant 9.99999974E-6 : f32
      %39 = vector.broadcast %cst_28 : f32 to vector<8x1xf32>
      %40 = arith.addf %36, %39 : vector<8x1xf32>
      %41 = math.rsqrt %40 : vector<8x1xf32>
      %42 = vector.broadcast %41 : vector<8x1xf32> to vector<8x32xf32>
      %43 = arith.mulf %38, %42 : vector<8x32xf32>
      %44 = vector.broadcast %24 : vector<1x32xf32> to vector<8x32xf32>
      %45 = arith.mulf %43, %44 : vector<8x32xf32>
      %46 = vector.broadcast %25 : vector<1x32xf32> to vector<8x32xf32>
      %47 = arith.addf %45, %46 : vector<8x32xf32>
      %c0_29 = arith.constant 0 : index
      %c0_30 = arith.constant 0 : index
      %48 = vector.load %arg9[%c0_29, %c0_30] : memref<8x32xf32, #tpu.memory_space<vmem>>, vector<8x32xf32>
      tpu.vector_store %arg9[%c0_29, %c0_30], %47 {strides = array<i32>} : memref<8x32xf32, #tpu.memory_space<vmem>>, vector<8x32xf32>,
    } else {
    }
    return
  }
  func.func @transform_0(%arg0: i32, %arg1: i32) -> (i32, i32) {
    %c0_i32 = arith.constant 0 : i32
    %c0_i32_0 = arith.constant 0 : i32
    return %arg0, %c0_i32 : i32, i32
  }
  func.func @transform_1(%arg0: i32, %arg1: i32) -> (i32, i32) {
    %c0_i32 = arith.constant 0 : i32
    %c0_i32_0 = arith.constant 0 : i32
    return %c0_i32, %arg1 : i32, i32
  }
  func.func @transform_2(%arg0: i32, %arg1: i32) -> (i32, i32) {
    %c0_i32 = arith.constant 0 : i32
    %c0_i32_0 = arith.constant 0 : i32
    return %c0_i32, %arg1 : i32, i32
  }
  func.func @transform_3(%arg0: i32, %arg1: i32) -> (i32, i32) {
    %c0_i32 = arith.constant 0 : i32
    %c0_i32_0 = arith.constant 0 : i32
    return %arg1, %c0_i32 : i32, i32
  }
  func.func @transform_4(%arg0: i32, %arg1: i32) -> (i32, i32) {
    %c0_i32 = arith.constant 0 : i32
    %c0_i32_0 = arith.constant 0 : i32
    %c0_i32_1 = arith.constant 0 : i32
    return %c0_i32, %c0_i32_0 : i32, i32
  }
  func.func @transform_5(%arg0: i32, %arg1: i32) -> (i32, i32) {
    %c0_i32 = arith.constant 0 : i32
    %c0_i32_0 = arith.constant 0 : i32
    %c0_i32_1 = arith.constant 0 : i32
    return %c0_i32, %c0_i32_0 : i32, i32
  }
  func.func @transform_6(%arg0: i32, %arg1: i32) -> (i32, i32) {
    %c0_i32 = arith.constant 0 : i32
    %c0_i32_0 = arith.constant 0 : i32
    %c0_i32_1 = arith.constant 0 : i32
    return %c0_i32, %c0_i32_0 : i32, i32
  }
  func.func @transform_7(%arg0: i32, %arg1: i32) -> (i32, i32) {
    %c0_i32 = arith.constant 0 : i32
    %c0_i32_0 = arith.constant 0 : i32
    return %arg0, %c0_i32 : i32, i32
  }
}

module attributes {stable_mosaic.version = 11 : i64} {
  func.func @_attn_core_kernel(%arg0: i32, %arg1: i32, %arg2: i32, %arg3: memref<1x8x32xf32, #tpu.memory_space<vmem>>, %arg4: memref<1x12x64xf32, #tpu.memory_space<vmem>>, %arg5: memref<1x8x32xf32, #tpu.memory_space<vmem>>, %arg6: memref<32x32xf32, #tpu.memory_space<vmem>>, %arg7: memref<1x32xf32, #tpu.memory_space<vmem>>, %arg8: memref<1x32xf32, #tpu.memory_space<vmem>>, %arg9: memref<1x32xf32, #tpu.memory_space<vmem>>, %arg10: memref<1x8x32xf32, #tpu.memory_space<vmem>>, %arg11: memref<4x8x1xf32, #tpu.memory_space<vmem>>, %arg12: memref<4x8x1xf32, #tpu.memory_space<vmem>>, %arg13: memref<4x8x8xf32, #tpu.memory_space<vmem>>) attributes {dimension_semantics = [#tpu.dimension_semantics<parallel>, #tpu.dimension_semantics<parallel>, #tpu.dimension_semantics<arbitrary>], iteration_bounds = array<i64: 2, 1, 1>, scalar_prefetch = 0 : i64, scratch_operands = 3 : i64, tpu.core_type = #tpu.core_type<tc>, window_params = [{transform_indices = @transform_0, window_bounds = array<i64: 1, 8, 32>}, {transform_indices = @transform_1, window_bounds = array<i64: 1, 12, 64>}, {transform_indices = @transform_2, window_bounds = array<i64: 1, 8, 32>}, {pipeline_mode = #tpu.pipeline_mode<synchronous>, transform_indices = @transform_3, window_bounds = array<i64: 32, 32>}, {pipeline_mode = #tpu.pipeline_mode<synchronous>, transform_indices = @transform_4, window_bounds = array<i64: 1, 32>}, {pipeline_mode = #tpu.pipeline_mode<synchronous>, transform_indices = @transform_5, window_bounds = array<i64: 1, 32>}, {pipeline_mode = #tpu.pipeline_mode<synchronous>, transform_indices = @transform_6, window_bounds = array<i64: 1, 32>}, {transform_indices = @transform_7, window_bounds = array<i64: 1, 8, 32>}]} {
    %c0_i32 = arith.constant 0 : i32
    %0 = arith.cmpi eq, %arg2, %c0_i32 : i32
    %1 = arith.extui %0 : i1 to i32
    %c0_i32_0 = arith.constant 0 : i32
    %2 = arith.cmpi ne, %1, %c0_i32_0 : i32
    scf.if %2 {
      %cst_115 = arith.constant -1.000000e+30 : f32
      %162 = vector.broadcast %cst_115 : f32 to vector<4x8x1xf32>
      %c0_116 = arith.constant 0 : index
      %c0_117 = arith.constant 0 : index
      %c0_118 = arith.constant 0 : index
      %163 = vector.load %arg11[%c0_116, %c0_117, %c0_118] : memref<4x8x1xf32, #tpu.memory_space<vmem>>, vector<4x8x1xf32>
      tpu.vector_store %arg11[%c0_116, %c0_117, %c0_118], %162 {strides = array<i32>} : memref<4x8x1xf32, #tpu.memory_space<vmem>>, vector<4x8x1xf32>,
      %cst_119 = arith.constant 0.000000e+00 : f32
      %164 = vector.broadcast %cst_119 : f32 to vector<4x8x1xf32>
      %c0_120 = arith.constant 0 : index
      %c0_121 = arith.constant 0 : index
      %c0_122 = arith.constant 0 : index
      %165 = vector.load %arg12[%c0_120, %c0_121, %c0_122] : memref<4x8x1xf32, #tpu.memory_space<vmem>>, vector<4x8x1xf32>
      tpu.vector_store %arg12[%c0_120, %c0_121, %c0_122], %164 {strides = array<i32>} : memref<4x8x1xf32, #tpu.memory_space<vmem>>, vector<4x8x1xf32>,
      %cst_123 = arith.constant 0.000000e+00 : f32
      %166 = vector.broadcast %cst_123 : f32 to vector<4x8x8xf32>
      %c0_124 = arith.constant 0 : index
      %c0_125 = arith.constant 0 : index
      %c0_126 = arith.constant 0 : index
      %167 = vector.load %arg13[%c0_124, %c0_125, %c0_126] : memref<4x8x8xf32, #tpu.memory_space<vmem>>, vector<4x8x8xf32>
      tpu.vector_store %arg13[%c0_124, %c0_125, %c0_126], %166 {strides = array<i32>} : memref<4x8x8xf32, #tpu.memory_space<vmem>>, vector<4x8x8xf32>,
    } else {
    }
    %c0 = arith.constant 0 : index
    %c0_1 = arith.constant 0 : index
    %c0_2 = arith.constant 0 : index
    %3 = vector.load %arg3[%c0, %c0_1, %c0_2] : memref<1x8x32xf32, #tpu.memory_space<vmem>>, vector<1x8x8xf32>
    %4 = vector.shape_cast %3 : vector<1x8x8xf32> to vector<8x8xf32>
    %c0_3 = arith.constant 0 : index
    %c0_4 = arith.constant 0 : index
    %c0_5 = arith.constant 0 : index
    %5 = vector.load %arg4[%c0_3, %c0_4, %c0_5] : memref<1x12x64xf32, #tpu.memory_space<vmem>>, vector<1x12x8xf32>
    %6 = vector.shape_cast %5 : vector<1x12x8xf32> to vector<12x8xf32>
    %c0_6 = arith.constant 0 : index
    %c0_7 = arith.constant 0 : index
    %c32 = arith.constant 32 : index
    %7 = vector.load %arg4[%c0_6, %c0_7, %c32] : memref<1x12x64xf32, #tpu.memory_space<vmem>>, vector<1x12x8xf32>
    %8 = vector.shape_cast %7 : vector<1x12x8xf32> to vector<12x8xf32>
    %9 = tpu.transpose %6, [1, 0] : vector<12x8xf32> -> vector<8x12xf32>
    %cst = arith.constant dense<0.000000e+00> : vector<8x12xf32>
    %10 = tpu.matmul %4, %9, %cst {dimension_numbers = #tpu.dot_dimension_numbers<[1], [0], [0], [1], [0, 0, 1, 1], [], []>} : vector<8x8xf32>, vector<8x12xf32>, vector<8x12xf32> -> vector<8x12xf32>
    %c0_8 = arith.constant 0 : index
    %c0_9 = arith.constant 0 : index
    %c0_10 = arith.constant 0 : index
    %11 = vector.load %arg11[%c0_8, %c0_9, %c0_10] : memref<4x8x1xf32, #tpu.memory_space<vmem>>, vector<1x8x1xf32>
    %12 = vector.shape_cast %11 : vector<1x8x1xf32> to vector<8x1xf32>
    %cst_11 = arith.constant dense<0xFF800000> : vector<8xf32>
    %13 = vector.multi_reduction <maximumf>, %10, %cst_11 [1] : vector<8x12xf32> to vector<8xf32>
    %14 = vector.shape_cast %13 : vector<8xf32> to vector<8x1xf32>
    %15 = arith.maximumf %12, %14 : vector<8x1xf32>
    %16 = arith.subf %12, %15 : vector<8x1xf32>
    %17 = math.exp %16 : vector<8x1xf32>
    %18 = vector.broadcast %15 : vector<8x1xf32> to vector<8x12xf32>
    %19 = arith.subf %10, %18 : vector<8x12xf32>
    %20 = math.exp %19 : vector<8x12xf32>
    %c0_12 = arith.constant 0 : index
    %c0_13 = arith.constant 0 : index
    %c0_14 = arith.constant 0 : index
    %21 = vector.load %arg12[%c0_12, %c0_13, %c0_14] : memref<4x8x1xf32, #tpu.memory_space<vmem>>, vector<1x8x1xf32>
    %22 = vector.shape_cast %21 : vector<1x8x1xf32> to vector<8x1xf32>
    %23 = arith.mulf %17, %22 : vector<8x1xf32>
    %cst_15 = arith.constant dense<0.000000e+00> : vector<8xf32>
    %24 = vector.multi_reduction <add>, %20, %cst_15 [1] : vector<8x12xf32> to vector<8xf32>
    %25 = vector.shape_cast %24 : vector<8xf32> to vector<8x1xf32>
    %26 = arith.addf %23, %25 : vector<8x1xf32>
    %c0_16 = arith.constant 0 : index
    %c0_17 = arith.constant 0 : index
    %c0_18 = arith.constant 0 : index
    %27 = vector.load %arg12[%c0_16, %c0_17, %c0_18] : memref<4x8x1xf32, #tpu.memory_space<vmem>>, vector<1x8x1xf32>
    %28 = vector.shape_cast %27 : vector<1x8x1xf32> to vector<8x1xf32>
    %29 = vector.shape_cast %26 : vector<8x1xf32> to vector<1x8x1xf32>
    tpu.vector_store %arg12[%c0_16, %c0_17, %c0_18], %29 {strides = array<i32>} : memref<4x8x1xf32, #tpu.memory_space<vmem>>, vector<1x8x1xf32>,
    %c0_19 = arith.constant 0 : index
    %c0_20 = arith.constant 0 : index
    %c0_21 = arith.constant 0 : index
    %30 = vector.load %arg13[%c0_19, %c0_20, %c0_21] : memref<4x8x8xf32, #tpu.memory_space<vmem>>, vector<1x8x8xf32>
    %31 = vector.shape_cast %30 : vector<1x8x8xf32> to vector<8x8xf32>
    %32 = vector.broadcast %17 : vector<8x1xf32> to vector<8x8xf32>
    %33 = arith.mulf %32, %31 : vector<8x8xf32>
    %cst_22 = arith.constant dense<0.000000e+00> : vector<8x8xf32>
    %34 = tpu.matmul %20, %8, %cst_22 {dimension_numbers = #tpu.dot_dimension_numbers<[1], [0], [0], [1], [0, 0, 1, 1], [], []>} : vector<8x12xf32>, vector<12x8xf32>, vector<8x8xf32> -> vector<8x8xf32>
    %35 = arith.addf %33, %34 : vector<8x8xf32>
    %c0_23 = arith.constant 0 : index
    %c0_24 = arith.constant 0 : index
    %c0_25 = arith.constant 0 : index
    %36 = vector.load %arg13[%c0_23, %c0_24, %c0_25] : memref<4x8x8xf32, #tpu.memory_space<vmem>>, vector<1x8x8xf32>
    %37 = vector.shape_cast %36 : vector<1x8x8xf32> to vector<8x8xf32>
    %38 = vector.shape_cast %35 : vector<8x8xf32> to vector<1x8x8xf32>
    tpu.vector_store %arg13[%c0_23, %c0_24, %c0_25], %38 {strides = array<i32>} : memref<4x8x8xf32, #tpu.memory_space<vmem>>, vector<1x8x8xf32>,
    %c0_26 = arith.constant 0 : index
    %c0_27 = arith.constant 0 : index
    %c0_28 = arith.constant 0 : index
    %39 = vector.load %arg11[%c0_26, %c0_27, %c0_28] : memref<4x8x1xf32, #tpu.memory_space<vmem>>, vector<1x8x1xf32>
    %40 = vector.shape_cast %39 : vector<1x8x1xf32> to vector<8x1xf32>
    %41 = vector.shape_cast %15 : vector<8x1xf32> to vector<1x8x1xf32>
    tpu.vector_store %arg11[%c0_26, %c0_27, %c0_28], %41 {strides = array<i32>} : memref<4x8x1xf32, #tpu.memory_space<vmem>>, vector<1x8x1xf32>,
    %c0_29 = arith.constant 0 : index
    %c0_30 = arith.constant 0 : index
    %c8 = arith.constant 8 : index
    %42 = vector.load %arg3[%c0_29, %c0_30, %c8] : memref<1x8x32xf32, #tpu.memory_space<vmem>>, vector<1x8x8xf32>
    %43 = vector.shape_cast %42 : vector<1x8x8xf32> to vector<8x8xf32>
    %c0_31 = arith.constant 0 : index
    %c0_32 = arith.constant 0 : index
    %c8_33 = arith.constant 8 : index
    %44 = vector.load %arg4[%c0_31, %c0_32, %c8_33] : memref<1x12x64xf32, #tpu.memory_space<vmem>>, vector<1x12x8xf32>
    %45 = vector.shape_cast %44 : vector<1x12x8xf32> to vector<12x8xf32>
    %c0_34 = arith.constant 0 : index
    %c0_35 = arith.constant 0 : index
    %c40 = arith.constant 40 : index
    %46 = vector.load %arg4[%c0_34, %c0_35, %c40] : memref<1x12x64xf32, #tpu.memory_space<vmem>>, vector<1x12x8xf32>
    %47 = vector.shape_cast %46 : vector<1x12x8xf32> to vector<12x8xf32>
    %48 = tpu.transpose %45, [1, 0] : vector<12x8xf32> -> vector<8x12xf32>
    %cst_36 = arith.constant dense<0.000000e+00> : vector<8x12xf32>
    %49 = tpu.matmul %43, %48, %cst_36 {dimension_numbers = #tpu.dot_dimension_numbers<[1], [0], [0], [1], [0, 0, 1, 1], [], []>} : vector<8x8xf32>, vector<8x12xf32>, vector<8x12xf32> -> vector<8x12xf32>
    %c1 = arith.constant 1 : index
    %c0_37 = arith.constant 0 : index
    %c0_38 = arith.constant 0 : index
    %50 = vector.load %arg11[%c1, %c0_37, %c0_38] : memref<4x8x1xf32, #tpu.memory_space<vmem>>, vector<1x8x1xf32>
    %51 = vector.shape_cast %50 : vector<1x8x1xf32> to vector<8x1xf32>
    %cst_39 = arith.constant dense<0xFF800000> : vector<8xf32>
    %52 = vector.multi_reduction <maximumf>, %49, %cst_39 [1] : vector<8x12xf32> to vector<8xf32>
    %53 = vector.shape_cast %52 : vector<8xf32> to vector<8x1xf32>
    %54 = arith.maximumf %51, %53 : vector<8x1xf32>
    %55 = arith.subf %51, %54 : vector<8x1xf32>
    %56 = math.exp %55 : vector<8x1xf32>
    %57 = vector.broadcast %54 : vector<8x1xf32> to vector<8x12xf32>
    %58 = arith.subf %49, %57 : vector<8x12xf32>
    %59 = math.exp %58 : vector<8x12xf32>
    %c1_40 = arith.constant 1 : index
    %c0_41 = arith.constant 0 : index
    %c0_42 = arith.constant 0 : index
    %60 = vector.load %arg12[%c1_40, %c0_41, %c0_42] : memref<4x8x1xf32, #tpu.memory_space<vmem>>, vector<1x8x1xf32>
    %61 = vector.shape_cast %60 : vector<1x8x1xf32> to vector<8x1xf32>
    %62 = arith.mulf %56, %61 : vector<8x1xf32>
    %cst_43 = arith.constant dense<0.000000e+00> : vector<8xf32>
    %63 = vector.multi_reduction <add>, %59, %cst_43 [1] : vector<8x12xf32> to vector<8xf32>
    %64 = vector.shape_cast %63 : vector<8xf32> to vector<8x1xf32>
    %65 = arith.addf %62, %64 : vector<8x1xf32>
    %c1_44 = arith.constant 1 : index
    %c0_45 = arith.constant 0 : index
    %c0_46 = arith.constant 0 : index
    %66 = vector.load %arg12[%c1_44, %c0_45, %c0_46] : memref<4x8x1xf32, #tpu.memory_space<vmem>>, vector<1x8x1xf32>
    %67 = vector.shape_cast %66 : vector<1x8x1xf32> to vector<8x1xf32>
    %68 = vector.shape_cast %65 : vector<8x1xf32> to vector<1x8x1xf32>
    tpu.vector_store %arg12[%c1_44, %c0_45, %c0_46], %68 {strides = array<i32>} : memref<4x8x1xf32, #tpu.memory_space<vmem>>, vector<1x8x1xf32>,
    %c1_47 = arith.constant 1 : index
    %c0_48 = arith.constant 0 : index
    %c0_49 = arith.constant 0 : index
    %69 = vector.load %arg13[%c1_47, %c0_48, %c0_49] : memref<4x8x8xf32, #tpu.memory_space<vmem>>, vector<1x8x8xf32>
    %70 = vector.shape_cast %69 : vector<1x8x8xf32> to vector<8x8xf32>
    %71 = vector.broadcast %56 : vector<8x1xf32> to vector<8x8xf32>
    %72 = arith.mulf %71, %70 : vector<8x8xf32>
    %cst_50 = arith.constant dense<0.000000e+00> : vector<8x8xf32>
    %73 = tpu.matmul %59, %47, %cst_50 {dimension_numbers = #tpu.dot_dimension_numbers<[1], [0], [0], [1], [0, 0, 1, 1], [], []>} : vector<8x12xf32>, vector<12x8xf32>, vector<8x8xf32> -> vector<8x8xf32>
    %74 = arith.addf %72, %73 : vector<8x8xf32>
    %c1_51 = arith.constant 1 : index
    %c0_52 = arith.constant 0 : index
    %c0_53 = arith.constant 0 : index
    %75 = vector.load %arg13[%c1_51, %c0_52, %c0_53] : memref<4x8x8xf32, #tpu.memory_space<vmem>>, vector<1x8x8xf32>
    %76 = vector.shape_cast %75 : vector<1x8x8xf32> to vector<8x8xf32>
    %77 = vector.shape_cast %74 : vector<8x8xf32> to vector<1x8x8xf32>
    tpu.vector_store %arg13[%c1_51, %c0_52, %c0_53], %77 {strides = array<i32>} : memref<4x8x8xf32, #tpu.memory_space<vmem>>, vector<1x8x8xf32>,
    %c1_54 = arith.constant 1 : index
    %c0_55 = arith.constant 0 : index
    %c0_56 = arith.constant 0 : index
    %78 = vector.load %arg11[%c1_54, %c0_55, %c0_56] : memref<4x8x1xf32, #tpu.memory_space<vmem>>, vector<1x8x1xf32>
    %79 = vector.shape_cast %78 : vector<1x8x1xf32> to vector<8x1xf32>
    %80 = vector.shape_cast %54 : vector<8x1xf32> to vector<1x8x1xf32>
    tpu.vector_store %arg11[%c1_54, %c0_55, %c0_56], %80 {strides = array<i32>} : memref<4x8x1xf32, #tpu.memory_space<vmem>>, vector<1x8x1xf32>,
    %c0_57 = arith.constant 0 : index
    %c0_58 = arith.constant 0 : index
    %c16 = arith.constant 16 : index
    %81 = vector.load %arg3[%c0_57, %c0_58, %c16] : memref<1x8x32xf32, #tpu.memory_space<vmem>>, vector<1x8x8xf32>
    %82 = vector.shape_cast %81 : vector<1x8x8xf32> to vector<8x8xf32>
    %c0_59 = arith.constant 0 : index
    %c0_60 = arith.constant 0 : index
    %c16_61 = arith.constant 16 : index
    %83 = vector.load %arg4[%c0_59, %c0_60, %c16_61] : memref<1x12x64xf32, #tpu.memory_space<vmem>>, vector<1x12x8xf32>
    %84 = vector.shape_cast %83 : vector<1x12x8xf32> to vector<12x8xf32>
    %c0_62 = arith.constant 0 : index
    %c0_63 = arith.constant 0 : index
    %c48 = arith.constant 48 : index
    %85 = vector.load %arg4[%c0_62, %c0_63, %c48] : memref<1x12x64xf32, #tpu.memory_space<vmem>>, vector<1x12x8xf32>
    %86 = vector.shape_cast %85 : vector<1x12x8xf32> to vector<12x8xf32>
    %87 = tpu.transpose %84, [1, 0] : vector<12x8xf32> -> vector<8x12xf32>
    %cst_64 = arith.constant dense<0.000000e+00> : vector<8x12xf32>
    %88 = tpu.matmul %82, %87, %cst_64 {dimension_numbers = #tpu.dot_dimension_numbers<[1], [0], [0], [1], [0, 0, 1, 1], [], []>} : vector<8x8xf32>, vector<8x12xf32>, vector<8x12xf32> -> vector<8x12xf32>
    %c2 = arith.constant 2 : index
    %c0_65 = arith.constant 0 : index
    %c0_66 = arith.constant 0 : index
    %89 = vector.load %arg11[%c2, %c0_65, %c0_66] : memref<4x8x1xf32, #tpu.memory_space<vmem>>, vector<1x8x1xf32>
    %90 = vector.shape_cast %89 : vector<1x8x1xf32> to vector<8x1xf32>
    %cst_67 = arith.constant dense<0xFF800000> : vector<8xf32>
    %91 = vector.multi_reduction <maximumf>, %88, %cst_67 [1] : vector<8x12xf32> to vector<8xf32>
    %92 = vector.shape_cast %91 : vector<8xf32> to vector<8x1xf32>
    %93 = arith.maximumf %90, %92 : vector<8x1xf32>
    %94 = arith.subf %90, %93 : vector<8x1xf32>
    %95 = math.exp %94 : vector<8x1xf32>
    %96 = vector.broadcast %93 : vector<8x1xf32> to vector<8x12xf32>
    %97 = arith.subf %88, %96 : vector<8x12xf32>
    %98 = math.exp %97 : vector<8x12xf32>
    %c2_68 = arith.constant 2 : index
    %c0_69 = arith.constant 0 : index
    %c0_70 = arith.constant 0 : index
    %99 = vector.load %arg12[%c2_68, %c0_69, %c0_70] : memref<4x8x1xf32, #tpu.memory_space<vmem>>, vector<1x8x1xf32>
    %100 = vector.shape_cast %99 : vector<1x8x1xf32> to vector<8x1xf32>
    %101 = arith.mulf %95, %100 : vector<8x1xf32>
    %cst_71 = arith.constant dense<0.000000e+00> : vector<8xf32>
    %102 = vector.multi_reduction <add>, %98, %cst_71 [1] : vector<8x12xf32> to vector<8xf32>
    %103 = vector.shape_cast %102 : vector<8xf32> to vector<8x1xf32>
    %104 = arith.addf %101, %103 : vector<8x1xf32>
    %c2_72 = arith.constant 2 : index
    %c0_73 = arith.constant 0 : index
    %c0_74 = arith.constant 0 : index
    %105 = vector.load %arg12[%c2_72, %c0_73, %c0_74] : memref<4x8x1xf32, #tpu.memory_space<vmem>>, vector<1x8x1xf32>
    %106 = vector.shape_cast %105 : vector<1x8x1xf32> to vector<8x1xf32>
    %107 = vector.shape_cast %104 : vector<8x1xf32> to vector<1x8x1xf32>
    tpu.vector_store %arg12[%c2_72, %c0_73, %c0_74], %107 {strides = array<i32>} : memref<4x8x1xf32, #tpu.memory_space<vmem>>, vector<1x8x1xf32>,
    %c2_75 = arith.constant 2 : index
    %c0_76 = arith.constant 0 : index
    %c0_77 = arith.constant 0 : index
    %108 = vector.load %arg13[%c2_75, %c0_76, %c0_77] : memref<4x8x8xf32, #tpu.memory_space<vmem>>, vector<1x8x8xf32>
    %109 = vector.shape_cast %108 : vector<1x8x8xf32> to vector<8x8xf32>
    %110 = vector.broadcast %95 : vector<8x1xf32> to vector<8x8xf32>
    %111 = arith.mulf %110, %109 : vector<8x8xf32>
    %cst_78 = arith.constant dense<0.000000e+00> : vector<8x8xf32>
    %112 = tpu.matmul %98, %86, %cst_78 {dimension_numbers = #tpu.dot_dimension_numbers<[1], [0], [0], [1], [0, 0, 1, 1], [], []>} : vector<8x12xf32>, vector<12x8xf32>, vector<8x8xf32> -> vector<8x8xf32>
    %113 = arith.addf %111, %112 : vector<8x8xf32>
    %c2_79 = arith.constant 2 : index
    %c0_80 = arith.constant 0 : index
    %c0_81 = arith.constant 0 : index
    %114 = vector.load %arg13[%c2_79, %c0_80, %c0_81] : memref<4x8x8xf32, #tpu.memory_space<vmem>>, vector<1x8x8xf32>
    %115 = vector.shape_cast %114 : vector<1x8x8xf32> to vector<8x8xf32>
    %116 = vector.shape_cast %113 : vector<8x8xf32> to vector<1x8x8xf32>
    tpu.vector_store %arg13[%c2_79, %c0_80, %c0_81], %116 {strides = array<i32>} : memref<4x8x8xf32, #tpu.memory_space<vmem>>, vector<1x8x8xf32>,
    %c2_82 = arith.constant 2 : index
    %c0_83 = arith.constant 0 : index
    %c0_84 = arith.constant 0 : index
    %117 = vector.load %arg11[%c2_82, %c0_83, %c0_84] : memref<4x8x1xf32, #tpu.memory_space<vmem>>, vector<1x8x1xf32>
    %118 = vector.shape_cast %117 : vector<1x8x1xf32> to vector<8x1xf32>
    %119 = vector.shape_cast %93 : vector<8x1xf32> to vector<1x8x1xf32>
    tpu.vector_store %arg11[%c2_82, %c0_83, %c0_84], %119 {strides = array<i32>} : memref<4x8x1xf32, #tpu.memory_space<vmem>>, vector<1x8x1xf32>,
    %c0_85 = arith.constant 0 : index
    %c0_86 = arith.constant 0 : index
    %c24 = arith.constant 24 : index
    %120 = vector.load %arg3[%c0_85, %c0_86, %c24] : memref<1x8x32xf32, #tpu.memory_space<vmem>>, vector<1x8x8xf32>
    %121 = vector.shape_cast %120 : vector<1x8x8xf32> to vector<8x8xf32>
    %c0_87 = arith.constant 0 : index
    %c0_88 = arith.constant 0 : index
    %c24_89 = arith.constant 24 : index
    %122 = vector.load %arg4[%c0_87, %c0_88, %c24_89] : memref<1x12x64xf32, #tpu.memory_space<vmem>>, vector<1x12x8xf32>
    %123 = vector.shape_cast %122 : vector<1x12x8xf32> to vector<12x8xf32>
    %c0_90 = arith.constant 0 : index
    %c0_91 = arith.constant 0 : index
    %c56 = arith.constant 56 : index
    %124 = vector.load %arg4[%c0_90, %c0_91, %c56] : memref<1x12x64xf32, #tpu.memory_space<vmem>>, vector<1x12x8xf32>
    %125 = vector.shape_cast %124 : vector<1x12x8xf32> to vector<12x8xf32>
    %126 = tpu.transpose %123, [1, 0] : vector<12x8xf32> -> vector<8x12xf32>
    %cst_92 = arith.constant dense<0.000000e+00> : vector<8x12xf32>
    %127 = tpu.matmul %121, %126, %cst_92 {dimension_numbers = #tpu.dot_dimension_numbers<[1], [0], [0], [1], [0, 0, 1, 1], [], []>} : vector<8x8xf32>, vector<8x12xf32>, vector<8x12xf32> -> vector<8x12xf32>
    %c3 = arith.constant 3 : index
    %c0_93 = arith.constant 0 : index
    %c0_94 = arith.constant 0 : index
    %128 = vector.load %arg11[%c3, %c0_93, %c0_94] : memref<4x8x1xf32, #tpu.memory_space<vmem>>, vector<1x8x1xf32>
    %129 = vector.shape_cast %128 : vector<1x8x1xf32> to vector<8x1xf32>
    %cst_95 = arith.constant dense<0xFF800000> : vector<8xf32>
    %130 = vector.multi_reduction <maximumf>, %127, %cst_95 [1] : vector<8x12xf32> to vector<8xf32>
    %131 = vector.shape_cast %130 : vector<8xf32> to vector<8x1xf32>
    %132 = arith.maximumf %129, %131 : vector<8x1xf32>
    %133 = arith.subf %129, %132 : vector<8x1xf32>
    %134 = math.exp %133 : vector<8x1xf32>
    %135 = vector.broadcast %132 : vector<8x1xf32> to vector<8x12xf32>
    %136 = arith.subf %127, %135 : vector<8x12xf32>
    %137 = math.exp %136 : vector<8x12xf32>
    %c3_96 = arith.constant 3 : index
    %c0_97 = arith.constant 0 : index
    %c0_98 = arith.constant 0 : index
    %138 = vector.load %arg12[%c3_96, %c0_97, %c0_98] : memref<4x8x1xf32, #tpu.memory_space<vmem>>, vector<1x8x1xf32>
    %139 = vector.shape_cast %138 : vector<1x8x1xf32> to vector<8x1xf32>
    %140 = arith.mulf %134, %139 : vector<8x1xf32>
    %cst_99 = arith.constant dense<0.000000e+00> : vector<8xf32>
    %141 = vector.multi_reduction <add>, %137, %cst_99 [1] : vector<8x12xf32> to vector<8xf32>
    %142 = vector.shape_cast %141 : vector<8xf32> to vector<8x1xf32>
    %143 = arith.addf %140, %142 : vector<8x1xf32>
    %c3_100 = arith.constant 3 : index
    %c0_101 = arith.constant 0 : index
    %c0_102 = arith.constant 0 : index
    %144 = vector.load %arg12[%c3_100, %c0_101, %c0_102] : memref<4x8x1xf32, #tpu.memory_space<vmem>>, vector<1x8x1xf32>
    %145 = vector.shape_cast %144 : vector<1x8x1xf32> to vector<8x1xf32>
    %146 = vector.shape_cast %143 : vector<8x1xf32> to vector<1x8x1xf32>
    tpu.vector_store %arg12[%c3_100, %c0_101, %c0_102], %146 {strides = array<i32>} : memref<4x8x1xf32, #tpu.memory_space<vmem>>, vector<1x8x1xf32>,
    %c3_103 = arith.constant 3 : index
    %c0_104 = arith.constant 0 : index
    %c0_105 = arith.constant 0 : index
    %147 = vector.load %arg13[%c3_103, %c0_104, %c0_105] : memref<4x8x8xf32, #tpu.memory_space<vmem>>, vector<1x8x8xf32>
    %148 = vector.shape_cast %147 : vector<1x8x8xf32> to vector<8x8xf32>
    %149 = vector.broadcast %134 : vector<8x1xf32> to vector<8x8xf32>
    %150 = arith.mulf %149, %148 : vector<8x8xf32>
    %cst_106 = arith.constant dense<0.000000e+00> : vector<8x8xf32>
    %151 = tpu.matmul %137, %125, %cst_106 {dimension_numbers = #tpu.dot_dimension_numbers<[1], [0], [0], [1], [0, 0, 1, 1], [], []>} : vector<8x12xf32>, vector<12x8xf32>, vector<8x8xf32> -> vector<8x8xf32>
    %152 = arith.addf %150, %151 : vector<8x8xf32>
    %c3_107 = arith.constant 3 : index
    %c0_108 = arith.constant 0 : index
    %c0_109 = arith.constant 0 : index
    %153 = vector.load %arg13[%c3_107, %c0_108, %c0_109] : memref<4x8x8xf32, #tpu.memory_space<vmem>>, vector<1x8x8xf32>
    %154 = vector.shape_cast %153 : vector<1x8x8xf32> to vector<8x8xf32>
    %155 = vector.shape_cast %152 : vector<8x8xf32> to vector<1x8x8xf32>
    tpu.vector_store %arg13[%c3_107, %c0_108, %c0_109], %155 {strides = array<i32>} : memref<4x8x8xf32, #tpu.memory_space<vmem>>, vector<1x8x8xf32>,
    %c3_110 = arith.constant 3 : index
    %c0_111 = arith.constant 0 : index
    %c0_112 = arith.constant 0 : index
    %156 = vector.load %arg11[%c3_110, %c0_111, %c0_112] : memref<4x8x1xf32, #tpu.memory_space<vmem>>, vector<1x8x1xf32>
    %157 = vector.shape_cast %156 : vector<1x8x1xf32> to vector<8x1xf32>
    %158 = vector.shape_cast %132 : vector<8x1xf32> to vector<1x8x1xf32>
    tpu.vector_store %arg11[%c3_110, %c0_111, %c0_112], %158 {strides = array<i32>} : memref<4x8x1xf32, #tpu.memory_space<vmem>>, vector<1x8x1xf32>,
    %c0_i32_113 = arith.constant 0 : i32
    %159 = arith.cmpi eq, %arg2, %c0_i32_113 : i32
    %160 = arith.extui %159 : i1 to i32
    %c0_i32_114 = arith.constant 0 : i32
    %161 = arith.cmpi ne, %160, %c0_i32_114 : i32
    scf.if %161 {
      %cst_115 = arith.constant 0.000000e+00 : f32
      %162 = vector.broadcast %cst_115 : f32 to vector<8x32xf32>
      %c0_116 = arith.constant 0 : index
      %c0_117 = arith.constant 0 : index
      %c0_118 = arith.constant 0 : index
      %163 = vector.load %arg12[%c0_116, %c0_117, %c0_118] : memref<4x8x1xf32, #tpu.memory_space<vmem>>, vector<1x8x1xf32>
      %164 = vector.shape_cast %163 : vector<1x8x1xf32> to vector<8x1xf32>
      %165 = tpu.reciprocal %164 {approx = true} : vector<8x1xf32> -> vector<8x1xf32>
      %c0_119 = arith.constant 0 : index
      %c0_120 = arith.constant 0 : index
      %c0_121 = arith.constant 0 : index
      %166 = vector.load %arg13[%c0_119, %c0_120, %c0_121] : memref<4x8x8xf32, #tpu.memory_space<vmem>>, vector<1x8x8xf32>
      %167 = vector.shape_cast %166 : vector<1x8x8xf32> to vector<8x8xf32>
      %168 = vector.broadcast %165 : vector<8x1xf32> to vector<8x8xf32>
      %169 = arith.mulf %167, %168 : vector<8x8xf32>
      %c0_122 = arith.constant 0 : index
      %c0_123 = arith.constant 0 : index
      %170 = vector.load %arg6[%c0_122, %c0_123] : memref<32x32xf32, #tpu.memory_space<vmem>>, vector<8x32xf32>
      %cst_124 = arith.constant dense<0.000000e+00> : vector<8x32xf32>
      %171 = tpu.matmul %169, %170, %cst_124 {dimension_numbers = #tpu.dot_dimension_numbers<[1], [0], [0], [1], [0, 0, 1, 1], [], []>} : vector<8x8xf32>, vector<8x32xf32>, vector<8x32xf32> -> vector<8x32xf32>
      %172 = arith.addf %162, %171 : vector<8x32xf32>
      %c1_125 = arith.constant 1 : index
      %c0_126 = arith.constant 0 : index
      %c0_127 = arith.constant 0 : index
      %173 = vector.load %arg12[%c1_125, %c0_126, %c0_127] : memref<4x8x1xf32, #tpu.memory_space<vmem>>, vector<1x8x1xf32>
      %174 = vector.shape_cast %173 : vector<1x8x1xf32> to vector<8x1xf32>
      %175 = tpu.reciprocal %174 {approx = true} : vector<8x1xf32> -> vector<8x1xf32>
      %c1_128 = arith.constant 1 : index
      %c0_129 = arith.constant 0 : index
      %c0_130 = arith.constant 0 : index
      %176 = vector.load %arg13[%c1_128, %c0_129, %c0_130] : memref<4x8x8xf32, #tpu.memory_space<vmem>>, vector<1x8x8xf32>
      %177 = vector.shape_cast %176 : vector<1x8x8xf32> to vector<8x8xf32>
      %178 = vector.broadcast %175 : vector<8x1xf32> to vector<8x8xf32>
      %179 = arith.mulf %177, %178 : vector<8x8xf32>
      %c8_131 = arith.constant 8 : index
      %c0_132 = arith.constant 0 : index
      %180 = vector.load %arg6[%c8_131, %c0_132] : memref<32x32xf32, #tpu.memory_space<vmem>>, vector<8x32xf32>
      %cst_133 = arith.constant dense<0.000000e+00> : vector<8x32xf32>
      %181 = tpu.matmul %179, %180, %cst_133 {dimension_numbers = #tpu.dot_dimension_numbers<[1], [0], [0], [1], [0, 0, 1, 1], [], []>} : vector<8x8xf32>, vector<8x32xf32>, vector<8x32xf32> -> vector<8x32xf32>
      %182 = arith.addf %172, %181 : vector<8x32xf32>
      %c2_134 = arith.constant 2 : index
      %c0_135 = arith.constant 0 : index
      %c0_136 = arith.constant 0 : index
      %183 = vector.load %arg12[%c2_134, %c0_135, %c0_136] : memref<4x8x1xf32, #tpu.memory_space<vmem>>, vector<1x8x1xf32>
      %184 = vector.shape_cast %183 : vector<1x8x1xf32> to vector<8x1xf32>
      %185 = tpu.reciprocal %184 {approx = true} : vector<8x1xf32> -> vector<8x1xf32>
      %c2_137 = arith.constant 2 : index
      %c0_138 = arith.constant 0 : index
      %c0_139 = arith.constant 0 : index
      %186 = vector.load %arg13[%c2_137, %c0_138, %c0_139] : memref<4x8x8xf32, #tpu.memory_space<vmem>>, vector<1x8x8xf32>
      %187 = vector.shape_cast %186 : vector<1x8x8xf32> to vector<8x8xf32>
      %188 = vector.broadcast %185 : vector<8x1xf32> to vector<8x8xf32>
      %189 = arith.mulf %187, %188 : vector<8x8xf32>
      %c16_140 = arith.constant 16 : index
      %c0_141 = arith.constant 0 : index
      %190 = vector.load %arg6[%c16_140, %c0_141] : memref<32x32xf32, #tpu.memory_space<vmem>>, vector<8x32xf32>
      %cst_142 = arith.constant dense<0.000000e+00> : vector<8x32xf32>
      %191 = tpu.matmul %189, %190, %cst_142 {dimension_numbers = #tpu.dot_dimension_numbers<[1], [0], [0], [1], [0, 0, 1, 1], [], []>} : vector<8x8xf32>, vector<8x32xf32>, vector<8x32xf32> -> vector<8x32xf32>
      %192 = arith.addf %182, %191 : vector<8x32xf32>
      %c3_143 = arith.constant 3 : index
      %c0_144 = arith.constant 0 : index
      %c0_145 = arith.constant 0 : index
      %193 = vector.load %arg12[%c3_143, %c0_144, %c0_145] : memref<4x8x1xf32, #tpu.memory_space<vmem>>, vector<1x8x1xf32>
      %194 = vector.shape_cast %193 : vector<1x8x1xf32> to vector<8x1xf32>
      %195 = tpu.reciprocal %194 {approx = true} : vector<8x1xf32> -> vector<8x1xf32>
      %c3_146 = arith.constant 3 : index
      %c0_147 = arith.constant 0 : index
      %c0_148 = arith.constant 0 : index
      %196 = vector.load %arg13[%c3_146, %c0_147, %c0_148] : memref<4x8x8xf32, #tpu.memory_space<vmem>>, vector<1x8x8xf32>
      %197 = vector.shape_cast %196 : vector<1x8x8xf32> to vector<8x8xf32>
      %198 = vector.broadcast %195 : vector<8x1xf32> to vector<8x8xf32>
      %199 = arith.mulf %197, %198 : vector<8x8xf32>
      %c24_149 = arith.constant 24 : index
      %c0_150 = arith.constant 0 : index
      %200 = vector.load %arg6[%c24_149, %c0_150] : memref<32x32xf32, #tpu.memory_space<vmem>>, vector<8x32xf32>
      %cst_151 = arith.constant dense<0.000000e+00> : vector<8x32xf32>
      %201 = tpu.matmul %199, %200, %cst_151 {dimension_numbers = #tpu.dot_dimension_numbers<[1], [0], [0], [1], [0, 0, 1, 1], [], []>} : vector<8x8xf32>, vector<8x32xf32>, vector<8x32xf32> -> vector<8x32xf32>
      %202 = arith.addf %192, %201 : vector<8x32xf32>
      %c0_152 = arith.constant 0 : index
      %c0_153 = arith.constant 0 : index
      %c0_154 = arith.constant 0 : index
      %203 = vector.load %arg5[%c0_152, %c0_153, %c0_154] : memref<1x8x32xf32, #tpu.memory_space<vmem>>, vector<1x8x32xf32>
      %204 = vector.shape_cast %203 : vector<1x8x32xf32> to vector<8x32xf32>
      %205 = arith.addf %204, %202 : vector<8x32xf32>
      %c0_155 = arith.constant 0 : index
      %c0_156 = arith.constant 0 : index
      %206 = vector.load %arg7[%c0_155, %c0_156] : memref<1x32xf32, #tpu.memory_space<vmem>>, vector<1x32xf32>
      %207 = vector.broadcast %206 : vector<1x32xf32> to vector<8x32xf32>
      %208 = arith.addf %205, %207 : vector<8x32xf32>
      %c0_157 = arith.constant 0 : index
      %c0_158 = arith.constant 0 : index
      %209 = vector.load %arg8[%c0_157, %c0_158] : memref<1x32xf32, #tpu.memory_space<vmem>>, vector<1x32xf32>
      %c0_159 = arith.constant 0 : index
      %c0_160 = arith.constant 0 : index
      %210 = vector.load %arg9[%c0_159, %c0_160] : memref<1x32xf32, #tpu.memory_space<vmem>>, vector<1x32xf32>
      %cst_161 = arith.constant dense<0.000000e+00> : vector<8xf32>
      %211 = vector.multi_reduction <add>, %208, %cst_161 [1] : vector<8x32xf32> to vector<8xf32>
      %212 = vector.shape_cast %211 : vector<8xf32> to vector<8x1xf32>
      %cst_162 = arith.constant 3.200000e+01 : f32
      %213 = vector.broadcast %cst_162 : f32 to vector<8x1xf32>
      %214 = arith.divf %212, %213 : vector<8x1xf32>
      %215 = vector.broadcast %214 : vector<8x1xf32> to vector<8x32xf32>
      %216 = arith.subf %208, %215 : vector<8x32xf32>
      %217 = arith.mulf %216, %216 : vector<8x32xf32>
      %cst_163 = arith.constant dense<0.000000e+00> : vector<8xf32>
      %218 = vector.multi_reduction <add>, %217, %cst_163 [1] : vector<8x32xf32> to vector<8xf32>
      %219 = vector.shape_cast %218 : vector<8xf32> to vector<8x1xf32>
      %cst_164 = arith.constant 3.200000e+01 : f32
      %220 = vector.broadcast %cst_164 : f32 to vector<8x1xf32>
      %221 = arith.divf %219, %220 : vector<8x1xf32>
      %222 = vector.broadcast %214 : vector<8x1xf32> to vector<8x32xf32>
      %223 = arith.subf %208, %222 : vector<8x32xf32>
      %cst_165 = arith.constant 9.99999974E-6 : f32
      %224 = vector.broadcast %cst_165 : f32 to vector<8x1xf32>
      %225 = arith.addf %221, %224 : vector<8x1xf32>
      %226 = math.rsqrt %225 : vector<8x1xf32>
      %227 = vector.broadcast %226 : vector<8x1xf32> to vector<8x32xf32>
      %228 = arith.mulf %223, %227 : vector<8x32xf32>
      %229 = vector.broadcast %209 : vector<1x32xf32> to vector<8x32xf32>
      %230 = arith.mulf %228, %229 : vector<8x32xf32>
      %231 = vector.broadcast %210 : vector<1x32xf32> to vector<8x32xf32>
      %232 = arith.addf %230, %231 : vector<8x32xf32>
      %c0_166 = arith.constant 0 : index
      %c0_167 = arith.constant 0 : index
      %c0_168 = arith.constant 0 : index
      %233 = vector.load %arg10[%c0_166, %c0_167, %c0_168] : memref<1x8x32xf32, #tpu.memory_space<vmem>>, vector<1x8x32xf32>
      %234 = vector.shape_cast %233 : vector<1x8x32xf32> to vector<8x32xf32>
      %235 = vector.shape_cast %232 : vector<8x32xf32> to vector<1x8x32xf32>
      tpu.vector_store %arg10[%c0_166, %c0_167, %c0_168], %235 {strides = array<i32>} : memref<1x8x32xf32, #tpu.memory_space<vmem>>, vector<1x8x32xf32>,
    } else {
    }
    return
  }
  func.func @transform_0(%arg0: i32, %arg1: i32, %arg2: i32) -> (i32, i32, i32) {
    %c0_i32 = arith.constant 0 : i32
    %c0_i32_0 = arith.constant 0 : i32
    return %arg0, %arg1, %c0_i32 : i32, i32, i32
  }
  func.func @transform_1(%arg0: i32, %arg1: i32, %arg2: i32) -> (i32, i32, i32) {
    %c0_i32 = arith.constant 0 : i32
    %c0_i32_0 = arith.constant 0 : i32
    return %arg0, %arg2, %c0_i32 : i32, i32, i32
  }
  func.func @transform_2(%arg0: i32, %arg1: i32, %arg2: i32) -> (i32, i32, i32) {
    %c0_i32 = arith.constant 0 : i32
    %c0_i32_0 = arith.constant 0 : i32
    return %arg0, %arg1, %c0_i32 : i32, i32, i32
  }
  func.func @transform_3(%arg0: i32, %arg1: i32, %arg2: i32) -> (i32, i32) {
    %c0_i32 = arith.constant 0 : i32
    %c0_i32_0 = arith.constant 0 : i32
    %c0_i32_1 = arith.constant 0 : i32
    return %c0_i32, %c0_i32_0 : i32, i32
  }
  func.func @transform_4(%arg0: i32, %arg1: i32, %arg2: i32) -> (i32, i32) {
    %c0_i32 = arith.constant 0 : i32
    %c0_i32_0 = arith.constant 0 : i32
    %c0_i32_1 = arith.constant 0 : i32
    return %c0_i32, %c0_i32_0 : i32, i32
  }
  func.func @transform_5(%arg0: i32, %arg1: i32, %arg2: i32) -> (i32, i32) {
    %c0_i32 = arith.constant 0 : i32
    %c0_i32_0 = arith.constant 0 : i32
    %c0_i32_1 = arith.constant 0 : i32
    return %c0_i32, %c0_i32_0 : i32, i32
  }
  func.func @transform_6(%arg0: i32, %arg1: i32, %arg2: i32) -> (i32, i32) {
    %c0_i32 = arith.constant 0 : i32
    %c0_i32_0 = arith.constant 0 : i32
    %c0_i32_1 = arith.constant 0 : i32
    return %c0_i32, %c0_i32_0 : i32, i32
  }
  func.func @transform_7(%arg0: i32, %arg1: i32, %arg2: i32) -> (i32, i32, i32) {
    %c0_i32 = arith.constant 0 : i32
    %c0_i32_0 = arith.constant 0 : i32
    return %arg0, %arg1, %c0_i32 : i32, i32, i32
  }
}

</mosaic_0001>

<llo_original>
// kernel: _lambda_.8
$region0: #{_lambda_.8}
  #allocation0 [shape = 'u32[]', space=smem, size = 0x4, offset = 0x4, fixed_abs, tag = 'smem constant byte address 0x4 - core index']
  #allocation1 [shape = 'u32[144,128]{1,0:T(1,128)}', space=vmem, size = 0x12000, scoped, tag = 'internal scratch']
  %s0 = inlined_call_operand.vmem [shape: f32[16,32], index: 0, kind: input, shape index: {}]
  %s1 = inlined_call_operand.vmem [shape: f32[16,32], index: 1, kind: input, shape index: {}]
  %s2 = inlined_call_operand.vmem [shape: f32[32,32], index: 2, kind: input, shape index: {}]
  %s3 = inlined_call_operand.vmem [shape: f32[1,32], index: 3, kind: input, shape index: {}]
  %s4 = inlined_call_operand.vmem [shape: f32[16,32], index: 4, kind: output, shape index: {}]
  %s5 = sld [smem:[#allocation0]]
  $region49: #{_lambda_.8} parent=0
    _
  %s7 = ssub.s32 1, %s5
  %s8 = scalar_select 0, %s7, %s5
  loop: start=0, step=1, limit=4
  $region2: #{_lambda_.8} parent=0 // loop_pre_header
    _
  $region3: #{_lambda_.8} parent=0 // loop_header
    %s10 = sphi 0, %s14
    %p11 = scmp.ge.s32.totalorder %s10, 4
    %s20 = sphi 0, %s22
    %s23 = sphi 0, %s20
    %s24 = sphi 0, %s23
    %s40 = sphi 0, %s24
    %s46 = sphi 0, %s48
    %s49 = sphi 0, %s46
    %s50 = sphi 0, %s49
    %s66 = sphi 0, %s50
    %s70 = sphi 0, %s70
    %s72 = sphi 0, %s70
    %s73 = sphi 0, %s72
    %s87 = sphi 0, %s73
    %s91 = sphi 0, %s91
    %s93 = sphi 0, %s91
    %s94 = sphi 0, %s93
    %s108 = sphi 0, %s94
    %s114 = sphi 0, %s116
    %s117 = sphi 0, %s114
    %s118 = sphi 0, %s117
    %s134 = sphi 0, %s118
  $region4: #{_lambda_.8} parent=0 // loop_header_branch
    %13 = sbr.rel (%p11) target = $region8
  $region5: #{_lambda_.8} parent=0 // loop_body
    %s15 = ssub.s32 %s10, 1
    %s16 = ssub.s32 %s10, 2
    %s17 = sadd.s32 %s10, 1
    %s18 = ssub.s32 %s10, %s17
    %p19 = scmp.eq.s32.totalorder %s18, 0
    %s21 = sadd.s32 %s20, 1
    %s22 = scalar_select %p19, %s20, %s21
    %p25 = pneg %p19
    %p26 = scmp.eq.s32.totalorder %s10, 1
    %p27 = por %p25, %p26
    %p28 = scmp.ne.s32.totalorder %s20, %s23
    %p29 = scmp.eq.s32.totalorder %s10, 0
    %p30 = por %p28, %p29
    %p31 = scmp.ne.s32.totalorder %s20, %s23
    %p32 = scmp.eq.s32.totalorder %s15, 1
    %p33 = por %p31, %p32
    %p34 = scmp.ne.s32.totalorder %s23, %s24
    %p35 = scmp.eq.s32.totalorder %s15, 0
    %p36 = por %p34, %p35
    %p37 = scmp.ne.s32.totalorder %s23, %s24
    %p38 = scmp.eq.s32.totalorder %s16, 1
    %p39 = por %p37, %p38
    %p41 = scmp.ne.s32.totalorder %s24, %s40
    %p42 = scmp.eq.s32.totalorder %s16, 0
    %p43 = por %p41, %p42
    %s44 = ssub.s32 %s10, %s17
    %p45 = scmp.eq.s32.totalorder %s44, 0
    %s47 = sadd.s32 %s46, 1
    %s48 = scalar_select %p45, %s46, %s47
    %p51 = pneg %p45
    %p52 = scmp.eq.s32.totalorder %s10, 1
    %p53 = por %p51, %p52
    %p54 = scmp.ne.s32.totalorder %s46, %s49
    %p55 = scmp.eq.s32.totalorder %s10, 0
    %p56 = por %p54, %p55
    %p57 = scmp.ne.s32.totalorder %s46, %s49
    %p58 = scmp.eq.s32.totalorder %s15, 1
    %p59 = por %p57, %p58
    %p60 = scmp.ne.s32.totalorder %s49, %s50
    %p61 = scmp.eq.s32.totalorder %s15, 0
    %p62 = por %p60, %p61
    %p63 = scmp.ne.s32.totalorder %s49, %s50
    %p64 = scmp.eq.s32.totalorder %s16, 1
    %p65 = por %p63, %p64
    %p67 = scmp.ne.s32.totalorder %s50, %s66
    %p68 = scmp.eq.s32.totalorder %s16, 0
    %p69 = por %p67, %p68
    %s71 = sadd.s32 %s70, 1
    %p74 = scmp.eq.s32.totalorder %s10, 1
    %p75 = scmp.ne.s32.totalorder %s70, %s72
    %p76 = scmp.eq.s32.totalorder %s10, 0
    %p77 = por %p75, %p76
    %p78 = scmp.ne.s32.totalorder %s70, %s72
    %p79 = scmp.eq.s32.totalorder %s15, 1
    %p80 = por %p78, %p79
    %p81 = scmp.ne.s32.totalorder %s72, %s73
    %p82 = scmp.eq.s32.totalorder %s15, 0
    %p83 = por %p81, %p82
    %p84 = scmp.ne.s32.totalorder %s72, %s73
    %p85 = scmp.eq.s32.totalorder %s16, 1
    %p86 = por %p84, %p85
    %p88 = scmp.ne.s32.totalorder %s73, %s87
    %p89 = scmp.eq.s32.totalorder %s16, 0
    %p90 = por %p88, %p89
    %s92 = sadd.s32 %s91, 1
    %p95 = scmp.eq.s32.totalorder %s10, 1
    %p96 = scmp.ne.s32.totalorder %s91, %s93
    %p97 = scmp.eq.s32.totalorder %s10, 0
    %p98 = por %p96, %p97
    %p99 = scmp.ne.s32.totalorder %s91, %s93
    %p100 = scmp.eq.s32.totalorder %s15, 1
    %p101 = por %p99, %p100
    %p102 = scmp.ne.s32.totalorder %s93, %s94
    %p103 = scmp.eq.s32.totalorder %s15, 0
    %p104 = por %p102, %p103
    %p105 = scmp.ne.s32.totalorder %s93, %s94
    %p106 = scmp.eq.s32.totalorder %s16, 1
    %p107 = por %p105, %p106
    %p109 = scmp.ne.s32.totalorder %s94, %s108
    %p110 = scmp.eq.s32.totalorder %s16, 0
    %p111 = por %p109, %p110
    %s112 = ssub.s32 %s10, %s17
    %p113 = scmp.eq.s32.totalorder %s112, 0
    %s115 = sadd.s32 %s114, 1
    %s116 = scalar_select %p113, %s114, %s115
    %p119 = pneg %p113
    %p120 = scmp.eq.s32.totalorder %s10, 1
    %p121 = por %p119, %p120
    %p122 = scmp.ne.s32.totalorder %s114, %s117
    %p123 = scmp.eq.s32.totalorder %s10, 0
    %p124 = por %p122, %p123
    %p125 = scmp.ne.s32.totalorder %s114, %s117
    %p126 = scmp.eq.s32.totalorder %s15, 1
    %p127 = por %p125, %p126
    %p128 = scmp.ne.s32.totalorder %s117, %s118
    %p129 = scmp.eq.s32.totalorder %s15, 0
    %p130 = por %p128, %p129
    %p131 = scmp.ne.s32.totalorder %s117, %s118
    %p132 = scmp.eq.s32.totalorder %s16, 1
    %p133 = por %p131, %p132
    %p135 = scmp.ne.s32.totalorder %s118, %s134
    %p136 = scmp.eq.s32.totalorder %s16, 0
    %p137 = por %p135, %p136
    %p138 = scmp.le.s32.totalorder 1, %s10
    %p139 = scmp.lt.s32.totalorder %s10, 3
    %p140 = pnand %p138, %p139
    %p141 = pneg %p140
    // Predicated region
    $region9: #{_lambda_.8} parent=5 // pred_check
      _
    $region10: #{_lambda_.8} parent=5 // pred_check_branch
      %143 = sbr.rel (%p140) target = $region12
    $region11: #{_lambda_.8} parent=5 // pred_region
      %s144 = ssub.s32 %s10, 1
      // Predicated region
      $region13: #{_lambda_.8} parent=11 // pred_check
        %p145 = pneg %p83
      $region14: #{_lambda_.8} parent=11 // pred_check_branch
        %147 = sbr.rel (%p145) target = $region16
      $region15: #{_lambda_.8} parent=11 // pred_region
        _
      $region16: #{_lambda_.8} parent=11 // pred_fallthru
        _
      // Predicated region
      $region17: #{_lambda_.8} parent=11 // pred_check
        %p148 = pneg %p104
      $region18: #{_lambda_.8} parent=11 // pred_check_branch
        %150 = sbr.rel (%p148) target = $region20
      $region19: #{_lambda_.8} parent=11 // pred_region
        _
      $region20: #{_lambda_.8} parent=11 // pred_fallthru
        _
    $region12: #{_lambda_.8} parent=5 // pred_fallthru
      _
    %p151 = scmp.lt.s32.totalorder %s10, 2
    // Predicated region
    $region21: #{_lambda_.8} parent=5 // pred_check
      %p152 = pneg %p151
    $region22: #{_lambda_.8} parent=5 // pred_check_branch
      %154 = sbr.rel (%p152) target = $region24
    $region23: #{_lambda_.8} parent=5 // pred_region
      // Predicated region
      $region25: #{_lambda_.8} parent=23 // pred_check
        %p155 = pneg %p30
      $region26: #{_lambda_.8} parent=23 // pred_check_branch
        %157 = sbr.rel (%p155) target = $region28
      $region27: #{_lambda_.8} parent=23 // pred_region
        %p158 = scmp.lt.s32.totalorder %s10, 1
        %s159 = scalar_select %p158, %s10, 1
        %s160 = smul.addr %s159, 8
        %s161 = scalar_lea.vmem %s0, %s160
      $region28: #{_lambda_.8} parent=23 // pred_fallthru
        _
      // Predicated region
      $region29: #{_lambda_.8} parent=23 // pred_check
        %p162 = pneg %p56
      $region30: #{_lambda_.8} parent=23 // pred_check_branch
        %164 = sbr.rel (%p162) target = $region32
      $region31: #{_lambda_.8} parent=23 // pred_region
        %p165 = scmp.lt.s32.totalorder %s10, 1
        %s166 = scalar_select %p165, %s10, 1
        %s167 = smul.addr %s166, 8
        %s168 = scalar_lea.vmem %s1, %s167
      $region32: #{_lambda_.8} parent=23 // pred_fallthru
        _
    $region24: #{_lambda_.8} parent=5 // pred_fallthru
      _
    %p169 = scmp.le.s32.totalorder 1, %s10
    %p170 = scmp.lt.s32.totalorder %s10, 3
    %p171 = pnand %p169, %p170
    %p172 = pneg %p171
    // Predicated region
    $region33: #{_lambda_.8} parent=5 // pred_check
      _
    $region34: #{_lambda_.8} parent=5 // pred_check_branch
      %174 = sbr.rel (%p171) target = $region36
    $region35: #{_lambda_.8} parent=5 // pred_region
      %s175 = ssub.s32 %s10, 1
      %p176 = scmp.lt.s32.totalorder %s15, 1
      %s177 = scalar_select %p176, %s15, 1
      %s178 = smul.addr %s177, 8
      %s179 = scalar_lea.vmem %s0, %s178
      %p180 = pneg %p36
      %p181 = pneg %p33
      %p182 = scmp.lt.s32.totalorder %s15, 1
      %s183 = scalar_select %p182, %s15, 1
      %s184 = smul.addr %s183, 8
      %s185 = scalar_lea.vmem %s1, %s184
      %p186 = pneg %p62
      %p187 = pneg %p59
      %p188 = pneg %p83
      %p189 = pneg %p80
      %p190 = pneg %p104
      %p191 = pneg %p101
      %p192 = pneg %p130
      %p193 = pneg %p127
      %p194 = scmp.lt.s32.totalorder %s15, 1
      %s195 = scalar_select %p194, %s15, 1
      %s196 = smul.addr %s195, 8
      %s197 = scalar_lea.vmem %s4, %s196
      %p198 = scmp.lt.s32.totalorder %s15, 1
      %s199 = scalar_select %p198, %s15, 1
      %s200 = smul.addr %s199, 8
      %s201 = scalar_lea.vmem %s0, %s200
      %p202 = scmp.lt.s32.totalorder %s15, 1
      %s203 = scalar_select %p202, %s15, 1
      %s204 = smul.addr %s203, 8
      %s205 = scalar_lea.vmem %s1, %s204
      %p206 = scmp.lt.s32.totalorder %s15, 1
      %s207 = scalar_select %p206, %s15, 1
      %s208 = smul.addr %s207, 8
      %s209 = scalar_lea.vmem %s4, %s208
      %v210 = vld [vmem:[%s201] sm:$0xff]
      %v211 = vld [vmem:[%s205] sm:$0xff]
      %v212 = vadd.f32 %v210, %v211
      %v213 = vld [vmem:[%s2] sm:$0xff]
      %v214 = vld [vmem:[%s2 + $0x8] sm:$0xff]
      %v215 = vld [vmem:[%s2 + $0x10] sm:$0xff]
      %v216 = vld [vmem:[%s2 + $0x18] sm:$0xff]
      %v217 = vld [vmem:[%s3] sm:$0x1]
      %v219 = vlaneseq
      %v220 = vshrl.u32 %v219, 7
      %v221 = vsub.s32 0, %v220
      %v222 = vrot.slane %v217, %v221
      %vm224 = vcmask 261120
      %v226 = vsel %vm224, %v212, 0
      %228 = vmatprep.subr.mxu0 0.0
      %229 = vmatpush1.msra.mxu0 %v213
      %230 = vmatprep.subr.mxu0 0.0
      %231 = vmatpush1.msra.mxu0 %v214
      %232 = vmatprep.subr.mxu0 0.0
      %233 = vmatpush1.msra.mxu0 %v215
      %234 = vmatprep.subr.mxu0 0.0
      %235 = vmatpush1.msra.mxu0 %v216
      %236 = vmatprep.subr.mxu0 0.0
      %237 = vmatpush1.msra.mxu0 0.0
      %238 = vmatprep.subr.mxu0 0.0
      %239 = vmatpush1.msra.mxu0 0.0
      %240 = vmatprep.subr.mxu0 0.0
      %241 = vmatpush1.msra.mxu0 0.0
      %242 = vmatprep.subr.mxu0 0.0
      %243 = vmatpush1.msra.mxu0 0.0
      %244 = vmatprep.subr.mxu0 0.0
      %245 = vmatpush1.msra.mxu0 0.0
      %246 = vmatprep.subr.mxu0 0.0
      %247 = vmatpush1.msra.mxu0 0.0
      %248 = vmatprep.subr.mxu0 0.0
      %249 = vmatpush1.msra.mxu0 0.0
      %250 = vmatprep.subr.mxu0 0.0
      %251 = vmatpush1.msra.mxu0 0.0
      %252 = vmatprep.subr.mxu0 0.0
      %253 = vmatpush1.msra.mxu0 0.0
      %254 = vmatprep.subr.mxu0 0.0
      %255 = vmatpush1.msra.mxu0 0.0
      %256 = vmatprep.subr.mxu0 0.0
      %257 = vmatpush1.msra.mxu0 0.0
      %258 = vmatprep.subr.mxu0 0.0
      %259 = vmatpush1.msra.mxu0 0.0
      %260 = vmatprep.subr.mxu0 0.0
      %261 = vmatpush1.msra.mxu0 0.0
      %262 = vmatprep.subr.mxu0 0.0
      %263 = vmatpush1.msra.mxu0 0.0
      %264 = vmatprep.subr.mxu0 0.0
      %265 = vmatpush1.msra.mxu0 0.0
      %266 = vmatprep.subr.mxu0 0.0
      %267 = vmatpush1.msra.mxu0 0.0
      %268 = vmatprep.subr.mxu0 0.0
      %269 = vmatpush1.msra.mxu0 0.0
      %270 = vmatprep.subr.mxu0 0.0
      %271 = vmatpush1.msra.mxu0 0.0
      %272 = vmatprep.subr.mxu0 0.0
      %273 = vmatpush1.msra.mxu0 0.0
      %274 = vmatprep.subr.mxu0 0.0
      %275 = vmatpush1.msra.mxu0 0.0
      %276 = vmatprep.subr.mxu0 0.0
      %277 = vmatpush1.msra.mxu0 0.0
      %278 = vmatprep.subr.mxu0 0.0
      %279 = vmatpush1.msra.mxu0 0.0
      %280 = vmatprep.subr.mxu0 0.0
      %281 = vmatpush1.msra.mxu0 0.0
      %282 = vmatprep.subr.mxu0 0.0
      %283 = vmatpush1.msra.mxu0 0.0
      %284 = vmatprep.subr.mxu0 0.0
      %285 = vmatpush1.msra.mxu0 0.0
      %286 = vmatprep.subr.mxu0 0.0
      %287 = vmatpush1.msra.mxu0 0.0
      %288 = vmatprep.subr.mxu0 0.0
      %289 = vmatpush1.msra.mxu0 0.0
      %290 = vmatprep.subr.mxu0 0.0
      %291 = vmatpush1.msra.mxu0 0.0
      %292 = vmatprep.mubr.f32.mxu0 0.0
      %293 = vmatmul.mubr.f32.gmra.mrb[0].mxu0 %v226
      %v294 = vpop.f32.mrb[0].mxu0
      %v295 = vadd.f32 %v222, %v294
      %v296 = vpop.f32.mrb[0].mxu0
      %297 = vdwg.mxu0
      %298 = vst.msk [vmem:[%s209] sm:$0xff] %vm224, %v295
      %p299 = scmp.lt.s32.totalorder %s15, 1
      %s300 = scalar_select %p299, %s15, 1
      %s301 = smul.addr %s300, 8
      %s302 = scalar_lea.vmem %s4, %s301
      // Predicated region
      $region37: #{_lambda_.8} parent=35 // pred_check
        %p303 = pneg %p127
      $region38: #{_lambda_.8} parent=35 // pred_check_branch
        %305 = sbr.rel (%p303) target = $region40
      $region39: #{_lambda_.8} parent=35 // pred_region
        _
      $region40: #{_lambda_.8} parent=35 // pred_fallthru
        _
    $region36: #{_lambda_.8} parent=5 // pred_fallthru
      _
    %p306 = scmp.le.s32.totalorder 2, %s10
    // Predicated region
    $region41: #{_lambda_.8} parent=5 // pred_check
      %p307 = pneg %p306
    $region42: #{_lambda_.8} parent=5 // pred_check_branch
      %309 = sbr.rel (%p307) target = $region44
    $region43: #{_lambda_.8} parent=5 // pred_region
      %s310 = ssub.s32 %s10, 2
      // Predicated region
      $region45: #{_lambda_.8} parent=43 // pred_check
        %p311 = pneg %p133
      $region46: #{_lambda_.8} parent=43 // pred_check_branch
        %313 = sbr.rel (%p311) target = $region48
      $region47: #{_lambda_.8} parent=43 // pred_region
        %p314 = scmp.lt.s32.totalorder %s16, 1
        %s315 = scalar_select %p314, %s16, 1
        %s316 = smul.addr %s315, 8
        %s317 = scalar_lea.vmem %s4, %s316
      $region48: #{_lambda_.8} parent=43 // pred_fallthru
        _
    $region44: #{_lambda_.8} parent=5 // pred_fallthru
      _
  $region6: #{_lambda_.8} parent=0 // loop_footer
    %s14 = sadd.s32 1, %s10
  $region7: #{_lambda_.8} parent=0 // loop_footer_branch
    %9 = sbr.rel target = $region3
  $region8: #{_lambda_.8} parent=0 // loop_exit
    _

// kernel: _lambda_.6
$region0: #{_lambda_.6}
  #allocation0 [shape = 'u32[]', space=smem, size = 0x4, offset = 0x4, fixed_abs, tag = 'smem constant byte address 0x4 - core index']
  #allocation1 [shape = 'u32[144,128]{1,0:T(1,128)}', space=vmem, size = 0x12000, scoped, tag = 'internal scratch']
  %s0 = inlined_call_operand.vmem [shape: f32[16,32], index: 0, kind: input, shape index: {}]
  %s1 = inlined_call_operand.vmem [shape: f32[16,32], index: 1, kind: input, shape index: {}]
  %s2 = inlined_call_operand.vmem [shape: f32[32,32], index: 2, kind: input, shape index: {}]
  %s3 = inlined_call_operand.vmem [shape: f32[1,32], index: 3, kind: input, shape index: {}]
  %s4 = inlined_call_operand.vmem [shape: f32[32,32], index: 4, kind: input, shape index: {}]
  %s5 = inlined_call_operand.vmem [shape: f32[1,32], index: 5, kind: input, shape index: {}]
  %s6 = inlined_call_operand.vmem [shape: f32[32,32], index: 6, kind: input, shape index: {}]
  %s7 = inlined_call_operand.vmem [shape: f32[1,32], index: 7, kind: input, shape index: {}]
  %s8 = inlined_call_operand.vmem [shape: f32[16,32], index: 8, kind: output, shape index: {0}]
  %s9 = inlined_call_operand.vmem [shape: f32[16,64], index: 9, kind: output, shape index: {1}]
  %10 = xla_tuple %s8, %s9
  %s11 = sld [smem:[#allocation0]]
  $region73: #{_lambda_.6} parent=0
    _
  %s13 = ssub.s32 1, %s11
  %s14 = scalar_select 0, %s13, %s11
  loop: start=0, step=1, limit=4
  $region2: #{_lambda_.6} parent=0 // loop_pre_header
    _
  $region3: #{_lambda_.6} parent=0 // loop_header
    %s16 = sphi 0, %s20
    %p17 = scmp.ge.s32.totalorder %s16, 4
    %s26 = sphi 0, %s28
    %s29 = sphi 0, %s26
    %s30 = sphi 0, %s29
    %s46 = sphi 0, %s30
    %s52 = sphi 0, %s54
    %s55 = sphi 0, %s52
    %s56 = sphi 0, %s55
    %s72 = sphi 0, %s56
    %s76 = sphi 0, %s76
    %s78 = sphi 0, %s76
    %s79 = sphi 0, %s78
    %s93 = sphi 0, %s79
    %s97 = sphi 0, %s97
    %s99 = sphi 0, %s97
    %s100 = sphi 0, %s99
    %s114 = sphi 0, %s100
    %s118 = sphi 0, %s118
    %s120 = sphi 0, %s118
    %s121 = sphi 0, %s120
    %s135 = sphi 0, %s121
    %s139 = sphi 0, %s139
    %s141 = sphi 0, %s139
    %s142 = sphi 0, %s141
    %s156 = sphi 0, %s142
    %s160 = sphi 0, %s160
    %s162 = sphi 0, %s160
    %s163 = sphi 0, %s162
    %s177 = sphi 0, %s163
    %s181 = sphi 0, %s181
    %s183 = sphi 0, %s181
    %s184 = sphi 0, %s183
    %s198 = sphi 0, %s184
    %s204 = sphi 0, %s206
    %s207 = sphi 0, %s204
    %s208 = sphi 0, %s207
    %s224 = sphi 0, %s208
    %s230 = sphi 0, %s232
    %s233 = sphi 0, %s230
    %s234 = sphi 0, %s233
    %s250 = sphi 0, %s234
  $region4: #{_lambda_.6} parent=0 // loop_header_branch
    %19 = sbr.rel (%p17) target = $region8
  $region5: #{_lambda_.6} parent=0 // loop_body
    %s21 = ssub.s32 %s16, 1
    %s22 = ssub.s32 %s16, 2
    %s23 = sadd.s32 %s16, 1
    %s24 = ssub.s32 %s16, %s23
    %p25 = scmp.eq.s32.totalorder %s24, 0
    %s27 = sadd.s32 %s26, 1
    %s28 = scalar_select %p25, %s26, %s27
    %p31 = pneg %p25
    %p32 = scmp.eq.s32.totalorder %s16, 1
    %p33 = por %p31, %p32
    %p34 = scmp.ne.s32.totalorder %s26, %s29
    %p35 = scmp.eq.s32.totalorder %s16, 0
    %p36 = por %p34, %p35
    %p37 = scmp.ne.s32.totalorder %s26, %s29
    %p38 = scmp.eq.s32.totalorder %s21, 1
    %p39 = por %p37, %p38
    %p40 = scmp.ne.s32.totalorder %s29, %s30
    %p41 = scmp.eq.s32.totalorder %s21, 0
    %p42 = por %p40, %p41
    %p43 = scmp.ne.s32.totalorder %s29, %s30
    %p44 = scmp.eq.s32.totalorder %s22, 1
    %p45 = por %p43, %p44
    %p47 = scmp.ne.s32.totalorder %s30, %s46
    %p48 = scmp.eq.s32.totalorder %s22, 0
    %p49 = por %p47, %p48
    %s50 = ssub.s32 %s16, %s23
    %p51 = scmp.eq.s32.totalorder %s50, 0
    %s53 = sadd.s32 %s52, 1
    %s54 = scalar_select %p51, %s52, %s53
    %p57 = pneg %p51
    %p58 = scmp.eq.s32.totalorder %s16, 1
    %p59 = por %p57, %p58
    %p60 = scmp.ne.s32.totalorder %s52, %s55
    %p61 = scmp.eq.s32.totalorder %s16, 0
    %p62 = por %p60, %p61
    %p63 = scmp.ne.s32.totalorder %s52, %s55
    %p64 = scmp.eq.s32.totalorder %s21, 1
    %p65 = por %p63, %p64
    %p66 = scmp.ne.s32.totalorder %s55, %s56
    %p67 = scmp.eq.s32.totalorder %s21, 0
    %p68 = por %p66, %p67
    %p69 = scmp.ne.s32.totalorder %s55, %s56
    %p70 = scmp.eq.s32.totalorder %s22, 1
    %p71 = por %p69, %p70
    %p73 = scmp.ne.s32.totalorder %s56, %s72
    %p74 = scmp.eq.s32.totalorder %s22, 0
    %p75 = por %p73, %p74
    %s77 = sadd.s32 %s76, 1
    %p80 = scmp.eq.s32.totalorder %s16, 1
    %p81 = scmp.ne.s32.totalorder %s76, %s78
    %p82 = scmp.eq.s32.totalorder %s16, 0
    %p83 = por %p81, %p82
    %p84 = scmp.ne.s32.totalorder %s76, %s78
    %p85 = scmp.eq.s32.totalorder %s21, 1
    %p86 = por %p84, %p85
    %p87 = scmp.ne.s32.totalorder %s78, %s79
    %p88 = scmp.eq.s32.totalorder %s21, 0
    %p89 = por %p87, %p88
    %p90 = scmp.ne.s32.totalorder %s78, %s79
    %p91 = scmp.eq.s32.totalorder %s22, 1
    %p92 = por %p90, %p91
    %p94 = scmp.ne.s32.totalorder %s79, %s93
    %p95 = scmp.eq.s32.totalorder %s22, 0
    %p96 = por %p94, %p95
    %s98 = sadd.s32 %s97, 1
    %p101 = scmp.eq.s32.totalorder %s16, 1
    %p102 = scmp.ne.s32.totalorder %s97, %s99
    %p103 = scmp.eq.s32.totalorder %s16, 0
    %p104 = por %p102, %p103
    %p105 = scmp.ne.s32.totalorder %s97, %s99
    %p106 = scmp.eq.s32.totalorder %s21, 1
    %p107 = por %p105, %p106
    %p108 = scmp.ne.s32.totalorder %s99, %s100
    %p109 = scmp.eq.s32.totalorder %s21, 0
    %p110 = por %p108, %p109
    %p111 = scmp.ne.s32.totalorder %s99, %s100
    %p112 = scmp.eq.s32.totalorder %s22, 1
    %p113 = por %p111, %p112
    %p115 = scmp.ne.s32.totalorder %s100, %s114
    %p116 = scmp.eq.s32.totalorder %s22, 0
    %p117 = por %p115, %p116
    %s119 = sadd.s32 %s118, 1
    %p122 = scmp.eq.s32.totalorder %s16, 1
    %p123 = scmp.ne.s32.totalorder %s118, %s120
    %p124 = scmp.eq.s32.totalorder %s16, 0
    %p125 = por %p123, %p124
    %p126 = scmp.ne.s32.totalorder %s118, %s120
    %p127 = scmp.eq.s32.totalorder %s21, 1
    %p128 = por %p126, %p127
    %p129 = scmp.ne.s32.totalorder %s120, %s121
    %p130 = scmp.eq.s32.totalorder %s21, 0
    %p131 = por %p129, %p130
    %p132 = scmp.ne.s32.totalorder %s120, %s121
    %p133 = scmp.eq.s32.totalorder %s22, 1
    %p134 = por %p132, %p133
    %p136 = scmp.ne.s32.totalorder %s121, %s135
    %p137 = scmp.eq.s32.totalorder %s22, 0
    %p138 = por %p136, %p137
    %s140 = sadd.s32 %s139, 1
    %p143 = scmp.eq.s32.totalorder %s16, 1
    %p144 = scmp.ne.s32.totalorder %s139, %s141
    %p145 = scmp.eq.s32.totalorder %s16, 0
    %p146 = por %p144, %p145
    %p147 = scmp.ne.s32.totalorder %s139, %s141
    %p148 = scmp.eq.s32.totalorder %s21, 1
    %p149 = por %p147, %p148
    %p150 = scmp.ne.s32.totalorder %s141, %s142
    %p151 = scmp.eq.s32.totalorder %s21, 0
    %p152 = por %p150, %p151
    %p153 = scmp.ne.s32.totalorder %s141, %s142
    %p154 = scmp.eq.s32.totalorder %s22, 1
    %p155 = por %p153, %p154
    %p157 = scmp.ne.s32.totalorder %s142, %s156
    %p158 = scmp.eq.s32.totalorder %s22, 0
    %p159 = por %p157, %p158
    %s161 = sadd.s32 %s160, 1
    %p164 = scmp.eq.s32.totalorder %s16, 1
    %p165 = scmp.ne.s32.totalorder %s160, %s162
    %p166 = scmp.eq.s32.totalorder %s16, 0
    %p167 = por %p165, %p166
    %p168 = scmp.ne.s32.totalorder %s160, %s162
    %p169 = scmp.eq.s32.totalorder %s21, 1
    %p170 = por %p168, %p169
    %p171 = scmp.ne.s32.totalorder %s162, %s163
    %p172 = scmp.eq.s32.totalorder %s21, 0
    %p173 = por %p171, %p172
    %p174 = scmp.ne.s32.totalorder %s162, %s163
    %p175 = scmp.eq.s32.totalorder %s22, 1
    %p176 = por %p174, %p175
    %p178 = scmp.ne.s32.totalorder %s163, %s177
    %p179 = scmp.eq.s32.totalorder %s22, 0
    %p180 = por %p178, %p179
    %s182 = sadd.s32 %s181, 1
    %p185 = scmp.eq.s32.totalorder %s16, 1
    %p186 = scmp.ne.s32.totalorder %s181, %s183
    %p187 = scmp.eq.s32.totalorder %s16, 0
    %p188 = por %p186, %p187
    %p189 = scmp.ne.s32.totalorder %s181, %s183
    %p190 = scmp.eq.s32.totalorder %s21, 1
    %p191 = por %p189, %p190
    %p192 = scmp.ne.s32.totalorder %s183, %s184
    %p193 = scmp.eq.s32.totalorder %s21, 0
    %p194 = por %p192, %p193
    %p195 = scmp.ne.s32.totalorder %s183, %s184
    %p196 = scmp.eq.s32.totalorder %s22, 1
    %p197 = por %p195, %p196
    %p199 = scmp.ne.s32.totalorder %s184, %s198
    %p200 = scmp.eq.s32.totalorder %s22, 0
    %p201 = por %p199, %p200
    %s202 = ssub.s32 %s16, %s23
    %p203 = scmp.eq.s32.totalorder %s202, 0
    %s205 = sadd.s32 %s204, 1
    %s206 = scalar_select %p203, %s204, %s205
    %p209 = pneg %p203
    %p210 = scmp.eq.s32.totalorder %s16, 1
    %p211 = por %p209, %p210
    %p212 = scmp.ne.s32.totalorder %s204, %s207
    %p213 = scmp.eq.s32.totalorder %s16, 0
    %p214 = por %p212, %p213
    %p215 = scmp.ne.s32.totalorder %s204, %s207
    %p216 = scmp.eq.s32.totalorder %s21, 1
    %p217 = por %p215, %p216
    %p218 = scmp.ne.s32.totalorder %s207, %s208
    %p219 = scmp.eq.s32.totalorder %s21, 0
    %p220 = por %p218, %p219
    %p221 = scmp.ne.s32.totalorder %s207, %s208
    %p222 = scmp.eq.s32.totalorder %s22, 1
    %p223 = por %p221, %p222
    %p225 = scmp.ne.s32.totalorder %s208, %s224
    %p226 = scmp.eq.s32.totalorder %s22, 0
    %p227 = por %p225, %p226
    %s228 = ssub.s32 %s16, %s23
    %p229 = scmp.eq.s32.totalorder %s228, 0
    %s231 = sadd.s32 %s230, 1
    %s232 = scalar_select %p229, %s230, %s231
    %p235 = pneg %p229
    %p236 = scmp.eq.s32.totalorder %s16, 1
    %p237 = por %p235, %p236
    %p238 = scmp.ne.s32.totalorder %s230, %s233
    %p239 = scmp.eq.s32.totalorder %s16, 0
    %p240 = por %p238, %p239
    %p241 = scmp.ne.s32.totalorder %s230, %s233
    %p242 = scmp.eq.s32.totalorder %s21, 1
    %p243 = por %p241, %p242
    %p244 = scmp.ne.s32.totalorder %s233, %s234
    %p245 = scmp.eq.s32.totalorder %s21, 0
    %p246 = por %p244, %p245
    %p247 = scmp.ne.s32.totalorder %s233, %s234
    %p248 = scmp.eq.s32.totalorder %s22, 1
    %p249 = por %p247, %p248
    %p251 = scmp.ne.s32.totalorder %s234, %s250
    %p252 = scmp.eq.s32.totalorder %s22, 0
    %p253 = por %p251, %p252
    %p254 = scmp.le.s32.totalorder 1, %s16
    %p255 = scmp.lt.s32.totalorder %s16, 3
    %p256 = pnand %p254, %p255
    %p257 = pneg %p256
    // Predicated region
    $region9: #{_lambda_.6} parent=5 // pred_check
      _
    $region10: #{_lambda_.6} parent=5 // pred_check_branch
      %259 = sbr.rel (%p256) target = $region12
    $region11: #{_lambda_.6} parent=5 // pred_region
      %s260 = ssub.s32 %s16, 1
      // Predicated region
      $region13: #{_lambda_.6} parent=11 // pred_check
        %p261 = pneg %p89
      $region14: #{_lambda_.6} parent=11 // pred_check_branch
        %263 = sbr.rel (%p261) target = $region16
      $region15: #{_lambda_.6} parent=11 // pred_region
        _
      $region16: #{_lambda_.6} parent=11 // pred_fallthru
        _
      // Predicated region
      $region17: #{_lambda_.6} parent=11 // pred_check
        %p264 = pneg %p110
      $region18: #{_lambda_.6} parent=11 // pred_check_branch
        %266 = sbr.rel (%p264) target = $region20
      $region19: #{_lambda_.6} parent=11 // pred_region
        _
      $region20: #{_lambda_.6} parent=11 // pred_fallthru
        _
      // Predicated region
      $region21: #{_lambda_.6} parent=11 // pred_check
        %p267 = pneg %p131
      $region22: #{_lambda_.6} parent=11 // pred_check_branch
        %269 = sbr.rel (%p267) target = $region24
      $region23: #{_lambda_.6} parent=11 // pred_region
        _
      $region24: #{_lambda_.6} parent=11 // pred_fallthru
        _
      // Predicated region
      $region25: #{_lambda_.6} parent=11 // pred_check
        %p270 = pneg %p152
      $region26: #{_lambda_.6} parent=11 // pred_check_branch
        %272 = sbr.rel (%p270) target = $region28
      $region27: #{_lambda_.6} parent=11 // pred_region
        _
      $region28: #{_lambda_.6} parent=11 // pred_fallthru
        _
      // Predicated region
      $region29: #{_lambda_.6} parent=11 // pred_check
        %p273 = pneg %p173
      $region30: #{_lambda_.6} parent=11 // pred_check_branch
        %275 = sbr.rel (%p273) target = $region32
      $region31: #{_lambda_.6} parent=11 // pred_region
        _
      $region32: #{_lambda_.6} parent=11 // pred_fallthru
        _
      // Predicated region
      $region33: #{_lambda_.6} parent=11 // pred_check
        %p276 = pneg %p194
      $region34: #{_lambda_.6} parent=11 // pred_check_branch
        %278 = sbr.rel (%p276) target = $region36
      $region35: #{_lambda_.6} parent=11 // pred_region
        _
      $region36: #{_lambda_.6} parent=11 // pred_fallthru
        _
    $region12: #{_lambda_.6} parent=5 // pred_fallthru
      _
    %p279 = scmp.lt.s32.totalorder %s16, 2
    // Predicated region
    $region37: #{_lambda_.6} parent=5 // pred_check
      %p280 = pneg %p279
    $region38: #{_lambda_.6} parent=5 // pred_check_branch
      %282 = sbr.rel (%p280) target = $region40
    $region39: #{_lambda_.6} parent=5 // pred_region
      // Predicated region
      $region41: #{_lambda_.6} parent=39 // pred_check
        %p283 = pneg %p36
      $region42: #{_lambda_.6} parent=39 // pred_check_branch
        %285 = sbr.rel (%p283) target = $region44
      $region43: #{_lambda_.6} parent=39 // pred_region
        %p286 = scmp.lt.s32.totalorder %s16, 1
        %s287 = scalar_select %p286, %s16, 1
        %s288 = smul.addr %s287, 8
        %s289 = scalar_lea.vmem %s0, %s288
      $region44: #{_lambda_.6} parent=39 // pred_fallthru
        _
      // Predicated region
      $region45: #{_lambda_.6} parent=39 // pred_check
        %p290 = pneg %p62
      $region46: #{_lambda_.6} parent=39 // pred_check_branch
        %292 = sbr.rel (%p290) target = $region48
      $region47: #{_lambda_.6} parent=39 // pred_region
        %p293 = scmp.lt.s32.totalorder %s16, 1
        %s294 = scalar_select %p293, %s16, 1
        %s295 = smul.addr %s294, 8
        %s296 = scalar_lea.vmem %s1, %s295
      $region48: #{_lambda_.6} parent=39 // pred_fallthru
        _
    $region40: #{_lambda_.6} parent=5 // pred_fallthru
      _
    %p297 = scmp.le.s32.totalorder 1, %s16
    %p298 = scmp.lt.s32.totalorder %s16, 3
    %p299 = pnand %p297, %p298
    %p300 = pneg %p299
    // Predicated region
    $region49: #{_lambda_.6} parent=5 // pred_check
      _
    $region50: #{_lambda_.6} parent=5 // pred_check_branch
      %302 = sbr.rel (%p299) target = $region52
    $region51: #{_lambda_.6} parent=5 // pred_region
      %s303 = ssub.s32 %s16, 1
      %p304 = scmp.lt.s32.totalorder %s21, 1
      %s305 = scalar_select %p304, %s21, 1
      %s306 = smul.addr %s305, 8
      %s307 = scalar_lea.vmem %s0, %s306
      %p308 = pneg %p42
      %p309 = pneg %p39
      %p310 = scmp.lt.s32.totalorder %s21, 1
      %s311 = scalar_select %p310, %s21, 1
      %s312 = smul.addr %s311, 8
      %s313 = scalar_lea.vmem %s1, %s312
      %p314 = pneg %p68
      %p315 = pneg %p65
      %p316 = pneg %p89
      %p317 = pneg %p86
      %p318 = pneg %p110
      %p319 = pneg %p107
      %p320 = pneg %p131
      %p321 = pneg %p128
      %p322 = pneg %p152
      %p323 = pneg %p149
      %p324 = pneg %p173
      %p325 = pneg %p170
      %p326 = pneg %p194
      %p327 = pneg %p191
      %p328 = pneg %p220
      %p329 = pneg %p217
      %p330 = scmp.lt.s32.totalorder %s21, 1
      %s331 = scalar_select %p330, %s21, 1
      %s332 = smul.addr %s331, 8
      %s333 = scalar_lea.vmem %s8, %s332
      %p334 = pneg %p246
      %p335 = pneg %p243
      %p336 = scmp.lt.s32.totalorder %s21, 1
      %s337 = scalar_select %p336, %s21, 1
      %s338 = smul.addr %s337, 8
      %s339 = scalar_lea.vmem %s9, %s338
      %p340 = scmp.lt.s32.totalorder %s21, 1
      %s341 = scalar_select %p340, %s21, 1
      %s342 = smul.addr %s341, 8
      %s343 = scalar_lea.vmem %s0, %s342
      %p344 = scmp.lt.s32.totalorder %s21, 1
      %s345 = scalar_select %p344, %s21, 1
      %s346 = smul.addr %s345, 8
      %s347 = scalar_lea.vmem %s1, %s346
      %p348 = scmp.lt.s32.totalorder %s21, 1
      %s349 = scalar_select %p348, %s21, 1
      %s350 = smul.addr %s349, 8
      %s351 = scalar_lea.vmem %s8, %s350
      %p352 = scmp.lt.s32.totalorder %s21, 1
      %s353 = scalar_select %p352, %s21, 1
      %s354 = smul.addr %s353, 8
      %s355 = scalar_lea.vmem %s9, %s354
      %v356 = vld [vmem:[%s343] sm:$0xff]
      %v357 = vld [vmem:[%s347] sm:$0xff]
      %v358 = vadd.f32 %v356, %v357
      %v359 = vld [vmem:[%s2] sm:$0xff]
      %v360 = vld [vmem:[%s2 + $0x8] sm:$0xff]
      %v361 = vld [vmem:[%s2 + $0x10] sm:$0xff]
      %v362 = vld [vmem:[%s2 + $0x18] sm:$0xff]
      %v363 = vld [vmem:[%s3] sm:$0x1]
      %v365 = vlaneseq
      %v366 = vshrl.u32 %v365, 7
      %v367 = vsub.s32 0, %v366
      %v368 = vrot.slane %v363, %v367
      %vm370 = vcmask 261120
      %v372 = vsel %vm370, %v358, 0
      %374 = vmatprep.subr.mxu0 0.0
      %375 = vmatpush1.msra.mxu0 %v359
      %376 = vmatprep.subr.mxu0 0.0
      %377 = vmatpush1.msra.mxu0 %v360
      %378 = vmatprep.subr.mxu0 0.0
      %379 = vmatpush1.msra.mxu0 %v361
      %380 = vmatprep.subr.mxu0 0.0
      %381 = vmatpush1.msra.mxu0 %v362
      %382 = vmatprep.subr.mxu0 0.0
      %383 = vmatpush1.msra.mxu0 0.0
      %384 = vmatprep.subr.mxu0 0.0
      %385 = vmatpush1.msra.mxu0 0.0
      %386 = vmatprep.subr.mxu0 0.0
      %387 = vmatpush1.msra.mxu0 0.0
      %388 = vmatprep.subr.mxu0 0.0
      %389 = vmatpush1.msra.mxu0 0.0
      %390 = vmatprep.subr.mxu0 0.0
      %391 = vmatpush1.msra.mxu0 0.0
      %392 = vmatprep.subr.mxu0 0.0
      %393 = vmatpush1.msra.mxu0 0.0
      %394 = vmatprep.subr.mxu0 0.0
      %395 = vmatpush1.msra.mxu0 0.0
      %396 = vmatprep.subr.mxu0 0.0
      %397 = vmatpush1.msra.mxu0 0.0
      %398 = vmatprep.subr.mxu0 0.0
      %399 = vmatpush1.msra.mxu0 0.0
      %400 = vmatprep.subr.mxu0 0.0
      %401 = vmatpush1.msra.mxu0 0.0
      %402 = vmatprep.subr.mxu0 0.0
      %403 = vmatpush1.msra.mxu0 0.0
      %404 = vmatprep.subr.mxu0 0.0
      %405 = vmatpush1.msra.mxu0 0.0
      %406 = vmatprep.subr.mxu0 0.0
      %407 = vmatpush1.msra.mxu0 0.0
      %408 = vmatprep.subr.mxu0 0.0
      %409 = vmatpush1.msra.mxu0 0.0
      %410 = vmatprep.subr.mxu0 0.0
      %411 = vmatpush1.msra.mxu0 0.0
      %412 = vmatprep.subr.mxu0 0.0
      %413 = vmatpush1.msra.mxu0 0.0
      %414 = vmatprep.subr.mxu0 0.0
      %415 = vmatpush1.msra.mxu0 0.0
      %416 = vmatprep.subr.mxu0 0.0
      %417 = vmatpush1.msra.mxu0 0.0
      %418 = vmatprep.subr.mxu0 0.0
      %419 = vmatpush1.msra.mxu0 0.0
      %420 = vmatprep.subr.mxu0 0.0
      %421 = vmatpush1.msra.mxu0 0.0
      %422 = vmatprep.subr.mxu0 0.0
      %423 = vmatpush1.msra.mxu0 0.0
      %424 = vmatprep.subr.mxu0 0.0
      %425 = vmatpush1.msra.mxu0 0.0
      %426 = vmatprep.subr.mxu0 0.0
      %427 = vmatpush1.msra.mxu0 0.0
      %428 = vmatprep.subr.mxu0 0.0
      %429 = vmatpush1.msra.mxu0 0.0
      %430 = vmatprep.subr.mxu0 0.0
      %431 = vmatpush1.msra.mxu0 0.0
      %432 = vmatprep.subr.mxu0 0.0
      %433 = vmatpush1.msra.mxu0 0.0
      %434 = vmatprep.subr.mxu0 0.0
      %435 = vmatpush1.msra.mxu0 0.0
      %436 = vmatprep.subr.mxu0 0.0
      %437 = vmatpush1.msra.mxu0 0.0
      %438 = vmatprep.mubr.f32.mxu0 0.0
      %439 = vmatmul.mubr.f32.gmra.mrb[0].mxu0 %v372
      %v440 = vpop.f32.mrb[0].mxu0
      %v441 = vadd.f32 %v368, %v440
      %v442 = vpop.f32.mrb[0].mxu0
      %443 = vdwg.mxu0
      %v444 = vld [vmem:[%s4] sm:$0xff]
      %v445 = vld [vmem:[%s4 + $0x8] sm:$0xff]
      %v446 = vld [vmem:[%s4 + $0x10] sm:$0xff]
      %v447 = vld [vmem:[%s4 + $0x18] sm:$0xff]
      %v448 = vld [vmem:[%s5] sm:$0x1]
      %v450 = vlaneseq
      %v451 = vshrl.u32 %v450, 7
      %v452 = vsub.s32 0, %v451
      %v453 = vrot.slane %v448, %v452
      %455 = vmatprep.subr.mxu0 0.0
      %456 = vmatpush1.msra.mxu0 %v444
      %457 = vmatprep.subr.mxu0 0.0
      %458 = vmatpush1.msra.mxu0 %v445
      %459 = vmatprep.subr.mxu0 0.0
      %460 = vmatpush1.msra.mxu0 %v446
      %461 = vmatprep.subr.mxu0 0.0
      %462 = vmatpush1.msra.mxu0 %v447
      %463 = vmatprep.subr.mxu0 0.0
      %464 = vmatpush1.msra.mxu0 0.0
      %465 = vmatprep.subr.mxu0 0.0
      %466 = vmatpush1.msra.mxu0 0.0
      %467 = vmatprep.subr.mxu0 0.0
      %468 = vmatpush1.msra.mxu0 0.0
      %469 = vmatprep.subr.mxu0 0.0
      %470 = vmatpush1.msra.mxu0 0.0
      %471 = vmatprep.subr.mxu0 0.0
      %472 = vmatpush1.msra.mxu0 0.0
      %473 = vmatprep.subr.mxu0 0.0
      %474 = vmatpush1.msra.mxu0 0.0
      %475 = vmatprep.subr.mxu0 0.0
      %476 = vmatpush1.msra.mxu0 0.0
      %477 = vmatprep.subr.mxu0 0.0
      %478 = vmatpush1.msra.mxu0 0.0
      %479 = vmatprep.subr.mxu0 0.0
      %480 = vmatpush1.msra.mxu0 0.0
      %481 = vmatprep.subr.mxu0 0.0
      %482 = vmatpush1.msra.mxu0 0.0
      %483 = vmatprep.subr.mxu0 0.0
      %484 = vmatpush1.msra.mxu0 0.0
      %485 = vmatprep.subr.mxu0 0.0
      %486 = vmatpush1.msra.mxu0 0.0
      %487 = vmatprep.subr.mxu0 0.0
      %488 = vmatpush1.msra.mxu0 0.0
      %489 = vmatprep.subr.mxu0 0.0
      %490 = vmatpush1.msra.mxu0 0.0
      %491 = vmatprep.subr.mxu0 0.0
      %492 = vmatpush1.msra.mxu0 0.0
      %493 = vmatprep.subr.mxu0 0.0
      %494 = vmatpush1.msra.mxu0 0.0
      %495 = vmatprep.subr.mxu0 0.0
      %496 = vmatpush1.msra.mxu0 0.0
      %497 = vmatprep.subr.mxu0 0.0
      %498 = vmatpush1.msra.mxu0 0.0
      %499 = vmatprep.subr.mxu0 0.0
      %500 = vmatpush1.msra.mxu0 0.0
      %501 = vmatprep.subr.mxu0 0.0
      %502 = vmatpush1.msra.mxu0 0.0
      %503 = vmatprep.subr.mxu0 0.0
      %504 = vmatpush1.msra.mxu0 0.0
      %505 = vmatprep.subr.mxu0 0.0
      %506 = vmatpush1.msra.mxu0 0.0
      %507 = vmatprep.subr.mxu0 0.0
      %508 = vmatpush1.msra.mxu0 0.0
      %509 = vmatprep.subr.mxu0 0.0
      %510 = vmatpush1.msra.mxu0 0.0
      %511 = vmatprep.subr.mxu0 0.0
      %512 = vmatpush1.msra.mxu0 0.0
      %513 = vmatprep.subr.mxu0 0.0
      %514 = vmatpush1.msra.mxu0 0.0
      %515 = vmatprep.subr.mxu0 0.0
      %516 = vmatpush1.msra.mxu0 0.0
      %517 = vmatprep.subr.mxu0 0.0
      %518 = vmatpush1.msra.mxu0 0.0
      %519 = vmatprep.mubr.f32.mxu0 0.0
      %520 = vmatmul.mubr.f32.gmra.mrb[0].mxu0 %v372
      %v521 = vpop.f32.mrb[0].mxu0
      %v522 = vadd.f32 %v453, %v521
      %v523 = vpop.f32.mrb[0].mxu0
      %524 = vdwg.mxu0
      %v525 = vld [vmem:[%s6] sm:$0xff]
      %v526 = vld [vmem:[%s6 + $0x8] sm:$0xff]
      %v527 = vld [vmem:[%s6 + $0x10] sm:$0xff]
      %v528 = vld [vmem:[%s6 + $0x18] sm:$0xff]
      %v529 = vld [vmem:[%s7] sm:$0x1]
      %v531 = vlaneseq
      %v532 = vshrl.u32 %v531, 7
      %v533 = vsub.s32 0, %v532
      %v534 = vrot.slane %v529, %v533
      %v537 = vsel %vm370, %v356, 0
      %539 = vmatprep.subr.mxu0 0.0
      %540 = vmatpush1.msra.mxu0 %v525
      %541 = vmatprep.subr.mxu0 0.0
      %542 = vmatpush1.msra.mxu0 %v526
      %543 = vmatprep.subr.mxu0 0.0
      %544 = vmatpush1.msra.mxu0 %v527
      %545 = vmatprep.subr.mxu0 0.0
      %546 = vmatpush1.msra.mxu0 %v528
      %547 = vmatprep.subr.mxu0 0.0
      %548 = vmatpush1.msra.mxu0 0.0
      %549 = vmatprep.subr.mxu0 0.0
      %550 = vmatpush1.msra.mxu0 0.0
      %551 = vmatprep.subr.mxu0 0.0
      %552 = vmatpush1.msra.mxu0 0.0
      %553 = vmatprep.subr.mxu0 0.0
      %554 = vmatpush1.msra.mxu0 0.0
      %555 = vmatprep.subr.mxu0 0.0
      %556 = vmatpush1.msra.mxu0 0.0
      %557 = vmatprep.subr.mxu0 0.0
      %558 = vmatpush1.msra.mxu0 0.0
      %559 = vmatprep.subr.mxu0 0.0
      %560 = vmatpush1.msra.mxu0 0.0
      %561 = vmatprep.subr.mxu0 0.0
      %562 = vmatpush1.msra.mxu0 0.0
      %563 = vmatprep.subr.mxu0 0.0
      %564 = vmatpush1.msra.mxu0 0.0
      %565 = vmatprep.subr.mxu0 0.0
      %566 = vmatpush1.msra.mxu0 0.0
      %567 = vmatprep.subr.mxu0 0.0
      %568 = vmatpush1.msra.mxu0 0.0
      %569 = vmatprep.subr.mxu0 0.0
      %570 = vmatpush1.msra.mxu0 0.0
      %571 = vmatprep.subr.mxu0 0.0
      %572 = vmatpush1.msra.mxu0 0.0
      %573 = vmatprep.subr.mxu0 0.0
      %574 = vmatpush1.msra.mxu0 0.0
      %575 = vmatprep.subr.mxu0 0.0
      %576 = vmatpush1.msra.mxu0 0.0
      %577 = vmatprep.subr.mxu0 0.0
      %578 = vmatpush1.msra.mxu0 0.0
      %579 = vmatprep.subr.mxu0 0.0
      %580 = vmatpush1.msra.mxu0 0.0
      %581 = vmatprep.subr.mxu0 0.0
      %582 = vmatpush1.msra.mxu0 0.0
      %583 = vmatprep.subr.mxu0 0.0
      %584 = vmatpush1.msra.mxu0 0.0
      %585 = vmatprep.subr.mxu0 0.0
      %586 = vmatpush1.msra.mxu0 0.0
      %587 = vmatprep.subr.mxu0 0.0
      %588 = vmatpush1.msra.mxu0 0.0
      %589 = vmatprep.subr.mxu0 0.0
      %590 = vmatpush1.msra.mxu0 0.0
      %591 = vmatprep.subr.mxu0 0.0
      %592 = vmatpush1.msra.mxu0 0.0
      %593 = vmatprep.subr.mxu0 0.0
      %594 = vmatpush1.msra.mxu0 0.0
      %595 = vmatprep.subr.mxu0 0.0
      %596 = vmatpush1.msra.mxu0 0.0
      %597 = vmatprep.subr.mxu0 0.0
      %598 = vmatpush1.msra.mxu0 0.0
      %599 = vmatprep.subr.mxu0 0.0
      %600 = vmatpush1.msra.mxu0 0.0
      %601 = vmatprep.subr.mxu0 0.0
      %602 = vmatpush1.msra.mxu0 0.0
      %603 = vmatprep.mubr.f32.mxu0 0.0
      %604 = vmatmul.mubr.f32.gmra.mrb[0].mxu0 %v537
      %v605 = vpop.f32.mrb[0].mxu0
      %v606 = vadd.f32 %v534, %v605
      %v607 = vpop.f32.mrb[0].mxu0
      %608 = vdwg.mxu0
      %609 = vst.msk [vmem:[%s351] sm:$0xff] %vm370, %v441
      %611 = vrot.lane.b32.xlu0 %v606, 32
      %v612 = vpop.permute.xlu0 %611
      %v614 = vsel %vm370, %v522, %v612
      %vm615 = vcmask 523264
      %616 = vst.msk [vmem:[%s355] sm:$0xff] %vm615, %v614
      %p617 = scmp.lt.s32.totalorder %s21, 1
      %s618 = scalar_select %p617, %s21, 1
      %s619 = smul.addr %s618, 8
      %s620 = scalar_lea.vmem %s8, %s619
      %p621 = scmp.lt.s32.totalorder %s21, 1
      %s622 = scalar_select %p621, %s21, 1
      %s623 = smul.addr %s622, 8
      %s624 = scalar_lea.vmem %s9, %s623
      // Predicated region
      $region53: #{_lambda_.6} parent=51 // pred_check
        %p625 = pneg %p217
      $region54: #{_lambda_.6} parent=51 // pred_check_branch
        %627 = sbr.rel (%p625) target = $region56
      $region55: #{_lambda_.6} parent=51 // pred_region
        _
      $region56: #{_lambda_.6} parent=51 // pred_fallthru
        _
      // Predicated region
      $region57: #{_lambda_.6} parent=51 // pred_check
        %p628 = pneg %p243
      $region58: #{_lambda_.6} parent=51 // pred_check_branch
        %630 = sbr.rel (%p628) target = $region60
      $region59: #{_lambda_.6} parent=51 // pred_region
        _
      $region60: #{_lambda_.6} parent=51 // pred_fallthru
        _
    $region52: #{_lambda_.6} parent=5 // pred_fallthru
      _
    %p631 = scmp.le.s32.totalorder 2, %s16
    // Predicated region
    $region61: #{_lambda_.6} parent=5 // pred_check
      %p632 = pneg %p631
    $region62: #{_lambda_.6} parent=5 // pred_check_branch
      %634 = sbr.rel (%p632) target = $region64
    $region63: #{_lambda_.6} parent=5 // pred_region
      %s635 = ssub.s32 %s16, 2
      // Predicated region
      $region65: #{_lambda_.6} parent=63 // pred_check
        %p636 = pneg %p223
      $region66: #{_lambda_.6} parent=63 // pred_check_branch
        %638 = sbr.rel (%p636) target = $region68
      $region67: #{_lambda_.6} parent=63 // pred_region
        %p639 = scmp.lt.s32.totalorder %s22, 1
        %s640 = scalar_select %p639, %s22, 1
        %s641 = smul.addr %s640, 8
        %s642 = scalar_lea.vmem %s8, %s641
      $region68: #{_lambda_.6} parent=63 // pred_fallthru
        _
      // Predicated region
      $region69: #{_lambda_.6} parent=63 // pred_check
        %p643 = pneg %p249
      $region70: #{_lambda_.6} parent=63 // pred_check_branch
        %645 = sbr.rel (%p643) target = $region72
      $region71: #{_lambda_.6} parent=63 // pred_region
        %p646 = scmp.lt.s32.totalorder %s22, 1
        %s647 = scalar_select %p646, %s22, 1
        %s648 = smul.addr %s647, 8
        %s649 = scalar_lea.vmem %s9, %s648
      $region72: #{_lambda_.6} parent=63 // pred_fallthru
        _
    $region64: #{_lambda_.6} parent=5 // pred_fallthru
      _
  $region6: #{_lambda_.6} parent=0 // loop_footer
    %s20 = sadd.s32 1, %s16
  $region7: #{_lambda_.6} parent=0 // loop_footer_branch
    %15 = sbr.rel target = $region3
  $region8: #{_lambda_.6} parent=0 // loop_exit
    _

// kernel: _lambda_.9
$region0: #{_lambda_.9}
  #allocation0 [shape = 'u32[]', space=smem, size = 0x4, offset = 0x4, fixed_abs, tag = 'smem constant byte address 0x4 - core index']
  #allocation1 [shape = 'u32[144,128]{1,0:T(1,128)}', space=vmem, size = 0x12000, scoped, tag = 'internal scratch']
  %s0 = inlined_call_operand.vmem [shape: f32[24,32], index: 0, kind: input, shape index: {}]
  %s1 = inlined_call_operand.vmem [shape: f32[24,32], index: 1, kind: input, shape index: {}]
  %s2 = inlined_call_operand.vmem [shape: f32[32,32], index: 2, kind: input, shape index: {}]
  %s3 = inlined_call_operand.vmem [shape: f32[1,32], index: 3, kind: input, shape index: {}]
  %s4 = inlined_call_operand.vmem [shape: f32[32,32], index: 4, kind: input, shape index: {}]
  %s5 = inlined_call_operand.vmem [shape: f32[1,32], index: 5, kind: input, shape index: {}]
  %s6 = inlined_call_operand.vmem [shape: f32[24,64], index: 6, kind: output, shape index: {}]
  %s7 = sld [smem:[#allocation0]]
  $region34: #{_lambda_.9} parent=0
    _
  %s9 = ssub.s32 1, %s7
  %s10 = scalar_select 0, %s9, %s7
  // Predicated region
  $region2: #{_lambda_.9} parent=0 // pred_check
    _
  $region3: #{_lambda_.9} parent=0 // pred_check_branch
    %12 = sbr.rel (0) target = $region5
  $region4: #{_lambda_.9} parent=0 // pred_region
    _
  $region5: #{_lambda_.9} parent=0 // pred_fallthru
    _
  // Predicated region
  $region6: #{_lambda_.9} parent=0 // pred_check
    _
  $region7: #{_lambda_.9} parent=0 // pred_check_branch
    %14 = sbr.rel (0) target = $region9
  $region8: #{_lambda_.9} parent=0 // pred_region
    _
  $region9: #{_lambda_.9} parent=0 // pred_fallthru
    _
  // Predicated region
  $region10: #{_lambda_.9} parent=0 // pred_check
    _
  $region11: #{_lambda_.9} parent=0 // pred_check_branch
    %16 = sbr.rel (0) target = $region13
  $region12: #{_lambda_.9} parent=0 // pred_region
    _
  $region13: #{_lambda_.9} parent=0 // pred_fallthru
    _
  // Predicated region
  $region14: #{_lambda_.9} parent=0 // pred_check
    _
  $region15: #{_lambda_.9} parent=0 // pred_check_branch
    %18 = sbr.rel (0) target = $region17
  $region16: #{_lambda_.9} parent=0 // pred_region
    _
  $region17: #{_lambda_.9} parent=0 // pred_fallthru
    _
  // Predicated region
  $region18: #{_lambda_.9} parent=0 // pred_check
    _
  $region19: #{_lambda_.9} parent=0 // pred_check_branch
    %20 = sbr.rel (0) target = $region21
  $region20: #{_lambda_.9} parent=0 // pred_region
    _
  $region21: #{_lambda_.9} parent=0 // pred_fallthru
    _
  // Predicated region
  $region22: #{_lambda_.9} parent=0 // pred_check
    _
  $region23: #{_lambda_.9} parent=0 // pred_check_branch
    %22 = sbr.rel (0) target = $region25
  $region24: #{_lambda_.9} parent=0 // pred_region
    _
  $region25: #{_lambda_.9} parent=0 // pred_fallthru
    _
  %v23 = vld [vmem:[%s0] sm:$0xff]
  %v24 = vld [vmem:[%s0 + $0x8] sm:$0xff]
  %v25 = vld [vmem:[%s0 + $0x10] sm:$0xff]
  %v26 = vld [vmem:[%s1] sm:$0xff]
  %v27 = vld [vmem:[%s1 + $0x8] sm:$0xff]
  %v28 = vld [vmem:[%s1 + $0x10] sm:$0xff]
  %v29 = vadd.f32 %v23, %v26
  %v30 = vadd.f32 %v24, %v27
  %v31 = vadd.f32 %v25, %v28
  %v32 = vld [vmem:[%s2] sm:$0xff]
  %v33 = vld [vmem:[%s2 + $0x8] sm:$0xff]
  %v34 = vld [vmem:[%s2 + $0x10] sm:$0xff]
  %v35 = vld [vmem:[%s2 + $0x18] sm:$0xff]
  %v36 = vld [vmem:[%s3] sm:$0x1]
  %v38 = vlaneseq
  %v39 = vshrl.u32 %v38, 7
  %v40 = vsub.s32 0, %v39
  %v41 = vrot.slane %v36, %v40
  %vm43 = vcmask 261120
  %v45 = vsel %vm43, %v29, 0
  %v48 = vsel %vm43, %v30, 0
  %v51 = vsel %vm43, %v31, 0
  %53 = vmatprep.subr.mxu0 0.0
  %54 = vmatpush1.msra.mxu0 %v32
  %55 = vmatprep.subr.mxu0 0.0
  %56 = vmatpush1.msra.mxu0 %v33
  %57 = vmatprep.subr.mxu0 0.0
  %58 = vmatpush1.msra.mxu0 %v34
  %59 = vmatprep.subr.mxu0 0.0
  %60 = vmatpush1.msra.mxu0 %v35
  %61 = vmatprep.subr.mxu0 0.0
  %62 = vmatpush1.msra.mxu0 0.0
  %63 = vmatprep.subr.mxu0 0.0
  %64 = vmatpush1.msra.mxu0 0.0
  %65 = vmatprep.subr.mxu0 0.0
  %66 = vmatpush1.msra.mxu0 0.0
  %67 = vmatprep.subr.mxu0 0.0
  %68 = vmatpush1.msra.mxu0 0.0
  %69 = vmatprep.subr.mxu0 0.0
  %70 = vmatpush1.msra.mxu0 0.0
  %71 = vmatprep.subr.mxu0 0.0
  %72 = vmatpush1.msra.mxu0 0.0
  %73 = vmatprep.subr.mxu0 0.0
  %74 = vmatpush1.msra.mxu0 0.0
  %75 = vmatprep.subr.mxu0 0.0
  %76 = vmatpush1.msra.mxu0 0.0
  %77 = vmatprep.subr.mxu0 0.0
  %78 = vmatpush1.msra.mxu0 0.0
  %79 = vmatprep.subr.mxu0 0.0
  %80 = vmatpush1.msra.mxu0 0.0
  %81 = vmatprep.subr.mxu0 0.0
  %82 = vmatpush1.msra.mxu0 0.0
  %83 = vmatprep.subr.mxu0 0.0
  %84 = vmatpush1.msra.mxu0 0.0
  %85 = vmatprep.subr.mxu0 0.0
  %86 = vmatpush1.msra.mxu0 0.0
  %87 = vmatprep.subr.mxu0 0.0
  %88 = vmatpush1.msra.mxu0 0.0
  %89 = vmatprep.subr.mxu0 0.0
  %90 = vmatpush1.msra.mxu0 0.0
  %91 = vmatprep.subr.mxu0 0.0
  %92 = vmatpush1.msra.mxu0 0.0
  %93 = vmatprep.subr.mxu0 0.0
  %94 = vmatpush1.msra.mxu0 0.0
  %95 = vmatprep.subr.mxu0 0.0
  %96 = vmatpush1.msra.mxu0 0.0
  %97 = vmatprep.subr.mxu0 0.0
  %98 = vmatpush1.msra.mxu0 0.0
  %99 = vmatprep.subr.mxu0 0.0
  %100 = vmatpush1.msra.mxu0 0.0
  %101 = vmatprep.subr.mxu0 0.0
  %102 = vmatpush1.msra.mxu0 0.0
  %103 = vmatprep.subr.mxu0 0.0
  %104 = vmatpush1.msra.mxu0 0.0
  %105 = vmatprep.subr.mxu0 0.0
  %106 = vmatpush1.msra.mxu0 0.0
  %107 = vmatprep.subr.mxu0 0.0
  %108 = vmatpush1.msra.mxu0 0.0
  %109 = vmatprep.subr.mxu0 0.0
  %110 = vmatpush1.msra.mxu0 0.0
  %111 = vmatprep.subr.mxu0 0.0
  %112 = vmatpush1.msra.mxu0 0.0
  %113 = vmatprep.subr.mxu0 0.0
  %114 = vmatpush1.msra.mxu0 0.0
  %115 = vmatprep.subr.mxu0 0.0
  %116 = vmatpush1.msra.mxu0 0.0
  %117 = vmatprep.mubr.f32.mxu0 0.0
  %118 = vmatmul.mubr.f32.gmra.mrb[0].mxu0 %v45
  %v119 = vpop.f32.mrb[0].mxu0
  %v120 = vadd.f32 %v41, %v119
  %v121 = vpop.f32.mrb[0].mxu0
  %122 = vmatprep.mubr.f32.mxu0 0.0
  %123 = vmatmul.mubr.f32.gmra.mrb[0].mxu0 %v48
  %v124 = vpop.f32.mrb[0].mxu0
  %v125 = vadd.f32 %v41, %v124
  %v126 = vpop.f32.mrb[0].mxu0
  %127 = vmatprep.mubr.f32.mxu0 0.0
  %128 = vmatmul.mubr.f32.gmra.mrb[0].mxu0 %v51
  %v129 = vpop.f32.mrb[0].mxu0
  %v130 = vadd.f32 %v41, %v129
  %v131 = vpop.f32.mrb[0].mxu0
  %132 = vdwg.mxu0
  %v133 = vld [vmem:[%s4] sm:$0xff]
  %v134 = vld [vmem:[%s4 + $0x8] sm:$0xff]
  %v135 = vld [vmem:[%s4 + $0x10] sm:$0xff]
  %v136 = vld [vmem:[%s4 + $0x18] sm:$0xff]
  %v137 = vld [vmem:[%s5] sm:$0x1]
  %v139 = vlaneseq
  %v140 = vshrl.u32 %v139, 7
  %v141 = vsub.s32 0, %v140
  %v142 = vrot.slane %v137, %v141
  %v145 = vsel %vm43, %v23, 0
  %v148 = vsel %vm43, %v24, 0
  %v151 = vsel %vm43, %v25, 0
  %153 = vmatprep.subr.mxu0 0.0
  %154 = vmatpush1.msra.mxu0 %v133
  %155 = vmatprep.subr.mxu0 0.0
  %156 = vmatpush1.msra.mxu0 %v134
  %157 = vmatprep.subr.mxu0 0.0
  %158 = vmatpush1.msra.mxu0 %v135
  %159 = vmatprep.subr.mxu0 0.0
  %160 = vmatpush1.msra.mxu0 %v136
  %161 = vmatprep.subr.mxu0 0.0
  %162 = vmatpush1.msra.mxu0 0.0
  %163 = vmatprep.subr.mxu0 0.0
  %164 = vmatpush1.msra.mxu0 0.0
  %165 = vmatprep.subr.mxu0 0.0
  %166 = vmatpush1.msra.mxu0 0.0
  %167 = vmatprep.subr.mxu0 0.0
  %168 = vmatpush1.msra.mxu0 0.0
  %169 = vmatprep.subr.mxu0 0.0
  %170 = vmatpush1.msra.mxu0 0.0
  %171 = vmatprep.subr.mxu0 0.0
  %172 = vmatpush1.msra.mxu0 0.0
  %173 = vmatprep.subr.mxu0 0.0
  %174 = vmatpush1.msra.mxu0 0.0
  %175 = vmatprep.subr.mxu0 0.0
  %176 = vmatpush1.msra.mxu0 0.0
  %177 = vmatprep.subr.mxu0 0.0
  %178 = vmatpush1.msra.mxu0 0.0
  %179 = vmatprep.subr.mxu0 0.0
  %180 = vmatpush1.msra.mxu0 0.0
  %181 = vmatprep.subr.mxu0 0.0
  %182 = vmatpush1.msra.mxu0 0.0
  %183 = vmatprep.subr.mxu0 0.0
  %184 = vmatpush1.msra.mxu0 0.0
  %185 = vmatprep.subr.mxu0 0.0
  %186 = vmatpush1.msra.mxu0 0.0
  %187 = vmatprep.subr.mxu0 0.0
  %188 = vmatpush1.msra.mxu0 0.0
  %189 = vmatprep.subr.mxu0 0.0
  %190 = vmatpush1.msra.mxu0 0.0
  %191 = vmatprep.subr.mxu0 0.0
  %192 = vmatpush1.msra.mxu0 0.0
  %193 = vmatprep.subr.mxu0 0.0
  %194 = vmatpush1.msra.mxu0 0.0
  %195 = vmatprep.subr.mxu0 0.0
  %196 = vmatpush1.msra.mxu0 0.0
  %197 = vmatprep.subr.mxu0 0.0
  %198 = vmatpush1.msra.mxu0 0.0
  %199 = vmatprep.subr.mxu0 0.0
  %200 = vmatpush1.msra.mxu0 0.0
  %201 = vmatprep.subr.mxu0 0.0
  %202 = vmatpush1.msra.mxu0 0.0
  %203 = vmatprep.subr.mxu0 0.0
  %204 = vmatpush1.msra.mxu0 0.0
  %205 = vmatprep.subr.mxu0 0.0
  %206 = vmatpush1.msra.mxu0 0.0
  %207 = vmatprep.subr.mxu0 0.0
  %208 = vmatpush1.msra.mxu0 0.0
  %209 = vmatprep.subr.mxu0 0.0
  %210 = vmatpush1.msra.mxu0 0.0
  %211 = vmatprep.subr.mxu0 0.0
  %212 = vmatpush1.msra.mxu0 0.0
  %213 = vmatprep.subr.mxu0 0.0
  %214 = vmatpush1.msra.mxu0 0.0
  %215 = vmatprep.subr.mxu0 0.0
  %216 = vmatpush1.msra.mxu0 0.0
  %217 = vmatprep.mubr.f32.mxu0 0.0
  %218 = vmatmul.mubr.f32.gmra.mrb[0].mxu0 %v145
  %v219 = vpop.f32.mrb[0].mxu0
  %v220 = vadd.f32 %v142, %v219
  %v221 = vpop.f32.mrb[0].mxu0
  %222 = vmatprep.mubr.f32.mxu0 0.0
  %223 = vmatmul.mubr.f32.gmra.mrb[0].mxu0 %v148
  %v224 = vpop.f32.mrb[0].mxu0
  %v225 = vadd.f32 %v142, %v224
  %v226 = vpop.f32.mrb[0].mxu0
  %227 = vmatprep.mubr.f32.mxu0 0.0
  %228 = vmatmul.mubr.f32.gmra.mrb[0].mxu0 %v151
  %v229 = vpop.f32.mrb[0].mxu0
  %v230 = vadd.f32 %v142, %v229
  %v231 = vpop.f32.mrb[0].mxu0
  %232 = vdwg.mxu0
  %236 = vrot.lane.b32.xlu0 %v220, 32
  %v237 = vpop.permute.xlu0 %236
  %238 = vrot.lane.b32.xlu0 %v225, 32
  %v239 = vpop.permute.xlu0 %238
  %240 = vrot.lane.b32.xlu0 %v230, 32
  %v241 = vpop.permute.xlu0 %240
  %v245 = vsel %vm43, %v120, %v237
  %v246 = vsel %vm43, %v125, %v239
  %v247 = vsel %vm43, %v130, %v241
  %vm248 = vcmask 523264
  %249 = vst.msk [vmem:[%s6] sm:$0xff] %vm248, %v245
  %250 = vst.msk [vmem:[%s6 + $0x8] sm:$0xff] %vm248, %v246
  %251 = vst.msk [vmem:[%s6 + $0x10] sm:$0xff] %vm248, %v247
  // Predicated region
  $region26: #{_lambda_.9} parent=0 // pred_check
    _
  $region27: #{_lambda_.9} parent=0 // pred_check_branch
    %253 = sbr.rel (0) target = $region29
  $region28: #{_lambda_.9} parent=0 // pred_region
    _
  $region29: #{_lambda_.9} parent=0 // pred_fallthru
    _
  // Predicated region
  $region30: #{_lambda_.9} parent=0 // pred_check
    _
  $region31: #{_lambda_.9} parent=0 // pred_check_branch
    %255 = sbr.rel (0) target = $region33
  $region32: #{_lambda_.9} parent=0 // pred_region
    _
  $region33: #{_lambda_.9} parent=0 // pred_fallthru
    _

// kernel: _lambda_.7
$region0: #{_lambda_.7}
  #allocation0 [shape = 'u32[]', space=smem, size = 0x4, offset = 0x4, fixed_abs, tag = 'smem constant byte address 0x4 - core index']
  #allocation1 [shape = 'u32[144,128]{1,0:T(1,128)}', space=vmem, size = 0x12000, scoped, tag = 'internal scratch']
  #allocation2 [shape = 'f32[4,8,1]{2,1,0:T(8,128)}', space=vmem, size = 0x4000, scoped, tag = 'scratch operand']
  #allocation3 [shape = 'f32[4,8,1]{2,1,0:T(8,128)}', space=vmem, size = 0x4000, scoped, tag = 'scratch operand']
  #allocation4 [shape = 'f32[4,8,8]{2,1,0:T(8,128)}', space=vmem, size = 0x4000, scoped, tag = 'scratch operand']
  %s0 = inlined_call_operand.vmem [shape: f32[2,8,32], index: 0, kind: input, shape index: {}]
  %s1 = inlined_call_operand.vmem [shape: f32[2,8,64], index: 1, kind: input, shape index: {}]
  %s2 = inlined_call_operand.vmem [shape: f32[2,8,32], index: 2, kind: input, shape index: {}]
  %s3 = inlined_call_operand.vmem [shape: f32[32,32], index: 3, kind: input, shape index: {}]
  %s4 = inlined_call_operand.vmem [shape: f32[1,32], index: 4, kind: input, shape index: {}]
  %s5 = inlined_call_operand.vmem [shape: f32[1,32], index: 5, kind: input, shape index: {}]
  %s6 = inlined_call_operand.vmem [shape: f32[1,32], index: 6, kind: input, shape index: {}]
  %s7 = inlined_call_operand.vmem [shape: f32[2,8,32], index: 7, kind: output, shape index: {}]
  %s8 = sld [smem:[#allocation0]]
  $region69: #{_lambda_.7} parent=0
    _
  %s10 = ssub.s32 1, %s8
  %s11 = scalar_select 0, %s10, %s8
  loop: start=0, step=1, limit=4
  $region2: #{_lambda_.7} parent=0 // loop_pre_header
    _
  $region3: #{_lambda_.7} parent=0 // loop_header
    %s13 = sphi 0, %s17
    %p14 = scmp.ge.s32.totalorder %s13, 4
    %s20 = sphi 0, %s39
    %s21 = sphi 0, %s35
    %s22 = sphi 0, %s31
    %s23 = sphi 0, %s20
    %s24 = sphi 0, %s21
    %s25 = sphi 0, %s22
    %s26 = sphi 0, %s23
    %s27 = sphi 0, %s24
    %s28 = sphi 0, %s25
    %s44 = sphi 0, %s46
    %s47 = sphi 0, %s44
    %s48 = sphi 0, %s47
    %s64 = sphi 0, %s48
    %s72 = sphi 0, %s74
    %s75 = sphi 0, %s72
    %s76 = sphi 0, %s75
    %s92 = sphi 0, %s76
    %s100 = sphi 0, %s102
    %s103 = sphi 0, %s100
    %s104 = sphi 0, %s103
    %s120 = sphi 0, %s104
    %s124 = sphi 0, %s124
    %s126 = sphi 0, %s124
    %s127 = sphi 0, %s126
    %s141 = sphi 0, %s127
    %s145 = sphi 0, %s145
    %s147 = sphi 0, %s145
    %s148 = sphi 0, %s147
    %s162 = sphi 0, %s148
    %s166 = sphi 0, %s166
    %s168 = sphi 0, %s166
    %s169 = sphi 0, %s168
    %s183 = sphi 0, %s169
    %s187 = sphi 0, %s187
    %s189 = sphi 0, %s187
    %s190 = sphi 0, %s189
    %s204 = sphi 0, %s190
    %s212 = sphi 0, %s214
    %s215 = sphi 0, %s212
    %s216 = sphi 0, %s215
    %s232 = sphi 0, %s216
  $region4: #{_lambda_.7} parent=0 // loop_header_branch
    %16 = sbr.rel (%p14) target = $region8
  $region5: #{_lambda_.7} parent=0 // loop_body
    %s18 = ssub.s32 %s13, 1
    %s19 = ssub.s32 %s13, 2
    %s29 = sadd.s32 1, %s22
    %p30 = scmp.ge.s32.totalorder %s29, 1
    %s31 = scalar_select %p30, 0, %s29
    %s32 = sadd.s32 1, %s21
    %s33 = scalar_select %p30, %s32, %s21
    %p34 = scmp.ge.s32.totalorder %s33, 1
    %s35 = scalar_select %p34, 0, %s33
    %s36 = sadd.s32 1, %s20
    %s37 = scalar_select %p34, %s36, %s20
    %p38 = scmp.ge.s32.totalorder %s37, 2
    %s39 = scalar_select %p38, 0, %s37
    %s40 = ssub.s32 %s20, %s39
    %s41 = ssub.s32 %s21, %s35
    %s42 = sor.u32 %s40, %s41
    %p43 = scmp.eq.s32.totalorder %s42, 0
    %s45 = sadd.s32 %s44, 1
    %s46 = scalar_select %p43, %s44, %s45
    %p49 = pneg %p43
    %p50 = scmp.eq.s32.totalorder %s13, 1
    %p51 = por %p49, %p50
    %p52 = scmp.ne.s32.totalorder %s44, %s47
    %p53 = scmp.eq.s32.totalorder %s13, 0
    %p54 = por %p52, %p53
    %p55 = scmp.ne.s32.totalorder %s44, %s47
    %p56 = scmp.eq.s32.totalorder %s18, 1
    %p57 = por %p55, %p56
    %p58 = scmp.ne.s32.totalorder %s47, %s48
    %p59 = scmp.eq.s32.totalorder %s18, 0
    %p60 = por %p58, %p59
    %p61 = scmp.ne.s32.totalorder %s47, %s48
    %p62 = scmp.eq.s32.totalorder %s19, 1
    %p63 = por %p61, %p62
    %p65 = scmp.ne.s32.totalorder %s48, %s64
    %p66 = scmp.eq.s32.totalorder %s19, 0
    %p67 = por %p65, %p66
    %s68 = ssub.s32 %s20, %s39
    %s69 = ssub.s32 %s22, %s31
    %s70 = sor.u32 %s68, %s69
    %p71 = scmp.eq.s32.totalorder %s70, 0
    %s73 = sadd.s32 %s72, 1
    %s74 = scalar_select %p71, %s72, %s73
    %p77 = pneg %p71
    %p78 = scmp.eq.s32.totalorder %s13, 1
    %p79 = por %p77, %p78
    %p80 = scmp.ne.s32.totalorder %s72, %s75
    %p81 = scmp.eq.s32.totalorder %s13, 0
    %p82 = por %p80, %p81
    %p83 = scmp.ne.s32.totalorder %s72, %s75
    %p84 = scmp.eq.s32.totalorder %s18, 1
    %p85 = por %p83, %p84
    %p86 = scmp.ne.s32.totalorder %s75, %s76
    %p87 = scmp.eq.s32.totalorder %s18, 0
    %p88 = por %p86, %p87
    %p89 = scmp.ne.s32.totalorder %s75, %s76
    %p90 = scmp.eq.s32.totalorder %s19, 1
    %p91 = por %p89, %p90
    %p93 = scmp.ne.s32.totalorder %s76, %s92
    %p94 = scmp.eq.s32.totalorder %s19, 0
    %p95 = por %p93, %p94
    %s96 = ssub.s32 %s20, %s39
    %s97 = ssub.s32 %s21, %s35
    %s98 = sor.u32 %s96, %s97
    %p99 = scmp.eq.s32.totalorder %s98, 0
    %s101 = sadd.s32 %s100, 1
    %s102 = scalar_select %p99, %s100, %s101
    %p105 = pneg %p99
    %p106 = scmp.eq.s32.totalorder %s13, 1
    %p107 = por %p105, %p106
    %p108 = scmp.ne.s32.totalorder %s100, %s103
    %p109 = scmp.eq.s32.totalorder %s13, 0
    %p110 = por %p108, %p109
    %p111 = scmp.ne.s32.totalorder %s100, %s103
    %p112 = scmp.eq.s32.totalorder %s18, 1
    %p113 = por %p111, %p112
    %p114 = scmp.ne.s32.totalorder %s103, %s104
    %p115 = scmp.eq.s32.totalorder %s18, 0
    %p116 = por %p114, %p115
    %p117 = scmp.ne.s32.totalorder %s103, %s104
    %p118 = scmp.eq.s32.totalorder %s19, 1
    %p119 = por %p117, %p118
    %p121 = scmp.ne.s32.totalorder %s104, %s120
    %p122 = scmp.eq.s32.totalorder %s19, 0
    %p123 = por %p121, %p122
    %s125 = sadd.s32 %s124, 1
    %p128 = scmp.eq.s32.totalorder %s13, 1
    %p129 = scmp.ne.s32.totalorder %s124, %s126
    %p130 = scmp.eq.s32.totalorder %s13, 0
    %p131 = por %p129, %p130
    %p132 = scmp.ne.s32.totalorder %s124, %s126
    %p133 = scmp.eq.s32.totalorder %s18, 1
    %p134 = por %p132, %p133
    %p135 = scmp.ne.s32.totalorder %s126, %s127
    %p136 = scmp.eq.s32.totalorder %s18, 0
    %p137 = por %p135, %p136
    %p138 = scmp.ne.s32.totalorder %s126, %s127
    %p139 = scmp.eq.s32.totalorder %s19, 1
    %p140 = por %p138, %p139
    %p142 = scmp.ne.s32.totalorder %s127, %s141
    %p143 = scmp.eq.s32.totalorder %s19, 0
    %p144 = por %p142, %p143
    %s146 = sadd.s32 %s145, 1
    %p149 = scmp.eq.s32.totalorder %s13, 1
    %p150 = scmp.ne.s32.totalorder %s145, %s147
    %p151 = scmp.eq.s32.totalorder %s13, 0
    %p152 = por %p150, %p151
    %p153 = scmp.ne.s32.totalorder %s145, %s147
    %p154 = scmp.eq.s32.totalorder %s18, 1
    %p155 = por %p153, %p154
    %p156 = scmp.ne.s32.totalorder %s147, %s148
    %p157 = scmp.eq.s32.totalorder %s18, 0
    %p158 = por %p156, %p157
    %p159 = scmp.ne.s32.totalorder %s147, %s148
    %p160 = scmp.eq.s32.totalorder %s19, 1
    %p161 = por %p159, %p160
    %p163 = scmp.ne.s32.totalorder %s148, %s162
    %p164 = scmp.eq.s32.totalorder %s19, 0
    %p165 = por %p163, %p164
    %s167 = sadd.s32 %s166, 1
    %p170 = scmp.eq.s32.totalorder %s13, 1
    %p171 = scmp.ne.s32.totalorder %s166, %s168
    %p172 = scmp.eq.s32.totalorder %s13, 0
    %p173 = por %p171, %p172
    %p174 = scmp.ne.s32.totalorder %s166, %s168
    %p175 = scmp.eq.s32.totalorder %s18, 1
    %p176 = por %p174, %p175
    %p177 = scmp.ne.s32.totalorder %s168, %s169
    %p178 = scmp.eq.s32.totalorder %s18, 0
    %p179 = por %p177, %p178
    %p180 = scmp.ne.s32.totalorder %s168, %s169
    %p181 = scmp.eq.s32.totalorder %s19, 1
    %p182 = por %p180, %p181
    %p184 = scmp.ne.s32.totalorder %s169, %s183
    %p185 = scmp.eq.s32.totalorder %s19, 0
    %p186 = por %p184, %p185
    %s188 = sadd.s32 %s187, 1
    %p191 = scmp.eq.s32.totalorder %s13, 1
    %p192 = scmp.ne.s32.totalorder %s187, %s189
    %p193 = scmp.eq.s32.totalorder %s13, 0
    %p194 = por %p192, %p193
    %p195 = scmp.ne.s32.totalorder %s187, %s189
    %p196 = scmp.eq.s32.totalorder %s18, 1
    %p197 = por %p195, %p196
    %p198 = scmp.ne.s32.totalorder %s189, %s190
    %p199 = scmp.eq.s32.totalorder %s18, 0
    %p200 = por %p198, %p199
    %p201 = scmp.ne.s32.totalorder %s189, %s190
    %p202 = scmp.eq.s32.totalorder %s19, 1
    %p203 = por %p201, %p202
    %p205 = scmp.ne.s32.totalorder %s190, %s204
    %p206 = scmp.eq.s32.totalorder %s19, 0
    %p207 = por %p205, %p206
    %s208 = ssub.s32 %s20, %s39
    %s209 = ssub.s32 %s21, %s35
    %s210 = sor.u32 %s208, %s209
    %p211 = scmp.eq.s32.totalorder %s210, 0
    %s213 = sadd.s32 %s212, 1
    %s214 = scalar_select %p211, %s212, %s213
    %p217 = pneg %p211
    %p218 = scmp.eq.s32.totalorder %s13, 1
    %p219 = por %p217, %p218
    %p220 = scmp.ne.s32.totalorder %s212, %s215
    %p221 = scmp.eq.s32.totalorder %s13, 0
    %p222 = por %p220, %p221
    %p223 = scmp.ne.s32.totalorder %s212, %s215
    %p224 = scmp.eq.s32.totalorder %s18, 1
    %p225 = por %p223, %p224
    %p226 = scmp.ne.s32.totalorder %s215, %s216
    %p227 = scmp.eq.s32.totalorder %s18, 0
    %p228 = por %p226, %p227
    %p229 = scmp.ne.s32.totalorder %s215, %s216
    %p230 = scmp.eq.s32.totalorder %s19, 1
    %p231 = por %p229, %p230
    %p233 = scmp.ne.s32.totalorder %s216, %s232
    %p234 = scmp.eq.s32.totalorder %s19, 0
    %p235 = por %p233, %p234
    %p236 = scmp.le.s32.totalorder 1, %s13
    %p237 = scmp.lt.s32.totalorder %s13, 3
    %p238 = pnand %p236, %p237
    %p239 = pneg %p238
    // Predicated region
    $region9: #{_lambda_.7} parent=5 // pred_check
      _
    $region10: #{_lambda_.7} parent=5 // pred_check_branch
      %241 = sbr.rel (%p238) target = $region12
    $region11: #{_lambda_.7} parent=5 // pred_region
      %s242 = ssub.s32 %s13, 1
      // Predicated region
      $region13: #{_lambda_.7} parent=11 // pred_check
        %p243 = pneg %p137
      $region14: #{_lambda_.7} parent=11 // pred_check_branch
        %245 = sbr.rel (%p243) target = $region16
      $region15: #{_lambda_.7} parent=11 // pred_region
        _
      $region16: #{_lambda_.7} parent=11 // pred_fallthru
        _
      // Predicated region
      $region17: #{_lambda_.7} parent=11 // pred_check
        %p246 = pneg %p158
      $region18: #{_lambda_.7} parent=11 // pred_check_branch
        %248 = sbr.rel (%p246) target = $region20
      $region19: #{_lambda_.7} parent=11 // pred_region
        _
      $region20: #{_lambda_.7} parent=11 // pred_fallthru
        _
      // Predicated region
      $region21: #{_lambda_.7} parent=11 // pred_check
        %p249 = pneg %p179
      $region22: #{_lambda_.7} parent=11 // pred_check_branch
        %251 = sbr.rel (%p249) target = $region24
      $region23: #{_lambda_.7} parent=11 // pred_region
        _
      $region24: #{_lambda_.7} parent=11 // pred_fallthru
        _
      // Predicated region
      $region25: #{_lambda_.7} parent=11 // pred_check
        %p252 = pneg %p200
      $region26: #{_lambda_.7} parent=11 // pred_check_branch
        %254 = sbr.rel (%p252) target = $region28
      $region27: #{_lambda_.7} parent=11 // pred_region
        _
      $region28: #{_lambda_.7} parent=11 // pred_fallthru
        _
    $region12: #{_lambda_.7} parent=5 // pred_fallthru
      _
    %p255 = scmp.lt.s32.totalorder %s13, 2
    // Predicated region
    $region29: #{_lambda_.7} parent=5 // pred_check
      %p256 = pneg %p255
    $region30: #{_lambda_.7} parent=5 // pred_check_branch
      %258 = sbr.rel (%p256) target = $region32
    $region31: #{_lambda_.7} parent=5 // pred_region
      // Predicated region
      $region33: #{_lambda_.7} parent=31 // pred_check
        %p259 = pneg %p54
      $region34: #{_lambda_.7} parent=31 // pred_check_branch
        %261 = sbr.rel (%p259) target = $region36
      $region35: #{_lambda_.7} parent=31 // pred_region
        %p262 = scmp.lt.s32.totalorder %s20, 1
        %s263 = scalar_select %p262, %s20, 1
        %p264 = scmp.lt.s32.totalorder %s21, 0
        %s265 = scalar_select %p264, %s21, 0
        %s266 = sadd.s32 %s265, %s263
        %s267 = smul.addr %s266, 8
        %s268 = scalar_lea.vmem %s0, %s267
      $region36: #{_lambda_.7} parent=31 // pred_fallthru
        _
      // Predicated region
      $region37: #{_lambda_.7} parent=31 // pred_check
        %p269 = pneg %p82
      $region38: #{_lambda_.7} parent=31 // pred_check_branch
        %271 = sbr.rel (%p269) target = $region40
      $region39: #{_lambda_.7} parent=31 // pred_region
        %p272 = scmp.lt.s32.totalorder %s20, 1
        %s273 = scalar_select %p272, %s20, 1
        %p274 = scmp.lt.s32.totalorder %s22, 0
        %s275 = scalar_select %p274, %s22, 0
        %s276 = sadd.s32 %s275, %s273
        %s277 = smul.addr %s276, 8
        %s278 = scalar_lea.vmem %s1, %s277
      $region40: #{_lambda_.7} parent=31 // pred_fallthru
        _
      // Predicated region
      $region41: #{_lambda_.7} parent=31 // pred_check
        %p279 = pneg %p110
      $region42: #{_lambda_.7} parent=31 // pred_check_branch
        %281 = sbr.rel (%p279) target = $region44
      $region43: #{_lambda_.7} parent=31 // pred_region
        %p282 = scmp.lt.s32.totalorder %s20, 1
        %s283 = scalar_select %p282, %s20, 1
        %p284 = scmp.lt.s32.totalorder %s21, 0
        %s285 = scalar_select %p284, %s21, 0
        %s286 = sadd.s32 %s285, %s283
        %s287 = smul.addr %s286, 8
        %s288 = scalar_lea.vmem %s2, %s287
      $region44: #{_lambda_.7} parent=31 // pred_fallthru
        _
    $region32: #{_lambda_.7} parent=5 // pred_fallthru
      _
    %p289 = scmp.le.s32.totalorder 1, %s13
    %p290 = scmp.lt.s32.totalorder %s13, 3
    %p291 = pnand %p289, %p290
    %p292 = pneg %p291
    // Predicated region
    $region45: #{_lambda_.7} parent=5 // pred_check
      _
    $region46: #{_lambda_.7} parent=5 // pred_check_branch
      %294 = sbr.rel (%p291) target = $region48
    $region47: #{_lambda_.7} parent=5 // pred_region
      %s295 = ssub.s32 %s13, 1
      %p296 = scmp.lt.s32.totalorder %s23, 1
      %s297 = scalar_select %p296, %s23, 1
      %p298 = scmp.lt.s32.totalorder %s24, 0
      %s299 = scalar_select %p298, %s24, 0
      %s300 = sadd.s32 %s299, %s297
      %s301 = smul.addr %s300, 8
      %s302 = scalar_lea.vmem %s0, %s301
      %p303 = pneg %p60
      %p304 = pneg %p57
      %p305 = scmp.lt.s32.totalorder %s23, 1
      %s306 = scalar_select %p305, %s23, 1
      %p307 = scmp.lt.s32.totalorder %s25, 0
      %s308 = scalar_select %p307, %s25, 0
      %s309 = sadd.s32 %s308, %s306
      %s310 = smul.addr %s309, 8
      %s311 = scalar_lea.vmem %s1, %s310
      %p312 = pneg %p88
      %p313 = pneg %p85
      %p314 = scmp.lt.s32.totalorder %s23, 1
      %s315 = scalar_select %p314, %s23, 1
      %p316 = scmp.lt.s32.totalorder %s24, 0
      %s317 = scalar_select %p316, %s24, 0
      %s318 = sadd.s32 %s317, %s315
      %s319 = smul.addr %s318, 8
      %s320 = scalar_lea.vmem %s2, %s319
      %p321 = pneg %p116
      %p322 = pneg %p113
      %p323 = pneg %p137
      %p324 = pneg %p134
      %p325 = pneg %p158
      %p326 = pneg %p155
      %p327 = pneg %p179
      %p328 = pneg %p176
      %p329 = pneg %p200
      %p330 = pneg %p197
      %p331 = pneg %p228
      %p332 = pneg %p225
      %p333 = scmp.lt.s32.totalorder %s23, 1
      %s334 = scalar_select %p333, %s23, 1
      %p335 = scmp.lt.s32.totalorder %s24, 0
      %s336 = scalar_select %p335, %s24, 0
      %s337 = sadd.s32 %s336, %s334
      %s338 = smul.addr %s337, 8
      %s339 = scalar_lea.vmem %s7, %s338
      %p340 = scmp.lt.s32.totalorder %s23, 1
      %s341 = scalar_select %p340, %s23, 1
      %p342 = scmp.lt.s32.totalorder %s24, 0
      %s343 = scalar_select %p342, %s24, 0
      %s344 = sadd.s32 %s343, %s341
      %s345 = smul.addr %s344, 8
      %s346 = scalar_lea.vmem %s0, %s345
      %p347 = scmp.lt.s32.totalorder %s23, 1
      %s348 = scalar_select %p347, %s23, 1
      %p349 = scmp.lt.s32.totalorder %s25, 0
      %s350 = scalar_select %p349, %s25, 0
      %s351 = sadd.s32 %s350, %s348
      %s352 = smul.addr %s351, 8
      %s353 = scalar_lea.vmem %s1, %s352
      %p354 = scmp.lt.s32.totalorder %s23, 1
      %s355 = scalar_select %p354, %s23, 1
      %p356 = scmp.lt.s32.totalorder %s24, 0
      %s357 = scalar_select %p356, %s24, 0
      %s358 = sadd.s32 %s357, %s355
      %s359 = smul.addr %s358, 8
      %s360 = scalar_lea.vmem %s2, %s359
      %p361 = scmp.lt.s32.totalorder %s23, 1
      %s362 = scalar_select %p361, %s23, 1
      %p363 = scmp.lt.s32.totalorder %s24, 0
      %s364 = scalar_select %p363, %s24, 0
      %s365 = sadd.s32 %s364, %s362
      %s366 = smul.addr %s365, 8
      %s367 = scalar_lea.vmem %s7, %s366
      %p368 = scmp.eq.s32.totalorder %s25, 0
      // Predicated region
      $region49: #{_lambda_.7} parent=47 // pred_check
        %p369 = pneg %p368
      $region50: #{_lambda_.7} parent=47 // pred_check_branch
        %371 = sbr.rel (%p369) target = $region52
      $region51: #{_lambda_.7} parent=47 // pred_region
        %vm372 = vcmask 7168
        %373 = vst.msk [vmem:[#allocation2] sm:$0xff] %vm372, -1e+30
        %374 = vst.msk [vmem:[#allocation2 + $0x8] sm:$0xff] %vm372, -1e+30
        %375 = vst.msk [vmem:[#allocation2 + $0x10] sm:$0xff] %vm372, -1e+30
        %376 = vst.msk [vmem:[#allocation2 + $0x18] sm:$0xff] %vm372, -1e+30
        %377 = vst.msk [vmem:[#allocation3] sm:$0xff] %vm372, 0.0
        %378 = vst.msk [vmem:[#allocation3 + $0x8] sm:$0xff] %vm372, 0.0
        %379 = vst.msk [vmem:[#allocation3 + $0x10] sm:$0xff] %vm372, 0.0
        %380 = vst.msk [vmem:[#allocation3 + $0x18] sm:$0xff] %vm372, 0.0
        %vm381 = vcmask 64512
        %382 = vst.msk [vmem:[#allocation4] sm:$0xff] %vm381, 0.0
        %383 = vst.msk [vmem:[#allocation4 + $0x8] sm:$0xff] %vm381, 0.0
        %384 = vst.msk [vmem:[#allocation4 + $0x10] sm:$0xff] %vm381, 0.0
        %385 = vst.msk [vmem:[#allocation4 + $0x18] sm:$0xff] %vm381, 0.0
      $region52: #{_lambda_.7} parent=47 // pred_fallthru
        _
      %v386 = vld [vmem:[%s346] sm:$0xff]
      %v387 = vld [vmem:[%s353] sm:$0xff]
      %vm388 = vcmask 64512
      %v390 = vsel %vm388, %v386, 0
      %v393 = vsel %vm388, %v387, 0
      %395 = vmatprep.subr.mxu0 0.0
      %396 = vmatpush1.xpose.msra.mxu0 %v393
      %397 = vmatprep.subr.mxu0 0.0
      %398 = vmatpush1.xpose.msra.mxu0 0.0
      %399 = vmatprep.subr.mxu0 0.0
      %400 = vmatpush1.xpose.msra.mxu0 0.0
      %401 = vmatprep.subr.mxu0 0.0
      %402 = vmatpush1.xpose.msra.mxu0 0.0
      %403 = vmatprep.subr.mxu0 0.0
      %404 = vmatpush1.xpose.msra.mxu0 0.0
      %405 = vmatprep.subr.mxu0 0.0
      %406 = vmatpush1.xpose.msra.mxu0 0.0
      %407 = vmatprep.subr.mxu0 0.0
      %408 = vmatpush1.xpose.msra.mxu0 0.0
      %409 = vmatprep.subr.mxu0 0.0
      %410 = vmatpush1.xpose.msra.mxu0 0.0
      %411 = vmatprep.subr.mxu0 0.0
      %412 = vmatpush1.xpose.msra.mxu0 0.0
      %413 = vmatprep.subr.mxu0 0.0
      %414 = vmatpush1.xpose.msra.mxu0 0.0
      %415 = vmatprep.subr.mxu0 0.0
      %416 = vmatpush1.xpose.msra.mxu0 0.0
      %417 = vmatprep.subr.mxu0 0.0
      %418 = vmatpush1.xpose.msra.mxu0 0.0
      %419 = vmatprep.subr.mxu0 0.0
      %420 = vmatpush1.xpose.msra.mxu0 0.0
      %421 = vmatprep.subr.mxu0 0.0
      %422 = vmatpush1.xpose.msra.mxu0 0.0
      %423 = vmatprep.subr.mxu0 0.0
      %424 = vmatpush1.xpose.msra.mxu0 0.0
      %425 = vmatprep.subr.mxu0 0.0
      %426 = vmatpush1.xpose.msra.mxu0 0.0
      %427 = vmatprep.subr.mxu0 0.0
      %428 = vmatpush1.xpose.msra.mxu0 0.0
      %429 = vmatprep.subr.mxu0 0.0
      %430 = vmatpush1.xpose.msra.mxu0 0.0
      %431 = vmatprep.subr.mxu0 0.0
      %432 = vmatpush1.xpose.msra.mxu0 0.0
      %433 = vmatprep.subr.mxu0 0.0
      %434 = vmatpush1.xpose.msra.mxu0 0.0
      %435 = vmatprep.subr.mxu0 0.0
      %436 = vmatpush1.xpose.msra.mxu0 0.0
      %437 = vmatprep.subr.mxu0 0.0
      %438 = vmatpush1.xpose.msra.mxu0 0.0
      %439 = vmatprep.subr.mxu0 0.0
      %440 = vmatpush1.xpose.msra.mxu0 0.0
      %441 = vmatprep.subr.mxu0 0.0
      %442 = vmatpush1.xpose.msra.mxu0 0.0
      %443 = vmatprep.subr.mxu0 0.0
      %444 = vmatpush1.xpose.msra.mxu0 0.0
      %445 = vmatprep.subr.mxu0 0.0
      %446 = vmatpush1.xpose.msra.mxu0 0.0
      %447 = vmatprep.subr.mxu0 0.0
      %448 = vmatpush1.xpose.msra.mxu0 0.0
      %449 = vmatprep.subr.mxu0 0.0
      %450 = vmatpush1.xpose.msra.mxu0 0.0
      %451 = vmatprep.subr.mxu0 0.0
      %452 = vmatpush1.xpose.msra.mxu0 0.0
      %453 = vmatprep.subr.mxu0 0.0
      %454 = vmatpush1.xpose.msra.mxu0 0.0
      %455 = vmatprep.subr.mxu0 0.0
      %456 = vmatpush1.xpose.msra.mxu0 0.0
      %457 = vmatprep.subr.mxu0 0.0
      %458 = vmatpush1.xpose.msra.mxu0 0.0
      %459 = vmatprep.mubr.f32.mxu0 0.0
      %460 = vmatmul.mubr.f32.gmra.mrb[0].mxu0 %v390
      %v461 = vpop.f32.mrb[0].mxu0
      %v462 = vadd.f32 0.0, %v461
      %v463 = vpop.f32.mrb[0].mxu0
      %464 = vdwg.mxu0
      %v465 = vld [vmem:[#allocation2] sm:$0xff]
      %v466 = vsel %vm388, %v462, -inf
      %467 = vmax.xlane.f32.xlu0 %v466
      %v468 = vpop.xlane.xlu0 %467
      %v469 = vmax.f32 %v465, %v468
      %v470 = vsub.f32 %v465, %v469
      %v471 = vmul.f32 %v470, 1.442695
      %v472 = vpow.pop %v471
      %474 = vset.pattern.permute.xlu0 0
      %475 = vperm.xlu0 %474, %v469
      %v476 = vpop.permute.xlu0 %475
      %v478 = vsub.f32 %v462, %v476
      %v479 = vmul.f32 %v478, 1.442695
      %v480 = vpow.pop %v479
      %v481 = vld [vmem:[#allocation3] sm:$0xff]
      %v482 = vmul.f32 %v472, %v481
      %v483 = vsel %vm388, %v480, 0.0
      %484 = vadd.xlane.f32.xlu0 %v483
      %v485 = vpop.xlane.xlu0 %484
      %v486 = vadd.f32 %v482, %v485
      %vm487 = vcmask 7168
      %488 = vst.msk [vmem:[#allocation3] sm:$0xff] %vm487, %v486
      %v489 = vld [vmem:[#allocation4] sm:$0xff]
      %491 = vset.pattern.permute.xlu0 0
      %492 = vperm.xlu0 %491, %v472
      %v493 = vpop.permute.xlu0 %492
      %v495 = vmul.f32 %v493, %v489
      %496 = vrot.lane.b32.xlu0 %v387, 96
      %v497 = vpop.permute.xlu0 %496
      %v500 = vsel %vm388, %v480, 0
      %502 = vmatprep.subr.mxu0 0.0
      %503 = vmatpush1.msra.mxu0 %v497
      %504 = vmatprep.subr.mxu0 0.0
      %505 = vmatpush1.msra.mxu0 0.0
      %506 = vmatprep.subr.mxu0 0.0
      %507 = vmatpush1.msra.mxu0 0.0
      %508 = vmatprep.subr.mxu0 0.0
      %509 = vmatpush1.msra.mxu0 0.0
      %510 = vmatprep.subr.mxu0 0.0
      %511 = vmatpush1.msra.mxu0 0.0
      %512 = vmatprep.subr.mxu0 0.0
      %513 = vmatpush1.msra.mxu0 0.0
      %514 = vmatprep.subr.mxu0 0.0
      %515 = vmatpush1.msra.mxu0 0.0
      %516 = vmatprep.subr.mxu0 0.0
      %517 = vmatpush1.msra.mxu0 0.0
      %518 = vmatprep.subr.mxu0 0.0
      %519 = vmatpush1.msra.mxu0 0.0
      %520 = vmatprep.subr.mxu0 0.0
      %521 = vmatpush1.msra.mxu0 0.0
      %522 = vmatprep.subr.mxu0 0.0
      %523 = vmatpush1.msra.mxu0 0.0
      %524 = vmatprep.subr.mxu0 0.0
      %525 = vmatpush1.msra.mxu0 0.0
      %526 = vmatprep.subr.mxu0 0.0
      %527 = vmatpush1.msra.mxu0 0.0
      %528 = vmatprep.subr.mxu0 0.0
      %529 = vmatpush1.msra.mxu0 0.0
      %530 = vmatprep.subr.mxu0 0.0
      %531 = vmatpush1.msra.mxu0 0.0
      %532 = vmatprep.subr.mxu0 0.0
      %533 = vmatpush1.msra.mxu0 0.0
      %534 = vmatprep.subr.mxu0 0.0
      %535 = vmatpush1.msra.mxu0 0.0
      %536 = vmatprep.subr.mxu0 0.0
      %537 = vmatpush1.msra.mxu0 0.0
      %538 = vmatprep.subr.mxu0 0.0
      %539 = vmatpush1.msra.mxu0 0.0
      %540 = vmatprep.subr.mxu0 0.0
      %541 = vmatpush1.msra.mxu0 0.0
      %542 = vmatprep.subr.mxu0 0.0
      %543 = vmatpush1.msra.mxu0 0.0
      %544 = vmatprep.subr.mxu0 0.0
      %545 = vmatpush1.msra.mxu0 0.0
      %546 = vmatprep.subr.mxu0 0.0
      %547 = vmatpush1.msra.mxu0 0.0
      %548 = vmatprep.subr.mxu0 0.0
      %549 = vmatpush1.msra.mxu0 0.0
      %550 = vmatprep.subr.mxu0 0.0
      %551 = vmatpush1.msra.mxu0 0.0
      %552 = vmatprep.subr.mxu0 0.0
      %553 = vmatpush1.msra.mxu0 0.0
      %554 = vmatprep.subr.mxu0 0.0
      %555 = vmatpush1.msra.mxu0 0.0
      %556 = vmatprep.subr.mxu0 0.0
      %557 = vmatpush1.msra.mxu0 0.0
      %558 = vmatprep.subr.mxu0 0.0
      %559 = vmatpush1.msra.mxu0 0.0
      %560 = vmatprep.subr.mxu0 0.0
      %561 = vmatpush1.msra.mxu0 0.0
      %562 = vmatprep.subr.mxu0 0.0
      %563 = vmatpush1.msra.mxu0 0.0
      %564 = vmatprep.subr.mxu0 0.0
      %565 = vmatpush1.msra.mxu0 0.0
      %566 = vmatprep.mubr.f32.mxu0 0.0
      %567 = vmatmul.mubr.f32.gmra.mrb[0].mxu0 %v500
      %v568 = vpop.f32.mrb[0].mxu0
      %v569 = vadd.f32 0.0, %v568
      %v570 = vpop.f32.mrb[0].mxu0
      %571 = vdwg.mxu0
      %v572 = vadd.f32 %v495, %v569
      %573 = vst.msk [vmem:[#allocation4] sm:$0xff] %vm388, %v572
      %574 = vst.msk [vmem:[#allocation2] sm:$0xff] %vm487, %v469
      %v575 = vld [vmem:[%s346] sm:$0xff]
      %v576 = vld [vmem:[%s353] sm:$0xff]
      %578 = vrot.lane.b32.xlu0 %v575, 120
      %v579 = vpop.permute.xlu0 %578
      %581 = vrot.lane.b32.xlu0 %v576, 120
      %v582 = vpop.permute.xlu0 %581
      %v583 = vsel %vm388, %v579, 0
      %v585 = vsel %vm388, %v582, 0
      %587 = vmatprep.subr.mxu0 0.0
      %588 = vmatpush1.xpose.msra.mxu0 %v585
      %589 = vmatprep.subr.mxu0 0.0
      %590 = vmatpush1.xpose.msra.mxu0 0.0
      %591 = vmatprep.subr.mxu0 0.0
      %592 = vmatpush1.xpose.msra.mxu0 0.0
      %593 = vmatprep.subr.mxu0 0.0
      %594 = vmatpush1.xpose.msra.mxu0 0.0
      %595 = vmatprep.subr.mxu0 0.0
      %596 = vmatpush1.xpose.msra.mxu0 0.0
      %597 = vmatprep.subr.mxu0 0.0
      %598 = vmatpush1.xpose.msra.mxu0 0.0
      %599 = vmatprep.subr.mxu0 0.0
      %600 = vmatpush1.xpose.msra.mxu0 0.0
      %601 = vmatprep.subr.mxu0 0.0
      %602 = vmatpush1.xpose.msra.mxu0 0.0
      %603 = vmatprep.subr.mxu0 0.0
      %604 = vmatpush1.xpose.msra.mxu0 0.0
      %605 = vmatprep.subr.mxu0 0.0
      %606 = vmatpush1.xpose.msra.mxu0 0.0
      %607 = vmatprep.subr.mxu0 0.0
      %608 = vmatpush1.xpose.msra.mxu0 0.0
      %609 = vmatprep.subr.mxu0 0.0
      %610 = vmatpush1.xpose.msra.mxu0 0.0
      %611 = vmatprep.subr.mxu0 0.0
      %612 = vmatpush1.xpose.msra.mxu0 0.0
      %613 = vmatprep.subr.mxu0 0.0
      %614 = vmatpush1.xpose.msra.mxu0 0.0
      %615 = vmatprep.subr.mxu0 0.0
      %616 = vmatpush1.xpose.msra.mxu0 0.0
      %617 = vmatprep.subr.mxu0 0.0
      %618 = vmatpush1.xpose.msra.mxu0 0.0
      %619 = vmatprep.subr.mxu0 0.0
      %620 = vmatpush1.xpose.msra.mxu0 0.0
      %621 = vmatprep.subr.mxu0 0.0
      %622 = vmatpush1.xpose.msra.mxu0 0.0
      %623 = vmatprep.subr.mxu0 0.0
      %624 = vmatpush1.xpose.msra.mxu0 0.0
      %625 = vmatprep.subr.mxu0 0.0
      %626 = vmatpush1.xpose.msra.mxu0 0.0
      %627 = vmatprep.subr.mxu0 0.0
      %628 = vmatpush1.xpose.msra.mxu0 0.0
      %629 = vmatprep.subr.mxu0 0.0
      %630 = vmatpush1.xpose.msra.mxu0 0.0
      %631 = vmatprep.subr.mxu0 0.0
      %632 = vmatpush1.xpose.msra.mxu0 0.0
      %633 = vmatprep.subr.mxu0 0.0
      %634 = vmatpush1.xpose.msra.mxu0 0.0
      %635 = vmatprep.subr.mxu0 0.0
      %636 = vmatpush1.xpose.msra.mxu0 0.0
      %637 = vmatprep.subr.mxu0 0.0
      %638 = vmatpush1.xpose.msra.mxu0 0.0
      %639 = vmatprep.subr.mxu0 0.0
      %640 = vmatpush1.xpose.msra.mxu0 0.0
      %641 = vmatprep.subr.mxu0 0.0
      %642 = vmatpush1.xpose.msra.mxu0 0.0
      %643 = vmatprep.subr.mxu0 0.0
      %644 = vmatpush1.xpose.msra.mxu0 0.0
      %645 = vmatprep.subr.mxu0 0.0
      %646 = vmatpush1.xpose.msra.mxu0 0.0
      %647 = vmatprep.subr.mxu0 0.0
      %648 = vmatpush1.xpose.msra.mxu0 0.0
      %649 = vmatprep.subr.mxu0 0.0
      %650 = vmatpush1.xpose.msra.mxu0 0.0
      %651 = vmatprep.mubr.f32.mxu0 0.0
      %652 = vmatmul.mubr.f32.gmra.mrb[0].mxu0 %v583
      %v653 = vpop.f32.mrb[0].mxu0
      %v654 = vadd.f32 0.0, %v653
      %v655 = vpop.f32.mrb[0].mxu0
      %656 = vdwg.mxu0
      %s657 = scalar_lea.vmem [#allocation2], 8
      %v658 = vld [vmem:[%s657] sm:$0xff]
      %v659 = vsel %vm388, %v654, -inf
      %660 = vmax.xlane.f32.xlu0 %v659
      %v661 = vpop.xlane.xlu0 %660
      %v662 = vmax.f32 %v658, %v661
      %v663 = vsub.f32 %v658, %v662
      %v664 = vmul.f32 %v663, 1.442695
      %v665 = vpow.pop %v664
      %667 = vset.pattern.permute.xlu0 0
      %668 = vperm.xlu0 %667, %v662
      %v669 = vpop.permute.xlu0 %668
      %v671 = vsub.f32 %v654, %v669
      %v672 = vmul.f32 %v671, 1.442695
      %v673 = vpow.pop %v672
      %s674 = scalar_lea.vmem [#allocation3], 8
      %v675 = vld [vmem:[%s674] sm:$0xff]
      %v676 = vmul.f32 %v665, %v675
      %v677 = vsel %vm388, %v673, 0.0
      %678 = vadd.xlane.f32.xlu0 %v677
      %v679 = vpop.xlane.xlu0 %678
      %v680 = vadd.f32 %v676, %v679
      %681 = vst.msk [vmem:[%s674] sm:$0xff] %vm487, %v680
      %s682 = scalar_lea.vmem [#allocation4], 8
      %v683 = vld [vmem:[%s682] sm:$0xff]
      %685 = vset.pattern.permute.xlu0 0
      %686 = vperm.xlu0 %685, %v665
      %v687 = vpop.permute.xlu0 %686
      %v689 = vmul.f32 %v687, %v683
      %690 = vrot.lane.b32.xlu0 %v576, 88
      %v691 = vpop.permute.xlu0 %690
      %v694 = vsel %vm388, %v673, 0
      %696 = vmatprep.subr.mxu0 0.0
      %697 = vmatpush1.msra.mxu0 %v691
      %698 = vmatprep.subr.mxu0 0.0
      %699 = vmatpush1.msra.mxu0 0.0
      %700 = vmatprep.subr.mxu0 0.0
      %701 = vmatpush1.msra.mxu0 0.0
      %702 = vmatprep.subr.mxu0 0.0
      %703 = vmatpush1.msra.mxu0 0.0
      %704 = vmatprep.subr.mxu0 0.0
      %705 = vmatpush1.msra.mxu0 0.0
      %706 = vmatprep.subr.mxu0 0.0
      %707 = vmatpush1.msra.mxu0 0.0
      %708 = vmatprep.subr.mxu0 0.0
      %709 = vmatpush1.msra.mxu0 0.0
      %710 = vmatprep.subr.mxu0 0.0
      %711 = vmatpush1.msra.mxu0 0.0
      %712 = vmatprep.subr.mxu0 0.0
      %713 = vmatpush1.msra.mxu0 0.0
      %714 = vmatprep.subr.mxu0 0.0
      %715 = vmatpush1.msra.mxu0 0.0
      %716 = vmatprep.subr.mxu0 0.0
      %717 = vmatpush1.msra.mxu0 0.0
      %718 = vmatprep.subr.mxu0 0.0
      %719 = vmatpush1.msra.mxu0 0.0
      %720 = vmatprep.subr.mxu0 0.0
      %721 = vmatpush1.msra.mxu0 0.0
      %722 = vmatprep.subr.mxu0 0.0
      %723 = vmatpush1.msra.mxu0 0.0
      %724 = vmatprep.subr.mxu0 0.0
      %725 = vmatpush1.msra.mxu0 0.0
      %726 = vmatprep.subr.mxu0 0.0
      %727 = vmatpush1.msra.mxu0 0.0
      %728 = vmatprep.subr.mxu0 0.0
      %729 = vmatpush1.msra.mxu0 0.0
      %730 = vmatprep.subr.mxu0 0.0
      %731 = vmatpush1.msra.mxu0 0.0
      %732 = vmatprep.subr.mxu0 0.0
      %733 = vmatpush1.msra.mxu0 0.0
      %734 = vmatprep.subr.mxu0 0.0
      %735 = vmatpush1.msra.mxu0 0.0
      %736 = vmatprep.subr.mxu0 0.0
      %737 = vmatpush1.msra.mxu0 0.0
      %738 = vmatprep.subr.mxu0 0.0
      %739 = vmatpush1.msra.mxu0 0.0
      %740 = vmatprep.subr.mxu0 0.0
      %741 = vmatpush1.msra.mxu0 0.0
      %742 = vmatprep.subr.mxu0 0.0
      %743 = vmatpush1.msra.mxu0 0.0
      %744 = vmatprep.subr.mxu0 0.0
      %745 = vmatpush1.msra.mxu0 0.0
      %746 = vmatprep.subr.mxu0 0.0
      %747 = vmatpush1.msra.mxu0 0.0
      %748 = vmatprep.subr.mxu0 0.0
      %749 = vmatpush1.msra.mxu0 0.0
      %750 = vmatprep.subr.mxu0 0.0
      %751 = vmatpush1.msra.mxu0 0.0
      %752 = vmatprep.subr.mxu0 0.0
      %753 = vmatpush1.msra.mxu0 0.0
      %754 = vmatprep.subr.mxu0 0.0
      %755 = vmatpush1.msra.mxu0 0.0
      %756 = vmatprep.subr.mxu0 0.0
      %757 = vmatpush1.msra.mxu0 0.0
      %758 = vmatprep.subr.mxu0 0.0
      %759 = vmatpush1.msra.mxu0 0.0
      %760 = vmatprep.mubr.f32.mxu0 0.0
      %761 = vmatmul.mubr.f32.gmra.mrb[0].mxu0 %v694
      %v762 = vpop.f32.mrb[0].mxu0
      %v763 = vadd.f32 0.0, %v762
      %v764 = vpop.f32.mrb[0].mxu0
      %765 = vdwg.mxu0
      %v766 = vadd.f32 %v689, %v763
      %767 = vst.msk [vmem:[%s682] sm:$0xff] %vm388, %v766
      %768 = vst.msk [vmem:[%s657] sm:$0xff] %vm487, %v662
      %v769 = vld [vmem:[%s346] sm:$0xff]
      %v770 = vld [vmem:[%s353] sm:$0xff]
      %772 = vrot.lane.b32.xlu0 %v769, 112
      %v773 = vpop.permute.xlu0 %772
      %775 = vrot.lane.b32.xlu0 %v770, 112
      %v776 = vpop.permute.xlu0 %775
      %v777 = vsel %vm388, %v773, 0
      %v779 = vsel %vm388, %v776, 0
      %781 = vmatprep.subr.mxu0 0.0
      %782 = vmatpush1.xpose.msra.mxu0 %v779
      %783 = vmatprep.subr.mxu0 0.0
      %784 = vmatpush1.xpose.msra.mxu0 0.0
      %785 = vmatprep.subr.mxu0 0.0
      %786 = vmatpush1.xpose.msra.mxu0 0.0
      %787 = vmatprep.subr.mxu0 0.0
      %788 = vmatpush1.xpose.msra.mxu0 0.0
      %789 = vmatprep.subr.mxu0 0.0
      %790 = vmatpush1.xpose.msra.mxu0 0.0
      %791 = vmatprep.subr.mxu0 0.0
      %792 = vmatpush1.xpose.msra.mxu0 0.0
      %793 = vmatprep.subr.mxu0 0.0
      %794 = vmatpush1.xpose.msra.mxu0 0.0
      %795 = vmatprep.subr.mxu0 0.0
      %796 = vmatpush1.xpose.msra.mxu0 0.0
      %797 = vmatprep.subr.mxu0 0.0
      %798 = vmatpush1.xpose.msra.mxu0 0.0
      %799 = vmatprep.subr.mxu0 0.0
      %800 = vmatpush1.xpose.msra.mxu0 0.0
      %801 = vmatprep.subr.mxu0 0.0
      %802 = vmatpush1.xpose.msra.mxu0 0.0
      %803 = vmatprep.subr.mxu0 0.0
      %804 = vmatpush1.xpose.msra.mxu0 0.0
      %805 = vmatprep.subr.mxu0 0.0
      %806 = vmatpush1.xpose.msra.mxu0 0.0
      %807 = vmatprep.subr.mxu0 0.0
      %808 = vmatpush1.xpose.msra.mxu0 0.0
      %809 = vmatprep.subr.mxu0 0.0
      %810 = vmatpush1.xpose.msra.mxu0 0.0
      %811 = vmatprep.subr.mxu0 0.0
      %812 = vmatpush1.xpose.msra.mxu0 0.0
      %813 = vmatprep.subr.mxu0 0.0
      %814 = vmatpush1.xpose.msra.mxu0 0.0
      %815 = vmatprep.subr.mxu0 0.0
      %816 = vmatpush1.xpose.msra.mxu0 0.0
      %817 = vmatprep.subr.mxu0 0.0
      %818 = vmatpush1.xpose.msra.mxu0 0.0
      %819 = vmatprep.subr.mxu0 0.0
      %820 = vmatpush1.xpose.msra.mxu0 0.0
      %821 = vmatprep.subr.mxu0 0.0
      %822 = vmatpush1.xpose.msra.mxu0 0.0
      %823 = vmatprep.subr.mxu0 0.0
      %824 = vmatpush1.xpose.msra.mxu0 0.0
      %825 = vmatprep.subr.mxu0 0.0
      %826 = vmatpush1.xpose.msra.mxu0 0.0
      %827 = vmatprep.subr.mxu0 0.0
      %828 = vmatpush1.xpose.msra.mxu0 0.0
      %829 = vmatprep.subr.mxu0 0.0
      %830 = vmatpush1.xpose.msra.mxu0 0.0
      %831 = vmatprep.subr.mxu0 0.0
      %832 = vmatpush1.xpose.msra.mxu0 0.0
      %833 = vmatprep.subr.mxu0 0.0
      %834 = vmatpush1.xpose.msra.mxu0 0.0
      %835 = vmatprep.subr.mxu0 0.0
      %836 = vmatpush1.xpose.msra.mxu0 0.0
      %837 = vmatprep.subr.mxu0 0.0
      %838 = vmatpush1.xpose.msra.mxu0 0.0
      %839 = vmatprep.subr.mxu0 0.0
      %840 = vmatpush1.xpose.msra.mxu0 0.0
      %841 = vmatprep.subr.mxu0 0.0
      %842 = vmatpush1.xpose.msra.mxu0 0.0
      %843 = vmatprep.subr.mxu0 0.0
      %844 = vmatpush1.xpose.msra.mxu0 0.0
      %845 = vmatprep.mubr.f32.mxu0 0.0
      %846 = vmatmul.mubr.f32.gmra.mrb[0].mxu0 %v777
      %v847 = vpop.f32.mrb[0].mxu0
      %v848 = vadd.f32 0.0, %v847
      %v849 = vpop.f32.mrb[0].mxu0
      %850 = vdwg.mxu0
      %s851 = scalar_lea.vmem [#allocation2], 16
      %v852 = vld [vmem:[%s851] sm:$0xff]
      %v853 = vsel %vm388, %v848, -inf
      %854 = vmax.xlane.f32.xlu0 %v853
      %v855 = vpop.xlane.xlu0 %854
      %v856 = vmax.f32 %v852, %v855
      %v857 = vsub.f32 %v852, %v856
      %v858 = vmul.f32 %v857, 1.442695
      %v859 = vpow.pop %v858
      %861 = vset.pattern.permute.xlu0 0
      %862 = vperm.xlu0 %861, %v856
      %v863 = vpop.permute.xlu0 %862
      %v865 = vsub.f32 %v848, %v863
      %v866 = vmul.f32 %v865, 1.442695
      %v867 = vpow.pop %v866
      %s868 = scalar_lea.vmem [#allocation3], 16
      %v869 = vld [vmem:[%s868] sm:$0xff]
      %v870 = vmul.f32 %v859, %v869
      %v871 = vsel %vm388, %v867, 0.0
      %872 = vadd.xlane.f32.xlu0 %v871
      %v873 = vpop.xlane.xlu0 %872
      %v874 = vadd.f32 %v870, %v873
      %875 = vst.msk [vmem:[%s868] sm:$0xff] %vm487, %v874
      %s876 = scalar_lea.vmem [#allocation4], 16
      %v877 = vld [vmem:[%s876] sm:$0xff]
      %879 = vset.pattern.permute.xlu0 0
      %880 = vperm.xlu0 %879, %v859
      %v881 = vpop.permute.xlu0 %880
      %v883 = vmul.f32 %v881, %v877
      %884 = vrot.lane.b32.xlu0 %v770, 80
      %v885 = vpop.permute.xlu0 %884
      %v888 = vsel %vm388, %v867, 0
      %890 = vmatprep.subr.mxu0 0.0
      %891 = vmatpush1.msra.mxu0 %v885
      %892 = vmatprep.subr.mxu0 0.0
      %893 = vmatpush1.msra.mxu0 0.0
      %894 = vmatprep.subr.mxu0 0.0
      %895 = vmatpush1.msra.mxu0 0.0
      %896 = vmatprep.subr.mxu0 0.0
      %897 = vmatpush1.msra.mxu0 0.0
      %898 = vmatprep.subr.mxu0 0.0
      %899 = vmatpush1.msra.mxu0 0.0
      %900 = vmatprep.subr.mxu0 0.0
      %901 = vmatpush1.msra.mxu0 0.0
      %902 = vmatprep.subr.mxu0 0.0
      %903 = vmatpush1.msra.mxu0 0.0
      %904 = vmatprep.subr.mxu0 0.0
      %905 = vmatpush1.msra.mxu0 0.0
      %906 = vmatprep.subr.mxu0 0.0
      %907 = vmatpush1.msra.mxu0 0.0
      %908 = vmatprep.subr.mxu0 0.0
      %909 = vmatpush1.msra.mxu0 0.0
      %910 = vmatprep.subr.mxu0 0.0
      %911 = vmatpush1.msra.mxu0 0.0
      %912 = vmatprep.subr.mxu0 0.0
      %913 = vmatpush1.msra.mxu0 0.0
      %914 = vmatprep.subr.mxu0 0.0
      %915 = vmatpush1.msra.mxu0 0.0
      %916 = vmatprep.subr.mxu0 0.0
      %917 = vmatpush1.msra.mxu0 0.0
      %918 = vmatprep.subr.mxu0 0.0
      %919 = vmatpush1.msra.mxu0 0.0
      %920 = vmatprep.subr.mxu0 0.0
      %921 = vmatpush1.msra.mxu0 0.0
      %922 = vmatprep.subr.mxu0 0.0
      %923 = vmatpush1.msra.mxu0 0.0
      %924 = vmatprep.subr.mxu0 0.0
      %925 = vmatpush1.msra.mxu0 0.0
      %926 = vmatprep.subr.mxu0 0.0
      %927 = vmatpush1.msra.mxu0 0.0
      %928 = vmatprep.subr.mxu0 0.0
      %929 = vmatpush1.msra.mxu0 0.0
      %930 = vmatprep.subr.mxu0 0.0
      %931 = vmatpush1.msra.mxu0 0.0
      %932 = vmatprep.subr.mxu0 0.0
      %933 = vmatpush1.msra.mxu0 0.0
      %934 = vmatprep.subr.mxu0 0.0
      %935 = vmatpush1.msra.mxu0 0.0
      %936 = vmatprep.subr.mxu0 0.0
      %937 = vmatpush1.msra.mxu0 0.0
      %938 = vmatprep.subr.mxu0 0.0
      %939 = vmatpush1.msra.mxu0 0.0
      %940 = vmatprep.subr.mxu0 0.0
      %941 = vmatpush1.msra.mxu0 0.0
      %942 = vmatprep.subr.mxu0 0.0
      %943 = vmatpush1.msra.mxu0 0.0
      %944 = vmatprep.subr.mxu0 0.0
      %945 = vmatpush1.msra.mxu0 0.0
      %946 = vmatprep.subr.mxu0 0.0
      %947 = vmatpush1.msra.mxu0 0.0
      %948 = vmatprep.subr.mxu0 0.0
      %949 = vmatpush1.msra.mxu0 0.0
      %950 = vmatprep.subr.mxu0 0.0
      %951 = vmatpush1.msra.mxu0 0.0
      %952 = vmatprep.subr.mxu0 0.0
      %953 = vmatpush1.msra.mxu0 0.0
      %954 = vmatprep.mubr.f32.mxu0 0.0
      %955 = vmatmul.mubr.f32.gmra.mrb[0].mxu0 %v888
      %v956 = vpop.f32.mrb[0].mxu0
      %v957 = vadd.f32 0.0, %v956
      %v958 = vpop.f32.mrb[0].mxu0
      %959 = vdwg.mxu0
      %v960 = vadd.f32 %v883, %v957
      %961 = vst.msk [vmem:[%s876] sm:$0xff] %vm388, %v960
      %962 = vst.msk [vmem:[%s851] sm:$0xff] %vm487, %v856
      %v963 = vld [vmem:[%s346] sm:$0xff]
      %v964 = vld [vmem:[%s353] sm:$0xff]
      %966 = vrot.lane.b32.xlu0 %v963, 104
      %v967 = vpop.permute.xlu0 %966
      %969 = vrot.lane.b32.xlu0 %v964, 104
      %v970 = vpop.permute.xlu0 %969
      %v971 = vsel %vm388, %v967, 0
      %v973 = vsel %vm388, %v970, 0
      %975 = vmatprep.subr.mxu0 0.0
      %976 = vmatpush1.xpose.msra.mxu0 %v973
      %977 = vmatprep.subr.mxu0 0.0
      %978 = vmatpush1.xpose.msra.mxu0 0.0
      %979 = vmatprep.subr.mxu0 0.0
      %980 = vmatpush1.xpose.msra.mxu0 0.0
      %981 = vmatprep.subr.mxu0 0.0
      %982 = vmatpush1.xpose.msra.mxu0 0.0
      %983 = vmatprep.subr.mxu0 0.0
      %984 = vmatpush1.xpose.msra.mxu0 0.0
      %985 = vmatprep.subr.mxu0 0.0
      %986 = vmatpush1.xpose.msra.mxu0 0.0
      %987 = vmatprep.subr.mxu0 0.0
      %988 = vmatpush1.xpose.msra.mxu0 0.0
      %989 = vmatprep.subr.mxu0 0.0
      %990 = vmatpush1.xpose.msra.mxu0 0.0
      %991 = vmatprep.subr.mxu0 0.0
      %992 = vmatpush1.xpose.msra.mxu0 0.0
      %993 = vmatprep.subr.mxu0 0.0
      %994 = vmatpush1.xpose.msra.mxu0 0.0
      %995 = vmatprep.subr.mxu0 0.0
      %996 = vmatpush1.xpose.msra.mxu0 0.0
      %997 = vmatprep.subr.mxu0 0.0
      %998 = vmatpush1.xpose.msra.mxu0 0.0
      %999 = vmatprep.subr.mxu0 0.0
      %1000 = vmatpush1.xpose.msra.mxu0 0.0
      %1001 = vmatprep.subr.mxu0 0.0
      %1002 = vmatpush1.xpose.msra.mxu0 0.0
      %1003 = vmatprep.subr.mxu0 0.0
      %1004 = vmatpush1.xpose.msra.mxu0 0.0
      %1005 = vmatprep.subr.mxu0 0.0
      %1006 = vmatpush1.xpose.msra.mxu0 0.0
      %1007 = vmatprep.subr.mxu0 0.0
      %1008 = vmatpush1.xpose.msra.mxu0 0.0
      %1009 = vmatprep.subr.mxu0 0.0
      %1010 = vmatpush1.xpose.msra.mxu0 0.0
      %1011 = vmatprep.subr.mxu0 0.0
      %1012 = vmatpush1.xpose.msra.mxu0 0.0
      %1013 = vmatprep.subr.mxu0 0.0
      %1014 = vmatpush1.xpose.msra.mxu0 0.0
      %1015 = vmatprep.subr.mxu0 0.0
      %1016 = vmatpush1.xpose.msra.mxu0 0.0
      %1017 = vmatprep.subr.mxu0 0.0
      %1018 = vmatpush1.xpose.msra.mxu0 0.0
      %1019 = vmatprep.subr.mxu0 0.0
      %1020 = vmatpush1.xpose.msra.mxu0 0.0
      %1021 = vmatprep.subr.mxu0 0.0
      %1022 = vmatpush1.xpose.msra.mxu0 0.0
      %1023 = vmatprep.subr.mxu0 0.0
      %1024 = vmatpush1.xpose.msra.mxu0 0.0
      %1025 = vmatprep.subr.mxu0 0.0
      %1026 = vmatpush1.xpose.msra.mxu0 0.0
      %1027 = vmatprep.subr.mxu0 0.0
      %1028 = vmatpush1.xpose.msra.mxu0 0.0
      %1029 = vmatprep.subr.mxu0 0.0
      %1030 = vmatpush1.xpose.msra.mxu0 0.0
      %1031 = vmatprep.subr.mxu0 0.0
      %1032 = vmatpush1.xpose.msra.mxu0 0.0
      %1033 = vmatprep.subr.mxu0 0.0
      %1034 = vmatpush1.xpose.msra.mxu0 0.0
      %1035 = vmatprep.subr.mxu0 0.0
      %1036 = vmatpush1.xpose.msra.mxu0 0.0
      %1037 = vmatprep.subr.mxu0 0.0
      %1038 = vmatpush1.xpose.msra.mxu0 0.0
      %1039 = vmatprep.mubr.f32.mxu0 0.0
      %1040 = vmatmul.mubr.f32.gmra.mrb[0].mxu0 %v971
      %v1041 = vpop.f32.mrb[0].mxu0
      %v1042 = vadd.f32 0.0, %v1041
      %v1043 = vpop.f32.mrb[0].mxu0
      %1044 = vdwg.mxu0
      %s1045 = scalar_lea.vmem [#allocation2], 24
      %v1046 = vld [vmem:[%s1045] sm:$0xff]
      %v1047 = vsel %vm388, %v1042, -inf
      %1048 = vmax.xlane.f32.xlu0 %v1047
      %v1049 = vpop.xlane.xlu0 %1048
      %v1050 = vmax.f32 %v1046, %v1049
      %v1051 = vsub.f32 %v1046, %v1050
      %v1052 = vmul.f32 %v1051, 1.442695
      %v1053 = vpow.pop %v1052
      %1055 = vset.pattern.permute.xlu0 0
      %1056 = vperm.xlu0 %1055, %v1050
      %v1057 = vpop.permute.xlu0 %1056
      %v1059 = vsub.f32 %v1042, %v1057
      %v1060 = vmul.f32 %v1059, 1.442695
      %v1061 = vpow.pop %v1060
      %s1062 = scalar_lea.vmem [#allocation3], 24
      %v1063 = vld [vmem:[%s1062] sm:$0xff]
      %v1064 = vmul.f32 %v1053, %v1063
      %v1065 = vsel %vm388, %v1061, 0.0
      %1066 = vadd.xlane.f32.xlu0 %v1065
      %v1067 = vpop.xlane.xlu0 %1066
      %v1068 = vadd.f32 %v1064, %v1067
      %1069 = vst.msk [vmem:[%s1062] sm:$0xff] %vm487, %v1068
      %s1070 = scalar_lea.vmem [#allocation4], 24
      %v1071 = vld [vmem:[%s1070] sm:$0xff]
      %1073 = vset.pattern.permute.xlu0 0
      %1074 = vperm.xlu0 %1073, %v1053
      %v1075 = vpop.permute.xlu0 %1074
      %v1077 = vmul.f32 %v1075, %v1071
      %1078 = vrot.lane.b32.xlu0 %v964, 72
      %v1079 = vpop.permute.xlu0 %1078
      %v1082 = vsel %vm388, %v1061, 0
      %1084 = vmatprep.subr.mxu0 0.0
      %1085 = vmatpush1.msra.mxu0 %v1079
      %1086 = vmatprep.subr.mxu0 0.0
      %1087 = vmatpush1.msra.mxu0 0.0
      %1088 = vmatprep.subr.mxu0 0.0
      %1089 = vmatpush1.msra.mxu0 0.0
      %1090 = vmatprep.subr.mxu0 0.0
      %1091 = vmatpush1.msra.mxu0 0.0
      %1092 = vmatprep.subr.mxu0 0.0
      %1093 = vmatpush1.msra.mxu0 0.0
      %1094 = vmatprep.subr.mxu0 0.0
      %1095 = vmatpush1.msra.mxu0 0.0
      %1096 = vmatprep.subr.mxu0 0.0
      %1097 = vmatpush1.msra.mxu0 0.0
      %1098 = vmatprep.subr.mxu0 0.0
      %1099 = vmatpush1.msra.mxu0 0.0
      %1100 = vmatprep.subr.mxu0 0.0
      %1101 = vmatpush1.msra.mxu0 0.0
      %1102 = vmatprep.subr.mxu0 0.0
      %1103 = vmatpush1.msra.mxu0 0.0
      %1104 = vmatprep.subr.mxu0 0.0
      %1105 = vmatpush1.msra.mxu0 0.0
      %1106 = vmatprep.subr.mxu0 0.0
      %1107 = vmatpush1.msra.mxu0 0.0
      %1108 = vmatprep.subr.mxu0 0.0
      %1109 = vmatpush1.msra.mxu0 0.0
      %1110 = vmatprep.subr.mxu0 0.0
      %1111 = vmatpush1.msra.mxu0 0.0
      %1112 = vmatprep.subr.mxu0 0.0
      %1113 = vmatpush1.msra.mxu0 0.0
      %1114 = vmatprep.subr.mxu0 0.0
      %1115 = vmatpush1.msra.mxu0 0.0
      %1116 = vmatprep.subr.mxu0 0.0
      %1117 = vmatpush1.msra.mxu0 0.0
      %1118 = vmatprep.subr.mxu0 0.0
      %1119 = vmatpush1.msra.mxu0 0.0
      %1120 = vmatprep.subr.mxu0 0.0
      %1121 = vmatpush1.msra.mxu0 0.0
      %1122 = vmatprep.subr.mxu0 0.0
      %1123 = vmatpush1.msra.mxu0 0.0
      %1124 = vmatprep.subr.mxu0 0.0
      %1125 = vmatpush1.msra.mxu0 0.0
      %1126 = vmatprep.subr.mxu0 0.0
      %1127 = vmatpush1.msra.mxu0 0.0
      %1128 = vmatprep.subr.mxu0 0.0
      %1129 = vmatpush1.msra.mxu0 0.0
      %1130 = vmatprep.subr.mxu0 0.0
      %1131 = vmatpush1.msra.mxu0 0.0
      %1132 = vmatprep.subr.mxu0 0.0
      %1133 = vmatpush1.msra.mxu0 0.0
      %1134 = vmatprep.subr.mxu0 0.0
      %1135 = vmatpush1.msra.mxu0 0.0
      %1136 = vmatprep.subr.mxu0 0.0
      %1137 = vmatpush1.msra.mxu0 0.0
      %1138 = vmatprep.subr.mxu0 0.0
      %1139 = vmatpush1.msra.mxu0 0.0
      %1140 = vmatprep.subr.mxu0 0.0
      %1141 = vmatpush1.msra.mxu0 0.0
      %1142 = vmatprep.subr.mxu0 0.0
      %1143 = vmatpush1.msra.mxu0 0.0
      %1144 = vmatprep.subr.mxu0 0.0
      %1145 = vmatpush1.msra.mxu0 0.0
      %1146 = vmatprep.subr.mxu0 0.0
      %1147 = vmatpush1.msra.mxu0 0.0
      %1148 = vmatprep.mubr.f32.mxu0 0.0
      %1149 = vmatmul.mubr.f32.gmra.mrb[0].mxu0 %v1082
      %v1150 = vpop.f32.mrb[0].mxu0
      %v1151 = vadd.f32 0.0, %v1150
      %v1152 = vpop.f32.mrb[0].mxu0
      %1153 = vdwg.mxu0
      %v1154 = vadd.f32 %v1077, %v1151
      %1155 = vst.msk [vmem:[%s1070] sm:$0xff] %vm388, %v1154
      %1156 = vst.msk [vmem:[%s1045] sm:$0xff] %vm487, %v1050
      // Predicated region
      $region53: #{_lambda_.7} parent=47 // pred_check
        %p1157 = pneg %p368
      $region54: #{_lambda_.7} parent=47 // pred_check_branch
        %1159 = sbr.rel (%p1157) target = $region56
      $region55: #{_lambda_.7} parent=47 // pred_region
        %v1160 = vld [vmem:[#allocation3] sm:$0xff]
        %v1161 = vrcp.pop %v1160
        %v1162 = vld [vmem:[#allocation4] sm:$0xff]
        %1164 = vset.pattern.permute.xlu0 0
        %1165 = vperm.xlu0 %1164, %v1161
        %v1166 = vpop.permute.xlu0 %1165
        %v1168 = vmul.f32 %v1162, %v1166
        %v1169 = vld [vmem:[%s3] sm:$0xff]
        %v1170 = vld [vmem:[%s674] sm:$0xff]
        %v1171 = vrcp.pop %v1170
        %v1172 = vld [vmem:[%s682] sm:$0xff]
        %1174 = vset.pattern.permute.xlu0 0
        %1175 = vperm.xlu0 %1174, %v1171
        %v1176 = vpop.permute.xlu0 %1175
        %v1178 = vmul.f32 %v1172, %v1176
        %v1179 = vld [vmem:[%s3 + $0x8] sm:$0xff]
        %v1181 = vsel %vm388, %v1178, 0
        %1183 = vmatprep.subr.mxu0 0.0
        %1184 = vmatpush1.msra.mxu0 %v1179
        %1185 = vmatprep.subr.mxu0 0.0
        %1186 = vmatpush1.msra.mxu0 0.0
        %1187 = vmatprep.subr.mxu0 0.0
        %1188 = vmatpush1.msra.mxu0 0.0
        %1189 = vmatprep.subr.mxu0 0.0
        %1190 = vmatpush1.msra.mxu0 0.0
        %1191 = vmatprep.subr.mxu0 0.0
        %1192 = vmatpush1.msra.mxu0 0.0
        %1193 = vmatprep.subr.mxu0 0.0
        %1194 = vmatpush1.msra.mxu0 0.0
        %1195 = vmatprep.subr.mxu0 0.0
        %1196 = vmatpush1.msra.mxu0 0.0
        %1197 = vmatprep.subr.mxu0 0.0
        %1198 = vmatpush1.msra.mxu0 0.0
        %1199 = vmatprep.subr.mxu0 0.0
        %1200 = vmatpush1.msra.mxu0 0.0
        %1201 = vmatprep.subr.mxu0 0.0
        %1202 = vmatpush1.msra.mxu0 0.0
        %1203 = vmatprep.subr.mxu0 0.0
        %1204 = vmatpush1.msra.mxu0 0.0
        %1205 = vmatprep.subr.mxu0 0.0
        %1206 = vmatpush1.msra.mxu0 0.0
        %1207 = vmatprep.subr.mxu0 0.0
        %1208 = vmatpush1.msra.mxu0 0.0
        %1209 = vmatprep.subr.mxu0 0.0
        %1210 = vmatpush1.msra.mxu0 0.0
        %1211 = vmatprep.subr.mxu0 0.0
        %1212 = vmatpush1.msra.mxu0 0.0
        %1213 = vmatprep.subr.mxu0 0.0
        %1214 = vmatpush1.msra.mxu0 0.0
        %1215 = vmatprep.subr.mxu0 0.0
        %1216 = vmatpush1.msra.mxu0 0.0
        %1217 = vmatprep.subr.mxu0 0.0
        %1218 = vmatpush1.msra.mxu0 0.0
        %1219 = vmatprep.subr.mxu0 0.0
        %1220 = vmatpush1.msra.mxu0 0.0
        %1221 = vmatprep.subr.mxu0 0.0
        %1222 = vmatpush1.msra.mxu0 0.0
        %1223 = vmatprep.subr.mxu0 0.0
        %1224 = vmatpush1.msra.mxu0 0.0
        %1225 = vmatprep.subr.mxu0 0.0
        %1226 = vmatpush1.msra.mxu0 0.0
        %1227 = vmatprep.subr.mxu0 0.0
        %1228 = vmatpush1.msra.mxu0 0.0
        %1229 = vmatprep.subr.mxu0 0.0
        %1230 = vmatpush1.msra.mxu0 0.0
        %1231 = vmatprep.subr.mxu0 0.0
        %1232 = vmatpush1.msra.mxu0 0.0
        %1233 = vmatprep.subr.mxu0 0.0
        %1234 = vmatpush1.msra.mxu0 0.0
        %1235 = vmatprep.subr.mxu0 0.0
        %1236 = vmatpush1.msra.mxu0 0.0
        %1237 = vmatprep.subr.mxu0 0.0
        %1238 = vmatpush1.msra.mxu0 0.0
        %1239 = vmatprep.subr.mxu0 0.0
        %1240 = vmatpush1.msra.mxu0 0.0
        %1241 = vmatprep.subr.mxu0 0.0
        %1242 = vmatpush1.msra.mxu0 0.0
        %1243 = vmatprep.subr.mxu0 0.0
        %1244 = vmatpush1.msra.mxu0 0.0
        %1245 = vmatprep.subr.mxu0 0.0
        %1246 = vmatpush1.msra.mxu0 0.0
        %1247 = vmatprep.mubr.f32.mxu0 0.0
        %1248 = vmatmul.mubr.f32.gmra.mrb[0].mxu0 %v1181
        %v1249 = vpop.f32.mrb[0].mxu0
        %v1250 = vadd.f32 0.0, %v1249
        %v1251 = vpop.f32.mrb[0].mxu0
        %1252 = vdwg.mxu0
        %v1254 = vsel %vm388, %v1168, 0
        %1256 = vmatprep.subr.mxu0 0.0
        %1257 = vmatpush1.msra.mxu0 %v1169
        %1258 = vmatprep.subr.mxu0 0.0
        %1259 = vmatpush1.msra.mxu0 0.0
        %1260 = vmatprep.subr.mxu0 0.0
        %1261 = vmatpush1.msra.mxu0 0.0
        %1262 = vmatprep.subr.mxu0 0.0
        %1263 = vmatpush1.msra.mxu0 0.0
        %1264 = vmatprep.subr.mxu0 0.0
        %1265 = vmatpush1.msra.mxu0 0.0
        %1266 = vmatprep.subr.mxu0 0.0
        %1267 = vmatpush1.msra.mxu0 0.0
        %1268 = vmatprep.subr.mxu0 0.0
        %1269 = vmatpush1.msra.mxu0 0.0
        %1270 = vmatprep.subr.mxu0 0.0
        %1271 = vmatpush1.msra.mxu0 0.0
        %1272 = vmatprep.subr.mxu0 0.0
        %1273 = vmatpush1.msra.mxu0 0.0
        %1274 = vmatprep.subr.mxu0 0.0
        %1275 = vmatpush1.msra.mxu0 0.0
        %1276 = vmatprep.subr.mxu0 0.0
        %1277 = vmatpush1.msra.mxu0 0.0
        %1278 = vmatprep.subr.mxu0 0.0
        %1279 = vmatpush1.msra.mxu0 0.0
        %1280 = vmatprep.subr.mxu0 0.0
        %1281 = vmatpush1.msra.mxu0 0.0
        %1282 = vmatprep.subr.mxu0 0.0
        %1283 = vmatpush1.msra.mxu0 0.0
        %1284 = vmatprep.subr.mxu0 0.0
        %1285 = vmatpush1.msra.mxu0 0.0
        %1286 = vmatprep.subr.mxu0 0.0
        %1287 = vmatpush1.msra.mxu0 0.0
        %1288 = vmatprep.subr.mxu0 0.0
        %1289 = vmatpush1.msra.mxu0 0.0
        %1290 = vmatprep.subr.mxu0 0.0
        %1291 = vmatpush1.msra.mxu0 0.0
        %1292 = vmatprep.subr.mxu0 0.0
        %1293 = vmatpush1.msra.mxu0 0.0
        %1294 = vmatprep.subr.mxu0 0.0
        %1295 = vmatpush1.msra.mxu0 0.0
        %1296 = vmatprep.subr.mxu0 0.0
        %1297 = vmatpush1.msra.mxu0 0.0
        %1298 = vmatprep.subr.mxu0 0.0
        %1299 = vmatpush1.msra.mxu0 0.0
        %1300 = vmatprep.subr.mxu0 0.0
        %1301 = vmatpush1.msra.mxu0 0.0
        %1302 = vmatprep.subr.mxu0 0.0
        %1303 = vmatpush1.msra.mxu0 0.0
        %1304 = vmatprep.subr.mxu0 0.0
        %1305 = vmatpush1.msra.mxu0 0.0
        %1306 = vmatprep.subr.mxu0 0.0
        %1307 = vmatpush1.msra.mxu0 0.0
        %1308 = vmatprep.subr.mxu0 0.0
        %1309 = vmatpush1.msra.mxu0 0.0
        %1310 = vmatprep.subr.mxu0 0.0
        %1311 = vmatpush1.msra.mxu0 0.0
        %1312 = vmatprep.subr.mxu0 0.0
        %1313 = vmatpush1.msra.mxu0 0.0
        %1314 = vmatprep.subr.mxu0 0.0
        %1315 = vmatpush1.msra.mxu0 0.0
        %1316 = vmatprep.subr.mxu0 0.0
        %1317 = vmatpush1.msra.mxu0 0.0
        %1318 = vmatprep.subr.mxu0 0.0
        %1319 = vmatpush1.msra.mxu0 0.0
        %1320 = vmatprep.mubr.f32.mxu0 0.0
        %1321 = vmatmul.mubr.f32.gmra.mrb[0].mxu0 %v1254
        %v1322 = vpop.f32.mrb[0].mxu0
        %v1323 = vadd.f32 %v1250, %v1322
        %v1324 = vpop.f32.mrb[0].mxu0
        %1325 = vdwg.mxu0
        %v1326 = vld [vmem:[%s868] sm:$0xff]
        %v1327 = vrcp.pop %v1326
        %v1328 = vld [vmem:[%s876] sm:$0xff]
        %1330 = vset.pattern.permute.xlu0 0
        %1331 = vperm.xlu0 %1330, %v1327
        %v1332 = vpop.permute.xlu0 %1331
        %v1334 = vmul.f32 %v1328, %v1332
        %v1335 = vld [vmem:[%s3 + $0x10] sm:$0xff]
        %v1337 = vsel %vm388, %v1334, 0
        %1339 = vmatprep.subr.mxu0 0.0
        %1340 = vmatpush1.msra.mxu0 %v1335
        %1341 = vmatprep.subr.mxu0 0.0
        %1342 = vmatpush1.msra.mxu0 0.0
        %1343 = vmatprep.subr.mxu0 0.0
        %1344 = vmatpush1.msra.mxu0 0.0
        %1345 = vmatprep.subr.mxu0 0.0
        %1346 = vmatpush1.msra.mxu0 0.0
        %1347 = vmatprep.subr.mxu0 0.0
        %1348 = vmatpush1.msra.mxu0 0.0
        %1349 = vmatprep.subr.mxu0 0.0
        %1350 = vmatpush1.msra.mxu0 0.0
        %1351 = vmatprep.subr.mxu0 0.0
        %1352 = vmatpush1.msra.mxu0 0.0
        %1353 = vmatprep.subr.mxu0 0.0
        %1354 = vmatpush1.msra.mxu0 0.0
        %1355 = vmatprep.subr.mxu0 0.0
        %1356 = vmatpush1.msra.mxu0 0.0
        %1357 = vmatprep.subr.mxu0 0.0
        %1358 = vmatpush1.msra.mxu0 0.0
        %1359 = vmatprep.subr.mxu0 0.0
        %1360 = vmatpush1.msra.mxu0 0.0
        %1361 = vmatprep.subr.mxu0 0.0
        %1362 = vmatpush1.msra.mxu0 0.0
        %1363 = vmatprep.subr.mxu0 0.0
        %1364 = vmatpush1.msra.mxu0 0.0
        %1365 = vmatprep.subr.mxu0 0.0
        %1366 = vmatpush1.msra.mxu0 0.0
        %1367 = vmatprep.subr.mxu0 0.0
        %1368 = vmatpush1.msra.mxu0 0.0
        %1369 = vmatprep.subr.mxu0 0.0
        %1370 = vmatpush1.msra.mxu0 0.0
        %1371 = vmatprep.subr.mxu0 0.0
        %1372 = vmatpush1.msra.mxu0 0.0
        %1373 = vmatprep.subr.mxu0 0.0
        %1374 = vmatpush1.msra.mxu0 0.0
        %1375 = vmatprep.subr.mxu0 0.0
        %1376 = vmatpush1.msra.mxu0 0.0
        %1377 = vmatprep.subr.mxu0 0.0
        %1378 = vmatpush1.msra.mxu0 0.0
        %1379 = vmatprep.subr.mxu0 0.0
        %1380 = vmatpush1.msra.mxu0 0.0
        %1381 = vmatprep.subr.mxu0 0.0
        %1382 = vmatpush1.msra.mxu0 0.0
        %1383 = vmatprep.subr.mxu0 0.0
        %1384 = vmatpush1.msra.mxu0 0.0
        %1385 = vmatprep.subr.mxu0 0.0
        %1386 = vmatpush1.msra.mxu0 0.0
        %1387 = vmatprep.subr.mxu0 0.0
        %1388 = vmatpush1.msra.mxu0 0.0
        %1389 = vmatprep.subr.mxu0 0.0
        %1390 = vmatpush1.msra.mxu0 0.0
        %1391 = vmatprep.subr.mxu0 0.0
        %1392 = vmatpush1.msra.mxu0 0.0
        %1393 = vmatprep.subr.mxu0 0.0
        %1394 = vmatpush1.msra.mxu0 0.0
        %1395 = vmatprep.subr.mxu0 0.0
        %1396 = vmatpush1.msra.mxu0 0.0
        %1397 = vmatprep.subr.mxu0 0.0
        %1398 = vmatpush1.msra.mxu0 0.0
        %1399 = vmatprep.subr.mxu0 0.0
        %1400 = vmatpush1.msra.mxu0 0.0
        %1401 = vmatprep.subr.mxu0 0.0
        %1402 = vmatpush1.msra.mxu0 0.0
        %1403 = vmatprep.mubr.f32.mxu0 0.0
        %1404 = vmatmul.mubr.f32.gmra.mrb[0].mxu0 %v1337
        %v1405 = vpop.f32.mrb[0].mxu0
        %v1406 = vadd.f32 0.0, %v1405
        %v1407 = vpop.f32.mrb[0].mxu0
        %1408 = vdwg.mxu0
        %v1409 = vadd.f32 %v1323, %v1406
        %v1410 = vld [vmem:[%s1062] sm:$0xff]
        %v1411 = vrcp.pop %v1410
        %v1412 = vld [vmem:[%s1070] sm:$0xff]
        %1414 = vset.pattern.permute.xlu0 0
        %1415 = vperm.xlu0 %1414, %v1411
        %v1416 = vpop.permute.xlu0 %1415
        %v1418 = vmul.f32 %v1412, %v1416
        %v1419 = vld [vmem:[%s3 + $0x18] sm:$0xff]
        %v1421 = vsel %vm388, %v1418, 0
        %1423 = vmatprep.subr.mxu0 0.0
        %1424 = vmatpush1.msra.mxu0 %v1419
        %1425 = vmatprep.subr.mxu0 0.0
        %1426 = vmatpush1.msra.mxu0 0.0
        %1427 = vmatprep.subr.mxu0 0.0
        %1428 = vmatpush1.msra.mxu0 0.0
        %1429 = vmatprep.subr.mxu0 0.0
        %1430 = vmatpush1.msra.mxu0 0.0
        %1431 = vmatprep.subr.mxu0 0.0
        %1432 = vmatpush1.msra.mxu0 0.0
        %1433 = vmatprep.subr.mxu0 0.0
        %1434 = vmatpush1.msra.mxu0 0.0
        %1435 = vmatprep.subr.mxu0 0.0
        %1436 = vmatpush1.msra.mxu0 0.0
        %1437 = vmatprep.subr.mxu0 0.0
        %1438 = vmatpush1.msra.mxu0 0.0
        %1439 = vmatprep.subr.mxu0 0.0
        %1440 = vmatpush1.msra.mxu0 0.0
        %1441 = vmatprep.subr.mxu0 0.0
        %1442 = vmatpush1.msra.mxu0 0.0
        %1443 = vmatprep.subr.mxu0 0.0
        %1444 = vmatpush1.msra.mxu0 0.0
        %1445 = vmatprep.subr.mxu0 0.0
        %1446 = vmatpush1.msra.mxu0 0.0
        %1447 = vmatprep.subr.mxu0 0.0
        %1448 = vmatpush1.msra.mxu0 0.0
        %1449 = vmatprep.subr.mxu0 0.0
        %1450 = vmatpush1.msra.mxu0 0.0
        %1451 = vmatprep.subr.mxu0 0.0
        %1452 = vmatpush1.msra.mxu0 0.0
        %1453 = vmatprep.subr.mxu0 0.0
        %1454 = vmatpush1.msra.mxu0 0.0
        %1455 = vmatprep.subr.mxu0 0.0
        %1456 = vmatpush1.msra.mxu0 0.0
        %1457 = vmatprep.subr.mxu0 0.0
        %1458 = vmatpush1.msra.mxu0 0.0
        %1459 = vmatprep.subr.mxu0 0.0
        %1460 = vmatpush1.msra.mxu0 0.0
        %1461 = vmatprep.subr.mxu0 0.0
        %1462 = vmatpush1.msra.mxu0 0.0
        %1463 = vmatprep.subr.mxu0 0.0
        %1464 = vmatpush1.msra.mxu0 0.0
        %1465 = vmatprep.subr.mxu0 0.0
        %1466 = vmatpush1.msra.mxu0 0.0
        %1467 = vmatprep.subr.mxu0 0.0
        %1468 = vmatpush1.msra.mxu0 0.0
        %1469 = vmatprep.subr.mxu0 0.0
        %1470 = vmatpush1.msra.mxu0 0.0
        %1471 = vmatprep.subr.mxu0 0.0
        %1472 = vmatpush1.msra.mxu0 0.0
        %1473 = vmatprep.subr.mxu0 0.0
        %1474 = vmatpush1.msra.mxu0 0.0
        %1475 = vmatprep.subr.mxu0 0.0
        %1476 = vmatpush1.msra.mxu0 0.0
        %1477 = vmatprep.subr.mxu0 0.0
        %1478 = vmatpush1.msra.mxu0 0.0
        %1479 = vmatprep.subr.mxu0 0.0
        %1480 = vmatpush1.msra.mxu0 0.0
        %1481 = vmatprep.subr.mxu0 0.0
        %1482 = vmatpush1.msra.mxu0 0.0
        %1483 = vmatprep.subr.mxu0 0.0
        %1484 = vmatpush1.msra.mxu0 0.0
        %1485 = vmatprep.subr.mxu0 0.0
        %1486 = vmatpush1.msra.mxu0 0.0
        %1487 = vmatprep.mubr.f32.mxu0 0.0
        %1488 = vmatmul.mubr.f32.gmra.mrb[0].mxu0 %v1421
        %v1489 = vpop.f32.mrb[0].mxu0
        %v1490 = vadd.f32 0.0, %v1489
        %v1491 = vpop.f32.mrb[0].mxu0
        %1492 = vdwg.mxu0
        %v1493 = vadd.f32 %v1409, %v1490
        %v1494 = vld [vmem:[%s360] sm:$0xff]
        %v1495 = vadd.f32 %v1494, %v1493
        %v1496 = vld [vmem:[%s4] sm:$0x1]
        %v1498 = vlaneseq
        %v1499 = vshrl.u32 %v1498, 7
        %v1500 = vsub.s32 0, %v1499
        %v1501 = vrot.slane %v1496, %v1500
        %v1503 = vadd.f32 %v1495, %v1501
        %v1504 = vld [vmem:[%s5] sm:$0x1]
        %v1505 = vld [vmem:[%s6] sm:$0x1]
        %vm1506 = vcmask 261120
        %v1507 = vsel %vm1506, %v1503, 0.0
        %1508 = vadd.xlane.f32.xlu0 %v1507
        %v1509 = vpop.xlane.xlu0 %1508
        %v1510 = vrcp.pop 32.0
        %v1511 = vmul.f32 %v1509, %v1510
        %v1512 = vsub.f32 %v1503, %v1511
        %v1513 = vmul.f32 %v1512, %v1512
        %v1514 = vsel %vm1506, %v1513, 0.0
        %1515 = vadd.xlane.f32.xlu0 %v1514
        %v1516 = vpop.xlane.xlu0 %1515
        %v1517 = vmul.f32 %v1516, %v1510
        %v1518 = vadd.f32 %v1517, 1e-05
        %v1519 = vrsqrt.pop %v1518
        %v1520 = vmul.f32 %v1512, %v1519
        %v1522 = vlaneseq
        %v1523 = vshrl.u32 %v1522, 7
        %v1524 = vsub.s32 0, %v1523
        %v1525 = vrot.slane %v1504, %v1524
        %v1527 = vmul.f32 %v1520, %v1525
        %v1529 = vlaneseq
        %v1530 = vshrl.u32 %v1529, 7
        %v1531 = vsub.s32 0, %v1530
        %v1532 = vrot.slane %v1505, %v1531
        %v1534 = vadd.f32 %v1527, %v1532
        %1535 = vst.msk [vmem:[%s367] sm:$0xff] %vm1506, %v1534
      $region56: #{_lambda_.7} parent=47 // pred_fallthru
        _
      %p1536 = scmp.lt.s32.totalorder %s23, 1
      %s1537 = scalar_select %p1536, %s23, 1
      %p1538 = scmp.lt.s32.totalorder %s24, 0
      %s1539 = scalar_select %p1538, %s24, 0
      %s1540 = sadd.s32 %s1539, %s1537
      %s1541 = smul.addr %s1540, 8
      %s1542 = scalar_lea.vmem %s7, %s1541
      // Predicated region
      $region57: #{_lambda_.7} parent=47 // pred_check
        %p1543 = pneg %p225
      $region58: #{_lambda_.7} parent=47 // pred_check_branch
        %1545 = sbr.rel (%p1543) target = $region60
      $region59: #{_lambda_.7} parent=47 // pred_region
        _
      $region60: #{_lambda_.7} parent=47 // pred_fallthru
        _
    $region48: #{_lambda_.7} parent=5 // pred_fallthru
      _
    %p1546 = scmp.le.s32.totalorder 2, %s13
    // Predicated region
    $region61: #{_lambda_.7} parent=5 // pred_check
      %p1547 = pneg %p1546
    $region62: #{_lambda_.7} parent=5 // pred_check_branch
      %1549 = sbr.rel (%p1547) target = $region64
    $region63: #{_lambda_.7} parent=5 // pred_region
      %s1550 = ssub.s32 %s13, 2
      // Predicated region
      $region65: #{_lambda_.7} parent=63 // pred_check
        %p1551 = pneg %p231
      $region66: #{_lambda_.7} parent=63 // pred_check_branch
        %1553 = sbr.rel (%p1551) target = $region68
      $region67: #{_lambda_.7} parent=63 // pred_region
        %p1554 = scmp.lt.s32.totalorder %s26, 1
        %s1555 = scalar_select %p1554, %s26, 1
        %p1556 = scmp.lt.s32.totalorder %s27, 0
        %s1557 = scalar_select %p1556, %s27, 0
        %s1558 = sadd.s32 %s1557, %s1555
        %s1559 = smul.addr %s1558, 8
        %s1560 = scalar_lea.vmem %s7, %s1559
      $region68: #{_lambda_.7} parent=63 // pred_fallthru
        _
    $region64: #{_lambda_.7} parent=5 // pred_fallthru
      _
  $region6: #{_lambda_.7} parent=0 // loop_footer
    %s17 = sadd.s32 1, %s13
  $region7: #{_lambda_.7} parent=0 // loop_footer_branch
    %12 = sbr.rel target = $region3
  $region8: #{_lambda_.7} parent=0 // loop_exit
    _

// kernel: _lambda_.11
$region0: #{_lambda_.11}
  #allocation0 [shape = 'u32[]', space=smem, size = 0x4, offset = 0x4, fixed_abs, tag = 'smem constant byte address 0x4 - core index']
  #allocation1 [shape = 'u32[144,128]{1,0:T(1,128)}', space=vmem, size = 0x12000, scoped, tag = 'internal scratch']
  #allocation2 [shape = 'f32[8,32]{1,0:T(8,128)}', space=vmem, size = 0x1000, scoped, tag = 'scratch operand']
  %s0 = inlined_call_operand.vmem [shape: f32[16,32], index: 0, kind: input, shape index: {}]
  %s1 = inlined_call_operand.vmem [shape: f32[32,64], index: 1, kind: input, shape index: {}]
  %s2 = inlined_call_operand.vmem [shape: f32[1,64], index: 2, kind: input, shape index: {}]
  %s3 = inlined_call_operand.vmem [shape: f32[64,32], index: 3, kind: input, shape index: {}]
  %s4 = inlined_call_operand.vmem [shape: f32[1,32], index: 4, kind: input, shape index: {}]
  %s5 = inlined_call_operand.vmem [shape: f32[1,32], index: 5, kind: input, shape index: {}]
  %s6 = inlined_call_operand.vmem [shape: f32[1,32], index: 6, kind: input, shape index: {}]
  %s7 = inlined_call_operand.vmem [shape: f32[16,32], index: 7, kind: output, shape index: {}]
  %s8 = sld [smem:[#allocation0]]
  $region69: #{_lambda_.11} parent=0
    _
  %s10 = ssub.s32 1, %s8
  %s11 = scalar_select 0, %s10, %s8
  loop: start=0, step=1, limit=4
  $region2: #{_lambda_.11} parent=0 // loop_pre_header
    _
  $region3: #{_lambda_.11} parent=0 // loop_header
    %s13 = sphi 0, %s17
    %p14 = scmp.ge.s32.totalorder %s13, 4
    %s20 = sphi 0, %s32
    %s21 = sphi 0, %s28
    %s22 = sphi 0, %s20
    %s23 = sphi 0, %s21
    %s24 = sphi 0, %s22
    %s25 = sphi 0, %s23
    %s35 = sphi 0, %s37
    %s38 = sphi 0, %s35
    %s39 = sphi 0, %s38
    %s55 = sphi 0, %s39
    %s61 = sphi 0, %s63
    %s64 = sphi 0, %s61
    %s65 = sphi 0, %s64
    %s81 = sphi 0, %s65
    %s87 = sphi 0, %s89
    %s90 = sphi 0, %s87
    %s91 = sphi 0, %s90
    %s107 = sphi 0, %s91
    %s113 = sphi 0, %s115
    %s116 = sphi 0, %s113
    %s117 = sphi 0, %s116
    %s133 = sphi 0, %s117
    %s137 = sphi 0, %s137
    %s139 = sphi 0, %s137
    %s140 = sphi 0, %s139
    %s154 = sphi 0, %s140
    %s158 = sphi 0, %s158
    %s160 = sphi 0, %s158
    %s161 = sphi 0, %s160
    %s175 = sphi 0, %s161
    %s179 = sphi 0, %s179
    %s181 = sphi 0, %s179
    %s182 = sphi 0, %s181
    %s196 = sphi 0, %s182
    %s202 = sphi 0, %s204
    %s205 = sphi 0, %s202
    %s206 = sphi 0, %s205
    %s222 = sphi 0, %s206
  $region4: #{_lambda_.11} parent=0 // loop_header_branch
    %16 = sbr.rel (%p14) target = $region8
  $region5: #{_lambda_.11} parent=0 // loop_body
    %s18 = ssub.s32 %s13, 1
    %s19 = ssub.s32 %s13, 2
    %s26 = sadd.s32 1, %s21
    %p27 = scmp.ge.s32.totalorder %s26, 1
    %s28 = scalar_select %p27, 0, %s26
    %s29 = sadd.s32 1, %s20
    %s30 = scalar_select %p27, %s29, %s20
    %p31 = scmp.ge.s32.totalorder %s30, 2
    %s32 = scalar_select %p31, 0, %s30
    %s33 = ssub.s32 %s20, %s32
    %p34 = scmp.eq.s32.totalorder %s33, 0
    %s36 = sadd.s32 %s35, 1
    %s37 = scalar_select %p34, %s35, %s36
    %p40 = pneg %p34
    %p41 = scmp.eq.s32.totalorder %s13, 1
    %p42 = por %p40, %p41
    %p43 = scmp.ne.s32.totalorder %s35, %s38
    %p44 = scmp.eq.s32.totalorder %s13, 0
    %p45 = por %p43, %p44
    %p46 = scmp.ne.s32.totalorder %s35, %s38
    %p47 = scmp.eq.s32.totalorder %s18, 1
    %p48 = por %p46, %p47
    %p49 = scmp.ne.s32.totalorder %s38, %s39
    %p50 = scmp.eq.s32.totalorder %s18, 0
    %p51 = por %p49, %p50
    %p52 = scmp.ne.s32.totalorder %s38, %s39
    %p53 = scmp.eq.s32.totalorder %s19, 1
    %p54 = por %p52, %p53
    %p56 = scmp.ne.s32.totalorder %s39, %s55
    %p57 = scmp.eq.s32.totalorder %s19, 0
    %p58 = por %p56, %p57
    %s59 = ssub.s32 %s21, %s28
    %p60 = scmp.eq.s32.totalorder %s59, 0
    %s62 = sadd.s32 %s61, 1
    %s63 = scalar_select %p60, %s61, %s62
    %p66 = pneg %p60
    %p67 = scmp.eq.s32.totalorder %s13, 1
    %p68 = por %p66, %p67
    %p69 = scmp.ne.s32.totalorder %s61, %s64
    %p70 = scmp.eq.s32.totalorder %s13, 0
    %p71 = por %p69, %p70
    %p72 = scmp.ne.s32.totalorder %s61, %s64
    %p73 = scmp.eq.s32.totalorder %s18, 1
    %p74 = por %p72, %p73
    %p75 = scmp.ne.s32.totalorder %s64, %s65
    %p76 = scmp.eq.s32.totalorder %s18, 0
    %p77 = por %p75, %p76
    %p78 = scmp.ne.s32.totalorder %s64, %s65
    %p79 = scmp.eq.s32.totalorder %s19, 1
    %p80 = por %p78, %p79
    %p82 = scmp.ne.s32.totalorder %s65, %s81
    %p83 = scmp.eq.s32.totalorder %s19, 0
    %p84 = por %p82, %p83
    %s85 = ssub.s32 %s21, %s28
    %p86 = scmp.eq.s32.totalorder %s85, 0
    %s88 = sadd.s32 %s87, 1
    %s89 = scalar_select %p86, %s87, %s88
    %p92 = pneg %p86
    %p93 = scmp.eq.s32.totalorder %s13, 1
    %p94 = por %p92, %p93
    %p95 = scmp.ne.s32.totalorder %s87, %s90
    %p96 = scmp.eq.s32.totalorder %s13, 0
    %p97 = por %p95, %p96
    %p98 = scmp.ne.s32.totalorder %s87, %s90
    %p99 = scmp.eq.s32.totalorder %s18, 1
    %p100 = por %p98, %p99
    %p101 = scmp.ne.s32.totalorder %s90, %s91
    %p102 = scmp.eq.s32.totalorder %s18, 0
    %p103 = por %p101, %p102
    %p104 = scmp.ne.s32.totalorder %s90, %s91
    %p105 = scmp.eq.s32.totalorder %s19, 1
    %p106 = por %p104, %p105
    %p108 = scmp.ne.s32.totalorder %s91, %s107
    %p109 = scmp.eq.s32.totalorder %s19, 0
    %p110 = por %p108, %p109
    %s111 = ssub.s32 %s21, %s28
    %p112 = scmp.eq.s32.totalorder %s111, 0
    %s114 = sadd.s32 %s113, 1
    %s115 = scalar_select %p112, %s113, %s114
    %p118 = pneg %p112
    %p119 = scmp.eq.s32.totalorder %s13, 1
    %p120 = por %p118, %p119
    %p121 = scmp.ne.s32.totalorder %s113, %s116
    %p122 = scmp.eq.s32.totalorder %s13, 0
    %p123 = por %p121, %p122
    %p124 = scmp.ne.s32.totalorder %s113, %s116
    %p125 = scmp.eq.s32.totalorder %s18, 1
    %p126 = por %p124, %p125
    %p127 = scmp.ne.s32.totalorder %s116, %s117
    %p128 = scmp.eq.s32.totalorder %s18, 0
    %p129 = por %p127, %p128
    %p130 = scmp.ne.s32.totalorder %s116, %s117
    %p131 = scmp.eq.s32.totalorder %s19, 1
    %p132 = por %p130, %p131
    %p134 = scmp.ne.s32.totalorder %s117, %s133
    %p135 = scmp.eq.s32.totalorder %s19, 0
    %p136 = por %p134, %p135
    %s138 = sadd.s32 %s137, 1
    %p141 = scmp.eq.s32.totalorder %s13, 1
    %p142 = scmp.ne.s32.totalorder %s137, %s139
    %p143 = scmp.eq.s32.totalorder %s13, 0
    %p144 = por %p142, %p143
    %p145 = scmp.ne.s32.totalorder %s137, %s139
    %p146 = scmp.eq.s32.totalorder %s18, 1
    %p147 = por %p145, %p146
    %p148 = scmp.ne.s32.totalorder %s139, %s140
    %p149 = scmp.eq.s32.totalorder %s18, 0
    %p150 = por %p148, %p149
    %p151 = scmp.ne.s32.totalorder %s139, %s140
    %p152 = scmp.eq.s32.totalorder %s19, 1
    %p153 = por %p151, %p152
    %p155 = scmp.ne.s32.totalorder %s140, %s154
    %p156 = scmp.eq.s32.totalorder %s19, 0
    %p157 = por %p155, %p156
    %s159 = sadd.s32 %s158, 1
    %p162 = scmp.eq.s32.totalorder %s13, 1
    %p163 = scmp.ne.s32.totalorder %s158, %s160
    %p164 = scmp.eq.s32.totalorder %s13, 0
    %p165 = por %p163, %p164
    %p166 = scmp.ne.s32.totalorder %s158, %s160
    %p167 = scmp.eq.s32.totalorder %s18, 1
    %p168 = por %p166, %p167
    %p169 = scmp.ne.s32.totalorder %s160, %s161
    %p170 = scmp.eq.s32.totalorder %s18, 0
    %p171 = por %p169, %p170
    %p172 = scmp.ne.s32.totalorder %s160, %s161
    %p173 = scmp.eq.s32.totalorder %s19, 1
    %p174 = por %p172, %p173
    %p176 = scmp.ne.s32.totalorder %s161, %s175
    %p177 = scmp.eq.s32.totalorder %s19, 0
    %p178 = por %p176, %p177
    %s180 = sadd.s32 %s179, 1
    %p183 = scmp.eq.s32.totalorder %s13, 1
    %p184 = scmp.ne.s32.totalorder %s179, %s181
    %p185 = scmp.eq.s32.totalorder %s13, 0
    %p186 = por %p184, %p185
    %p187 = scmp.ne.s32.totalorder %s179, %s181
    %p188 = scmp.eq.s32.totalorder %s18, 1
    %p189 = por %p187, %p188
    %p190 = scmp.ne.s32.totalorder %s181, %s182
    %p191 = scmp.eq.s32.totalorder %s18, 0
    %p192 = por %p190, %p191
    %p193 = scmp.ne.s32.totalorder %s181, %s182
    %p194 = scmp.eq.s32.totalorder %s19, 1
    %p195 = por %p193, %p194
    %p197 = scmp.ne.s32.totalorder %s182, %s196
    %p198 = scmp.eq.s32.totalorder %s19, 0
    %p199 = por %p197, %p198
    %s200 = ssub.s32 %s20, %s32
    %p201 = scmp.eq.s32.totalorder %s200, 0
    %s203 = sadd.s32 %s202, 1
    %s204 = scalar_select %p201, %s202, %s203
    %p207 = pneg %p201
    %p208 = scmp.eq.s32.totalorder %s13, 1
    %p209 = por %p207, %p208
    %p210 = scmp.ne.s32.totalorder %s202, %s205
    %p211 = scmp.eq.s32.totalorder %s13, 0
    %p212 = por %p210, %p211
    %p213 = scmp.ne.s32.totalorder %s202, %s205
    %p214 = scmp.eq.s32.totalorder %s18, 1
    %p215 = por %p213, %p214
    %p216 = scmp.ne.s32.totalorder %s205, %s206
    %p217 = scmp.eq.s32.totalorder %s18, 0
    %p218 = por %p216, %p217
    %p219 = scmp.ne.s32.totalorder %s205, %s206
    %p220 = scmp.eq.s32.totalorder %s19, 1
    %p221 = por %p219, %p220
    %p223 = scmp.ne.s32.totalorder %s206, %s222
    %p224 = scmp.eq.s32.totalorder %s19, 0
    %p225 = por %p223, %p224
    %p226 = scmp.le.s32.totalorder 1, %s13
    %p227 = scmp.lt.s32.totalorder %s13, 3
    %p228 = pnand %p226, %p227
    %p229 = pneg %p228
    // Predicated region
    $region9: #{_lambda_.11} parent=5 // pred_check
      _
    $region10: #{_lambda_.11} parent=5 // pred_check_branch
      %231 = sbr.rel (%p228) target = $region12
    $region11: #{_lambda_.11} parent=5 // pred_region
      %s232 = ssub.s32 %s13, 1
      // Predicated region
      $region13: #{_lambda_.11} parent=11 // pred_check
        %p233 = pneg %p77
      $region14: #{_lambda_.11} parent=11 // pred_check_branch
        %235 = sbr.rel (%p233) target = $region16
      $region15: #{_lambda_.11} parent=11 // pred_region
        %p236 = scmp.lt.s32.totalorder %s23, 0
        %s237 = scalar_select %p236, %s23, 0
        %s238 = smul.addr %s237, 8
        %s239 = scalar_lea.vmem %s1, %s238
      $region16: #{_lambda_.11} parent=11 // pred_fallthru
        _
      // Predicated region
      $region17: #{_lambda_.11} parent=11 // pred_check
        %p240 = pneg %p103
      $region18: #{_lambda_.11} parent=11 // pred_check_branch
        %242 = sbr.rel (%p240) target = $region20
      $region19: #{_lambda_.11} parent=11 // pred_region
        %p243 = scmp.lt.s32.totalorder %s23, 0
        %s244 = scalar_select %p243, %s23, 0
        %s245 = scalar_lea.vmem %s2, %s244
      $region20: #{_lambda_.11} parent=11 // pred_fallthru
        _
      // Predicated region
      $region21: #{_lambda_.11} parent=11 // pred_check
        %p246 = pneg %p129
      $region22: #{_lambda_.11} parent=11 // pred_check_branch
        %248 = sbr.rel (%p246) target = $region24
      $region23: #{_lambda_.11} parent=11 // pred_region
        %s249 = smul.u32 8, %s23
        %p250 = scmp.lt.s32.totalorder %s249, 7
        %s251 = scalar_select %p250, %s249, 7
        %s252 = smul.addr %s251, 8
        %s253 = scalar_lea.vmem %s3, %s252
        %s254 = smul.u32 8, %s23
      $region24: #{_lambda_.11} parent=11 // pred_fallthru
        _
      // Predicated region
      $region25: #{_lambda_.11} parent=11 // pred_check
        %p255 = pneg %p150
      $region26: #{_lambda_.11} parent=11 // pred_check_branch
        %257 = sbr.rel (%p255) target = $region28
      $region27: #{_lambda_.11} parent=11 // pred_region
        _
      $region28: #{_lambda_.11} parent=11 // pred_fallthru
        _
      // Predicated region
      $region29: #{_lambda_.11} parent=11 // pred_check
        %p258 = pneg %p171
      $region30: #{_lambda_.11} parent=11 // pred_check_branch
        %260 = sbr.rel (%p258) target = $region32
      $region31: #{_lambda_.11} parent=11 // pred_region
        _
      $region32: #{_lambda_.11} parent=11 // pred_fallthru
        _
      // Predicated region
      $region33: #{_lambda_.11} parent=11 // pred_check
        %p261 = pneg %p192
      $region34: #{_lambda_.11} parent=11 // pred_check_branch
        %263 = sbr.rel (%p261) target = $region36
      $region35: #{_lambda_.11} parent=11 // pred_region
        _
      $region36: #{_lambda_.11} parent=11 // pred_fallthru
        _
    $region12: #{_lambda_.11} parent=5 // pred_fallthru
      _
    %p264 = scmp.lt.s32.totalorder %s13, 2
    // Predicated region
    $region37: #{_lambda_.11} parent=5 // pred_check
      %p265 = pneg %p264
    $region38: #{_lambda_.11} parent=5 // pred_check_branch
      %267 = sbr.rel (%p265) target = $region40
    $region39: #{_lambda_.11} parent=5 // pred_region
      // Predicated region
      $region41: #{_lambda_.11} parent=39 // pred_check
        %p268 = pneg %p45
      $region42: #{_lambda_.11} parent=39 // pred_check_branch
        %270 = sbr.rel (%p268) target = $region44
      $region43: #{_lambda_.11} parent=39 // pred_region
        %p271 = scmp.lt.s32.totalorder %s20, 1
        %s272 = scalar_select %p271, %s20, 1
        %s273 = smul.addr %s272, 8
        %s274 = scalar_lea.vmem %s0, %s273
      $region44: #{_lambda_.11} parent=39 // pred_fallthru
        _
    $region40: #{_lambda_.11} parent=5 // pred_fallthru
      _
    %p275 = scmp.le.s32.totalorder 1, %s13
    %p276 = scmp.lt.s32.totalorder %s13, 3
    %p277 = pnand %p275, %p276
    %p278 = pneg %p277
    // Predicated region
    $region45: #{_lambda_.11} parent=5 // pred_check
      _
    $region46: #{_lambda_.11} parent=5 // pred_check_branch
      %280 = sbr.rel (%p277) target = $region48
    $region47: #{_lambda_.11} parent=5 // pred_region
      %s281 = ssub.s32 %s13, 1
      %p282 = scmp.lt.s32.totalorder %s22, 1
      %s283 = scalar_select %p282, %s22, 1
      %s284 = smul.addr %s283, 8
      %s285 = scalar_lea.vmem %s0, %s284
      %p286 = pneg %p51
      %p287 = pneg %p48
      %p288 = scmp.lt.s32.totalorder %s23, 0
      %s289 = scalar_select %p288, %s23, 0
      %s290 = smul.addr %s289, 8
      %s291 = scalar_lea.vmem %s1, %s290
      %p292 = pneg %p77
      %p293 = pneg %p74
      %p294 = scmp.lt.s32.totalorder %s23, 0
      %s295 = scalar_select %p294, %s23, 0
      %s296 = scalar_lea.vmem %s2, %s295
      %p297 = pneg %p103
      %p298 = pneg %p100
      %s299 = smul.u32 8, %s23
      %p300 = scmp.lt.s32.totalorder %s299, 7
      %s301 = scalar_select %p300, %s299, 7
      %s302 = smul.addr %s301, 8
      %s303 = scalar_lea.vmem %s3, %s302
      %p304 = pneg %p129
      %p305 = pneg %p126
      %p306 = pneg %p150
      %p307 = pneg %p147
      %p308 = pneg %p171
      %p309 = pneg %p168
      %p310 = pneg %p192
      %p311 = pneg %p189
      %p312 = pneg %p218
      %p313 = pneg %p215
      %p314 = scmp.lt.s32.totalorder %s22, 1
      %s315 = scalar_select %p314, %s22, 1
      %s316 = smul.addr %s315, 8
      %s317 = scalar_lea.vmem %s7, %s316
      %p318 = scmp.lt.s32.totalorder %s22, 1
      %s319 = scalar_select %p318, %s22, 1
      %s320 = smul.addr %s319, 8
      %s321 = scalar_lea.vmem %s0, %s320
      %p322 = scmp.lt.s32.totalorder %s23, 0
      %s323 = scalar_select %p322, %s23, 0
      %s324 = smul.addr %s323, 8
      %s325 = scalar_lea.vmem %s1, %s324
      %p326 = scmp.lt.s32.totalorder %s23, 0
      %s327 = scalar_select %p326, %s23, 0
      %s328 = scalar_lea.vmem %s2, %s327
      %s329 = smul.u32 8, %s23
      %p330 = scmp.lt.s32.totalorder %s329, 7
      %s331 = scalar_select %p330, %s329, 7
      %s332 = smul.addr %s331, 8
      %s333 = scalar_lea.vmem %s3, %s332
      %s334 = smul.u32 8, %s23
      %p335 = scmp.lt.s32.totalorder %s22, 1
      %s336 = scalar_select %p335, %s22, 1
      %s337 = smul.addr %s336, 8
      %s338 = scalar_lea.vmem %s7, %s337
      %p339 = scmp.eq.s32.totalorder %s23, 0
      // Predicated region
      $region49: #{_lambda_.11} parent=47 // pred_check
        %p340 = pneg %p339
      $region50: #{_lambda_.11} parent=47 // pred_check_branch
        %342 = sbr.rel (%p340) target = $region52
      $region51: #{_lambda_.11} parent=47 // pred_region
        %vm343 = vcmask 261120
        %344 = vst.msk [vmem:[#allocation2] sm:$0xff] %vm343, 0.0
      $region52: #{_lambda_.11} parent=47 // pred_fallthru
        _
      %v345 = vld [vmem:[%s321] sm:$0xff]
      %v346 = vld [vmem:[%s325] sm:$0xff]
      %v347 = vld [vmem:[%s325 + $0x8] sm:$0xff]
      %v348 = vld [vmem:[%s325 + $0x10] sm:$0xff]
      %v349 = vld [vmem:[%s325 + $0x18] sm:$0xff]
      %v350 = vld [vmem:[%s328] sm:$0x1]
      %v352 = vlaneseq
      %v353 = vshrl.u32 %v352, 7
      %v354 = vsub.s32 0, %v353
      %v355 = vrot.slane %v350, %v354
      %vm357 = vcmask 261120
      %v359 = vsel %vm357, %v345, 0
      %361 = vmatprep.subr.mxu0 0.0
      %362 = vmatpush1.msra.mxu0 %v346
      %363 = vmatprep.subr.mxu0 0.0
      %364 = vmatpush1.msra.mxu0 %v347
      %365 = vmatprep.subr.mxu0 0.0
      %366 = vmatpush1.msra.mxu0 %v348
      %367 = vmatprep.subr.mxu0 0.0
      %368 = vmatpush1.msra.mxu0 %v349
      %369 = vmatprep.subr.mxu0 0.0
      %370 = vmatpush1.msra.mxu0 0.0
      %371 = vmatprep.subr.mxu0 0.0
      %372 = vmatpush1.msra.mxu0 0.0
      %373 = vmatprep.subr.mxu0 0.0
      %374 = vmatpush1.msra.mxu0 0.0
      %375 = vmatprep.subr.mxu0 0.0
      %376 = vmatpush1.msra.mxu0 0.0
      %377 = vmatprep.subr.mxu0 0.0
      %378 = vmatpush1.msra.mxu0 0.0
      %379 = vmatprep.subr.mxu0 0.0
      %380 = vmatpush1.msra.mxu0 0.0
      %381 = vmatprep.subr.mxu0 0.0
      %382 = vmatpush1.msra.mxu0 0.0
      %383 = vmatprep.subr.mxu0 0.0
      %384 = vmatpush1.msra.mxu0 0.0
      %385 = vmatprep.subr.mxu0 0.0
      %386 = vmatpush1.msra.mxu0 0.0
      %387 = vmatprep.subr.mxu0 0.0
      %388 = vmatpush1.msra.mxu0 0.0
      %389 = vmatprep.subr.mxu0 0.0
      %390 = vmatpush1.msra.mxu0 0.0
      %391 = vmatprep.subr.mxu0 0.0
      %392 = vmatpush1.msra.mxu0 0.0
      %393 = vmatprep.subr.mxu0 0.0
      %394 = vmatpush1.msra.mxu0 0.0
      %395 = vmatprep.subr.mxu0 0.0
      %396 = vmatpush1.msra.mxu0 0.0
      %397 = vmatprep.subr.mxu0 0.0
      %398 = vmatpush1.msra.mxu0 0.0
      %399 = vmatprep.subr.mxu0 0.0
      %400 = vmatpush1.msra.mxu0 0.0
      %401 = vmatprep.subr.mxu0 0.0
      %402 = vmatpush1.msra.mxu0 0.0
      %403 = vmatprep.subr.mxu0 0.0
      %404 = vmatpush1.msra.mxu0 0.0
      %405 = vmatprep.subr.mxu0 0.0
      %406 = vmatpush1.msra.mxu0 0.0
      %407 = vmatprep.subr.mxu0 0.0
      %408 = vmatpush1.msra.mxu0 0.0
      %409 = vmatprep.subr.mxu0 0.0
      %410 = vmatpush1.msra.mxu0 0.0
      %411 = vmatprep.subr.mxu0 0.0
      %412 = vmatpush1.msra.mxu0 0.0
      %413 = vmatprep.subr.mxu0 0.0
      %414 = vmatpush1.msra.mxu0 0.0
      %415 = vmatprep.subr.mxu0 0.0
      %416 = vmatpush1.msra.mxu0 0.0
      %417 = vmatprep.subr.mxu0 0.0
      %418 = vmatpush1.msra.mxu0 0.0
      %419 = vmatprep.subr.mxu0 0.0
      %420 = vmatpush1.msra.mxu0 0.0
      %421 = vmatprep.subr.mxu0 0.0
      %422 = vmatpush1.msra.mxu0 0.0
      %423 = vmatprep.subr.mxu0 0.0
      %424 = vmatpush1.msra.mxu0 0.0
      %425 = vmatprep.mubr.f32.mxu0 0.0
      %426 = vmatmul.mubr.f32.gmra.mrb[0].mxu0 %v359
      %v427 = vpop.f32.mrb[0].mxu0
      %v428 = vadd.f32 %v355, %v427
      %v429 = vpop.f32.mrb[0].mxu0
      %430 = vdwg.mxu0
      %v431 = vmax.f32 %v428, 0.0
      %v432 = vld [vmem:[#allocation2] sm:$0xff]
      %v433 = vld [vmem:[%s333] sm:$0xff]
      %v434 = vld [vmem:[%s333 + $0x8] sm:$0xff]
      %v435 = vld [vmem:[%s333 + $0x10] sm:$0xff]
      %v436 = vld [vmem:[%s333 + $0x18] sm:$0xff]
      %v437 = vld [vmem:[%s333 + $0x20] sm:$0xff]
      %v438 = vld [vmem:[%s333 + $0x28] sm:$0xff]
      %v439 = vld [vmem:[%s333 + $0x30] sm:$0xff]
      %v440 = vld [vmem:[%s333 + $0x38] sm:$0xff]
      %vm441 = vcmask 523264
      %v443 = vsel %vm441, %v431, 0
      %445 = vmatprep.subr.mxu0 0.0
      %446 = vmatpush1.msra.mxu0 %v433
      %447 = vmatprep.subr.mxu0 0.0
      %448 = vmatpush1.msra.mxu0 %v434
      %449 = vmatprep.subr.mxu0 0.0
      %450 = vmatpush1.msra.mxu0 %v435
      %451 = vmatprep.subr.mxu0 0.0
      %452 = vmatpush1.msra.mxu0 %v436
      %453 = vmatprep.subr.mxu0 0.0
      %454 = vmatpush1.msra.mxu0 %v437
      %455 = vmatprep.subr.mxu0 0.0
      %456 = vmatpush1.msra.mxu0 %v438
      %457 = vmatprep.subr.mxu0 0.0
      %458 = vmatpush1.msra.mxu0 %v439
      %459 = vmatprep.subr.mxu0 0.0
      %460 = vmatpush1.msra.mxu0 %v440
      %461 = vmatprep.subr.mxu0 0.0
      %462 = vmatpush1.msra.mxu0 0.0
      %463 = vmatprep.subr.mxu0 0.0
      %464 = vmatpush1.msra.mxu0 0.0
      %465 = vmatprep.subr.mxu0 0.0
      %466 = vmatpush1.msra.mxu0 0.0
      %467 = vmatprep.subr.mxu0 0.0
      %468 = vmatpush1.msra.mxu0 0.0
      %469 = vmatprep.subr.mxu0 0.0
      %470 = vmatpush1.msra.mxu0 0.0
      %471 = vmatprep.subr.mxu0 0.0
      %472 = vmatpush1.msra.mxu0 0.0
      %473 = vmatprep.subr.mxu0 0.0
      %474 = vmatpush1.msra.mxu0 0.0
      %475 = vmatprep.subr.mxu0 0.0
      %476 = vmatpush1.msra.mxu0 0.0
      %477 = vmatprep.subr.mxu0 0.0
      %478 = vmatpush1.msra.mxu0 0.0
      %479 = vmatprep.subr.mxu0 0.0
      %480 = vmatpush1.msra.mxu0 0.0
      %481 = vmatprep.subr.mxu0 0.0
      %482 = vmatpush1.msra.mxu0 0.0
      %483 = vmatprep.subr.mxu0 0.0
      %484 = vmatpush1.msra.mxu0 0.0
      %485 = vmatprep.subr.mxu0 0.0
      %486 = vmatpush1.msra.mxu0 0.0
      %487 = vmatprep.subr.mxu0 0.0
      %488 = vmatpush1.msra.mxu0 0.0
      %489 = vmatprep.subr.mxu0 0.0
      %490 = vmatpush1.msra.mxu0 0.0
      %491 = vmatprep.subr.mxu0 0.0
      %492 = vmatpush1.msra.mxu0 0.0
      %493 = vmatprep.subr.mxu0 0.0
      %494 = vmatpush1.msra.mxu0 0.0
      %495 = vmatprep.subr.mxu0 0.0
      %496 = vmatpush1.msra.mxu0 0.0
      %497 = vmatprep.subr.mxu0 0.0
      %498 = vmatpush1.msra.mxu0 0.0
      %499 = vmatprep.subr.mxu0 0.0
      %500 = vmatpush1.msra.mxu0 0.0
      %501 = vmatprep.subr.mxu0 0.0
      %502 = vmatpush1.msra.mxu0 0.0
      %503 = vmatprep.subr.mxu0 0.0
      %504 = vmatpush1.msra.mxu0 0.0
      %505 = vmatprep.subr.mxu0 0.0
      %506 = vmatpush1.msra.mxu0 0.0
      %507 = vmatprep.subr.mxu0 0.0
      %508 = vmatpush1.msra.mxu0 0.0
      %509 = vmatprep.mubr.f32.mxu0 0.0
      %510 = vmatmul.mubr.f32.gmra.mrb[0].mxu0 %v443
      %v511 = vpop.f32.mrb[0].mxu0
      %v512 = vadd.f32 0.0, %v511
      %v513 = vpop.f32.mrb[0].mxu0
      %514 = vdwg.mxu0
      %v515 = vadd.f32 %v432, %v512
      %516 = vst.msk [vmem:[#allocation2] sm:$0xff] %vm357, %v515
      // Predicated region
      $region53: #{_lambda_.11} parent=47 // pred_check
        %p517 = pneg %p339
      $region54: #{_lambda_.11} parent=47 // pred_check_branch
        %519 = sbr.rel (%p517) target = $region56
      $region55: #{_lambda_.11} parent=47 // pred_region
        %v520 = vld [vmem:[#allocation2] sm:$0xff]
        %v521 = vadd.f32 %v345, %v520
        %v522 = vld [vmem:[%s4] sm:$0x1]
        %v524 = vlaneseq
        %v525 = vshrl.u32 %v524, 7
        %v526 = vsub.s32 0, %v525
        %v527 = vrot.slane %v522, %v526
        %v529 = vadd.f32 %v521, %v527
        %v530 = vld [vmem:[%s5] sm:$0x1]
        %v531 = vld [vmem:[%s6] sm:$0x1]
        %v532 = vsel %vm357, %v529, 0.0
        %533 = vadd.xlane.f32.xlu0 %v532
        %v534 = vpop.xlane.xlu0 %533
        %v535 = vrcp.pop 32.0
        %v536 = vmul.f32 %v534, %v535
        %v537 = vsub.f32 %v529, %v536
        %v538 = vmul.f32 %v537, %v537
        %v539 = vsel %vm357, %v538, 0.0
        %540 = vadd.xlane.f32.xlu0 %v539
        %v541 = vpop.xlane.xlu0 %540
        %v542 = vmul.f32 %v541, %v535
        %v543 = vadd.f32 %v542, 1e-05
        %v544 = vrsqrt.pop %v543
        %v545 = vmul.f32 %v537, %v544
        %v547 = vlaneseq
        %v548 = vshrl.u32 %v547, 7
        %v549 = vsub.s32 0, %v548
        %v550 = vrot.slane %v530, %v549
        %v552 = vmul.f32 %v545, %v550
        %v554 = vlaneseq
        %v555 = vshrl.u32 %v554, 7
        %v556 = vsub.s32 0, %v555
        %v557 = vrot.slane %v531, %v556
        %v559 = vadd.f32 %v552, %v557
        %560 = vst.msk [vmem:[%s338] sm:$0xff] %vm357, %v559
      $region56: #{_lambda_.11} parent=47 // pred_fallthru
        _
      %p561 = scmp.lt.s32.totalorder %s22, 1
      %s562 = scalar_select %p561, %s22, 1
      %s563 = smul.addr %s562, 8
      %s564 = scalar_lea.vmem %s7, %s563
      // Predicated region
      $region57: #{_lambda_.11} parent=47 // pred_check
        %p565 = pneg %p215
      $region58: #{_lambda_.11} parent=47 // pred_check_branch
        %567 = sbr.rel (%p565) target = $region60
      $region59: #{_lambda_.11} parent=47 // pred_region
        _
      $region60: #{_lambda_.11} parent=47 // pred_fallthru
        _
    $region48: #{_lambda_.11} parent=5 // pred_fallthru
      _
    %p568 = scmp.le.s32.totalorder 2, %s13
    // Predicated region
    $region61: #{_lambda_.11} parent=5 // pred_check
      %p569 = pneg %p568
    $region62: #{_lambda_.11} parent=5 // pred_check_branch
      %571 = sbr.rel (%p569) target = $region64
    $region63: #{_lambda_.11} parent=5 // pred_region
      %s572 = ssub.s32 %s13, 2
      // Predicated region
      $region65: #{_lambda_.11} parent=63 // pred_check
        %p573 = pneg %p221
      $region66: #{_lambda_.11} parent=63 // pred_check_branch
        %575 = sbr.rel (%p573) target = $region68
      $region67: #{_lambda_.11} parent=63 // pred_region
        %p576 = scmp.lt.s32.totalorder %s24, 1
        %s577 = scalar_select %p576, %s24, 1
        %s578 = smul.addr %s577, 8
        %s579 = scalar_lea.vmem %s7, %s578
      $region68: #{_lambda_.11} parent=63 // pred_fallthru
        _
    $region64: #{_lambda_.11} parent=5 // pred_fallthru
      _
  $region6: #{_lambda_.11} parent=0 // loop_footer
    %s17 = sadd.s32 1, %s13
  $region7: #{_lambda_.11} parent=0 // loop_footer_branch
    %12 = sbr.rel target = $region3
  $region8: #{_lambda_.11} parent=0 // loop_exit
    _

// kernel: _lambda_.10
$region0: #{_lambda_.10}
  #allocation0 [shape = 'u32[]', space=smem, size = 0x4, offset = 0x4, fixed_abs, tag = 'smem constant byte address 0x4 - core index']
  #allocation1 [shape = 'u32[144,128]{1,0:T(1,128)}', space=vmem, size = 0x12000, scoped, tag = 'internal scratch']
  #allocation2 [shape = 'f32[4,8,1]{2,1,0:T(8,128)}', space=vmem, size = 0x4000, scoped, tag = 'scratch operand']
  #allocation3 [shape = 'f32[4,8,1]{2,1,0:T(8,128)}', space=vmem, size = 0x4000, scoped, tag = 'scratch operand']
  #allocation4 [shape = 'f32[4,8,8]{2,1,0:T(8,128)}', space=vmem, size = 0x4000, scoped, tag = 'scratch operand']
  %s0 = inlined_call_operand.vmem [shape: f32[2,8,32], index: 0, kind: input, shape index: {}]
  %s1 = inlined_call_operand.vmem [shape: f32[2,12,64], index: 1, kind: input, shape index: {}]
  %s2 = inlined_call_operand.vmem [shape: f32[2,8,32], index: 2, kind: input, shape index: {}]
  %s3 = inlined_call_operand.vmem [shape: f32[32,32], index: 3, kind: input, shape index: {}]
  %s4 = inlined_call_operand.vmem [shape: f32[1,32], index: 4, kind: input, shape index: {}]
  %s5 = inlined_call_operand.vmem [shape: f32[1,32], index: 5, kind: input, shape index: {}]
  %s6 = inlined_call_operand.vmem [shape: f32[1,32], index: 6, kind: input, shape index: {}]
  %s7 = inlined_call_operand.vmem [shape: f32[2,8,32], index: 7, kind: output, shape index: {}]
  %s8 = sld [smem:[#allocation0]]
  $region69: #{_lambda_.10} parent=0
    _
  %s10 = ssub.s32 1, %s8
  %s11 = scalar_select 0, %s10, %s8
  loop: start=0, step=1, limit=4
  $region2: #{_lambda_.10} parent=0 // loop_pre_header
    _
  $region3: #{_lambda_.10} parent=0 // loop_header
    %s13 = sphi 0, %s17
    %p14 = scmp.ge.s32.totalorder %s13, 4
    %s20 = sphi 0, %s39
    %s21 = sphi 0, %s35
    %s22 = sphi 0, %s31
    %s23 = sphi 0, %s20
    %s24 = sphi 0, %s21
    %s25 = sphi 0, %s22
    %s26 = sphi 0, %s23
    %s27 = sphi 0, %s24
    %s28 = sphi 0, %s25
    %s44 = sphi 0, %s46
    %s47 = sphi 0, %s44
    %s48 = sphi 0, %s47
    %s64 = sphi 0, %s48
    %s72 = sphi 0, %s74
    %s75 = sphi 0, %s72
    %s76 = sphi 0, %s75
    %s92 = sphi 0, %s76
    %s100 = sphi 0, %s102
    %s103 = sphi 0, %s100
    %s104 = sphi 0, %s103
    %s120 = sphi 0, %s104
    %s124 = sphi 0, %s124
    %s126 = sphi 0, %s124
    %s127 = sphi 0, %s126
    %s141 = sphi 0, %s127
    %s145 = sphi 0, %s145
    %s147 = sphi 0, %s145
    %s148 = sphi 0, %s147
    %s162 = sphi 0, %s148
    %s166 = sphi 0, %s166
    %s168 = sphi 0, %s166
    %s169 = sphi 0, %s168
    %s183 = sphi 0, %s169
    %s187 = sphi 0, %s187
    %s189 = sphi 0, %s187
    %s190 = sphi 0, %s189
    %s204 = sphi 0, %s190
    %s212 = sphi 0, %s214
    %s215 = sphi 0, %s212
    %s216 = sphi 0, %s215
    %s232 = sphi 0, %s216
  $region4: #{_lambda_.10} parent=0 // loop_header_branch
    %16 = sbr.rel (%p14) target = $region8
  $region5: #{_lambda_.10} parent=0 // loop_body
    %s18 = ssub.s32 %s13, 1
    %s19 = ssub.s32 %s13, 2
    %s29 = sadd.s32 1, %s22
    %p30 = scmp.ge.s32.totalorder %s29, 1
    %s31 = scalar_select %p30, 0, %s29
    %s32 = sadd.s32 1, %s21
    %s33 = scalar_select %p30, %s32, %s21
    %p34 = scmp.ge.s32.totalorder %s33, 1
    %s35 = scalar_select %p34, 0, %s33
    %s36 = sadd.s32 1, %s20
    %s37 = scalar_select %p34, %s36, %s20
    %p38 = scmp.ge.s32.totalorder %s37, 2
    %s39 = scalar_select %p38, 0, %s37
    %s40 = ssub.s32 %s20, %s39
    %s41 = ssub.s32 %s21, %s35
    %s42 = sor.u32 %s40, %s41
    %p43 = scmp.eq.s32.totalorder %s42, 0
    %s45 = sadd.s32 %s44, 1
    %s46 = scalar_select %p43, %s44, %s45
    %p49 = pneg %p43
    %p50 = scmp.eq.s32.totalorder %s13, 1
    %p51 = por %p49, %p50
    %p52 = scmp.ne.s32.totalorder %s44, %s47
    %p53 = scmp.eq.s32.totalorder %s13, 0
    %p54 = por %p52, %p53
    %p55 = scmp.ne.s32.totalorder %s44, %s47
    %p56 = scmp.eq.s32.totalorder %s18, 1
    %p57 = por %p55, %p56
    %p58 = scmp.ne.s32.totalorder %s47, %s48
    %p59 = scmp.eq.s32.totalorder %s18, 0
    %p60 = por %p58, %p59
    %p61 = scmp.ne.s32.totalorder %s47, %s48
    %p62 = scmp.eq.s32.totalorder %s19, 1
    %p63 = por %p61, %p62
    %p65 = scmp.ne.s32.totalorder %s48, %s64
    %p66 = scmp.eq.s32.totalorder %s19, 0
    %p67 = por %p65, %p66
    %s68 = ssub.s32 %s20, %s39
    %s69 = ssub.s32 %s22, %s31
    %s70 = sor.u32 %s68, %s69
    %p71 = scmp.eq.s32.totalorder %s70, 0
    %s73 = sadd.s32 %s72, 1
    %s74 = scalar_select %p71, %s72, %s73
    %p77 = pneg %p71
    %p78 = scmp.eq.s32.totalorder %s13, 1
    %p79 = por %p77, %p78
    %p80 = scmp.ne.s32.totalorder %s72, %s75
    %p81 = scmp.eq.s32.totalorder %s13, 0
    %p82 = por %p80, %p81
    %p83 = scmp.ne.s32.totalorder %s72, %s75
    %p84 = scmp.eq.s32.totalorder %s18, 1
    %p85 = por %p83, %p84
    %p86 = scmp.ne.s32.totalorder %s75, %s76
    %p87 = scmp.eq.s32.totalorder %s18, 0
    %p88 = por %p86, %p87
    %p89 = scmp.ne.s32.totalorder %s75, %s76
    %p90 = scmp.eq.s32.totalorder %s19, 1
    %p91 = por %p89, %p90
    %p93 = scmp.ne.s32.totalorder %s76, %s92
    %p94 = scmp.eq.s32.totalorder %s19, 0
    %p95 = por %p93, %p94
    %s96 = ssub.s32 %s20, %s39
    %s97 = ssub.s32 %s21, %s35
    %s98 = sor.u32 %s96, %s97
    %p99 = scmp.eq.s32.totalorder %s98, 0
    %s101 = sadd.s32 %s100, 1
    %s102 = scalar_select %p99, %s100, %s101
    %p105 = pneg %p99
    %p106 = scmp.eq.s32.totalorder %s13, 1
    %p107 = por %p105, %p106
    %p108 = scmp.ne.s32.totalorder %s100, %s103
    %p109 = scmp.eq.s32.totalorder %s13, 0
    %p110 = por %p108, %p109
    %p111 = scmp.ne.s32.totalorder %s100, %s103
    %p112 = scmp.eq.s32.totalorder %s18, 1
    %p113 = por %p111, %p112
    %p114 = scmp.ne.s32.totalorder %s103, %s104
    %p115 = scmp.eq.s32.totalorder %s18, 0
    %p116 = por %p114, %p115
    %p117 = scmp.ne.s32.totalorder %s103, %s104
    %p118 = scmp.eq.s32.totalorder %s19, 1
    %p119 = por %p117, %p118
    %p121 = scmp.ne.s32.totalorder %s104, %s120
    %p122 = scmp.eq.s32.totalorder %s19, 0
    %p123 = por %p121, %p122
    %s125 = sadd.s32 %s124, 1
    %p128 = scmp.eq.s32.totalorder %s13, 1
    %p129 = scmp.ne.s32.totalorder %s124, %s126
    %p130 = scmp.eq.s32.totalorder %s13, 0
    %p131 = por %p129, %p130
    %p132 = scmp.ne.s32.totalorder %s124, %s126
    %p133 = scmp.eq.s32.totalorder %s18, 1
    %p134 = por %p132, %p133
    %p135 = scmp.ne.s32.totalorder %s126, %s127
    %p136 = scmp.eq.s32.totalorder %s18, 0
    %p137 = por %p135, %p136
    %p138 = scmp.ne.s32.totalorder %s126, %s127
    %p139 = scmp.eq.s32.totalorder %s19, 1
    %p140 = por %p138, %p139
    %p142 = scmp.ne.s32.totalorder %s127, %s141
    %p143 = scmp.eq.s32.totalorder %s19, 0
    %p144 = por %p142, %p143
    %s146 = sadd.s32 %s145, 1
    %p149 = scmp.eq.s32.totalorder %s13, 1
    %p150 = scmp.ne.s32.totalorder %s145, %s147
    %p151 = scmp.eq.s32.totalorder %s13, 0
    %p152 = por %p150, %p151
    %p153 = scmp.ne.s32.totalorder %s145, %s147
    %p154 = scmp.eq.s32.totalorder %s18, 1
    %p155 = por %p153, %p154
    %p156 = scmp.ne.s32.totalorder %s147, %s148
    %p157 = scmp.eq.s32.totalorder %s18, 0
    %p158 = por %p156, %p157
    %p159 = scmp.ne.s32.totalorder %s147, %s148
    %p160 = scmp.eq.s32.totalorder %s19, 1
    %p161 = por %p159, %p160
    %p163 = scmp.ne.s32.totalorder %s148, %s162
    %p164 = scmp.eq.s32.totalorder %s19, 0
    %p165 = por %p163, %p164
    %s167 = sadd.s32 %s166, 1
    %p170 = scmp.eq.s32.totalorder %s13, 1
    %p171 = scmp.ne.s32.totalorder %s166, %s168
    %p172 = scmp.eq.s32.totalorder %s13, 0
    %p173 = por %p171, %p172
    %p174 = scmp.ne.s32.totalorder %s166, %s168
    %p175 = scmp.eq.s32.totalorder %s18, 1
    %p176 = por %p174, %p175
    %p177 = scmp.ne.s32.totalorder %s168, %s169
    %p178 = scmp.eq.s32.totalorder %s18, 0
    %p179 = por %p177, %p178
    %p180 = scmp.ne.s32.totalorder %s168, %s169
    %p181 = scmp.eq.s32.totalorder %s19, 1
    %p182 = por %p180, %p181
    %p184 = scmp.ne.s32.totalorder %s169, %s183
    %p185 = scmp.eq.s32.totalorder %s19, 0
    %p186 = por %p184, %p185
    %s188 = sadd.s32 %s187, 1
    %p191 = scmp.eq.s32.totalorder %s13, 1
    %p192 = scmp.ne.s32.totalorder %s187, %s189
    %p193 = scmp.eq.s32.totalorder %s13, 0
    %p194 = por %p192, %p193
    %p195 = scmp.ne.s32.totalorder %s187, %s189
    %p196 = scmp.eq.s32.totalorder %s18, 1
    %p197 = por %p195, %p196
    %p198 = scmp.ne.s32.totalorder %s189, %s190
    %p199 = scmp.eq.s32.totalorder %s18, 0
    %p200 = por %p198, %p199
    %p201 = scmp.ne.s32.totalorder %s189, %s190
    %p202 = scmp.eq.s32.totalorder %s19, 1
    %p203 = por %p201, %p202
    %p205 = scmp.ne.s32.totalorder %s190, %s204
    %p206 = scmp.eq.s32.totalorder %s19, 0
    %p207 = por %p205, %p206
    %s208 = ssub.s32 %s20, %s39
    %s209 = ssub.s32 %s21, %s35
    %s210 = sor.u32 %s208, %s209
    %p211 = scmp.eq.s32.totalorder %s210, 0
    %s213 = sadd.s32 %s212, 1
    %s214 = scalar_select %p211, %s212, %s213
    %p217 = pneg %p211
    %p218 = scmp.eq.s32.totalorder %s13, 1
    %p219 = por %p217, %p218
    %p220 = scmp.ne.s32.totalorder %s212, %s215
    %p221 = scmp.eq.s32.totalorder %s13, 0
    %p222 = por %p220, %p221
    %p223 = scmp.ne.s32.totalorder %s212, %s215
    %p224 = scmp.eq.s32.totalorder %s18, 1
    %p225 = por %p223, %p224
    %p226 = scmp.ne.s32.totalorder %s215, %s216
    %p227 = scmp.eq.s32.totalorder %s18, 0
    %p228 = por %p226, %p227
    %p229 = scmp.ne.s32.totalorder %s215, %s216
    %p230 = scmp.eq.s32.totalorder %s19, 1
    %p231 = por %p229, %p230
    %p233 = scmp.ne.s32.totalorder %s216, %s232
    %p234 = scmp.eq.s32.totalorder %s19, 0
    %p235 = por %p233, %p234
    %p236 = scmp.le.s32.totalorder 1, %s13
    %p237 = scmp.lt.s32.totalorder %s13, 3
    %p238 = pnand %p236, %p237
    %p239 = pneg %p238
    // Predicated region
    $region9: #{_lambda_.10} parent=5 // pred_check
      _
    $region10: #{_lambda_.10} parent=5 // pred_check_branch
      %241 = sbr.rel (%p238) target = $region12
    $region11: #{_lambda_.10} parent=5 // pred_region
      %s242 = ssub.s32 %s13, 1
      // Predicated region
      $region13: #{_lambda_.10} parent=11 // pred_check
        %p243 = pneg %p137
      $region14: #{_lambda_.10} parent=11 // pred_check_branch
        %245 = sbr.rel (%p243) target = $region16
      $region15: #{_lambda_.10} parent=11 // pred_region
        _
      $region16: #{_lambda_.10} parent=11 // pred_fallthru
        _
      // Predicated region
      $region17: #{_lambda_.10} parent=11 // pred_check
        %p246 = pneg %p158
      $region18: #{_lambda_.10} parent=11 // pred_check_branch
        %248 = sbr.rel (%p246) target = $region20
      $region19: #{_lambda_.10} parent=11 // pred_region
        _
      $region20: #{_lambda_.10} parent=11 // pred_fallthru
        _
      // Predicated region
      $region21: #{_lambda_.10} parent=11 // pred_check
        %p249 = pneg %p179
      $region22: #{_lambda_.10} parent=11 // pred_check_branch
        %251 = sbr.rel (%p249) target = $region24
      $region23: #{_lambda_.10} parent=11 // pred_region
        _
      $region24: #{_lambda_.10} parent=11 // pred_fallthru
        _
      // Predicated region
      $region25: #{_lambda_.10} parent=11 // pred_check
        %p252 = pneg %p200
      $region26: #{_lambda_.10} parent=11 // pred_check_branch
        %254 = sbr.rel (%p252) target = $region28
      $region27: #{_lambda_.10} parent=11 // pred_region
        _
      $region28: #{_lambda_.10} parent=11 // pred_fallthru
        _
    $region12: #{_lambda_.10} parent=5 // pred_fallthru
      _
    %p255 = scmp.lt.s32.totalorder %s13, 2
    // Predicated region
    $region29: #{_lambda_.10} parent=5 // pred_check
      %p256 = pneg %p255
    $region30: #{_lambda_.10} parent=5 // pred_check_branch
      %258 = sbr.rel (%p256) target = $region32
    $region31: #{_lambda_.10} parent=5 // pred_region
      // Predicated region
      $region33: #{_lambda_.10} parent=31 // pred_check
        %p259 = pneg %p54
      $region34: #{_lambda_.10} parent=31 // pred_check_branch
        %261 = sbr.rel (%p259) target = $region36
      $region35: #{_lambda_.10} parent=31 // pred_region
        %p262 = scmp.lt.s32.totalorder %s20, 1
        %s263 = scalar_select %p262, %s20, 1
        %p264 = scmp.lt.s32.totalorder %s21, 0
        %s265 = scalar_select %p264, %s21, 0
        %s266 = sadd.s32 %s265, %s263
        %s267 = smul.addr %s266, 8
        %s268 = scalar_lea.vmem %s0, %s267
      $region36: #{_lambda_.10} parent=31 // pred_fallthru
        _
      // Predicated region
      $region37: #{_lambda_.10} parent=31 // pred_check
        %p269 = pneg %p82
      $region38: #{_lambda_.10} parent=31 // pred_check_branch
        %271 = sbr.rel (%p269) target = $region40
      $region39: #{_lambda_.10} parent=31 // pred_region
        %s272 = smul.u32 2, %s22
        %p273 = scmp.lt.s32.totalorder %s20, 1
        %s274 = scalar_select %p273, %s20, 1
        %p275 = scmp.lt.s32.totalorder %s272, 1
        %s276 = scalar_select %p275, %s272, 1
        %s277 = smul.addr %s274, 2
        %s278 = sadd.s32 %s276, %s277
        %s279 = smul.addr %s278, 8
        %s280 = scalar_lea.vmem %s1, %s279
        %s281 = smul.u32 2, %s22
      $region40: #{_lambda_.10} parent=31 // pred_fallthru
        _
      // Predicated region
      $region41: #{_lambda_.10} parent=31 // pred_check
        %p282 = pneg %p110
      $region42: #{_lambda_.10} parent=31 // pred_check_branch
        %284 = sbr.rel (%p282) target = $region44
      $region43: #{_lambda_.10} parent=31 // pred_region
        %p285 = scmp.lt.s32.totalorder %s20, 1
        %s286 = scalar_select %p285, %s20, 1
        %p287 = scmp.lt.s32.totalorder %s21, 0
        %s288 = scalar_select %p287, %s21, 0
        %s289 = sadd.s32 %s288, %s286
        %s290 = smul.addr %s289, 8
        %s291 = scalar_lea.vmem %s2, %s290
      $region44: #{_lambda_.10} parent=31 // pred_fallthru
        _
    $region32: #{_lambda_.10} parent=5 // pred_fallthru
      _
    %p292 = scmp.le.s32.totalorder 1, %s13
    %p293 = scmp.lt.s32.totalorder %s13, 3
    %p294 = pnand %p292, %p293
    %p295 = pneg %p294
    // Predicated region
    $region45: #{_lambda_.10} parent=5 // pred_check
      _
    $region46: #{_lambda_.10} parent=5 // pred_check_branch
      %297 = sbr.rel (%p294) target = $region48
    $region47: #{_lambda_.10} parent=5 // pred_region
      %s298 = ssub.s32 %s13, 1
      %p299 = scmp.lt.s32.totalorder %s23, 1
      %s300 = scalar_select %p299, %s23, 1
      %p301 = scmp.lt.s32.totalorder %s24, 0
      %s302 = scalar_select %p301, %s24, 0
      %s303 = sadd.s32 %s302, %s300
      %s304 = smul.addr %s303, 8
      %s305 = scalar_lea.vmem %s0, %s304
      %p306 = pneg %p60
      %p307 = pneg %p57
      %s308 = smul.u32 2, %s25
      %p309 = scmp.lt.s32.totalorder %s23, 1
      %s310 = scalar_select %p309, %s23, 1
      %p311 = scmp.lt.s32.totalorder %s308, 1
      %s312 = scalar_select %p311, %s308, 1
      %s313 = smul.addr %s310, 2
      %s314 = sadd.s32 %s312, %s313
      %s315 = smul.addr %s314, 8
      %s316 = scalar_lea.vmem %s1, %s315
      %p317 = pneg %p88
      %p318 = pneg %p85
      %p319 = scmp.lt.s32.totalorder %s23, 1
      %s320 = scalar_select %p319, %s23, 1
      %p321 = scmp.lt.s32.totalorder %s24, 0
      %s322 = scalar_select %p321, %s24, 0
      %s323 = sadd.s32 %s322, %s320
      %s324 = smul.addr %s323, 8
      %s325 = scalar_lea.vmem %s2, %s324
      %p326 = pneg %p116
      %p327 = pneg %p113
      %p328 = pneg %p137
      %p329 = pneg %p134
      %p330 = pneg %p158
      %p331 = pneg %p155
      %p332 = pneg %p179
      %p333 = pneg %p176
      %p334 = pneg %p200
      %p335 = pneg %p197
      %p336 = pneg %p228
      %p337 = pneg %p225
      %p338 = scmp.lt.s32.totalorder %s23, 1
      %s339 = scalar_select %p338, %s23, 1
      %p340 = scmp.lt.s32.totalorder %s24, 0
      %s341 = scalar_select %p340, %s24, 0
      %s342 = sadd.s32 %s341, %s339
      %s343 = smul.addr %s342, 8
      %s344 = scalar_lea.vmem %s7, %s343
      %p345 = scmp.lt.s32.totalorder %s23, 1
      %s346 = scalar_select %p345, %s23, 1
      %p347 = scmp.lt.s32.totalorder %s24, 0
      %s348 = scalar_select %p347, %s24, 0
      %s349 = sadd.s32 %s348, %s346
      %s350 = smul.addr %s349, 8
      %s351 = scalar_lea.vmem %s0, %s350
      %s352 = smul.u32 2, %s25
      %p353 = scmp.lt.s32.totalorder %s23, 1
      %s354 = scalar_select %p353, %s23, 1
      %p355 = scmp.lt.s32.totalorder %s352, 1
      %s356 = scalar_select %p355, %s352, 1
      %s357 = smul.addr %s354, 2
      %s358 = sadd.s32 %s356, %s357
      %s359 = smul.addr %s358, 8
      %s360 = scalar_lea.vmem %s1, %s359
      %s361 = smul.u32 2, %s25
      %p362 = scmp.lt.s32.totalorder %s23, 1
      %s363 = scalar_select %p362, %s23, 1
      %p364 = scmp.lt.s32.totalorder %s24, 0
      %s365 = scalar_select %p364, %s24, 0
      %s366 = sadd.s32 %s365, %s363
      %s367 = smul.addr %s366, 8
      %s368 = scalar_lea.vmem %s2, %s367
      %p369 = scmp.lt.s32.totalorder %s23, 1
      %s370 = scalar_select %p369, %s23, 1
      %p371 = scmp.lt.s32.totalorder %s24, 0
      %s372 = scalar_select %p371, %s24, 0
      %s373 = sadd.s32 %s372, %s370
      %s374 = smul.addr %s373, 8
      %s375 = scalar_lea.vmem %s7, %s374
      %p376 = scmp.eq.s32.totalorder %s25, 0
      // Predicated region
      $region49: #{_lambda_.10} parent=47 // pred_check
        %p377 = pneg %p376
      $region50: #{_lambda_.10} parent=47 // pred_check_branch
        %379 = sbr.rel (%p377) target = $region52
      $region51: #{_lambda_.10} parent=47 // pred_region
        %vm380 = vcmask 7168
        %381 = vst.msk [vmem:[#allocation2] sm:$0xff] %vm380, -1e+30
        %382 = vst.msk [vmem:[#allocation2 + $0x8] sm:$0xff] %vm380, -1e+30
        %383 = vst.msk [vmem:[#allocation2 + $0x10] sm:$0xff] %vm380, -1e+30
        %384 = vst.msk [vmem:[#allocation2 + $0x18] sm:$0xff] %vm380, -1e+30
        %385 = vst.msk [vmem:[#allocation3] sm:$0xff] %vm380, 0.0
        %386 = vst.msk [vmem:[#allocation3 + $0x8] sm:$0xff] %vm380, 0.0
        %387 = vst.msk [vmem:[#allocation3 + $0x10] sm:$0xff] %vm380, 0.0
        %388 = vst.msk [vmem:[#allocation3 + $0x18] sm:$0xff] %vm380, 0.0
        %vm389 = vcmask 64512
        %390 = vst.msk [vmem:[#allocation4] sm:$0xff] %vm389, 0.0
        %391 = vst.msk [vmem:[#allocation4 + $0x8] sm:$0xff] %vm389, 0.0
        %392 = vst.msk [vmem:[#allocation4 + $0x10] sm:$0xff] %vm389, 0.0
        %393 = vst.msk [vmem:[#allocation4 + $0x18] sm:$0xff] %vm389, 0.0
      $region52: #{_lambda_.10} parent=47 // pred_fallthru
        _
      %v394 = vld [vmem:[%s351] sm:$0xff]
      %v395 = vld [vmem:[%s360] sm:$0xff]
      %v396 = vld [vmem:[%s360 + $0x8] sm:$0xf]
      %vm397 = vcmask 64512
      %v399 = vsel %vm397, %v394, 0
      %v402 = vsel %vm397, %v395, 0
      %v405 = vsel %vm397, %v396, 0
      %407 = vmatprep.subr.mxu0 0.0
      %408 = vmatpush1.xpose.msra.mxu0 %v402
      %409 = vmatprep.subr.mxu0 0.0
      %410 = vmatpush1.xpose.msra.mxu0 %v405
      %411 = vmatprep.subr.mxu0 0.0
      %412 = vmatpush1.xpose.msra.mxu0 0.0
      %413 = vmatprep.subr.mxu0 0.0
      %414 = vmatpush1.xpose.msra.mxu0 0.0
      %415 = vmatprep.subr.mxu0 0.0
      %416 = vmatpush1.xpose.msra.mxu0 0.0
      %417 = vmatprep.subr.mxu0 0.0
      %418 = vmatpush1.xpose.msra.mxu0 0.0
      %419 = vmatprep.subr.mxu0 0.0
      %420 = vmatpush1.xpose.msra.mxu0 0.0
      %421 = vmatprep.subr.mxu0 0.0
      %422 = vmatpush1.xpose.msra.mxu0 0.0
      %423 = vmatprep.subr.mxu0 0.0
      %424 = vmatpush1.xpose.msra.mxu0 0.0
      %425 = vmatprep.subr.mxu0 0.0
      %426 = vmatpush1.xpose.msra.mxu0 0.0
      %427 = vmatprep.subr.mxu0 0.0
      %428 = vmatpush1.xpose.msra.mxu0 0.0
      %429 = vmatprep.subr.mxu0 0.0
      %430 = vmatpush1.xpose.msra.mxu0 0.0
      %431 = vmatprep.subr.mxu0 0.0
      %432 = vmatpush1.xpose.msra.mxu0 0.0
      %433 = vmatprep.subr.mxu0 0.0
      %434 = vmatpush1.xpose.msra.mxu0 0.0
      %435 = vmatprep.subr.mxu0 0.0
      %436 = vmatpush1.xpose.msra.mxu0 0.0
      %437 = vmatprep.subr.mxu0 0.0
      %438 = vmatpush1.xpose.msra.mxu0 0.0
      %439 = vmatprep.subr.mxu0 0.0
      %440 = vmatpush1.xpose.msra.mxu0 0.0
      %441 = vmatprep.subr.mxu0 0.0
      %442 = vmatpush1.xpose.msra.mxu0 0.0
      %443 = vmatprep.subr.mxu0 0.0
      %444 = vmatpush1.xpose.msra.mxu0 0.0
      %445 = vmatprep.subr.mxu0 0.0
      %446 = vmatpush1.xpose.msra.mxu0 0.0
      %447 = vmatprep.subr.mxu0 0.0
      %448 = vmatpush1.xpose.msra.mxu0 0.0
      %449 = vmatprep.subr.mxu0 0.0
      %450 = vmatpush1.xpose.msra.mxu0 0.0
      %451 = vmatprep.subr.mxu0 0.0
      %452 = vmatpush1.xpose.msra.mxu0 0.0
      %453 = vmatprep.subr.mxu0 0.0
      %454 = vmatpush1.xpose.msra.mxu0 0.0
      %455 = vmatprep.subr.mxu0 0.0
      %456 = vmatpush1.xpose.msra.mxu0 0.0
      %457 = vmatprep.subr.mxu0 0.0
      %458 = vmatpush1.xpose.msra.mxu0 0.0
      %459 = vmatprep.subr.mxu0 0.0
      %460 = vmatpush1.xpose.msra.mxu0 0.0
      %461 = vmatprep.subr.mxu0 0.0
      %462 = vmatpush1.xpose.msra.mxu0 0.0
      %463 = vmatprep.subr.mxu0 0.0
      %464 = vmatpush1.xpose.msra.mxu0 0.0
      %465 = vmatprep.subr.mxu0 0.0
      %466 = vmatpush1.xpose.msra.mxu0 0.0
      %467 = vmatprep.subr.mxu0 0.0
      %468 = vmatpush1.xpose.msra.mxu0 0.0
      %469 = vmatprep.subr.mxu0 0.0
      %470 = vmatpush1.xpose.msra.mxu0 0.0
      %471 = vmatprep.mubr.f32.mxu0 0.0
      %472 = vmatmul.mubr.f32.gmra.mrb[0].mxu0 %v399
      %v473 = vpop.f32.mrb[0].mxu0
      %v474 = vadd.f32 0.0, %v473
      %v475 = vpop.f32.mrb[0].mxu0
      %476 = vdwg.mxu0
      %v477 = vld [vmem:[#allocation2] sm:$0xff]
      %vm478 = vcmask 97280
      %v479 = vsel %vm478, %v474, -inf
      %480 = vmax.xlane.f32.xlu0 %v479
      %v481 = vpop.xlane.xlu0 %480
      %v482 = vmax.f32 %v477, %v481
      %v483 = vsub.f32 %v477, %v482
      %v484 = vmul.f32 %v483, 1.442695
      %v485 = vpow.pop %v484
      %487 = vset.pattern.permute.xlu0 0
      %488 = vperm.xlu0 %487, %v482
      %v489 = vpop.permute.xlu0 %488
      %v491 = vsub.f32 %v474, %v489
      %v492 = vmul.f32 %v491, 1.442695
      %v493 = vpow.pop %v492
      %v494 = vld [vmem:[#allocation3] sm:$0xff]
      %v495 = vmul.f32 %v485, %v494
      %v496 = vsel %vm478, %v493, 0.0
      %497 = vadd.xlane.f32.xlu0 %v496
      %v498 = vpop.xlane.xlu0 %497
      %v499 = vadd.f32 %v495, %v498
      %vm500 = vcmask 7168
      %501 = vst.msk [vmem:[#allocation3] sm:$0xff] %vm500, %v499
      %v502 = vld [vmem:[#allocation4] sm:$0xff]
      %504 = vset.pattern.permute.xlu0 0
      %505 = vperm.xlu0 %504, %v485
      %v506 = vpop.permute.xlu0 %505
      %v508 = vmul.f32 %v506, %v502
      %509 = vrot.lane.b32.xlu0 %v395, 96
      %v510 = vpop.permute.xlu0 %509
      %511 = vrot.lane.b32.xlu0 %v396, 96
      %v512 = vpop.permute.xlu0 %511
      %v515 = vsel %vm478, %v493, 0
      %vm517 = vcmask 1043456
      %v518 = vsel %vm517, %v512, 0
      %520 = vmatprep.subr.mxu0 0.0
      %521 = vmatpush1.msra.mxu0 %v510
      %522 = vmatprep.subr.mxu0 0.0
      %523 = vmatpush1.msra.mxu0 %v518
      %524 = vmatprep.subr.mxu0 0.0
      %525 = vmatpush1.msra.mxu0 0.0
      %526 = vmatprep.subr.mxu0 0.0
      %527 = vmatpush1.msra.mxu0 0.0
      %528 = vmatprep.subr.mxu0 0.0
      %529 = vmatpush1.msra.mxu0 0.0
      %530 = vmatprep.subr.mxu0 0.0
      %531 = vmatpush1.msra.mxu0 0.0
      %532 = vmatprep.subr.mxu0 0.0
      %533 = vmatpush1.msra.mxu0 0.0
      %534 = vmatprep.subr.mxu0 0.0
      %535 = vmatpush1.msra.mxu0 0.0
      %536 = vmatprep.subr.mxu0 0.0
      %537 = vmatpush1.msra.mxu0 0.0
      %538 = vmatprep.subr.mxu0 0.0
      %539 = vmatpush1.msra.mxu0 0.0
      %540 = vmatprep.subr.mxu0 0.0
      %541 = vmatpush1.msra.mxu0 0.0
      %542 = vmatprep.subr.mxu0 0.0
      %543 = vmatpush1.msra.mxu0 0.0
      %544 = vmatprep.subr.mxu0 0.0
      %545 = vmatpush1.msra.mxu0 0.0
      %546 = vmatprep.subr.mxu0 0.0
      %547 = vmatpush1.msra.mxu0 0.0
      %548 = vmatprep.subr.mxu0 0.0
      %549 = vmatpush1.msra.mxu0 0.0
      %550 = vmatprep.subr.mxu0 0.0
      %551 = vmatpush1.msra.mxu0 0.0
      %552 = vmatprep.subr.mxu0 0.0
      %553 = vmatpush1.msra.mxu0 0.0
      %554 = vmatprep.subr.mxu0 0.0
      %555 = vmatpush1.msra.mxu0 0.0
      %556 = vmatprep.subr.mxu0 0.0
      %557 = vmatpush1.msra.mxu0 0.0
      %558 = vmatprep.subr.mxu0 0.0
      %559 = vmatpush1.msra.mxu0 0.0
      %560 = vmatprep.subr.mxu0 0.0
      %561 = vmatpush1.msra.mxu0 0.0
      %562 = vmatprep.subr.mxu0 0.0
      %563 = vmatpush1.msra.mxu0 0.0
      %564 = vmatprep.subr.mxu0 0.0
      %565 = vmatpush1.msra.mxu0 0.0
      %566 = vmatprep.subr.mxu0 0.0
      %567 = vmatpush1.msra.mxu0 0.0
      %568 = vmatprep.subr.mxu0 0.0
      %569 = vmatpush1.msra.mxu0 0.0
      %570 = vmatprep.subr.mxu0 0.0
      %571 = vmatpush1.msra.mxu0 0.0
      %572 = vmatprep.subr.mxu0 0.0
      %573 = vmatpush1.msra.mxu0 0.0
      %574 = vmatprep.subr.mxu0 0.0
      %575 = vmatpush1.msra.mxu0 0.0
      %576 = vmatprep.subr.mxu0 0.0
      %577 = vmatpush1.msra.mxu0 0.0
      %578 = vmatprep.subr.mxu0 0.0
      %579 = vmatpush1.msra.mxu0 0.0
      %580 = vmatprep.subr.mxu0 0.0
      %581 = vmatpush1.msra.mxu0 0.0
      %582 = vmatprep.subr.mxu0 0.0
      %583 = vmatpush1.msra.mxu0 0.0
      %584 = vmatprep.mubr.f32.mxu0 0.0
      %585 = vmatmul.mubr.f32.gmra.mrb[0].mxu0 %v515
      %v586 = vpop.f32.mrb[0].mxu0
      %v587 = vadd.f32 0.0, %v586
      %v588 = vpop.f32.mrb[0].mxu0
      %589 = vdwg.mxu0
      %v590 = vadd.f32 %v508, %v587
      %591 = vst.msk [vmem:[#allocation4] sm:$0xff] %vm397, %v590
      %592 = vst.msk [vmem:[#allocation2] sm:$0xff] %vm500, %v482
      %v593 = vld [vmem:[%s351] sm:$0xff]
      %v594 = vld [vmem:[%s360] sm:$0xff]
      %v595 = vld [vmem:[%s360 + $0x8] sm:$0xf]
      %597 = vrot.lane.b32.xlu0 %v593, 120
      %v598 = vpop.permute.xlu0 %597
      %601 = vrot.lane.b32.xlu0 %v594, 120
      %v602 = vpop.permute.xlu0 %601
      %603 = vrot.lane.b32.xlu0 %v595, 120
      %v604 = vpop.permute.xlu0 %603
      %v605 = vsel %vm397, %v598, 0
      %v607 = vsel %vm397, %v602, 0
      %v609 = vsel %vm397, %v604, 0
      %611 = vmatprep.subr.mxu0 0.0
      %612 = vmatpush1.xpose.msra.mxu0 %v607
      %613 = vmatprep.subr.mxu0 0.0
      %614 = vmatpush1.xpose.msra.mxu0 %v609
      %615 = vmatprep.subr.mxu0 0.0
      %616 = vmatpush1.xpose.msra.mxu0 0.0
      %617 = vmatprep.subr.mxu0 0.0
      %618 = vmatpush1.xpose.msra.mxu0 0.0
      %619 = vmatprep.subr.mxu0 0.0
      %620 = vmatpush1.xpose.msra.mxu0 0.0
      %621 = vmatprep.subr.mxu0 0.0
      %622 = vmatpush1.xpose.msra.mxu0 0.0
      %623 = vmatprep.subr.mxu0 0.0
      %624 = vmatpush1.xpose.msra.mxu0 0.0
      %625 = vmatprep.subr.mxu0 0.0
      %626 = vmatpush1.xpose.msra.mxu0 0.0
      %627 = vmatprep.subr.mxu0 0.0
      %628 = vmatpush1.xpose.msra.mxu0 0.0
      %629 = vmatprep.subr.mxu0 0.0
      %630 = vmatpush1.xpose.msra.mxu0 0.0
      %631 = vmatprep.subr.mxu0 0.0
      %632 = vmatpush1.xpose.msra.mxu0 0.0
      %633 = vmatprep.subr.mxu0 0.0
      %634 = vmatpush1.xpose.msra.mxu0 0.0
      %635 = vmatprep.subr.mxu0 0.0
      %636 = vmatpush1.xpose.msra.mxu0 0.0
      %637 = vmatprep.subr.mxu0 0.0
      %638 = vmatpush1.xpose.msra.mxu0 0.0
      %639 = vmatprep.subr.mxu0 0.0
      %640 = vmatpush1.xpose.msra.mxu0 0.0
      %641 = vmatprep.subr.mxu0 0.0
      %642 = vmatpush1.xpose.msra.mxu0 0.0
      %643 = vmatprep.subr.mxu0 0.0
      %644 = vmatpush1.xpose.msra.mxu0 0.0
      %645 = vmatprep.subr.mxu0 0.0
      %646 = vmatpush1.xpose.msra.mxu0 0.0
      %647 = vmatprep.subr.mxu0 0.0
      %648 = vmatpush1.xpose.msra.mxu0 0.0
      %649 = vmatprep.subr.mxu0 0.0
      %650 = vmatpush1.xpose.msra.mxu0 0.0
      %651 = vmatprep.subr.mxu0 0.0
      %652 = vmatpush1.xpose.msra.mxu0 0.0
      %653 = vmatprep.subr.mxu0 0.0
      %654 = vmatpush1.xpose.msra.mxu0 0.0
      %655 = vmatprep.subr.mxu0 0.0
      %656 = vmatpush1.xpose.msra.mxu0 0.0
      %657 = vmatprep.subr.mxu0 0.0
      %658 = vmatpush1.xpose.msra.mxu0 0.0
      %659 = vmatprep.subr.mxu0 0.0
      %660 = vmatpush1.xpose.msra.mxu0 0.0
      %661 = vmatprep.subr.mxu0 0.0
      %662 = vmatpush1.xpose.msra.mxu0 0.0
      %663 = vmatprep.subr.mxu0 0.0
      %664 = vmatpush1.xpose.msra.mxu0 0.0
      %665 = vmatprep.subr.mxu0 0.0
      %666 = vmatpush1.xpose.msra.mxu0 0.0
      %667 = vmatprep.subr.mxu0 0.0
      %668 = vmatpush1.xpose.msra.mxu0 0.0
      %669 = vmatprep.subr.mxu0 0.0
      %670 = vmatpush1.xpose.msra.mxu0 0.0
      %671 = vmatprep.subr.mxu0 0.0
      %672 = vmatpush1.xpose.msra.mxu0 0.0
      %673 = vmatprep.subr.mxu0 0.0
      %674 = vmatpush1.xpose.msra.mxu0 0.0
      %675 = vmatprep.mubr.f32.mxu0 0.0
      %676 = vmatmul.mubr.f32.gmra.mrb[0].mxu0 %v605
      %v677 = vpop.f32.mrb[0].mxu0
      %v678 = vadd.f32 0.0, %v677
      %v679 = vpop.f32.mrb[0].mxu0
      %680 = vdwg.mxu0
      %s681 = scalar_lea.vmem [#allocation2], 8
      %v682 = vld [vmem:[%s681] sm:$0xff]
      %v683 = vsel %vm478, %v678, -inf
      %684 = vmax.xlane.f32.xlu0 %v683
      %v685 = vpop.xlane.xlu0 %684
      %v686 = vmax.f32 %v682, %v685
      %v687 = vsub.f32 %v682, %v686
      %v688 = vmul.f32 %v687, 1.442695
      %v689 = vpow.pop %v688
      %691 = vset.pattern.permute.xlu0 0
      %692 = vperm.xlu0 %691, %v686
      %v693 = vpop.permute.xlu0 %692
      %v695 = vsub.f32 %v678, %v693
      %v696 = vmul.f32 %v695, 1.442695
      %v697 = vpow.pop %v696
      %s698 = scalar_lea.vmem [#allocation3], 8
      %v699 = vld [vmem:[%s698] sm:$0xff]
      %v700 = vmul.f32 %v689, %v699
      %v701 = vsel %vm478, %v697, 0.0
      %702 = vadd.xlane.f32.xlu0 %v701
      %v703 = vpop.xlane.xlu0 %702
      %v704 = vadd.f32 %v700, %v703
      %705 = vst.msk [vmem:[%s698] sm:$0xff] %vm500, %v704
      %s706 = scalar_lea.vmem [#allocation4], 8
      %v707 = vld [vmem:[%s706] sm:$0xff]
      %709 = vset.pattern.permute.xlu0 0
      %710 = vperm.xlu0 %709, %v689
      %v711 = vpop.permute.xlu0 %710
      %v713 = vmul.f32 %v711, %v707
      %714 = vrot.lane.b32.xlu0 %v594, 88
      %v715 = vpop.permute.xlu0 %714
      %716 = vrot.lane.b32.xlu0 %v595, 88
      %v717 = vpop.permute.xlu0 %716
      %v720 = vsel %vm478, %v697, 0
      %v722 = vsel %vm517, %v717, 0
      %724 = vmatprep.subr.mxu0 0.0
      %725 = vmatpush1.msra.mxu0 %v715
      %726 = vmatprep.subr.mxu0 0.0
      %727 = vmatpush1.msra.mxu0 %v722
      %728 = vmatprep.subr.mxu0 0.0
      %729 = vmatpush1.msra.mxu0 0.0
      %730 = vmatprep.subr.mxu0 0.0
      %731 = vmatpush1.msra.mxu0 0.0
      %732 = vmatprep.subr.mxu0 0.0
      %733 = vmatpush1.msra.mxu0 0.0
      %734 = vmatprep.subr.mxu0 0.0
      %735 = vmatpush1.msra.mxu0 0.0
      %736 = vmatprep.subr.mxu0 0.0
      %737 = vmatpush1.msra.mxu0 0.0
      %738 = vmatprep.subr.mxu0 0.0
      %739 = vmatpush1.msra.mxu0 0.0
      %740 = vmatprep.subr.mxu0 0.0
      %741 = vmatpush1.msra.mxu0 0.0
      %742 = vmatprep.subr.mxu0 0.0
      %743 = vmatpush1.msra.mxu0 0.0
      %744 = vmatprep.subr.mxu0 0.0
      %745 = vmatpush1.msra.mxu0 0.0
      %746 = vmatprep.subr.mxu0 0.0
      %747 = vmatpush1.msra.mxu0 0.0
      %748 = vmatprep.subr.mxu0 0.0
      %749 = vmatpush1.msra.mxu0 0.0
      %750 = vmatprep.subr.mxu0 0.0
      %751 = vmatpush1.msra.mxu0 0.0
      %752 = vmatprep.subr.mxu0 0.0
      %753 = vmatpush1.msra.mxu0 0.0
      %754 = vmatprep.subr.mxu0 0.0
      %755 = vmatpush1.msra.mxu0 0.0
      %756 = vmatprep.subr.mxu0 0.0
      %757 = vmatpush1.msra.mxu0 0.0
      %758 = vmatprep.subr.mxu0 0.0
      %759 = vmatpush1.msra.mxu0 0.0
      %760 = vmatprep.subr.mxu0 0.0
      %761 = vmatpush1.msra.mxu0 0.0
      %762 = vmatprep.subr.mxu0 0.0
      %763 = vmatpush1.msra.mxu0 0.0
      %764 = vmatprep.subr.mxu0 0.0
      %765 = vmatpush1.msra.mxu0 0.0
      %766 = vmatprep.subr.mxu0 0.0
      %767 = vmatpush1.msra.mxu0 0.0
      %768 = vmatprep.subr.mxu0 0.0
      %769 = vmatpush1.msra.mxu0 0.0
      %770 = vmatprep.subr.mxu0 0.0
      %771 = vmatpush1.msra.mxu0 0.0
      %772 = vmatprep.subr.mxu0 0.0
      %773 = vmatpush1.msra.mxu0 0.0
      %774 = vmatprep.subr.mxu0 0.0
      %775 = vmatpush1.msra.mxu0 0.0
      %776 = vmatprep.subr.mxu0 0.0
      %777 = vmatpush1.msra.mxu0 0.0
      %778 = vmatprep.subr.mxu0 0.0
      %779 = vmatpush1.msra.mxu0 0.0
      %780 = vmatprep.subr.mxu0 0.0
      %781 = vmatpush1.msra.mxu0 0.0
      %782 = vmatprep.subr.mxu0 0.0
      %783 = vmatpush1.msra.mxu0 0.0
      %784 = vmatprep.subr.mxu0 0.0
      %785 = vmatpush1.msra.mxu0 0.0
      %786 = vmatprep.subr.mxu0 0.0
      %787 = vmatpush1.msra.mxu0 0.0
      %788 = vmatprep.mubr.f32.mxu0 0.0
      %789 = vmatmul.mubr.f32.gmra.mrb[0].mxu0 %v720
      %v790 = vpop.f32.mrb[0].mxu0
      %v791 = vadd.f32 0.0, %v790
      %v792 = vpop.f32.mrb[0].mxu0
      %793 = vdwg.mxu0
      %v794 = vadd.f32 %v713, %v791
      %795 = vst.msk [vmem:[%s706] sm:$0xff] %vm397, %v794
      %796 = vst.msk [vmem:[%s681] sm:$0xff] %vm500, %v686
      %v797 = vld [vmem:[%s351] sm:$0xff]
      %v798 = vld [vmem:[%s360] sm:$0xff]
      %v799 = vld [vmem:[%s360 + $0x8] sm:$0xf]
      %801 = vrot.lane.b32.xlu0 %v797, 112
      %v802 = vpop.permute.xlu0 %801
      %805 = vrot.lane.b32.xlu0 %v798, 112
      %v806 = vpop.permute.xlu0 %805
      %807 = vrot.lane.b32.xlu0 %v799, 112
      %v808 = vpop.permute.xlu0 %807
      %v809 = vsel %vm397, %v802, 0
      %v811 = vsel %vm397, %v806, 0
      %v813 = vsel %vm397, %v808, 0
      %815 = vmatprep.subr.mxu0 0.0
      %816 = vmatpush1.xpose.msra.mxu0 %v811
      %817 = vmatprep.subr.mxu0 0.0
      %818 = vmatpush1.xpose.msra.mxu0 %v813
      %819 = vmatprep.subr.mxu0 0.0
      %820 = vmatpush1.xpose.msra.mxu0 0.0
      %821 = vmatprep.subr.mxu0 0.0
      %822 = vmatpush1.xpose.msra.mxu0 0.0
      %823 = vmatprep.subr.mxu0 0.0
      %824 = vmatpush1.xpose.msra.mxu0 0.0
      %825 = vmatprep.subr.mxu0 0.0
      %826 = vmatpush1.xpose.msra.mxu0 0.0
      %827 = vmatprep.subr.mxu0 0.0
      %828 = vmatpush1.xpose.msra.mxu0 0.0
      %829 = vmatprep.subr.mxu0 0.0
      %830 = vmatpush1.xpose.msra.mxu0 0.0
      %831 = vmatprep.subr.mxu0 0.0
      %832 = vmatpush1.xpose.msra.mxu0 0.0
      %833 = vmatprep.subr.mxu0 0.0
      %834 = vmatpush1.xpose.msra.mxu0 0.0
      %835 = vmatprep.subr.mxu0 0.0
      %836 = vmatpush1.xpose.msra.mxu0 0.0
      %837 = vmatprep.subr.mxu0 0.0
      %838 = vmatpush1.xpose.msra.mxu0 0.0
      %839 = vmatprep.subr.mxu0 0.0
      %840 = vmatpush1.xpose.msra.mxu0 0.0
      %841 = vmatprep.subr.mxu0 0.0
      %842 = vmatpush1.xpose.msra.mxu0 0.0
      %843 = vmatprep.subr.mxu0 0.0
      %844 = vmatpush1.xpose.msra.mxu0 0.0
      %845 = vmatprep.subr.mxu0 0.0
      %846 = vmatpush1.xpose.msra.mxu0 0.0
      %847 = vmatprep.subr.mxu0 0.0
      %848 = vmatpush1.xpose.msra.mxu0 0.0
      %849 = vmatprep.subr.mxu0 0.0
      %850 = vmatpush1.xpose.msra.mxu0 0.0
      %851 = vmatprep.subr.mxu0 0.0
      %852 = vmatpush1.xpose.msra.mxu0 0.0
      %853 = vmatprep.subr.mxu0 0.0
      %854 = vmatpush1.xpose.msra.mxu0 0.0
      %855 = vmatprep.subr.mxu0 0.0
      %856 = vmatpush1.xpose.msra.mxu0 0.0
      %857 = vmatprep.subr.mxu0 0.0
      %858 = vmatpush1.xpose.msra.mxu0 0.0
      %859 = vmatprep.subr.mxu0 0.0
      %860 = vmatpush1.xpose.msra.mxu0 0.0
      %861 = vmatprep.subr.mxu0 0.0
      %862 = vmatpush1.xpose.msra.mxu0 0.0
      %863 = vmatprep.subr.mxu0 0.0
      %864 = vmatpush1.xpose.msra.mxu0 0.0
      %865 = vmatprep.subr.mxu0 0.0
      %866 = vmatpush1.xpose.msra.mxu0 0.0
      %867 = vmatprep.subr.mxu0 0.0
      %868 = vmatpush1.xpose.msra.mxu0 0.0
      %869 = vmatprep.subr.mxu0 0.0
      %870 = vmatpush1.xpose.msra.mxu0 0.0
      %871 = vmatprep.subr.mxu0 0.0
      %872 = vmatpush1.xpose.msra.mxu0 0.0
      %873 = vmatprep.subr.mxu0 0.0
      %874 = vmatpush1.xpose.msra.mxu0 0.0
      %875 = vmatprep.subr.mxu0 0.0
      %876 = vmatpush1.xpose.msra.mxu0 0.0
      %877 = vmatprep.subr.mxu0 0.0
      %878 = vmatpush1.xpose.msra.mxu0 0.0
      %879 = vmatprep.mubr.f32.mxu0 0.0
      %880 = vmatmul.mubr.f32.gmra.mrb[0].mxu0 %v809
      %v881 = vpop.f32.mrb[0].mxu0
      %v882 = vadd.f32 0.0, %v881
      %v883 = vpop.f32.mrb[0].mxu0
      %884 = vdwg.mxu0
      %s885 = scalar_lea.vmem [#allocation2], 16
      %v886 = vld [vmem:[%s885] sm:$0xff]
      %v887 = vsel %vm478, %v882, -inf
      %888 = vmax.xlane.f32.xlu0 %v887
      %v889 = vpop.xlane.xlu0 %888
      %v890 = vmax.f32 %v886, %v889
      %v891 = vsub.f32 %v886, %v890
      %v892 = vmul.f32 %v891, 1.442695
      %v893 = vpow.pop %v892
      %895 = vset.pattern.permute.xlu0 0
      %896 = vperm.xlu0 %895, %v890
      %v897 = vpop.permute.xlu0 %896
      %v899 = vsub.f32 %v882, %v897
      %v900 = vmul.f32 %v899, 1.442695
      %v901 = vpow.pop %v900
      %s902 = scalar_lea.vmem [#allocation3], 16
      %v903 = vld [vmem:[%s902] sm:$0xff]
      %v904 = vmul.f32 %v893, %v903
      %v905 = vsel %vm478, %v901, 0.0
      %906 = vadd.xlane.f32.xlu0 %v905
      %v907 = vpop.xlane.xlu0 %906
      %v908 = vadd.f32 %v904, %v907
      %909 = vst.msk [vmem:[%s902] sm:$0xff] %vm500, %v908
      %s910 = scalar_lea.vmem [#allocation4], 16
      %v911 = vld [vmem:[%s910] sm:$0xff]
      %913 = vset.pattern.permute.xlu0 0
      %914 = vperm.xlu0 %913, %v893
      %v915 = vpop.permute.xlu0 %914
      %v917 = vmul.f32 %v915, %v911
      %918 = vrot.lane.b32.xlu0 %v798, 80
      %v919 = vpop.permute.xlu0 %918
      %920 = vrot.lane.b32.xlu0 %v799, 80
      %v921 = vpop.permute.xlu0 %920
      %v924 = vsel %vm478, %v901, 0
      %v926 = vsel %vm517, %v921, 0
      %928 = vmatprep.subr.mxu0 0.0
      %929 = vmatpush1.msra.mxu0 %v919
      %930 = vmatprep.subr.mxu0 0.0
      %931 = vmatpush1.msra.mxu0 %v926
      %932 = vmatprep.subr.mxu0 0.0
      %933 = vmatpush1.msra.mxu0 0.0
      %934 = vmatprep.subr.mxu0 0.0
      %935 = vmatpush1.msra.mxu0 0.0
      %936 = vmatprep.subr.mxu0 0.0
      %937 = vmatpush1.msra.mxu0 0.0
      %938 = vmatprep.subr.mxu0 0.0
      %939 = vmatpush1.msra.mxu0 0.0
      %940 = vmatprep.subr.mxu0 0.0
      %941 = vmatpush1.msra.mxu0 0.0
      %942 = vmatprep.subr.mxu0 0.0
      %943 = vmatpush1.msra.mxu0 0.0
      %944 = vmatprep.subr.mxu0 0.0
      %945 = vmatpush1.msra.mxu0 0.0
      %946 = vmatprep.subr.mxu0 0.0
      %947 = vmatpush1.msra.mxu0 0.0
      %948 = vmatprep.subr.mxu0 0.0
      %949 = vmatpush1.msra.mxu0 0.0
      %950 = vmatprep.subr.mxu0 0.0
      %951 = vmatpush1.msra.mxu0 0.0
      %952 = vmatprep.subr.mxu0 0.0
      %953 = vmatpush1.msra.mxu0 0.0
      %954 = vmatprep.subr.mxu0 0.0
      %955 = vmatpush1.msra.mxu0 0.0
      %956 = vmatprep.subr.mxu0 0.0
      %957 = vmatpush1.msra.mxu0 0.0
      %958 = vmatprep.subr.mxu0 0.0
      %959 = vmatpush1.msra.mxu0 0.0
      %960 = vmatprep.subr.mxu0 0.0
      %961 = vmatpush1.msra.mxu0 0.0
      %962 = vmatprep.subr.mxu0 0.0
      %963 = vmatpush1.msra.mxu0 0.0
      %964 = vmatprep.subr.mxu0 0.0
      %965 = vmatpush1.msra.mxu0 0.0
      %966 = vmatprep.subr.mxu0 0.0
      %967 = vmatpush1.msra.mxu0 0.0
      %968 = vmatprep.subr.mxu0 0.0
      %969 = vmatpush1.msra.mxu0 0.0
      %970 = vmatprep.subr.mxu0 0.0
      %971 = vmatpush1.msra.mxu0 0.0
      %972 = vmatprep.subr.mxu0 0.0
      %973 = vmatpush1.msra.mxu0 0.0
      %974 = vmatprep.subr.mxu0 0.0
      %975 = vmatpush1.msra.mxu0 0.0
      %976 = vmatprep.subr.mxu0 0.0
      %977 = vmatpush1.msra.mxu0 0.0
      %978 = vmatprep.subr.mxu0 0.0
      %979 = vmatpush1.msra.mxu0 0.0
      %980 = vmatprep.subr.mxu0 0.0
      %981 = vmatpush1.msra.mxu0 0.0
      %982 = vmatprep.subr.mxu0 0.0
      %983 = vmatpush1.msra.mxu0 0.0
      %984 = vmatprep.subr.mxu0 0.0
      %985 = vmatpush1.msra.mxu0 0.0
      %986 = vmatprep.subr.mxu0 0.0
      %987 = vmatpush1.msra.mxu0 0.0
      %988 = vmatprep.subr.mxu0 0.0
      %989 = vmatpush1.msra.mxu0 0.0
      %990 = vmatprep.subr.mxu0 0.0
      %991 = vmatpush1.msra.mxu0 0.0
      %992 = vmatprep.mubr.f32.mxu0 0.0
      %993 = vmatmul.mubr.f32.gmra.mrb[0].mxu0 %v924
      %v994 = vpop.f32.mrb[0].mxu0
      %v995 = vadd.f32 0.0, %v994
      %v996 = vpop.f32.mrb[0].mxu0
      %997 = vdwg.mxu0
      %v998 = vadd.f32 %v917, %v995
      %999 = vst.msk [vmem:[%s910] sm:$0xff] %vm397, %v998
      %1000 = vst.msk [vmem:[%s885] sm:$0xff] %vm500, %v890
      %v1001 = vld [vmem:[%s351] sm:$0xff]
      %v1002 = vld [vmem:[%s360] sm:$0xff]
      %v1003 = vld [vmem:[%s360 + $0x8] sm:$0xf]
      %1005 = vrot.lane.b32.xlu0 %v1001, 104
      %v1006 = vpop.permute.xlu0 %1005
      %1009 = vrot.lane.b32.xlu0 %v1002, 104
      %v1010 = vpop.permute.xlu0 %1009
      %1011 = vrot.lane.b32.xlu0 %v1003, 104
      %v1012 = vpop.permute.xlu0 %1011
      %v1013 = vsel %vm397, %v1006, 0
      %v1015 = vsel %vm397, %v1010, 0
      %v1017 = vsel %vm397, %v1012, 0
      %1019 = vmatprep.subr.mxu0 0.0
      %1020 = vmatpush1.xpose.msra.mxu0 %v1015
      %1021 = vmatprep.subr.mxu0 0.0
      %1022 = vmatpush1.xpose.msra.mxu0 %v1017
      %1023 = vmatprep.subr.mxu0 0.0
      %1024 = vmatpush1.xpose.msra.mxu0 0.0
      %1025 = vmatprep.subr.mxu0 0.0
      %1026 = vmatpush1.xpose.msra.mxu0 0.0
      %1027 = vmatprep.subr.mxu0 0.0
      %1028 = vmatpush1.xpose.msra.mxu0 0.0
      %1029 = vmatprep.subr.mxu0 0.0
      %1030 = vmatpush1.xpose.msra.mxu0 0.0
      %1031 = vmatprep.subr.mxu0 0.0
      %1032 = vmatpush1.xpose.msra.mxu0 0.0
      %1033 = vmatprep.subr.mxu0 0.0
      %1034 = vmatpush1.xpose.msra.mxu0 0.0
      %1035 = vmatprep.subr.mxu0 0.0
      %1036 = vmatpush1.xpose.msra.mxu0 0.0
      %1037 = vmatprep.subr.mxu0 0.0
      %1038 = vmatpush1.xpose.msra.mxu0 0.0
      %1039 = vmatprep.subr.mxu0 0.0
      %1040 = vmatpush1.xpose.msra.mxu0 0.0
      %1041 = vmatprep.subr.mxu0 0.0
      %1042 = vmatpush1.xpose.msra.mxu0 0.0
      %1043 = vmatprep.subr.mxu0 0.0
      %1044 = vmatpush1.xpose.msra.mxu0 0.0
      %1045 = vmatprep.subr.mxu0 0.0
      %1046 = vmatpush1.xpose.msra.mxu0 0.0
      %1047 = vmatprep.subr.mxu0 0.0
      %1048 = vmatpush1.xpose.msra.mxu0 0.0
      %1049 = vmatprep.subr.mxu0 0.0
      %1050 = vmatpush1.xpose.msra.mxu0 0.0
      %1051 = vmatprep.subr.mxu0 0.0
      %1052 = vmatpush1.xpose.msra.mxu0 0.0
      %1053 = vmatprep.subr.mxu0 0.0
      %1054 = vmatpush1.xpose.msra.mxu0 0.0
      %1055 = vmatprep.subr.mxu0 0.0
      %1056 = vmatpush1.xpose.msra.mxu0 0.0
      %1057 = vmatprep.subr.mxu0 0.0
      %1058 = vmatpush1.xpose.msra.mxu0 0.0
      %1059 = vmatprep.subr.mxu0 0.0
      %1060 = vmatpush1.xpose.msra.mxu0 0.0
      %1061 = vmatprep.subr.mxu0 0.0
      %1062 = vmatpush1.xpose.msra.mxu0 0.0
      %1063 = vmatprep.subr.mxu0 0.0
      %1064 = vmatpush1.xpose.msra.mxu0 0.0
      %1065 = vmatprep.subr.mxu0 0.0
      %1066 = vmatpush1.xpose.msra.mxu0 0.0
      %1067 = vmatprep.subr.mxu0 0.0
      %1068 = vmatpush1.xpose.msra.mxu0 0.0
      %1069 = vmatprep.subr.mxu0 0.0
      %1070 = vmatpush1.xpose.msra.mxu0 0.0
      %1071 = vmatprep.subr.mxu0 0.0
      %1072 = vmatpush1.xpose.msra.mxu0 0.0
      %1073 = vmatprep.subr.mxu0 0.0
      %1074 = vmatpush1.xpose.msra.mxu0 0.0
      %1075 = vmatprep.subr.mxu0 0.0
      %1076 = vmatpush1.xpose.msra.mxu0 0.0
      %1077 = vmatprep.subr.mxu0 0.0
      %1078 = vmatpush1.xpose.msra.mxu0 0.0
      %1079 = vmatprep.subr.mxu0 0.0
      %1080 = vmatpush1.xpose.msra.mxu0 0.0
      %1081 = vmatprep.subr.mxu0 0.0
      %1082 = vmatpush1.xpose.msra.mxu0 0.0
      %1083 = vmatprep.mubr.f32.mxu0 0.0
      %1084 = vmatmul.mubr.f32.gmra.mrb[0].mxu0 %v1013
      %v1085 = vpop.f32.mrb[0].mxu0
      %v1086 = vadd.f32 0.0, %v1085
      %v1087 = vpop.f32.mrb[0].mxu0
      %1088 = vdwg.mxu0
      %s1089 = scalar_lea.vmem [#allocation2], 24
      %v1090 = vld [vmem:[%s1089] sm:$0xff]
      %v1091 = vsel %vm478, %v1086, -inf
      %1092 = vmax.xlane.f32.xlu0 %v1091
      %v1093 = vpop.xlane.xlu0 %1092
      %v1094 = vmax.f32 %v1090, %v1093
      %v1095 = vsub.f32 %v1090, %v1094
      %v1096 = vmul.f32 %v1095, 1.442695
      %v1097 = vpow.pop %v1096
      %1099 = vset.pattern.permute.xlu0 0
      %1100 = vperm.xlu0 %1099, %v1094
      %v1101 = vpop.permute.xlu0 %1100
      %v1103 = vsub.f32 %v1086, %v1101
      %v1104 = vmul.f32 %v1103, 1.442695
      %v1105 = vpow.pop %v1104
      %s1106 = scalar_lea.vmem [#allocation3], 24
      %v1107 = vld [vmem:[%s1106] sm:$0xff]
      %v1108 = vmul.f32 %v1097, %v1107
      %v1109 = vsel %vm478, %v1105, 0.0
      %1110 = vadd.xlane.f32.xlu0 %v1109
      %v1111 = vpop.xlane.xlu0 %1110
      %v1112 = vadd.f32 %v1108, %v1111
      %1113 = vst.msk [vmem:[%s1106] sm:$0xff] %vm500, %v1112
      %s1114 = scalar_lea.vmem [#allocation4], 24
      %v1115 = vld [vmem:[%s1114] sm:$0xff]
      %1117 = vset.pattern.permute.xlu0 0
      %1118 = vperm.xlu0 %1117, %v1097
      %v1119 = vpop.permute.xlu0 %1118
      %v1121 = vmul.f32 %v1119, %v1115
      %1122 = vrot.lane.b32.xlu0 %v1002, 72
      %v1123 = vpop.permute.xlu0 %1122
      %1124 = vrot.lane.b32.xlu0 %v1003, 72
      %v1125 = vpop.permute.xlu0 %1124
      %v1128 = vsel %vm478, %v1105, 0
      %v1130 = vsel %vm517, %v1125, 0
      %1132 = vmatprep.subr.mxu0 0.0
      %1133 = vmatpush1.msra.mxu0 %v1123
      %1134 = vmatprep.subr.mxu0 0.0
      %1135 = vmatpush1.msra.mxu0 %v1130
      %1136 = vmatprep.subr.mxu0 0.0
      %1137 = vmatpush1.msra.mxu0 0.0
      %1138 = vmatprep.subr.mxu0 0.0
      %1139 = vmatpush1.msra.mxu0 0.0
      %1140 = vmatprep.subr.mxu0 0.0
      %1141 = vmatpush1.msra.mxu0 0.0
      %1142 = vmatprep.subr.mxu0 0.0
      %1143 = vmatpush1.msra.mxu0 0.0
      %1144 = vmatprep.subr.mxu0 0.0
      %1145 = vmatpush1.msra.mxu0 0.0
      %1146 = vmatprep.subr.mxu0 0.0
      %1147 = vmatpush1.msra.mxu0 0.0
      %1148 = vmatprep.subr.mxu0 0.0
      %1149 = vmatpush1.msra.mxu0 0.0
      %1150 = vmatprep.subr.mxu0 0.0
      %1151 = vmatpush1.msra.mxu0 0.0
      %1152 = vmatprep.subr.mxu0 0.0
      %1153 = vmatpush1.msra.mxu0 0.0
      %1154 = vmatprep.subr.mxu0 0.0
      %1155 = vmatpush1.msra.mxu0 0.0
      %1156 = vmatprep.subr.mxu0 0.0
      %1157 = vmatpush1.msra.mxu0 0.0
      %1158 = vmatprep.subr.mxu0 0.0
      %1159 = vmatpush1.msra.mxu0 0.0
      %1160 = vmatprep.subr.mxu0 0.0
      %1161 = vmatpush1.msra.mxu0 0.0
      %1162 = vmatprep.subr.mxu0 0.0
      %1163 = vmatpush1.msra.mxu0 0.0
      %1164 = vmatprep.subr.mxu0 0.0
      %1165 = vmatpush1.msra.mxu0 0.0
      %1166 = vmatprep.subr.mxu0 0.0
      %1167 = vmatpush1.msra.mxu0 0.0
      %1168 = vmatprep.subr.mxu0 0.0
      %1169 = vmatpush1.msra.mxu0 0.0
      %1170 = vmatprep.subr.mxu0 0.0
      %1171 = vmatpush1.msra.mxu0 0.0
      %1172 = vmatprep.subr.mxu0 0.0
      %1173 = vmatpush1.msra.mxu0 0.0
      %1174 = vmatprep.subr.mxu0 0.0
      %1175 = vmatpush1.msra.mxu0 0.0
      %1176 = vmatprep.subr.mxu0 0.0
      %1177 = vmatpush1.msra.mxu0 0.0
      %1178 = vmatprep.subr.mxu0 0.0
      %1179 = vmatpush1.msra.mxu0 0.0
      %1180 = vmatprep.subr.mxu0 0.0
      %1181 = vmatpush1.msra.mxu0 0.0
      %1182 = vmatprep.subr.mxu0 0.0
      %1183 = vmatpush1.msra.mxu0 0.0
      %1184 = vmatprep.subr.mxu0 0.0
      %1185 = vmatpush1.msra.mxu0 0.0
      %1186 = vmatprep.subr.mxu0 0.0
      %1187 = vmatpush1.msra.mxu0 0.0
      %1188 = vmatprep.subr.mxu0 0.0
      %1189 = vmatpush1.msra.mxu0 0.0
      %1190 = vmatprep.subr.mxu0 0.0
      %1191 = vmatpush1.msra.mxu0 0.0
      %1192 = vmatprep.subr.mxu0 0.0
      %1193 = vmatpush1.msra.mxu0 0.0
      %1194 = vmatprep.subr.mxu0 0.0
      %1195 = vmatpush1.msra.mxu0 0.0
      %1196 = vmatprep.mubr.f32.mxu0 0.0
      %1197 = vmatmul.mubr.f32.gmra.mrb[0].mxu0 %v1128
      %v1198 = vpop.f32.mrb[0].mxu0
      %v1199 = vadd.f32 0.0, %v1198
      %v1200 = vpop.f32.mrb[0].mxu0
      %1201 = vdwg.mxu0
      %v1202 = vadd.f32 %v1121, %v1199
      %1203 = vst.msk [vmem:[%s1114] sm:$0xff] %vm397, %v1202
      %1204 = vst.msk [vmem:[%s1089] sm:$0xff] %vm500, %v1094
      // Predicated region
      $region53: #{_lambda_.10} parent=47 // pred_check
        %p1205 = pneg %p376
      $region54: #{_lambda_.10} parent=47 // pred_check_branch
        %1207 = sbr.rel (%p1205) target = $region56
      $region55: #{_lambda_.10} parent=47 // pred_region
        %v1208 = vld [vmem:[#allocation3] sm:$0xff]
        %v1209 = vrcp.pop %v1208
        %v1210 = vld [vmem:[#allocation4] sm:$0xff]
        %1212 = vset.pattern.permute.xlu0 0
        %1213 = vperm.xlu0 %1212, %v1209
        %v1214 = vpop.permute.xlu0 %1213
        %v1216 = vmul.f32 %v1210, %v1214
        %v1217 = vld [vmem:[%s3] sm:$0xff]
        %v1218 = vld [vmem:[%s698] sm:$0xff]
        %v1219 = vrcp.pop %v1218
        %v1220 = vld [vmem:[%s706] sm:$0xff]
        %1222 = vset.pattern.permute.xlu0 0
        %1223 = vperm.xlu0 %1222, %v1219
        %v1224 = vpop.permute.xlu0 %1223
        %v1226 = vmul.f32 %v1220, %v1224
        %v1227 = vld [vmem:[%s3 + $0x8] sm:$0xff]
        %v1229 = vsel %vm397, %v1226, 0
        %1231 = vmatprep.subr.mxu0 0.0
        %1232 = vmatpush1.msra.mxu0 %v1227
        %1233 = vmatprep.subr.mxu0 0.0
        %1234 = vmatpush1.msra.mxu0 0.0
        %1235 = vmatprep.subr.mxu0 0.0
        %1236 = vmatpush1.msra.mxu0 0.0
        %1237 = vmatprep.subr.mxu0 0.0
        %1238 = vmatpush1.msra.mxu0 0.0
        %1239 = vmatprep.subr.mxu0 0.0
        %1240 = vmatpush1.msra.mxu0 0.0
        %1241 = vmatprep.subr.mxu0 0.0
        %1242 = vmatpush1.msra.mxu0 0.0
        %1243 = vmatprep.subr.mxu0 0.0
        %1244 = vmatpush1.msra.mxu0 0.0
        %1245 = vmatprep.subr.mxu0 0.0
        %1246 = vmatpush1.msra.mxu0 0.0
        %1247 = vmatprep.subr.mxu0 0.0
        %1248 = vmatpush1.msra.mxu0 0.0
        %1249 = vmatprep.subr.mxu0 0.0
        %1250 = vmatpush1.msra.mxu0 0.0
        %1251 = vmatprep.subr.mxu0 0.0
        %1252 = vmatpush1.msra.mxu0 0.0
        %1253 = vmatprep.subr.mxu0 0.0
        %1254 = vmatpush1.msra.mxu0 0.0
        %1255 = vmatprep.subr.mxu0 0.0
        %1256 = vmatpush1.msra.mxu0 0.0
        %1257 = vmatprep.subr.mxu0 0.0
        %1258 = vmatpush1.msra.mxu0 0.0
        %1259 = vmatprep.subr.mxu0 0.0
        %1260 = vmatpush1.msra.mxu0 0.0
        %1261 = vmatprep.subr.mxu0 0.0
        %1262 = vmatpush1.msra.mxu0 0.0
        %1263 = vmatprep.subr.mxu0 0.0
        %1264 = vmatpush1.msra.mxu0 0.0
        %1265 = vmatprep.subr.mxu0 0.0
        %1266 = vmatpush1.msra.mxu0 0.0
        %1267 = vmatprep.subr.mxu0 0.0
        %1268 = vmatpush1.msra.mxu0 0.0
        %1269 = vmatprep.subr.mxu0 0.0
        %1270 = vmatpush1.msra.mxu0 0.0
        %1271 = vmatprep.subr.mxu0 0.0
        %1272 = vmatpush1.msra.mxu0 0.0
        %1273 = vmatprep.subr.mxu0 0.0
        %1274 = vmatpush1.msra.mxu0 0.0
        %1275 = vmatprep.subr.mxu0 0.0
        %1276 = vmatpush1.msra.mxu0 0.0
        %1277 = vmatprep.subr.mxu0 0.0
        %1278 = vmatpush1.msra.mxu0 0.0
        %1279 = vmatprep.subr.mxu0 0.0
        %1280 = vmatpush1.msra.mxu0 0.0
        %1281 = vmatprep.subr.mxu0 0.0
        %1282 = vmatpush1.msra.mxu0 0.0
        %1283 = vmatprep.subr.mxu0 0.0
        %1284 = vmatpush1.msra.mxu0 0.0
        %1285 = vmatprep.subr.mxu0 0.0
        %1286 = vmatpush1.msra.mxu0 0.0
        %1287 = vmatprep.subr.mxu0 0.0
        %1288 = vmatpush1.msra.mxu0 0.0
        %1289 = vmatprep.subr.mxu0 0.0
        %1290 = vmatpush1.msra.mxu0 0.0
        %1291 = vmatprep.subr.mxu0 0.0
        %1292 = vmatpush1.msra.mxu0 0.0
        %1293 = vmatprep.subr.mxu0 0.0
        %1294 = vmatpush1.msra.mxu0 0.0
        %1295 = vmatprep.mubr.f32.mxu0 0.0
        %1296 = vmatmul.mubr.f32.gmra.mrb[0].mxu0 %v1229
        %v1297 = vpop.f32.mrb[0].mxu0
        %v1298 = vadd.f32 0.0, %v1297
        %v1299 = vpop.f32.mrb[0].mxu0
        %1300 = vdwg.mxu0
        %v1302 = vsel %vm397, %v1216, 0
        %1304 = vmatprep.subr.mxu0 0.0
        %1305 = vmatpush1.msra.mxu0 %v1217
        %1306 = vmatprep.subr.mxu0 0.0
        %1307 = vmatpush1.msra.mxu0 0.0
        %1308 = vmatprep.subr.mxu0 0.0
        %1309 = vmatpush1.msra.mxu0 0.0
        %1310 = vmatprep.subr.mxu0 0.0
        %1311 = vmatpush1.msra.mxu0 0.0
        %1312 = vmatprep.subr.mxu0 0.0
        %1313 = vmatpush1.msra.mxu0 0.0
        %1314 = vmatprep.subr.mxu0 0.0
        %1315 = vmatpush1.msra.mxu0 0.0
        %1316 = vmatprep.subr.mxu0 0.0
        %1317 = vmatpush1.msra.mxu0 0.0
        %1318 = vmatprep.subr.mxu0 0.0
        %1319 = vmatpush1.msra.mxu0 0.0
        %1320 = vmatprep.subr.mxu0 0.0
        %1321 = vmatpush1.msra.mxu0 0.0
        %1322 = vmatprep.subr.mxu0 0.0
        %1323 = vmatpush1.msra.mxu0 0.0
        %1324 = vmatprep.subr.mxu0 0.0
        %1325 = vmatpush1.msra.mxu0 0.0
        %1326 = vmatprep.subr.mxu0 0.0
        %1327 = vmatpush1.msra.mxu0 0.0
        %1328 = vmatprep.subr.mxu0 0.0
        %1329 = vmatpush1.msra.mxu0 0.0
        %1330 = vmatprep.subr.mxu0 0.0
        %1331 = vmatpush1.msra.mxu0 0.0
        %1332 = vmatprep.subr.mxu0 0.0
        %1333 = vmatpush1.msra.mxu0 0.0
        %1334 = vmatprep.subr.mxu0 0.0
        %1335 = vmatpush1.msra.mxu0 0.0
        %1336 = vmatprep.subr.mxu0 0.0
        %1337 = vmatpush1.msra.mxu0 0.0
        %1338 = vmatprep.subr.mxu0 0.0
        %1339 = vmatpush1.msra.mxu0 0.0
        %1340 = vmatprep.subr.mxu0 0.0
        %1341 = vmatpush1.msra.mxu0 0.0
        %1342 = vmatprep.subr.mxu0 0.0
        %1343 = vmatpush1.msra.mxu0 0.0
        %1344 = vmatprep.subr.mxu0 0.0
        %1345 = vmatpush1.msra.mxu0 0.0
        %1346 = vmatprep.subr.mxu0 0.0
        %1347 = vmatpush1.msra.mxu0 0.0
        %1348 = vmatprep.subr.mxu0 0.0
        %1349 = vmatpush1.msra.mxu0 0.0
        %1350 = vmatprep.subr.mxu0 0.0
        %1351 = vmatpush1.msra.mxu0 0.0
        %1352 = vmatprep.subr.mxu0 0.0
        %1353 = vmatpush1.msra.mxu0 0.0
        %1354 = vmatprep.subr.mxu0 0.0
        %1355 = vmatpush1.msra.mxu0 0.0
        %1356 = vmatprep.subr.mxu0 0.0
        %1357 = vmatpush1.msra.mxu0 0.0
        %1358 = vmatprep.subr.mxu0 0.0
        %1359 = vmatpush1.msra.mxu0 0.0
        %1360 = vmatprep.subr.mxu0 0.0
        %1361 = vmatpush1.msra.mxu0 0.0
        %1362 = vmatprep.subr.mxu0 0.0
        %1363 = vmatpush1.msra.mxu0 0.0
        %1364 = vmatprep.subr.mxu0 0.0
        %1365 = vmatpush1.msra.mxu0 0.0
        %1366 = vmatprep.subr.mxu0 0.0
        %1367 = vmatpush1.msra.mxu0 0.0
        %1368 = vmatprep.mubr.f32.mxu0 0.0
        %1369 = vmatmul.mubr.f32.gmra.mrb[0].mxu0 %v1302
        %v1370 = vpop.f32.mrb[0].mxu0
        %v1371 = vadd.f32 %v1298, %v1370
        %v1372 = vpop.f32.mrb[0].mxu0
        %1373 = vdwg.mxu0
        %v1374 = vld [vmem:[%s902] sm:$0xff]
        %v1375 = vrcp.pop %v1374
        %v1376 = vld [vmem:[%s910] sm:$0xff]
        %1378 = vset.pattern.permute.xlu0 0
        %1379 = vperm.xlu0 %1378, %v1375
        %v1380 = vpop.permute.xlu0 %1379
        %v1382 = vmul.f32 %v1376, %v1380
        %v1383 = vld [vmem:[%s3 + $0x10] sm:$0xff]
        %v1385 = vsel %vm397, %v1382, 0
        %1387 = vmatprep.subr.mxu0 0.0
        %1388 = vmatpush1.msra.mxu0 %v1383
        %1389 = vmatprep.subr.mxu0 0.0
        %1390 = vmatpush1.msra.mxu0 0.0
        %1391 = vmatprep.subr.mxu0 0.0
        %1392 = vmatpush1.msra.mxu0 0.0
        %1393 = vmatprep.subr.mxu0 0.0
        %1394 = vmatpush1.msra.mxu0 0.0
        %1395 = vmatprep.subr.mxu0 0.0
        %1396 = vmatpush1.msra.mxu0 0.0
        %1397 = vmatprep.subr.mxu0 0.0
        %1398 = vmatpush1.msra.mxu0 0.0
        %1399 = vmatprep.subr.mxu0 0.0
        %1400 = vmatpush1.msra.mxu0 0.0
        %1401 = vmatprep.subr.mxu0 0.0
        %1402 = vmatpush1.msra.mxu0 0.0
        %1403 = vmatprep.subr.mxu0 0.0
        %1404 = vmatpush1.msra.mxu0 0.0
        %1405 = vmatprep.subr.mxu0 0.0
        %1406 = vmatpush1.msra.mxu0 0.0
        %1407 = vmatprep.subr.mxu0 0.0
        %1408 = vmatpush1.msra.mxu0 0.0
        %1409 = vmatprep.subr.mxu0 0.0
        %1410 = vmatpush1.msra.mxu0 0.0
        %1411 = vmatprep.subr.mxu0 0.0
        %1412 = vmatpush1.msra.mxu0 0.0
        %1413 = vmatprep.subr.mxu0 0.0
        %1414 = vmatpush1.msra.mxu0 0.0
        %1415 = vmatprep.subr.mxu0 0.0
        %1416 = vmatpush1.msra.mxu0 0.0
        %1417 = vmatprep.subr.mxu0 0.0
        %1418 = vmatpush1.msra.mxu0 0.0
        %1419 = vmatprep.subr.mxu0 0.0
        %1420 = vmatpush1.msra.mxu0 0.0
        %1421 = vmatprep.subr.mxu0 0.0
        %1422 = vmatpush1.msra.mxu0 0.0
        %1423 = vmatprep.subr.mxu0 0.0
        %1424 = vmatpush1.msra.mxu0 0.0
        %1425 = vmatprep.subr.mxu0 0.0
        %1426 = vmatpush1.msra.mxu0 0.0
        %1427 = vmatprep.subr.mxu0 0.0
        %1428 = vmatpush1.msra.mxu0 0.0
        %1429 = vmatprep.subr.mxu0 0.0
        %1430 = vmatpush1.msra.mxu0 0.0
        %1431 = vmatprep.subr.mxu0 0.0
        %1432 = vmatpush1.msra.mxu0 0.0
        %1433 = vmatprep.subr.mxu0 0.0
        %1434 = vmatpush1.msra.mxu0 0.0
        %1435 = vmatprep.subr.mxu0 0.0
        %1436 = vmatpush1.msra.mxu0 0.0
        %1437 = vmatprep.subr.mxu0 0.0
        %1438 = vmatpush1.msra.mxu0 0.0
        %1439 = vmatprep.subr.mxu0 0.0
        %1440 = vmatpush1.msra.mxu0 0.0
        %1441 = vmatprep.subr.mxu0 0.0
        %1442 = vmatpush1.msra.mxu0 0.0
        %1443 = vmatprep.subr.mxu0 0.0
        %1444 = vmatpush1.msra.mxu0 0.0
        %1445 = vmatprep.subr.mxu0 0.0
        %1446 = vmatpush1.msra.mxu0 0.0
        %1447 = vmatprep.subr.mxu0 0.0
        %1448 = vmatpush1.msra.mxu0 0.0
        %1449 = vmatprep.subr.mxu0 0.0
        %1450 = vmatpush1.msra.mxu0 0.0
        %1451 = vmatprep.mubr.f32.mxu0 0.0
        %1452 = vmatmul.mubr.f32.gmra.mrb[0].mxu0 %v1385
        %v1453 = vpop.f32.mrb[0].mxu0
        %v1454 = vadd.f32 0.0, %v1453
        %v1455 = vpop.f32.mrb[0].mxu0
        %1456 = vdwg.mxu0
        %v1457 = vadd.f32 %v1371, %v1454
        %v1458 = vld [vmem:[%s1106] sm:$0xff]
        %v1459 = vrcp.pop %v1458
        %v1460 = vld [vmem:[%s1114] sm:$0xff]
        %1462 = vset.pattern.permute.xlu0 0
        %1463 = vperm.xlu0 %1462, %v1459
        %v1464 = vpop.permute.xlu0 %1463
        %v1466 = vmul.f32 %v1460, %v1464
        %v1467 = vld [vmem:[%s3 + $0x18] sm:$0xff]
        %v1469 = vsel %vm397, %v1466, 0
        %1471 = vmatprep.subr.mxu0 0.0
        %1472 = vmatpush1.msra.mxu0 %v1467
        %1473 = vmatprep.subr.mxu0 0.0
        %1474 = vmatpush1.msra.mxu0 0.0
        %1475 = vmatprep.subr.mxu0 0.0
        %1476 = vmatpush1.msra.mxu0 0.0
        %1477 = vmatprep.subr.mxu0 0.0
        %1478 = vmatpush1.msra.mxu0 0.0
        %1479 = vmatprep.subr.mxu0 0.0
        %1480 = vmatpush1.msra.mxu0 0.0
        %1481 = vmatprep.subr.mxu0 0.0
        %1482 = vmatpush1.msra.mxu0 0.0
        %1483 = vmatprep.subr.mxu0 0.0
        %1484 = vmatpush1.msra.mxu0 0.0
        %1485 = vmatprep.subr.mxu0 0.0
        %1486 = vmatpush1.msra.mxu0 0.0
        %1487 = vmatprep.subr.mxu0 0.0
        %1488 = vmatpush1.msra.mxu0 0.0
        %1489 = vmatprep.subr.mxu0 0.0
        %1490 = vmatpush1.msra.mxu0 0.0
        %1491 = vmatprep.subr.mxu0 0.0
        %1492 = vmatpush1.msra.mxu0 0.0
        %1493 = vmatprep.subr.mxu0 0.0
        %1494 = vmatpush1.msra.mxu0 0.0
        %1495 = vmatprep.subr.mxu0 0.0
        %1496 = vmatpush1.msra.mxu0 0.0
        %1497 = vmatprep.subr.mxu0 0.0
        %1498 = vmatpush1.msra.mxu0 0.0
        %1499 = vmatprep.subr.mxu0 0.0
        %1500 = vmatpush1.msra.mxu0 0.0
        %1501 = vmatprep.subr.mxu0 0.0
        %1502 = vmatpush1.msra.mxu0 0.0
        %1503 = vmatprep.subr.mxu0 0.0
        %1504 = vmatpush1.msra.mxu0 0.0
        %1505 = vmatprep.subr.mxu0 0.0
        %1506 = vmatpush1.msra.mxu0 0.0
        %1507 = vmatprep.subr.mxu0 0.0
        %1508 = vmatpush1.msra.mxu0 0.0
        %1509 = vmatprep.subr.mxu0 0.0
        %1510 = vmatpush1.msra.mxu0 0.0
        %1511 = vmatprep.subr.mxu0 0.0
        %1512 = vmatpush1.msra.mxu0 0.0
        %1513 = vmatprep.subr.mxu0 0.0
        %1514 = vmatpush1.msra.mxu0 0.0
        %1515 = vmatprep.subr.mxu0 0.0
        %1516 = vmatpush1.msra.mxu0 0.0
        %1517 = vmatprep.subr.mxu0 0.0
        %1518 = vmatpush1.msra.mxu0 0.0
        %1519 = vmatprep.subr.mxu0 0.0
        %1520 = vmatpush1.msra.mxu0 0.0
        %1521 = vmatprep.subr.mxu0 0.0
        %1522 = vmatpush1.msra.mxu0 0.0
        %1523 = vmatprep.subr.mxu0 0.0
        %1524 = vmatpush1.msra.mxu0 0.0
        %1525 = vmatprep.subr.mxu0 0.0
        %1526 = vmatpush1.msra.mxu0 0.0
        %1527 = vmatprep.subr.mxu0 0.0
        %1528 = vmatpush1.msra.mxu0 0.0
        %1529 = vmatprep.subr.mxu0 0.0
        %1530 = vmatpush1.msra.mxu0 0.0
        %1531 = vmatprep.subr.mxu0 0.0
        %1532 = vmatpush1.msra.mxu0 0.0
        %1533 = vmatprep.subr.mxu0 0.0
        %1534 = vmatpush1.msra.mxu0 0.0
        %1535 = vmatprep.mubr.f32.mxu0 0.0
        %1536 = vmatmul.mubr.f32.gmra.mrb[0].mxu0 %v1469
        %v1537 = vpop.f32.mrb[0].mxu0
        %v1538 = vadd.f32 0.0, %v1537
        %v1539 = vpop.f32.mrb[0].mxu0
        %1540 = vdwg.mxu0
        %v1541 = vadd.f32 %v1457, %v1538
        %v1542 = vld [vmem:[%s368] sm:$0xff]
        %v1543 = vadd.f32 %v1542, %v1541
        %v1544 = vld [vmem:[%s4] sm:$0x1]
        %v1546 = vlaneseq
        %v1547 = vshrl.u32 %v1546, 7
        %v1548 = vsub.s32 0, %v1547
        %v1549 = vrot.slane %v1544, %v1548
        %v1551 = vadd.f32 %v1543, %v1549
        %v1552 = vld [vmem:[%s5] sm:$0x1]
        %v1553 = vld [vmem:[%s6] sm:$0x1]
        %vm1554 = vcmask 261120
        %v1555 = vsel %vm1554, %v1551, 0.0
        %1556 = vadd.xlane.f32.xlu0 %v1555
        %v1557 = vpop.xlane.xlu0 %1556
        %v1558 = vrcp.pop 32.0
        %v1559 = vmul.f32 %v1557, %v1558
        %v1560 = vsub.f32 %v1551, %v1559
        %v1561 = vmul.f32 %v1560, %v1560
        %v1562 = vsel %vm1554, %v1561, 0.0
        %1563 = vadd.xlane.f32.xlu0 %v1562
        %v1564 = vpop.xlane.xlu0 %1563
        %v1565 = vmul.f32 %v1564, %v1558
        %v1566 = vadd.f32 %v1565, 1e-05
        %v1567 = vrsqrt.pop %v1566
        %v1568 = vmul.f32 %v1560, %v1567
        %v1570 = vlaneseq
        %v1571 = vshrl.u32 %v1570, 7
        %v1572 = vsub.s32 0, %v1571
        %v1573 = vrot.slane %v1552, %v1572
        %v1575 = vmul.f32 %v1568, %v1573
        %v1577 = vlaneseq
        %v1578 = vshrl.u32 %v1577, 7
        %v1579 = vsub.s32 0, %v1578
        %v1580 = vrot.slane %v1553, %v1579
        %v1582 = vadd.f32 %v1575, %v1580
        %1583 = vst.msk [vmem:[%s375] sm:$0xff] %vm1554, %v1582
      $region56: #{_lambda_.10} parent=47 // pred_fallthru
        _
      %p1584 = scmp.lt.s32.totalorder %s23, 1
      %s1585 = scalar_select %p1584, %s23, 1
      %p1586 = scmp.lt.s32.totalorder %s24, 0
      %s1587 = scalar_select %p1586, %s24, 0
      %s1588 = sadd.s32 %s1587, %s1585
      %s1589 = smul.addr %s1588, 8
      %s1590 = scalar_lea.vmem %s7, %s1589
      // Predicated region
      $region57: #{_lambda_.10} parent=47 // pred_check
        %p1591 = pneg %p225
      $region58: #{_lambda_.10} parent=47 // pred_check_branch
        %1593 = sbr.rel (%p1591) target = $region60
      $region59: #{_lambda_.10} parent=47 // pred_region
        _
      $region60: #{_lambda_.10} parent=47 // pred_fallthru
        _
    $region48: #{_lambda_.10} parent=5 // pred_fallthru
      _
    %p1594 = scmp.le.s32.totalorder 2, %s13
    // Predicated region
    $region61: #{_lambda_.10} parent=5 // pred_check
      %p1595 = pneg %p1594
    $region62: #{_lambda_.10} parent=5 // pred_check_branch
      %1597 = sbr.rel (%p1595) target = $region64
    $region63: #{_lambda_.10} parent=5 // pred_region
      %s1598 = ssub.s32 %s13, 2
      // Predicated region
      $region65: #{_lambda_.10} parent=63 // pred_check
        %p1599 = pneg %p231
      $region66: #{_lambda_.10} parent=63 // pred_check_branch
        %1601 = sbr.rel (%p1599) target = $region68
      $region67: #{_lambda_.10} parent=63 // pred_region
        %p1602 = scmp.lt.s32.totalorder %s26, 1
        %s1603 = scalar_select %p1602, %s26, 1
        %p1604 = scmp.lt.s32.totalorder %s27, 0
        %s1605 = scalar_select %p1604, %s27, 0
        %s1606 = sadd.s32 %s1605, %s1603
        %s1607 = smul.addr %s1606, 8
        %s1608 = scalar_lea.vmem %s7, %s1607
      $region68: #{_lambda_.10} parent=63 // pred_fallthru
        _
    $region64: #{_lambda_.10} parent=5 // pred_fallthru
      _
  $region6: #{_lambda_.10} parent=0 // loop_footer
    %s17 = sadd.s32 1, %s13
  $region7: #{_lambda_.10} parent=0 // loop_footer_branch
    %12 = sbr.rel target = $region3
  $region8: #{_lambda_.10} parent=0 // loop_exit
    _

</llo_original>
